<compile_context>
chip_gen: v7x
topology: tpu7x:2x2x1
jax: 0.10.0
libtpu: 0.0.40
codegen_flags: <defaults>
</compile_context>

<pallas_src>
import functools

import jax
import jax.numpy as jnp
from jax.experimental import pallas as pl
from jax.experimental.pallas import tpu as pltpu


_VMEM_LIMIT = 64 * 1024 * 1024  # explicit scoped-VMEM budget (fits v7x's 64 MiB)


def _pick_tile(dim, cap, mult):
    """Largest tile <= cap that divides dim, preferring multiples of `mult`.

    If dim <= cap the full dimension is used (a block equal to the full array
    dim always satisfies the (8,128) rule)."""
    if dim <= cap:
        return dim
    t = (cap // mult) * mult
    while t >= mult:
        if dim % t == 0:
            return t
        t -= mult
    for t in range(cap, 0, -1):          # fallback for odd sizes
        if dim % t == 0:
            return t
    return dim


# ----------------------------------------------------------------------------
# Tiled GEMM + bias:  (M, K) @ (K, N) + (1, N)
# Used for the hoisted LSTM input projections and the final vocab projection.
# ----------------------------------------------------------------------------
def _matmul_bias_kernel(x_ref, w_ref, b_ref, o_ref, acc_ref):
    k = pl.program_id(2)

    @pl.when(k == 0)
    def _():
        acc_ref[...] = jnp.zeros_like(acc_ref)

    acc_ref[...] += jnp.dot(x_ref[...], w_ref[...],
                            preferred_element_type=jnp.float32)

    @pl.when(k == pl.num_programs(2) - 1)
    def _():
        o_ref[...] = (acc_ref[...] + b_ref[...]).astype(o_ref.dtype)


def matmul_bias(x, w, b):
    """x:(M,K) f32/bf16, w:(K,N) bf16, b:(1,N) f32 -> (M,N) f32."""
    M, K = x.shape
    K2, N = w.shape
    assert K == K2
    tm = _pick_tile(M, 256, 8)
    tn = _pick_tile(N, 512, 128)   # lane-dense output tiles -> unmasked vst
    tk = _pick_tile(K, 512, 128)

    x = x.astype(jnp.bfloat16)     # bf16 MXU inputs, f32 accumulation
    w = w.astype(jnp.bfloat16)
    b = b.astype(jnp.float32).reshape(1, N)

    grid = (M // tm, N // tn, K // tk)
    return pl.pallas_call(
        _matmul_bias_kernel,
        out_shape=jax.ShapeDtypeStruct((M, N), jnp.float32),
        grid_spec=pltpu.PrefetchScalarGridSpec(
            num_scalar_prefetch=0,
            grid=grid,
            in_specs=[
                pl.BlockSpec((tm, tk), lambda i, j, k: (i, k)),
                pl.BlockSpec((tk, tn), lambda i, j, k: (k, j)),
                pl.BlockSpec((1, tn), lambda i, j, k: (0, j)),
            ],
            out_specs=pl.BlockSpec((tm, tn), lambda i, j, k: (i, j)),
            scratch_shapes=[pltpu.VMEM((tm, tn), jnp.float32)],
        ),
        compiler_params=pltpu.CompilerParams(
            dimension_semantics=("parallel", "parallel", "arbitrary"),
            vmem_limit_bytes=_VMEM_LIMIT),
    )(x, w, b)


# ----------------------------------------------------------------------------
# LSTM recurrence.  The input projection (x @ W_ih + b) is precomputed, so the
# kernel only does gates = gx_t + h @ W_hh per step.  Grid is
# (batch_tiles [parallel], time_chunks [arbitrary]); each grid step runs
# `time_chunk` unrolled timesteps with h/c carried in VMEM scratch.
# Gate order follows PyTorch: i, f, g, o.
# ----------------------------------------------------------------------------
def _lstm_scan_kernel(gx_ref, w_hh_ref, h0_ref, c0_ref,
                      out_ref, hN_ref, cN_ref, h_sc, c_sc, *, time_chunk):
    t = pl.program_id(1)

    @pl.when(t == 0)
    def _():
        h_sc[...] = h0_ref[...]
        c_sc[...] = c0_ref[...]

    H = h_sc.shape[-1]
    w_hh = w_hh_ref[...]          # (H, 4H) bf16, VMEM-resident across the grid
    h = h_sc[...]                 # (BT, H) f32
    c = c_sc[...]                 # (BT, H) f32

    for tt in range(time_chunk):  # static unroll: MXU/EUP/VPU interleave
        gates = gx_ref[:, tt, :] + jnp.dot(
            h.astype(w_hh.dtype), w_hh, preferred_element_type=jnp.float32)
        i = jax.nn.sigmoid(gates[:, 0 * H:1 * H])
        f = jax.nn.sigmoid(gates[:, 1 * H:2 * H])
        g = jnp.tanh(gates[:, 2 * H:3 * H])
        o = jax.nn.sigmoid(gates[:, 3 * H:4 * H])
        c = f * c + i * g
        h = o * jnp.tanh(c)
        out_ref[:, tt, :] = h     # batch-first output, lane-dense (H) stores

    h_sc[...] = h
    c_sc[...] = c

    @pl.when(t == pl.num_programs(1) - 1)
    def _():
        hN_ref[...] = h
        cN_ref[...] = c


def lstm_recurrence(gx, w_hh, h0, c0, *, batch_tile=None, time_chunk=None):
    """gx: (B, S, 4H) f32 precomputed input gates (incl. bias).
       w_hh: (H, 4H), h0/c0: (B, H).
       returns out (B, S, H) f32 [batch-first], hN (B, H), cN (B, H)."""
    B, S, G = gx.shape
    H = h0.shape[-1]
    assert G == 4 * H

    if batch_tile is None:
        # >=2 batch tiles when possible so v7x's two TensorCores both work.
        batch_tile = B // 2 if (B % 16 == 0) else B
    if time_chunk is None:
        time_chunk = 8 if (S % 8 == 0 and S > 8) else S
    assert B % batch_tile == 0 and S % time_chunk == 0

    grid = (B // batch_tile, S // time_chunk)
    kernel = functools.partial(_lstm_scan_kernel, time_chunk=time_chunk)

    out, hN, cN = pl.pallas_call(
        kernel,
        out_shape=(
            jax.ShapeDtypeStruct((B, S, H), jnp.float32),
            jax.ShapeDtypeStruct((B, H), jnp.float32),
            jax.ShapeDtypeStruct((B, H), jnp.float32),
        ),
        grid_spec=pltpu.PrefetchScalarGridSpec(
            num_scalar_prefetch=0,
            grid=grid,
            in_specs=[
                pl.BlockSpec((batch_tile, time_chunk, 4 * H),
                             lambda b, t: (b, t, 0)),
                pl.BlockSpec((H, 4 * H), lambda b, t: (0, 0)),
                pl.BlockSpec((batch_tile, H), lambda b, t: (b, 0)),
                pl.BlockSpec((batch_tile, H), lambda b, t: (b, 0)),
            ],
            out_specs=[
                pl.BlockSpec((batch_tile, time_chunk, H),
                             lambda b, t: (b, t, 0)),
                pl.BlockSpec((batch_tile, H), lambda b, t: (b, 0)),
                pl.BlockSpec((batch_tile, H), lambda b, t: (b, 0)),
            ],
            scratch_shapes=[
                pltpu.VMEM((batch_tile, H), jnp.float32),
                pltpu.VMEM((batch_tile, H), jnp.float32),
            ],
        ),
        compiler_params=pltpu.CompilerParams(
            dimension_semantics=("parallel", "arbitrary"),
            vmem_limit_bytes=_VMEM_LIMIT),
    )(gx, w_hh.astype(jnp.bfloat16), h0, c0)
    return out, hN, cN


# ----------------------------------------------------------------------------
# Full RNNLM forward
# ----------------------------------------------------------------------------
def rnnlm_forward(params, x_tokens, h0, c0):
    """
    x_tokens : (B, S) int32
    h0, c0   : (num_layers, B, H)
    returns (logits (B*S, V), (h (L,B,H), c (L,B,H)))
    """
    # Embedding lookup (glue in plain JAX). Dropout in eval mode == identity.
    emb = jnp.take(params["embed"], x_tokens, axis=0)      # (B, S, E) f32
    B, S, _ = emb.shape
    H = h0.shape[-1]
    num_layers = h0.shape[0]

    layer_in = emb                                          # batch-first always
    h_finals, c_finals = [], []
    for l in range(num_layers):
        feat = layer_in.shape[-1]
        # Hoisted input projection: one big GEMM over all B*S rows.
        gx = matmul_bias(layer_in.reshape(B * S, feat),
                         params["w_ih"][l], params["b"][l])  # (B*S, 4H) f32
        gx = gx.reshape(B, S, 4 * H)
        out, hN, cN = lstm_recurrence(gx, params["w_hh"][l], h0[l], c0[l])
        h_finals.append(hN)
        c_finals.append(cN)
        layer_in = out                                      # (B, S, H)

    # Final vocab projection on the flattened batch-first activations
    # (matches out.reshape(B*S, H) in the reference forward).
    logits = matmul_bias(layer_in.reshape(B * S, H),
                         params["linear_w"], params["linear_b"])

    h_out = jnp.stack(h_finals, axis=0)
    c_out = jnp.stack(c_finals, axis=0)
    return logits, (h_out, c_out)


# ----------------------------------------------------------------------------
# Deterministic parameter init (shapes from RNNLM.__init__).
# Weights stored pre-transposed ((in, 4H), (H, 4H), (H, V)) and in bf16 for the
# MXU; biases and LSTM state stay f32.  Gate order i, f, g, o; bias = b_ih+b_hh.
# ----------------------------------------------------------------------------
def init_params(key, vocab_size, embed_size, hidden_size, num_layers):
    keys = list(jax.random.split(key, 3 + 4 * num_layers))
    kstd = 1.0 / (hidden_size ** 0.5)

    embed = jax.random.normal(keys[0], (vocab_size, embed_size), jnp.float32)

    w_ih, w_hh, b = [], [], []
    for l in range(num_layers):
        in_sz = embed_size if l == 0 else hidden_size
        kw = keys[3 + 4 * l: 3 + 4 * (l + 1)]
        w_ih.append(jax.random.uniform(kw[0], (in_sz, 4 * hidden_size),
                                       jnp.float32, -kstd, kstd
                                       ).astype(jnp.bfloat16))
        w_hh.append(jax.random.uniform(kw[1], (hidden_size, 4 * hidden_size),
                                       jnp.float32, -kstd, kstd
                                       ).astype(jnp.bfloat16))
        b_ih = jax.random.uniform(kw[2], (4 * hidden_size,), jnp.float32,
                                  -kstd, kstd)
        b_hh = jax.random.uniform(kw[3], (4 * hidden_size,), jnp.float32,
                                  -kstd, kstd)
        b.append((b_ih + b_hh).reshape(1, 4 * hidden_size))

    linear_w = jax.random.uniform(keys[1], (hidden_size, vocab_size),
                                  jnp.float32, -kstd, kstd).astype(jnp.bfloat16)
    linear_b = jax.random.uniform(keys[2], (1, vocab_size), jnp.float32,
                                  -kstd, kstd)

    return {"embed": embed, "w_ih": w_ih, "w_hh": w_hh, "b": b,
            "linear_w": linear_w, "linear_b": linear_b}


if __name__ == "__main__":
    # Small but (8,128)-aligned shapes: B mult of 8, E/H/V mult of 128, so all
    # vector ops are full-vreg and gate slices start on 128-lane boundaries.
    VOCAB, EMBED, HIDDEN, LAYERS = 256, 128, 128, 2
    BATCH, SEQ = 8, 16

    key = jax.random.PRNGKey(0)
    kp, kx, kh, kc = jax.random.split(key, 4)

    params = init_params(kp, VOCAB, EMBED, HIDDEN, LAYERS)
    x_tokens = jax.random.randint(kx, (BATCH, SEQ), 0, VOCAB, jnp.int32)
    h0 = jax.random.normal(kh, (LAYERS, BATCH, HIDDEN), jnp.float32)
    c0 = jax.random.normal(kc, (LAYERS, BATCH, HIDDEN), jnp.float32)

    fwd = jax.jit(rnnlm_forward)
    logits, (h, c) = fwd(params, x_tokens, h0, c0)
    jax.block_until_ready((logits, h, c))

    assert logits.shape == (BATCH * SEQ, VOCAB)
    assert h.shape == (LAYERS, BATCH, HIDDEN)
    assert c.shape == (LAYERS, BATCH, HIDDEN)
    assert bool(jnp.all(jnp.isfinite(logits)))
    print("KERNEL_OK")
</pallas_src>

<mosaic_0001>
module attributes {stable_mosaic.version = 11 : i64} {
  func.func @_matmul_bias_kernel(%arg0: i32, %arg1: i32, %arg2: i32, %arg3: memref<128x128xbf16, #tpu.memory_space<vmem>>, %arg4: memref<128x512xbf16, #tpu.memory_space<vmem>>, %arg5: memref<1x512xf32, #tpu.memory_space<vmem>>, %arg6: memref<128x512xf32, #tpu.memory_space<vmem>>, %arg7: memref<128x512xf32, #tpu.memory_space<vmem>>) attributes {dimension_semantics = [#tpu.dimension_semantics<parallel>, #tpu.dimension_semantics<parallel>, #tpu.dimension_semantics<arbitrary>], iteration_bounds = array<i64: 1, 1, 1>, scalar_prefetch = 0 : i64, scratch_operands = 1 : i64, tpu.core_type = #tpu.core_type<tc>, window_params = [{transform_indices = @transform_0, window_bounds = array<i64: 128, 128>}, {transform_indices = @transform_1, window_bounds = array<i64: 128, 512>}, {transform_indices = @transform_2, window_bounds = array<i64: 1, 512>}, {transform_indices = @transform_3, window_bounds = array<i64: 128, 512>}]} {
    %c0_i32 = arith.constant 0 : i32
    %0 = arith.cmpi eq, %arg2, %c0_i32 : i32
    %1 = arith.extui %0 : i1 to i32
    %c0_i32_0 = arith.constant 0 : i32
    %2 = arith.cmpi ne, %1, %c0_i32_0 : i32
    scf.if %2 {
      %cst_10 = arith.constant 0.000000e+00 : f32
      %12 = vector.broadcast %cst_10 : f32 to vector<128x512xf32>
      %c0_11 = arith.constant 0 : index
      %c0_12 = arith.constant 0 : index
      %13 = vector.load %arg7[%c0_11, %c0_12] : memref<128x512xf32, #tpu.memory_space<vmem>>, vector<128x512xf32>
      tpu.vector_store %arg7[%c0_11, %c0_12], %12 {strides = array<i32>} : memref<128x512xf32, #tpu.memory_space<vmem>>, vector<128x512xf32>,
    } else {
    }
    %c0 = arith.constant 0 : index
    %c0_1 = arith.constant 0 : index
    %3 = vector.load %arg7[%c0, %c0_1] : memref<128x512xf32, #tpu.memory_space<vmem>>, vector<128x512xf32>
    %c0_2 = arith.constant 0 : index
    %c0_3 = arith.constant 0 : index
    %4 = vector.load %arg3[%c0_2, %c0_3] : memref<128x128xbf16, #tpu.memory_space<vmem>>, vector<128x128xbf16>
    %c0_4 = arith.constant 0 : index
    %c0_5 = arith.constant 0 : index
    %5 = vector.load %arg4[%c0_4, %c0_5] : memref<128x512xbf16, #tpu.memory_space<vmem>>, vector<128x512xbf16>
    %cst = arith.constant dense<0.000000e+00> : vector<128x512xf32>
    %6 = tpu.matmul %4, %5, %cst {dimension_numbers = #tpu.dot_dimension_numbers<[1], [0], [0], [1], [0, 0, 1, 1], [], []>} : vector<128x128xbf16>, vector<128x512xbf16>, vector<128x512xf32> -> vector<128x512xf32>
    %7 = arith.addf %3, %6 : vector<128x512xf32>
    %c0_6 = arith.constant 0 : index
    %c0_7 = arith.constant 0 : index
    %8 = vector.load %arg7[%c0_6, %c0_7] : memref<128x512xf32, #tpu.memory_space<vmem>>, vector<128x512xf32>
    tpu.vector_store %arg7[%c0_6, %c0_7], %7 {strides = array<i32>} : memref<128x512xf32, #tpu.memory_space<vmem>>, vector<128x512xf32>,
    %c0_i32_8 = arith.constant 0 : i32
    %9 = arith.cmpi eq, %arg2, %c0_i32_8 : i32
    %10 = arith.extui %9 : i1 to i32
    %c0_i32_9 = arith.constant 0 : i32
    %11 = arith.cmpi ne, %10, %c0_i32_9 : i32
    scf.if %11 {
      %c0_10 = arith.constant 0 : index
      %c0_11 = arith.constant 0 : index
      %12 = vector.load %arg7[%c0_10, %c0_11] : memref<128x512xf32, #tpu.memory_space<vmem>>, vector<128x512xf32>
      %c0_12 = arith.constant 0 : index
      %c0_13 = arith.constant 0 : index
      %13 = vector.load %arg5[%c0_12, %c0_13] : memref<1x512xf32, #tpu.memory_space<vmem>>, vector<1x512xf32>
      %14 = vector.broadcast %13 : vector<1x512xf32> to vector<128x512xf32>
      %15 = arith.addf %12, %14 : vector<128x512xf32>
      %c0_14 = arith.constant 0 : index
      %c0_15 = arith.constant 0 : index
      %16 = vector.load %arg6[%c0_14, %c0_15] : memref<128x512xf32, #tpu.memory_space<vmem>>, vector<128x512xf32>
      tpu.vector_store %arg6[%c0_14, %c0_15], %15 {strides = array<i32>} : memref<128x512xf32, #tpu.memory_space<vmem>>, vector<128x512xf32>,
    } else {
    }
    return
  }
  func.func @transform_0(%arg0: i32, %arg1: i32, %arg2: i32) -> (i32, i32) {
    %c0_i32 = arith.constant 0 : i32
    return %arg0, %arg2 : i32, i32
  }
  func.func @transform_1(%arg0: i32, %arg1: i32, %arg2: i32) -> (i32, i32) {
    %c0_i32 = arith.constant 0 : i32
    return %arg2, %arg1 : i32, i32
  }
  func.func @transform_2(%arg0: i32, %arg1: i32, %arg2: i32) -> (i32, i32) {
    %c0_i32 = arith.constant 0 : i32
    %c0_i32_0 = arith.constant 0 : i32
    return %c0_i32, %arg1 : i32, i32
  }
  func.func @transform_3(%arg0: i32, %arg1: i32, %arg2: i32) -> (i32, i32) {
    %c0_i32 = arith.constant 0 : i32
    return %arg0, %arg1 : i32, i32
  }
}

module attributes {stable_mosaic.version = 11 : i64} {
  func.func @_lstm_scan_kernel(%arg0: i32, %arg1: i32, %arg2: memref<8x8x512xf32, #tpu.memory_space<vmem>>, %arg3: memref<128x512xbf16, #tpu.memory_space<vmem>>, %arg4: memref<8x128xf32, #tpu.memory_space<vmem>>, %arg5: memref<8x128xf32, #tpu.memory_space<vmem>>, %arg6: memref<8x8x128xf32, #tpu.memory_space<vmem>>, %arg7: memref<8x128xf32, #tpu.memory_space<vmem>>, %arg8: memref<8x128xf32, #tpu.memory_space<vmem>>, %arg9: memref<8x128xf32, #tpu.memory_space<vmem>>, %arg10: memref<8x128xf32, #tpu.memory_space<vmem>>) attributes {dimension_semantics = [#tpu.dimension_semantics<parallel>, #tpu.dimension_semantics<arbitrary>], iteration_bounds = array<i64: 1, 2>, scalar_prefetch = 0 : i64, scratch_operands = 2 : i64, tpu.core_type = #tpu.core_type<tc>, window_params = [{transform_indices = @transform_0, window_bounds = array<i64: 8, 8, 512>}, {pipeline_mode = #tpu.pipeline_mode<synchronous>, transform_indices = @transform_1, window_bounds = array<i64: 128, 512>}, {transform_indices = @transform_2, window_bounds = array<i64: 8, 128>}, {transform_indices = @transform_3, window_bounds = array<i64: 8, 128>}, {transform_indices = @transform_4, window_bounds = array<i64: 8, 8, 128>}, {transform_indices = @transform_5, window_bounds = array<i64: 8, 128>}, {transform_indices = @transform_6, window_bounds = array<i64: 8, 128>}]} {
    %c0_i32 = arith.constant 0 : i32
    %0 = arith.cmpi eq, %arg1, %c0_i32 : i32
    %1 = arith.extui %0 : i1 to i32
    %c0_i32_0 = arith.constant 0 : i32
    %2 = arith.cmpi ne, %1, %c0_i32_0 : i32
    scf.if %2 {
      %c0_83 = arith.constant 0 : index
      %c0_84 = arith.constant 0 : index
      %275 = vector.load %arg4[%c0_83, %c0_84] : memref<8x128xf32, #tpu.memory_space<vmem>>, vector<8x128xf32>
      %c0_85 = arith.constant 0 : index
      %c0_86 = arith.constant 0 : index
      %276 = vector.load %arg9[%c0_85, %c0_86] : memref<8x128xf32, #tpu.memory_space<vmem>>, vector<8x128xf32>
      tpu.vector_store %arg9[%c0_85, %c0_86], %275 {strides = array<i32>} : memref<8x128xf32, #tpu.memory_space<vmem>>, vector<8x128xf32>,
      %c0_87 = arith.constant 0 : index
      %c0_88 = arith.constant 0 : index
      %277 = vector.load %arg5[%c0_87, %c0_88] : memref<8x128xf32, #tpu.memory_space<vmem>>, vector<8x128xf32>
      %c0_89 = arith.constant 0 : index
      %c0_90 = arith.constant 0 : index
      %278 = vector.load %arg10[%c0_89, %c0_90] : memref<8x128xf32, #tpu.memory_space<vmem>>, vector<8x128xf32>
      tpu.vector_store %arg10[%c0_89, %c0_90], %277 {strides = array<i32>} : memref<8x128xf32, #tpu.memory_space<vmem>>, vector<8x128xf32>,
    } else {
    }
    %c0 = arith.constant 0 : index
    %c0_1 = arith.constant 0 : index
    %3 = vector.load %arg3[%c0, %c0_1] : memref<128x512xbf16, #tpu.memory_space<vmem>>, vector<128x512xbf16>
    %c0_2 = arith.constant 0 : index
    %c0_3 = arith.constant 0 : index
    %4 = vector.load %arg9[%c0_2, %c0_3] : memref<8x128xf32, #tpu.memory_space<vmem>>, vector<8x128xf32>
    %c0_4 = arith.constant 0 : index
    %c0_5 = arith.constant 0 : index
    %5 = vector.load %arg10[%c0_4, %c0_5] : memref<8x128xf32, #tpu.memory_space<vmem>>, vector<8x128xf32>
    %c0_6 = arith.constant 0 : index
    %c0_7 = arith.constant 0 : index
    %c0_8 = arith.constant 0 : index
    %6 = vector.load %arg2[%c0_6, %c0_7, %c0_8] : memref<8x8x512xf32, #tpu.memory_space<vmem>>, vector<8x1x512xf32>
    %7 = vector.shape_cast %6 : vector<8x1x512xf32> to vector<8x512xf32>
    %8 = arith.truncf %4 : vector<8x128xf32> to vector<8x128xbf16>
    %cst = arith.constant dense<0.000000e+00> : vector<8x512xf32>
    %9 = tpu.matmul %8, %3, %cst {dimension_numbers = #tpu.dot_dimension_numbers<[1], [0], [0], [1], [0, 0, 1, 1], [], []>} : vector<8x128xbf16>, vector<128x512xbf16>, vector<8x512xf32> -> vector<8x512xf32>
    %10 = arith.addf %7, %9 : vector<8x512xf32>
    %11 = vector.extract_strided_slice %10 {offsets = [0, 0], sizes = [8, 128], strides = [1, 1]} : vector<8x512xf32> to vector<8x128xf32>
    %12 = arith.negf %11 : vector<8x128xf32>
    %13 = math.exp %12 : vector<8x128xf32>
    %cst_9 = arith.constant 1.000000e+00 : f32
    %14 = vector.broadcast %cst_9 : f32 to vector<8x128xf32>
    %15 = arith.addf %14, %13 : vector<8x128xf32>
    %16 = arith.divf %14, %15 : vector<8x128xf32>
    %17 = vector.extract_strided_slice %10 {offsets = [0, 128], sizes = [8, 128], strides = [1, 1]} : vector<8x512xf32> to vector<8x128xf32>
    %18 = arith.negf %17 : vector<8x128xf32>
    %19 = math.exp %18 : vector<8x128xf32>
    %cst_10 = arith.constant 1.000000e+00 : f32
    %20 = vector.broadcast %cst_10 : f32 to vector<8x128xf32>
    %21 = arith.addf %20, %19 : vector<8x128xf32>
    %22 = arith.divf %20, %21 : vector<8x128xf32>
    %23 = vector.extract_strided_slice %10 {offsets = [0, 256], sizes = [8, 128], strides = [1, 1]} : vector<8x512xf32> to vector<8x128xf32>
    %24 = math.tanh %23 : vector<8x128xf32>
    %25 = vector.extract_strided_slice %10 {offsets = [0, 384], sizes = [8, 128], strides = [1, 1]} : vector<8x512xf32> to vector<8x128xf32>
    %26 = arith.negf %25 : vector<8x128xf32>
    %27 = math.exp %26 : vector<8x128xf32>
    %cst_11 = arith.constant 1.000000e+00 : f32
    %28 = vector.broadcast %cst_11 : f32 to vector<8x128xf32>
    %29 = arith.addf %28, %27 : vector<8x128xf32>
    %30 = arith.divf %28, %29 : vector<8x128xf32>
    %31 = arith.mulf %22, %5 : vector<8x128xf32>
    %32 = arith.mulf %16, %24 : vector<8x128xf32>
    %33 = arith.addf %31, %32 : vector<8x128xf32>
    %34 = math.tanh %33 : vector<8x128xf32>
    %35 = arith.mulf %30, %34 : vector<8x128xf32>
    %c0_12 = arith.constant 0 : index
    %c0_13 = arith.constant 0 : index
    %c0_14 = arith.constant 0 : index
    %36 = vector.load %arg6[%c0_12, %c0_13, %c0_14] : memref<8x8x128xf32, #tpu.memory_space<vmem>>, vector<8x1x128xf32>
    %37 = vector.shape_cast %36 : vector<8x1x128xf32> to vector<8x128xf32>
    %38 = vector.shape_cast %35 : vector<8x128xf32> to vector<8x1x128xf32>
    tpu.vector_store %arg6[%c0_12, %c0_13, %c0_14], %38 {strides = array<i32>} : memref<8x8x128xf32, #tpu.memory_space<vmem>>, vector<8x1x128xf32>,
    %c0_15 = arith.constant 0 : index
    %c1 = arith.constant 1 : index
    %c0_16 = arith.constant 0 : index
    %39 = vector.load %arg2[%c0_15, %c1, %c0_16] : memref<8x8x512xf32, #tpu.memory_space<vmem>>, vector<8x1x512xf32>
    %40 = vector.shape_cast %39 : vector<8x1x512xf32> to vector<8x512xf32>
    %41 = arith.truncf %35 : vector<8x128xf32> to vector<8x128xbf16>
    %cst_17 = arith.constant dense<0.000000e+00> : vector<8x512xf32>
    %42 = tpu.matmul %41, %3, %cst_17 {dimension_numbers = #tpu.dot_dimension_numbers<[1], [0], [0], [1], [0, 0, 1, 1], [], []>} : vector<8x128xbf16>, vector<128x512xbf16>, vector<8x512xf32> -> vector<8x512xf32>
    %43 = arith.addf %40, %42 : vector<8x512xf32>
    %44 = vector.extract_strided_slice %43 {offsets = [0, 0], sizes = [8, 128], strides = [1, 1]} : vector<8x512xf32> to vector<8x128xf32>
    %45 = arith.negf %44 : vector<8x128xf32>
    %46 = math.exp %45 : vector<8x128xf32>
    %cst_18 = arith.constant 1.000000e+00 : f32
    %47 = vector.broadcast %cst_18 : f32 to vector<8x128xf32>
    %48 = arith.addf %47, %46 : vector<8x128xf32>
    %49 = arith.divf %47, %48 : vector<8x128xf32>
    %50 = vector.extract_strided_slice %43 {offsets = [0, 128], sizes = [8, 128], strides = [1, 1]} : vector<8x512xf32> to vector<8x128xf32>
    %51 = arith.negf %50 : vector<8x128xf32>
    %52 = math.exp %51 : vector<8x128xf32>
    %cst_19 = arith.constant 1.000000e+00 : f32
    %53 = vector.broadcast %cst_19 : f32 to vector<8x128xf32>
    %54 = arith.addf %53, %52 : vector<8x128xf32>
    %55 = arith.divf %53, %54 : vector<8x128xf32>
    %56 = vector.extract_strided_slice %43 {offsets = [0, 256], sizes = [8, 128], strides = [1, 1]} : vector<8x512xf32> to vector<8x128xf32>
    %57 = math.tanh %56 : vector<8x128xf32>
    %58 = vector.extract_strided_slice %43 {offsets = [0, 384], sizes = [8, 128], strides = [1, 1]} : vector<8x512xf32> to vector<8x128xf32>
    %59 = arith.negf %58 : vector<8x128xf32>
    %60 = math.exp %59 : vector<8x128xf32>
    %cst_20 = arith.constant 1.000000e+00 : f32
    %61 = vector.broadcast %cst_20 : f32 to vector<8x128xf32>
    %62 = arith.addf %61, %60 : vector<8x128xf32>
    %63 = arith.divf %61, %62 : vector<8x128xf32>
    %64 = arith.mulf %55, %33 : vector<8x128xf32>
    %65 = arith.mulf %49, %57 : vector<8x128xf32>
    %66 = arith.addf %64, %65 : vector<8x128xf32>
    %67 = math.tanh %66 : vector<8x128xf32>
    %68 = arith.mulf %63, %67 : vector<8x128xf32>
    %c0_21 = arith.constant 0 : index
    %c1_22 = arith.constant 1 : index
    %c0_23 = arith.constant 0 : index
    %69 = vector.load %arg6[%c0_21, %c1_22, %c0_23] : memref<8x8x128xf32, #tpu.memory_space<vmem>>, vector<8x1x128xf32>
    %70 = vector.shape_cast %69 : vector<8x1x128xf32> to vector<8x128xf32>
    %71 = vector.shape_cast %68 : vector<8x128xf32> to vector<8x1x128xf32>
    tpu.vector_store %arg6[%c0_21, %c1_22, %c0_23], %71 {strides = array<i32>} : memref<8x8x128xf32, #tpu.memory_space<vmem>>, vector<8x1x128xf32>,
    %c0_24 = arith.constant 0 : index
    %c2 = arith.constant 2 : index
    %c0_25 = arith.constant 0 : index
    %72 = vector.load %arg2[%c0_24, %c2, %c0_25] : memref<8x8x512xf32, #tpu.memory_space<vmem>>, vector<8x1x512xf32>
    %73 = vector.shape_cast %72 : vector<8x1x512xf32> to vector<8x512xf32>
    %74 = arith.truncf %68 : vector<8x128xf32> to vector<8x128xbf16>
    %cst_26 = arith.constant dense<0.000000e+00> : vector<8x512xf32>
    %75 = tpu.matmul %74, %3, %cst_26 {dimension_numbers = #tpu.dot_dimension_numbers<[1], [0], [0], [1], [0, 0, 1, 1], [], []>} : vector<8x128xbf16>, vector<128x512xbf16>, vector<8x512xf32> -> vector<8x512xf32>
    %76 = arith.addf %73, %75 : vector<8x512xf32>
    %77 = vector.extract_strided_slice %76 {offsets = [0, 0], sizes = [8, 128], strides = [1, 1]} : vector<8x512xf32> to vector<8x128xf32>
    %78 = arith.negf %77 : vector<8x128xf32>
    %79 = math.exp %78 : vector<8x128xf32>
    %cst_27 = arith.constant 1.000000e+00 : f32
    %80 = vector.broadcast %cst_27 : f32 to vector<8x128xf32>
    %81 = arith.addf %80, %79 : vector<8x128xf32>
    %82 = arith.divf %80, %81 : vector<8x128xf32>
    %83 = vector.extract_strided_slice %76 {offsets = [0, 128], sizes = [8, 128], strides = [1, 1]} : vector<8x512xf32> to vector<8x128xf32>
    %84 = arith.negf %83 : vector<8x128xf32>
    %85 = math.exp %84 : vector<8x128xf32>
    %cst_28 = arith.constant 1.000000e+00 : f32
    %86 = vector.broadcast %cst_28 : f32 to vector<8x128xf32>
    %87 = arith.addf %86, %85 : vector<8x128xf32>
    %88 = arith.divf %86, %87 : vector<8x128xf32>
    %89 = vector.extract_strided_slice %76 {offsets = [0, 256], sizes = [8, 128], strides = [1, 1]} : vector<8x512xf32> to vector<8x128xf32>
    %90 = math.tanh %89 : vector<8x128xf32>
    %91 = vector.extract_strided_slice %76 {offsets = [0, 384], sizes = [8, 128], strides = [1, 1]} : vector<8x512xf32> to vector<8x128xf32>
    %92 = arith.negf %91 : vector<8x128xf32>
    %93 = math.exp %92 : vector<8x128xf32>
    %cst_29 = arith.constant 1.000000e+00 : f32
    %94 = vector.broadcast %cst_29 : f32 to vector<8x128xf32>
    %95 = arith.addf %94, %93 : vector<8x128xf32>
    %96 = arith.divf %94, %95 : vector<8x128xf32>
    %97 = arith.mulf %88, %66 : vector<8x128xf32>
    %98 = arith.mulf %82, %90 : vector<8x128xf32>
    %99 = arith.addf %97, %98 : vector<8x128xf32>
    %100 = math.tanh %99 : vector<8x128xf32>
    %101 = arith.mulf %96, %100 : vector<8x128xf32>
    %c0_30 = arith.constant 0 : index
    %c2_31 = arith.constant 2 : index
    %c0_32 = arith.constant 0 : index
    %102 = vector.load %arg6[%c0_30, %c2_31, %c0_32] : memref<8x8x128xf32, #tpu.memory_space<vmem>>, vector<8x1x128xf32>
    %103 = vector.shape_cast %102 : vector<8x1x128xf32> to vector<8x128xf32>
    %104 = vector.shape_cast %101 : vector<8x128xf32> to vector<8x1x128xf32>
    tpu.vector_store %arg6[%c0_30, %c2_31, %c0_32], %104 {strides = array<i32>} : memref<8x8x128xf32, #tpu.memory_space<vmem>>, vector<8x1x128xf32>,
    %c0_33 = arith.constant 0 : index
    %c3 = arith.constant 3 : index
    %c0_34 = arith.constant 0 : index
    %105 = vector.load %arg2[%c0_33, %c3, %c0_34] : memref<8x8x512xf32, #tpu.memory_space<vmem>>, vector<8x1x512xf32>
    %106 = vector.shape_cast %105 : vector<8x1x512xf32> to vector<8x512xf32>
    %107 = arith.truncf %101 : vector<8x128xf32> to vector<8x128xbf16>
    %cst_35 = arith.constant dense<0.000000e+00> : vector<8x512xf32>
    %108 = tpu.matmul %107, %3, %cst_35 {dimension_numbers = #tpu.dot_dimension_numbers<[1], [0], [0], [1], [0, 0, 1, 1], [], []>} : vector<8x128xbf16>, vector<128x512xbf16>, vector<8x512xf32> -> vector<8x512xf32>
    %109 = arith.addf %106, %108 : vector<8x512xf32>
    %110 = vector.extract_strided_slice %109 {offsets = [0, 0], sizes = [8, 128], strides = [1, 1]} : vector<8x512xf32> to vector<8x128xf32>
    %111 = arith.negf %110 : vector<8x128xf32>
    %112 = math.exp %111 : vector<8x128xf32>
    %cst_36 = arith.constant 1.000000e+00 : f32
    %113 = vector.broadcast %cst_36 : f32 to vector<8x128xf32>
    %114 = arith.addf %113, %112 : vector<8x128xf32>
    %115 = arith.divf %113, %114 : vector<8x128xf32>
    %116 = vector.extract_strided_slice %109 {offsets = [0, 128], sizes = [8, 128], strides = [1, 1]} : vector<8x512xf32> to vector<8x128xf32>
    %117 = arith.negf %116 : vector<8x128xf32>
    %118 = math.exp %117 : vector<8x128xf32>
    %cst_37 = arith.constant 1.000000e+00 : f32
    %119 = vector.broadcast %cst_37 : f32 to vector<8x128xf32>
    %120 = arith.addf %119, %118 : vector<8x128xf32>
    %121 = arith.divf %119, %120 : vector<8x128xf32>
    %122 = vector.extract_strided_slice %109 {offsets = [0, 256], sizes = [8, 128], strides = [1, 1]} : vector<8x512xf32> to vector<8x128xf32>
    %123 = math.tanh %122 : vector<8x128xf32>
    %124 = vector.extract_strided_slice %109 {offsets = [0, 384], sizes = [8, 128], strides = [1, 1]} : vector<8x512xf32> to vector<8x128xf32>
    %125 = arith.negf %124 : vector<8x128xf32>
    %126 = math.exp %125 : vector<8x128xf32>
    %cst_38 = arith.constant 1.000000e+00 : f32
    %127 = vector.broadcast %cst_38 : f32 to vector<8x128xf32>
    %128 = arith.addf %127, %126 : vector<8x128xf32>
    %129 = arith.divf %127, %128 : vector<8x128xf32>
    %130 = arith.mulf %121, %99 : vector<8x128xf32>
    %131 = arith.mulf %115, %123 : vector<8x128xf32>
    %132 = arith.addf %130, %131 : vector<8x128xf32>
    %133 = math.tanh %132 : vector<8x128xf32>
    %134 = arith.mulf %129, %133 : vector<8x128xf32>
    %c0_39 = arith.constant 0 : index
    %c3_40 = arith.constant 3 : index
    %c0_41 = arith.constant 0 : index
    %135 = vector.load %arg6[%c0_39, %c3_40, %c0_41] : memref<8x8x128xf32, #tpu.memory_space<vmem>>, vector<8x1x128xf32>
    %136 = vector.shape_cast %135 : vector<8x1x128xf32> to vector<8x128xf32>
    %137 = vector.shape_cast %134 : vector<8x128xf32> to vector<8x1x128xf32>
    tpu.vector_store %arg6[%c0_39, %c3_40, %c0_41], %137 {strides = array<i32>} : memref<8x8x128xf32, #tpu.memory_space<vmem>>, vector<8x1x128xf32>,
    %c0_42 = arith.constant 0 : index
    %c4 = arith.constant 4 : index
    %c0_43 = arith.constant 0 : index
    %138 = vector.load %arg2[%c0_42, %c4, %c0_43] : memref<8x8x512xf32, #tpu.memory_space<vmem>>, vector<8x1x512xf32>
    %139 = vector.shape_cast %138 : vector<8x1x512xf32> to vector<8x512xf32>
    %140 = arith.truncf %134 : vector<8x128xf32> to vector<8x128xbf16>
    %cst_44 = arith.constant dense<0.000000e+00> : vector<8x512xf32>
    %141 = tpu.matmul %140, %3, %cst_44 {dimension_numbers = #tpu.dot_dimension_numbers<[1], [0], [0], [1], [0, 0, 1, 1], [], []>} : vector<8x128xbf16>, vector<128x512xbf16>, vector<8x512xf32> -> vector<8x512xf32>
    %142 = arith.addf %139, %141 : vector<8x512xf32>
    %143 = vector.extract_strided_slice %142 {offsets = [0, 0], sizes = [8, 128], strides = [1, 1]} : vector<8x512xf32> to vector<8x128xf32>
    %144 = arith.negf %143 : vector<8x128xf32>
    %145 = math.exp %144 : vector<8x128xf32>
    %cst_45 = arith.constant 1.000000e+00 : f32
    %146 = vector.broadcast %cst_45 : f32 to vector<8x128xf32>
    %147 = arith.addf %146, %145 : vector<8x128xf32>
    %148 = arith.divf %146, %147 : vector<8x128xf32>
    %149 = vector.extract_strided_slice %142 {offsets = [0, 128], sizes = [8, 128], strides = [1, 1]} : vector<8x512xf32> to vector<8x128xf32>
    %150 = arith.negf %149 : vector<8x128xf32>
    %151 = math.exp %150 : vector<8x128xf32>
    %cst_46 = arith.constant 1.000000e+00 : f32
    %152 = vector.broadcast %cst_46 : f32 to vector<8x128xf32>
    %153 = arith.addf %152, %151 : vector<8x128xf32>
    %154 = arith.divf %152, %153 : vector<8x128xf32>
    %155 = vector.extract_strided_slice %142 {offsets = [0, 256], sizes = [8, 128], strides = [1, 1]} : vector<8x512xf32> to vector<8x128xf32>
    %156 = math.tanh %155 : vector<8x128xf32>
    %157 = vector.extract_strided_slice %142 {offsets = [0, 384], sizes = [8, 128], strides = [1, 1]} : vector<8x512xf32> to vector<8x128xf32>
    %158 = arith.negf %157 : vector<8x128xf32>
    %159 = math.exp %158 : vector<8x128xf32>
    %cst_47 = arith.constant 1.000000e+00 : f32
    %160 = vector.broadcast %cst_47 : f32 to vector<8x128xf32>
    %161 = arith.addf %160, %159 : vector<8x128xf32>
    %162 = arith.divf %160, %161 : vector<8x128xf32>
    %163 = arith.mulf %154, %132 : vector<8x128xf32>
    %164 = arith.mulf %148, %156 : vector<8x128xf32>
    %165 = arith.addf %163, %164 : vector<8x128xf32>
    %166 = math.tanh %165 : vector<8x128xf32>
    %167 = arith.mulf %162, %166 : vector<8x128xf32>
    %c0_48 = arith.constant 0 : index
    %c4_49 = arith.constant 4 : index
    %c0_50 = arith.constant 0 : index
    %168 = vector.load %arg6[%c0_48, %c4_49, %c0_50] : memref<8x8x128xf32, #tpu.memory_space<vmem>>, vector<8x1x128xf32>
    %169 = vector.shape_cast %168 : vector<8x1x128xf32> to vector<8x128xf32>
    %170 = vector.shape_cast %167 : vector<8x128xf32> to vector<8x1x128xf32>
    tpu.vector_store %arg6[%c0_48, %c4_49, %c0_50], %170 {strides = array<i32>} : memref<8x8x128xf32, #tpu.memory_space<vmem>>, vector<8x1x128xf32>,
    %c0_51 = arith.constant 0 : index
    %c5 = arith.constant 5 : index
    %c0_52 = arith.constant 0 : index
    %171 = vector.load %arg2[%c0_51, %c5, %c0_52] : memref<8x8x512xf32, #tpu.memory_space<vmem>>, vector<8x1x512xf32>
    %172 = vector.shape_cast %171 : vector<8x1x512xf32> to vector<8x512xf32>
    %173 = arith.truncf %167 : vector<8x128xf32> to vector<8x128xbf16>
    %cst_53 = arith.constant dense<0.000000e+00> : vector<8x512xf32>
    %174 = tpu.matmul %173, %3, %cst_53 {dimension_numbers = #tpu.dot_dimension_numbers<[1], [0], [0], [1], [0, 0, 1, 1], [], []>} : vector<8x128xbf16>, vector<128x512xbf16>, vector<8x512xf32> -> vector<8x512xf32>
    %175 = arith.addf %172, %174 : vector<8x512xf32>
    %176 = vector.extract_strided_slice %175 {offsets = [0, 0], sizes = [8, 128], strides = [1, 1]} : vector<8x512xf32> to vector<8x128xf32>
    %177 = arith.negf %176 : vector<8x128xf32>
    %178 = math.exp %177 : vector<8x128xf32>
    %cst_54 = arith.constant 1.000000e+00 : f32
    %179 = vector.broadcast %cst_54 : f32 to vector<8x128xf32>
    %180 = arith.addf %179, %178 : vector<8x128xf32>
    %181 = arith.divf %179, %180 : vector<8x128xf32>
    %182 = vector.extract_strided_slice %175 {offsets = [0, 128], sizes = [8, 128], strides = [1, 1]} : vector<8x512xf32> to vector<8x128xf32>
    %183 = arith.negf %182 : vector<8x128xf32>
    %184 = math.exp %183 : vector<8x128xf32>
    %cst_55 = arith.constant 1.000000e+00 : f32
    %185 = vector.broadcast %cst_55 : f32 to vector<8x128xf32>
    %186 = arith.addf %185, %184 : vector<8x128xf32>
    %187 = arith.divf %185, %186 : vector<8x128xf32>
    %188 = vector.extract_strided_slice %175 {offsets = [0, 256], sizes = [8, 128], strides = [1, 1]} : vector<8x512xf32> to vector<8x128xf32>
    %189 = math.tanh %188 : vector<8x128xf32>
    %190 = vector.extract_strided_slice %175 {offsets = [0, 384], sizes = [8, 128], strides = [1, 1]} : vector<8x512xf32> to vector<8x128xf32>
    %191 = arith.negf %190 : vector<8x128xf32>
    %192 = math.exp %191 : vector<8x128xf32>
    %cst_56 = arith.constant 1.000000e+00 : f32
    %193 = vector.broadcast %cst_56 : f32 to vector<8x128xf32>
    %194 = arith.addf %193, %192 : vector<8x128xf32>
    %195 = arith.divf %193, %194 : vector<8x128xf32>
    %196 = arith.mulf %187, %165 : vector<8x128xf32>
    %197 = arith.mulf %181, %189 : vector<8x128xf32>
    %198 = arith.addf %196, %197 : vector<8x128xf32>
    %199 = math.tanh %198 : vector<8x128xf32>
    %200 = arith.mulf %195, %199 : vector<8x128xf32>
    %c0_57 = arith.constant 0 : index
    %c5_58 = arith.constant 5 : index
    %c0_59 = arith.constant 0 : index
    %201 = vector.load %arg6[%c0_57, %c5_58, %c0_59] : memref<8x8x128xf32, #tpu.memory_space<vmem>>, vector<8x1x128xf32>
    %202 = vector.shape_cast %201 : vector<8x1x128xf32> to vector<8x128xf32>
    %203 = vector.shape_cast %200 : vector<8x128xf32> to vector<8x1x128xf32>
    tpu.vector_store %arg6[%c0_57, %c5_58, %c0_59], %203 {strides = array<i32>} : memref<8x8x128xf32, #tpu.memory_space<vmem>>, vector<8x1x128xf32>,
    %c0_60 = arith.constant 0 : index
    %c6 = arith.constant 6 : index
    %c0_61 = arith.constant 0 : index
    %204 = vector.load %arg2[%c0_60, %c6, %c0_61] : memref<8x8x512xf32, #tpu.memory_space<vmem>>, vector<8x1x512xf32>
    %205 = vector.shape_cast %204 : vector<8x1x512xf32> to vector<8x512xf32>
    %206 = arith.truncf %200 : vector<8x128xf32> to vector<8x128xbf16>
    %cst_62 = arith.constant dense<0.000000e+00> : vector<8x512xf32>
    %207 = tpu.matmul %206, %3, %cst_62 {dimension_numbers = #tpu.dot_dimension_numbers<[1], [0], [0], [1], [0, 0, 1, 1], [], []>} : vector<8x128xbf16>, vector<128x512xbf16>, vector<8x512xf32> -> vector<8x512xf32>
    %208 = arith.addf %205, %207 : vector<8x512xf32>
    %209 = vector.extract_strided_slice %208 {offsets = [0, 0], sizes = [8, 128], strides = [1, 1]} : vector<8x512xf32> to vector<8x128xf32>
    %210 = arith.negf %209 : vector<8x128xf32>
    %211 = math.exp %210 : vector<8x128xf32>
    %cst_63 = arith.constant 1.000000e+00 : f32
    %212 = vector.broadcast %cst_63 : f32 to vector<8x128xf32>
    %213 = arith.addf %212, %211 : vector<8x128xf32>
    %214 = arith.divf %212, %213 : vector<8x128xf32>
    %215 = vector.extract_strided_slice %208 {offsets = [0, 128], sizes = [8, 128], strides = [1, 1]} : vector<8x512xf32> to vector<8x128xf32>
    %216 = arith.negf %215 : vector<8x128xf32>
    %217 = math.exp %216 : vector<8x128xf32>
    %cst_64 = arith.constant 1.000000e+00 : f32
    %218 = vector.broadcast %cst_64 : f32 to vector<8x128xf32>
    %219 = arith.addf %218, %217 : vector<8x128xf32>
    %220 = arith.divf %218, %219 : vector<8x128xf32>
    %221 = vector.extract_strided_slice %208 {offsets = [0, 256], sizes = [8, 128], strides = [1, 1]} : vector<8x512xf32> to vector<8x128xf32>
    %222 = math.tanh %221 : vector<8x128xf32>
    %223 = vector.extract_strided_slice %208 {offsets = [0, 384], sizes = [8, 128], strides = [1, 1]} : vector<8x512xf32> to vector<8x128xf32>
    %224 = arith.negf %223 : vector<8x128xf32>
    %225 = math.exp %224 : vector<8x128xf32>
    %cst_65 = arith.constant 1.000000e+00 : f32
    %226 = vector.broadcast %cst_65 : f32 to vector<8x128xf32>
    %227 = arith.addf %226, %225 : vector<8x128xf32>
    %228 = arith.divf %226, %227 : vector<8x128xf32>
    %229 = arith.mulf %220, %198 : vector<8x128xf32>
    %230 = arith.mulf %214, %222 : vector<8x128xf32>
    %231 = arith.addf %229, %230 : vector<8x128xf32>
    %232 = math.tanh %231 : vector<8x128xf32>
    %233 = arith.mulf %228, %232 : vector<8x128xf32>
    %c0_66 = arith.constant 0 : index
    %c6_67 = arith.constant 6 : index
    %c0_68 = arith.constant 0 : index
    %234 = vector.load %arg6[%c0_66, %c6_67, %c0_68] : memref<8x8x128xf32, #tpu.memory_space<vmem>>, vector<8x1x128xf32>
    %235 = vector.shape_cast %234 : vector<8x1x128xf32> to vector<8x128xf32>
    %236 = vector.shape_cast %233 : vector<8x128xf32> to vector<8x1x128xf32>
    tpu.vector_store %arg6[%c0_66, %c6_67, %c0_68], %236 {strides = array<i32>} : memref<8x8x128xf32, #tpu.memory_space<vmem>>, vector<8x1x128xf32>,
    %c0_69 = arith.constant 0 : index
    %c7 = arith.constant 7 : index
    %c0_70 = arith.constant 0 : index
    %237 = vector.load %arg2[%c0_69, %c7, %c0_70] : memref<8x8x512xf32, #tpu.memory_space<vmem>>, vector<8x1x512xf32>
    %238 = vector.shape_cast %237 : vector<8x1x512xf32> to vector<8x512xf32>
    %239 = arith.truncf %233 : vector<8x128xf32> to vector<8x128xbf16>
    %cst_71 = arith.constant dense<0.000000e+00> : vector<8x512xf32>
    %240 = tpu.matmul %239, %3, %cst_71 {dimension_numbers = #tpu.dot_dimension_numbers<[1], [0], [0], [1], [0, 0, 1, 1], [], []>} : vector<8x128xbf16>, vector<128x512xbf16>, vector<8x512xf32> -> vector<8x512xf32>
    %241 = arith.addf %238, %240 : vector<8x512xf32>
    %242 = vector.extract_strided_slice %241 {offsets = [0, 0], sizes = [8, 128], strides = [1, 1]} : vector<8x512xf32> to vector<8x128xf32>
    %243 = arith.negf %242 : vector<8x128xf32>
    %244 = math.exp %243 : vector<8x128xf32>
    %cst_72 = arith.constant 1.000000e+00 : f32
    %245 = vector.broadcast %cst_72 : f32 to vector<8x128xf32>
    %246 = arith.addf %245, %244 : vector<8x128xf32>
    %247 = arith.divf %245, %246 : vector<8x128xf32>
    %248 = vector.extract_strided_slice %241 {offsets = [0, 128], sizes = [8, 128], strides = [1, 1]} : vector<8x512xf32> to vector<8x128xf32>
    %249 = arith.negf %248 : vector<8x128xf32>
    %250 = math.exp %249 : vector<8x128xf32>
    %cst_73 = arith.constant 1.000000e+00 : f32
    %251 = vector.broadcast %cst_73 : f32 to vector<8x128xf32>
    %252 = arith.addf %251, %250 : vector<8x128xf32>
    %253 = arith.divf %251, %252 : vector<8x128xf32>
    %254 = vector.extract_strided_slice %241 {offsets = [0, 256], sizes = [8, 128], strides = [1, 1]} : vector<8x512xf32> to vector<8x128xf32>
    %255 = math.tanh %254 : vector<8x128xf32>
    %256 = vector.extract_strided_slice %241 {offsets = [0, 384], sizes = [8, 128], strides = [1, 1]} : vector<8x512xf32> to vector<8x128xf32>
    %257 = arith.negf %256 : vector<8x128xf32>
    %258 = math.exp %257 : vector<8x128xf32>
    %cst_74 = arith.constant 1.000000e+00 : f32
    %259 = vector.broadcast %cst_74 : f32 to vector<8x128xf32>
    %260 = arith.addf %259, %258 : vector<8x128xf32>
    %261 = arith.divf %259, %260 : vector<8x128xf32>
    %262 = arith.mulf %253, %231 : vector<8x128xf32>
    %263 = arith.mulf %247, %255 : vector<8x128xf32>
    %264 = arith.addf %262, %263 : vector<8x128xf32>
    %265 = math.tanh %264 : vector<8x128xf32>
    %266 = arith.mulf %261, %265 : vector<8x128xf32>
    %c0_75 = arith.constant 0 : index
    %c7_76 = arith.constant 7 : index
    %c0_77 = arith.constant 0 : index
    %267 = vector.load %arg6[%c0_75, %c7_76, %c0_77] : memref<8x8x128xf32, #tpu.memory_space<vmem>>, vector<8x1x128xf32>
    %268 = vector.shape_cast %267 : vector<8x1x128xf32> to vector<8x128xf32>
    %269 = vector.shape_cast %266 : vector<8x128xf32> to vector<8x1x128xf32>
    tpu.vector_store %arg6[%c0_75, %c7_76, %c0_77], %269 {strides = array<i32>} : memref<8x8x128xf32, #tpu.memory_space<vmem>>, vector<8x1x128xf32>,
    %c0_78 = arith.constant 0 : index
    %c0_79 = arith.constant 0 : index
    %270 = vector.load %arg9[%c0_78, %c0_79] : memref<8x128xf32, #tpu.memory_space<vmem>>, vector<8x128xf32>
    tpu.vector_store %arg9[%c0_78, %c0_79], %266 {strides = array<i32>} : memref<8x128xf32, #tpu.memory_space<vmem>>, vector<8x128xf32>,
    %c0_80 = arith.constant 0 : index
    %c0_81 = arith.constant 0 : index
    %271 = vector.load %arg10[%c0_80, %c0_81] : memref<8x128xf32, #tpu.memory_space<vmem>>, vector<8x128xf32>
    tpu.vector_store %arg10[%c0_80, %c0_81], %264 {strides = array<i32>} : memref<8x128xf32, #tpu.memory_space<vmem>>, vector<8x128xf32>,
    %c1_i32 = arith.constant 1 : i32
    %272 = arith.cmpi eq, %arg1, %c1_i32 : i32
    %273 = arith.extui %272 : i1 to i32
    %c0_i32_82 = arith.constant 0 : i32
    %274 = arith.cmpi ne, %273, %c0_i32_82 : i32
    scf.if %274 {
      %c0_83 = arith.constant 0 : index
      %c0_84 = arith.constant 0 : index
      %275 = vector.load %arg7[%c0_83, %c0_84] : memref<8x128xf32, #tpu.memory_space<vmem>>, vector<8x128xf32>
      tpu.vector_store %arg7[%c0_83, %c0_84], %266 {strides = array<i32>} : memref<8x128xf32, #tpu.memory_space<vmem>>, vector<8x128xf32>,
      %c0_85 = arith.constant 0 : index
      %c0_86 = arith.constant 0 : index
      %276 = vector.load %arg8[%c0_85, %c0_86] : memref<8x128xf32, #tpu.memory_space<vmem>>, vector<8x128xf32>
      tpu.vector_store %arg8[%c0_85, %c0_86], %264 {strides = array<i32>} : memref<8x128xf32, #tpu.memory_space<vmem>>, vector<8x128xf32>,
    } else {
    }
    return
  }
  func.func @transform_0(%arg0: i32, %arg1: i32) -> (i32, i32, i32) {
    %c0_i32 = arith.constant 0 : i32
    %c0_i32_0 = arith.constant 0 : i32
    return %arg0, %arg1, %c0_i32 : i32, i32, i32
  }
  func.func @transform_1(%arg0: i32, %arg1: i32) -> (i32, i32) {
    %c0_i32 = arith.constant 0 : i32
    %c0_i32_0 = arith.constant 0 : i32
    %c0_i32_1 = arith.constant 0 : i32
    return %c0_i32, %c0_i32_0 : i32, i32
  }
  func.func @transform_2(%arg0: i32, %arg1: i32) -> (i32, i32) {
    %c0_i32 = arith.constant 0 : i32
    %c0_i32_0 = arith.constant 0 : i32
    return %arg0, %c0_i32 : i32, i32
  }
  func.func @transform_3(%arg0: i32, %arg1: i32) -> (i32, i32) {
    %c0_i32 = arith.constant 0 : i32
    %c0_i32_0 = arith.constant 0 : i32
    return %arg0, %c0_i32 : i32, i32
  }
  func.func @transform_4(%arg0: i32, %arg1: i32) -> (i32, i32, i32) {
    %c0_i32 = arith.constant 0 : i32
    %c0_i32_0 = arith.constant 0 : i32
    return %arg0, %arg1, %c0_i32 : i32, i32, i32
  }
  func.func @transform_5(%arg0: i32, %arg1: i32) -> (i32, i32) {
    %c0_i32 = arith.constant 0 : i32
    %c0_i32_0 = arith.constant 0 : i32
    return %arg0, %c0_i32 : i32, i32
  }
  func.func @transform_6(%arg0: i32, %arg1: i32) -> (i32, i32) {
    %c0_i32 = arith.constant 0 : i32
    %c0_i32_0 = arith.constant 0 : i32
    return %arg0, %c0_i32 : i32, i32
  }
}

module attributes {stable_mosaic.version = 11 : i64} {
  func.func @_matmul_bias_kernel(%arg0: i32, %arg1: i32, %arg2: i32, %arg3: memref<128x128xbf16, #tpu.memory_space<vmem>>, %arg4: memref<128x256xbf16, #tpu.memory_space<vmem>>, %arg5: memref<1x256xf32, #tpu.memory_space<vmem>>, %arg6: memref<128x256xf32, #tpu.memory_space<vmem>>, %arg7: memref<128x256xf32, #tpu.memory_space<vmem>>) attributes {dimension_semantics = [#tpu.dimension_semantics<parallel>, #tpu.dimension_semantics<parallel>, #tpu.dimension_semantics<arbitrary>], iteration_bounds = array<i64: 1, 1, 1>, scalar_prefetch = 0 : i64, scratch_operands = 1 : i64, tpu.core_type = #tpu.core_type<tc>, window_params = [{transform_indices = @transform_0, window_bounds = array<i64: 128, 128>}, {transform_indices = @transform_1, window_bounds = array<i64: 128, 256>}, {transform_indices = @transform_2, window_bounds = array<i64: 1, 256>}, {transform_indices = @transform_3, window_bounds = array<i64: 128, 256>}]} {
    %c0_i32 = arith.constant 0 : i32
    %0 = arith.cmpi eq, %arg2, %c0_i32 : i32
    %1 = arith.extui %0 : i1 to i32
    %c0_i32_0 = arith.constant 0 : i32
    %2 = arith.cmpi ne, %1, %c0_i32_0 : i32
    scf.if %2 {
      %cst_10 = arith.constant 0.000000e+00 : f32
      %12 = vector.broadcast %cst_10 : f32 to vector<128x256xf32>
      %c0_11 = arith.constant 0 : index
      %c0_12 = arith.constant 0 : index
      %13 = vector.load %arg7[%c0_11, %c0_12] : memref<128x256xf32, #tpu.memory_space<vmem>>, vector<128x256xf32>
      tpu.vector_store %arg7[%c0_11, %c0_12], %12 {strides = array<i32>} : memref<128x256xf32, #tpu.memory_space<vmem>>, vector<128x256xf32>,
    } else {
    }
    %c0 = arith.constant 0 : index
    %c0_1 = arith.constant 0 : index
    %3 = vector.load %arg7[%c0, %c0_1] : memref<128x256xf32, #tpu.memory_space<vmem>>, vector<128x256xf32>
    %c0_2 = arith.constant 0 : index
    %c0_3 = arith.constant 0 : index
    %4 = vector.load %arg3[%c0_2, %c0_3] : memref<128x128xbf16, #tpu.memory_space<vmem>>, vector<128x128xbf16>
    %c0_4 = arith.constant 0 : index
    %c0_5 = arith.constant 0 : index
    %5 = vector.load %arg4[%c0_4, %c0_5] : memref<128x256xbf16, #tpu.memory_space<vmem>>, vector<128x256xbf16>
    %cst = arith.constant dense<0.000000e+00> : vector<128x256xf32>
    %6 = tpu.matmul %4, %5, %cst {dimension_numbers = #tpu.dot_dimension_numbers<[1], [0], [0], [1], [0, 0, 1, 1], [], []>} : vector<128x128xbf16>, vector<128x256xbf16>, vector<128x256xf32> -> vector<128x256xf32>
    %7 = arith.addf %3, %6 : vector<128x256xf32>
    %c0_6 = arith.constant 0 : index
    %c0_7 = arith.constant 0 : index
    %8 = vector.load %arg7[%c0_6, %c0_7] : memref<128x256xf32, #tpu.memory_space<vmem>>, vector<128x256xf32>
    tpu.vector_store %arg7[%c0_6, %c0_7], %7 {strides = array<i32>} : memref<128x256xf32, #tpu.memory_space<vmem>>, vector<128x256xf32>,
    %c0_i32_8 = arith.constant 0 : i32
    %9 = arith.cmpi eq, %arg2, %c0_i32_8 : i32
    %10 = arith.extui %9 : i1 to i32
    %c0_i32_9 = arith.constant 0 : i32
    %11 = arith.cmpi ne, %10, %c0_i32_9 : i32
    scf.if %11 {
      %c0_10 = arith.constant 0 : index
      %c0_11 = arith.constant 0 : index
      %12 = vector.load %arg7[%c0_10, %c0_11] : memref<128x256xf32, #tpu.memory_space<vmem>>, vector<128x256xf32>
      %c0_12 = arith.constant 0 : index
      %c0_13 = arith.constant 0 : index
      %13 = vector.load %arg5[%c0_12, %c0_13] : memref<1x256xf32, #tpu.memory_space<vmem>>, vector<1x256xf32>
      %14 = vector.broadcast %13 : vector<1x256xf32> to vector<128x256xf32>
      %15 = arith.addf %12, %14 : vector<128x256xf32>
      %c0_14 = arith.constant 0 : index
      %c0_15 = arith.constant 0 : index
      %16 = vector.load %arg6[%c0_14, %c0_15] : memref<128x256xf32, #tpu.memory_space<vmem>>, vector<128x256xf32>
      tpu.vector_store %arg6[%c0_14, %c0_15], %15 {strides = array<i32>} : memref<128x256xf32, #tpu.memory_space<vmem>>, vector<128x256xf32>,
    } else {
    }
    return
  }
  func.func @transform_0(%arg0: i32, %arg1: i32, %arg2: i32) -> (i32, i32) {
    %c0_i32 = arith.constant 0 : i32
    return %arg0, %arg2 : i32, i32
  }
  func.func @transform_1(%arg0: i32, %arg1: i32, %arg2: i32) -> (i32, i32) {
    %c0_i32 = arith.constant 0 : i32
    return %arg2, %arg1 : i32, i32
  }
  func.func @transform_2(%arg0: i32, %arg1: i32, %arg2: i32) -> (i32, i32) {
    %c0_i32 = arith.constant 0 : i32
    %c0_i32_0 = arith.constant 0 : i32
    return %c0_i32, %arg1 : i32, i32
  }
  func.func @transform_3(%arg0: i32, %arg1: i32, %arg2: i32) -> (i32, i32) {
    %c0_i32 = arith.constant 0 : i32
    return %arg0, %arg1 : i32, i32
  }
}

</mosaic_0001>

<llo_original>
// kernel: rnnlm_forward.9
$region0: #{rnnlm_forward.9}
  #allocation0 [shape = 'u32[]', space=smem, size = 0x4, offset = 0x4, fixed_abs, tag = 'smem constant byte address 0x4 - core index']
  #allocation1 [shape = 'u32[144,128]{1,0:T(1,128)}', space=vmem, size = 0x12000, scoped, tag = 'internal scratch']
  #allocation2 [shape = 'f32[128,256]{1,0:T(8,128)}', space=vmem, size = 0x20000, scoped, tag = 'scratch operand']
  %s0 = inlined_call_operand.hbm [shape: bf16[128,128], index: 0, kind: input, shape index: {}]
  %s1 = inlined_call_operand.hbm [shape: bf16[128,256], index: 1, kind: input, shape index: {}]
  %s2 = inlined_call_operand.hbm [shape: f32[1,256], index: 2, kind: input, shape index: {}]
  %s3 = inlined_call_operand.hbm [shape: f32[128,256], index: 3, kind: output, shape index: {}]
  %s4 = sld [smem:[#allocation0]]
  $region42: #{rnnlm_forward.9} parent=0
    _
  %s6 = ssub.s32 1, %s4
  %s7 = scalar_select 0, %s6, %s4
  $region1: #{rnnlm_forward.9} parent=0
    #allocation3 [shape = 'u8[32768]{0}', space=vmem, size = 0x8000, scoped, tag = 'input window, operand 0, single buffered']
    #allocation4 [shape = 's32[1]{0}', space=sflag, size = 0x4, scoped, tag = 'scoped memory for rnnlm_forward.9']
    #allocation5 [shape = 's32[1]{0}', space=sflag, size = 0x4, scoped, tag = 'scoped memory for rnnlm_forward.9']
    #allocation6 [shape = 'u8[65536]{0}', space=vmem, size = 0x10000, scoped, tag = 'input window, operand 1, single buffered']
    #allocation7 [shape = 's32[1]{0}', space=sflag, size = 0x4, scoped, tag = 'scoped memory for rnnlm_forward.9']
    #allocation8 [shape = 'u8[1024]{0}', space=vmem, size = 0x400, scoped, tag = 'input window, operand 2, single buffered']
    #allocation9 [shape = 'u8[131072]{0}', space=vmem, size = 0x20000, scoped, tag = 'output window, operand 0, single buffered']
    %8 = vsyncpa [#allocation4], 0
    %9 = vsyncpa [#allocation7], 0
    %10 = vsyncpa [#allocation5], 0
    // Predicated region
    $region2: #{rnnlm_forward.9} parent=1 // pred_check
      _
    $region3: #{rnnlm_forward.9} parent=1 // pred_check_branch
      %12 = sbr.rel (0) target = $region5
    $region4: #{rnnlm_forward.9} parent=1 // pred_region
      %s14 = ssub.s32 1024, 1024
      %15 = vsyncadd [#allocation4], %s14
      %s16 = sshll.u32 [#allocation3], 4
      %s17 = int_to_ptr.vmem [resolvable:$true] %s16
      %22 = dma.hbm_to_vmem [thread:$0]  %s0, 1024, %s17, [#allocation4], 64, 64, 4
    $region5: #{rnnlm_forward.9} parent=1 // pred_fallthru
      _
    // Predicated region
    $region6: #{rnnlm_forward.9} parent=1 // pred_check
      _
    $region7: #{rnnlm_forward.9} parent=1 // pred_check_branch
      %24 = sbr.rel (0) target = $region9
    $region8: #{rnnlm_forward.9} parent=1 // pred_region
      %s26 = ssub.s32 2048, 2048
      %27 = vsyncadd [#allocation7], %s26
      %s28 = sshll.u32 [#allocation6], 4
      %s29 = int_to_ptr.vmem [resolvable:$true] %s28
      %34 = dma.hbm_to_vmem [thread:$0]  %s1, 2048, %s29, [#allocation7], 128, 128, 8
    $region9: #{rnnlm_forward.9} parent=1 // pred_fallthru
      _
    // Predicated region
    $region10: #{rnnlm_forward.9} parent=1 // pred_check
      _
    $region11: #{rnnlm_forward.9} parent=1 // pred_check_branch
      %36 = sbr.rel (0) target = $region13
    $region12: #{rnnlm_forward.9} parent=1 // pred_region
      %s38 = ssub.s32 32, 32
      %39 = vsyncadd [#allocation7], %s38
      %s41 = sshll.u32 [#allocation8], 4
      %s42 = int_to_ptr.vmem [resolvable:$true] %s41
      %44 = dma.hbm_to_vmem [thread:$0]  %s2, 32, %s42, [#allocation7]
    $region13: #{rnnlm_forward.9} parent=1 // pred_fallthru
      _
    // Predicated region
    $region14: #{rnnlm_forward.9} parent=1 // pred_check
      _
    $region15: #{rnnlm_forward.9} parent=1 // pred_check_branch
      %46 = sbr.rel (0) target = $region17
    $region16: #{rnnlm_forward.9} parent=1 // pred_region
      %47 = dma.done [#allocation4], 1024
    $region17: #{rnnlm_forward.9} parent=1 // pred_fallthru
      _
    // Predicated region
    $region18: #{rnnlm_forward.9} parent=1 // pred_check
      _
    $region19: #{rnnlm_forward.9} parent=1 // pred_check_branch
      %49 = sbr.rel (0) target = $region21
    $region20: #{rnnlm_forward.9} parent=1 // pred_region
      %50 = dma.done [#allocation7], 2048
    $region21: #{rnnlm_forward.9} parent=1 // pred_fallthru
      _
    // Predicated region
    $region22: #{rnnlm_forward.9} parent=1 // pred_check
      _
    $region23: #{rnnlm_forward.9} parent=1 // pred_check_branch
      %52 = sbr.rel (0) target = $region25
    $region24: #{rnnlm_forward.9} parent=1 // pred_region
      %53 = dma.done [#allocation7], 32
    $region25: #{rnnlm_forward.9} parent=1 // pred_fallthru
      _
    %p55 = scmp.eq.s32.totalorder 0, 0
    // Predicated region
    $region26: #{rnnlm_forward.9} parent=1 // pred_check
      %p56 = pneg %p55
    $region27: #{rnnlm_forward.9} parent=1 // pred_check_branch
      %58 = sbr.rel (%p56) target = $region29
    $region28: #{rnnlm_forward.9} parent=1 // pred_region
      %59 = vst [vmem:[#allocation2] sm:$0xff] 0.0
      %60 = vst [vmem:[#allocation2 + $0x8] sm:$0xff] 0.0
      %61 = vst [vmem:[#allocation2 + $0x10] sm:$0xff] 0.0
      %62 = vst [vmem:[#allocation2 + $0x18] sm:$0xff] 0.0
      %63 = vst [vmem:[#allocation2 + $0x20] sm:$0xff] 0.0
      %64 = vst [vmem:[#allocation2 + $0x28] sm:$0xff] 0.0
      %65 = vst [vmem:[#allocation2 + $0x30] sm:$0xff] 0.0
      %66 = vst [vmem:[#allocation2 + $0x38] sm:$0xff] 0.0
      %67 = vst [vmem:[#allocation2 + $0x40] sm:$0xff] 0.0
      %68 = vst [vmem:[#allocation2 + $0x48] sm:$0xff] 0.0
      %69 = vst [vmem:[#allocation2 + $0x50] sm:$0xff] 0.0
      %70 = vst [vmem:[#allocation2 + $0x58] sm:$0xff] 0.0
      %71 = vst [vmem:[#allocation2 + $0x60] sm:$0xff] 0.0
      %72 = vst [vmem:[#allocation2 + $0x68] sm:$0xff] 0.0
      %73 = vst [vmem:[#allocation2 + $0x70] sm:$0xff] 0.0
      %74 = vst [vmem:[#allocation2 + $0x78] sm:$0xff] 0.0
      %75 = vst [vmem:[#allocation2 + $0x80] sm:$0xff] 0.0
      %76 = vst [vmem:[#allocation2 + $0x88] sm:$0xff] 0.0
      %77 = vst [vmem:[#allocation2 + $0x90] sm:$0xff] 0.0
      %78 = vst [vmem:[#allocation2 + $0x98] sm:$0xff] 0.0
      %79 = vst [vmem:[#allocation2 + $0xa0] sm:$0xff] 0.0
      %80 = vst [vmem:[#allocation2 + $0xa8] sm:$0xff] 0.0
      %81 = vst [vmem:[#allocation2 + $0xb0] sm:$0xff] 0.0
      %82 = vst [vmem:[#allocation2 + $0xb8] sm:$0xff] 0.0
      %83 = vst [vmem:[#allocation2 + $0xc0] sm:$0xff] 0.0
      %84 = vst [vmem:[#allocation2 + $0xc8] sm:$0xff] 0.0
      %85 = vst [vmem:[#allocation2 + $0xd0] sm:$0xff] 0.0
      %86 = vst [vmem:[#allocation2 + $0xd8] sm:$0xff] 0.0
      %87 = vst [vmem:[#allocation2 + $0xe0] sm:$0xff] 0.0
      %88 = vst [vmem:[#allocation2 + $0xe8] sm:$0xff] 0.0
      %89 = vst [vmem:[#allocation2 + $0xf0] sm:$0xff] 0.0
      %90 = vst [vmem:[#allocation2 + $0xf8] sm:$0xff] 0.0
    $region29: #{rnnlm_forward.9} parent=1 // pred_fallthru
      _
    %v91 = vld [vmem:[#allocation2] sm:$0xff]
    %v92 = vld [vmem:[#allocation2 + $0x8] sm:$0xff]
    %v93 = vld [vmem:[#allocation2 + $0x10] sm:$0xff]
    %v94 = vld [vmem:[#allocation2 + $0x18] sm:$0xff]
    %v95 = vld [vmem:[#allocation2 + $0x20] sm:$0xff]
    %v96 = vld [vmem:[#allocation2 + $0x28] sm:$0xff]
    %v97 = vld [vmem:[#allocation2 + $0x30] sm:$0xff]
    %v98 = vld [vmem:[#allocation2 + $0x38] sm:$0xff]
    %v99 = vld [vmem:[#allocation2 + $0x40] sm:$0xff]
    %v100 = vld [vmem:[#allocation2 + $0x48] sm:$0xff]
    %v101 = vld [vmem:[#allocation2 + $0x50] sm:$0xff]
    %v102 = vld [vmem:[#allocation2 + $0x58] sm:$0xff]
    %v103 = vld [vmem:[#allocation2 + $0x60] sm:$0xff]
    %v104 = vld [vmem:[#allocation2 + $0x68] sm:$0xff]
    %v105 = vld [vmem:[#allocation2 + $0x70] sm:$0xff]
    %v106 = vld [vmem:[#allocation2 + $0x78] sm:$0xff]
    %v107 = vld [vmem:[#allocation2 + $0x80] sm:$0xff]
    %v108 = vld [vmem:[#allocation2 + $0x88] sm:$0xff]
    %v109 = vld [vmem:[#allocation2 + $0x90] sm:$0xff]
    %v110 = vld [vmem:[#allocation2 + $0x98] sm:$0xff]
    %v111 = vld [vmem:[#allocation2 + $0xa0] sm:$0xff]
    %v112 = vld [vmem:[#allocation2 + $0xa8] sm:$0xff]
    %v113 = vld [vmem:[#allocation2 + $0xb0] sm:$0xff]
    %v114 = vld [vmem:[#allocation2 + $0xb8] sm:$0xff]
    %v115 = vld [vmem:[#allocation2 + $0xc0] sm:$0xff]
    %v116 = vld [vmem:[#allocation2 + $0xc8] sm:$0xff]
    %v117 = vld [vmem:[#allocation2 + $0xd0] sm:$0xff]
    %v118 = vld [vmem:[#allocation2 + $0xd8] sm:$0xff]
    %v119 = vld [vmem:[#allocation2 + $0xe0] sm:$0xff]
    %v120 = vld [vmem:[#allocation2 + $0xe8] sm:$0xff]
    %v121 = vld [vmem:[#allocation2 + $0xf0] sm:$0xff]
    %v122 = vld [vmem:[#allocation2 + $0xf8] sm:$0xff]
    %v123 = vld [vmem:[#allocation3] sm:$0xf]
    %v124 = vld [vmem:[#allocation3 + $0x4] sm:$0xf]
    %v125 = vld [vmem:[#allocation3 + $0x8] sm:$0xf]
    %v126 = vld [vmem:[#allocation3 + $0xc] sm:$0xf]
    %v127 = vld [vmem:[#allocation3 + $0x10] sm:$0xf]
    %v128 = vld [vmem:[#allocation3 + $0x14] sm:$0xf]
    %v129 = vld [vmem:[#allocation3 + $0x18] sm:$0xf]
    %v130 = vld [vmem:[#allocation3 + $0x1c] sm:$0xf]
    %v131 = vld [vmem:[#allocation3 + $0x20] sm:$0xf]
    %v132 = vld [vmem:[#allocation3 + $0x24] sm:$0xf]
    %v133 = vld [vmem:[#allocation3 + $0x28] sm:$0xf]
    %v134 = vld [vmem:[#allocation3 + $0x2c] sm:$0xf]
    %v135 = vld [vmem:[#allocation3 + $0x30] sm:$0xf]
    %v136 = vld [vmem:[#allocation3 + $0x34] sm:$0xf]
    %v137 = vld [vmem:[#allocation3 + $0x38] sm:$0xf]
    %v138 = vld [vmem:[#allocation3 + $0x3c] sm:$0xf]
    %v139 = vld [vmem:[#allocation6] sm:$0xff]
    %v140 = vld [vmem:[#allocation6 + $0x8] sm:$0xff]
    %v141 = vld [vmem:[#allocation6 + $0x10] sm:$0xff]
    %v142 = vld [vmem:[#allocation6 + $0x18] sm:$0xff]
    %v143 = vld [vmem:[#allocation6 + $0x20] sm:$0xff]
    %v144 = vld [vmem:[#allocation6 + $0x28] sm:$0xff]
    %v145 = vld [vmem:[#allocation6 + $0x30] sm:$0xff]
    %v146 = vld [vmem:[#allocation6 + $0x38] sm:$0xff]
    %v147 = vld [vmem:[#allocation6 + $0x40] sm:$0xff]
    %v148 = vld [vmem:[#allocation6 + $0x48] sm:$0xff]
    %v149 = vld [vmem:[#allocation6 + $0x50] sm:$0xff]
    %v150 = vld [vmem:[#allocation6 + $0x58] sm:$0xff]
    %v151 = vld [vmem:[#allocation6 + $0x60] sm:$0xff]
    %v152 = vld [vmem:[#allocation6 + $0x68] sm:$0xff]
    %v153 = vld [vmem:[#allocation6 + $0x70] sm:$0xff]
    %v154 = vld [vmem:[#allocation6 + $0x78] sm:$0xff]
    %v171 = vunpack.c.l.b16 %v123
    %v172 = vunpack.c.l.b16 %v124
    %v173 = vunpack.c.l.b16 %v125
    %v174 = vunpack.c.l.b16 %v126
    %v175 = vunpack.c.l.b16 %v127
    %v176 = vunpack.c.l.b16 %v128
    %v177 = vunpack.c.l.b16 %v129
    %v178 = vunpack.c.l.b16 %v130
    %v179 = vunpack.c.l.b16 %v131
    %v180 = vunpack.c.l.b16 %v132
    %v181 = vunpack.c.l.b16 %v133
    %v182 = vunpack.c.l.b16 %v134
    %v183 = vunpack.c.l.b16 %v135
    %v184 = vunpack.c.l.b16 %v136
    %v185 = vunpack.c.l.b16 %v137
    %v186 = vunpack.c.l.b16 %v138
    %v187 = vpack.c.b16 %v172, %v171
    %v188 = vpack.c.b16 %v174, %v173
    %v189 = vpack.c.b16 %v176, %v175
    %v190 = vpack.c.b16 %v178, %v177
    %v191 = vpack.c.b16 %v180, %v179
    %v192 = vpack.c.b16 %v182, %v181
    %v193 = vpack.c.b16 %v184, %v183
    %v194 = vpack.c.b16 %v186, %v185
    %v219 = vunpack.c.l.b16 %v139
    %v220 = vunpack.c.h.b16 %v139
    %v221 = vunpack.c.l.b16 %v140
    %v222 = vunpack.c.h.b16 %v140
    %v223 = vunpack.c.l.b16 %v141
    %v224 = vunpack.c.h.b16 %v141
    %v225 = vunpack.c.l.b16 %v142
    %v226 = vunpack.c.h.b16 %v142
    %v227 = vunpack.c.l.b16 %v143
    %v228 = vunpack.c.h.b16 %v143
    %v229 = vunpack.c.l.b16 %v144
    %v230 = vunpack.c.h.b16 %v144
    %v231 = vunpack.c.l.b16 %v145
    %v232 = vunpack.c.h.b16 %v145
    %v233 = vunpack.c.l.b16 %v146
    %v234 = vunpack.c.h.b16 %v146
    %v235 = vunpack.c.l.b16 %v147
    %v236 = vunpack.c.h.b16 %v147
    %v237 = vunpack.c.l.b16 %v148
    %v238 = vunpack.c.h.b16 %v148
    %v239 = vunpack.c.l.b16 %v149
    %v240 = vunpack.c.h.b16 %v149
    %v241 = vunpack.c.l.b16 %v150
    %v242 = vunpack.c.h.b16 %v150
    %v243 = vunpack.c.l.b16 %v151
    %v244 = vunpack.c.h.b16 %v151
    %v245 = vunpack.c.l.b16 %v152
    %v246 = vunpack.c.h.b16 %v152
    %v247 = vunpack.c.l.b16 %v153
    %v248 = vunpack.c.h.b16 %v153
    %v249 = vunpack.c.l.b16 %v154
    %v250 = vunpack.c.h.b16 %v154
    %v251 = vpack.c.b16 %v221, %v219
    %v252 = vpack.c.b16 %v222, %v220
    %v253 = vpack.c.b16 %v225, %v223
    %v254 = vpack.c.b16 %v226, %v224
    %v255 = vpack.c.b16 %v229, %v227
    %v256 = vpack.c.b16 %v230, %v228
    %v257 = vpack.c.b16 %v233, %v231
    %v258 = vpack.c.b16 %v234, %v232
    %v259 = vpack.c.b16 %v237, %v235
    %v260 = vpack.c.b16 %v238, %v236
    %v261 = vpack.c.b16 %v241, %v239
    %v262 = vpack.c.b16 %v242, %v240
    %v263 = vpack.c.b16 %v245, %v243
    %v264 = vpack.c.b16 %v246, %v244
    %v265 = vpack.c.b16 %v249, %v247
    %v266 = vpack.c.b16 %v250, %v248
    %283 = vmatprep.subr.bf16.mxu0 %v252
    %284 = vmatpush1.bf16.msra.mxu0 %v251
    %285 = vmatprep.subr.bf16.mxu0 %v254
    %286 = vmatpush1.bf16.msra.mxu0 %v253
    %287 = vmatprep.subr.bf16.mxu0 %v256
    %288 = vmatpush1.bf16.msra.mxu0 %v255
    %289 = vmatprep.subr.bf16.mxu0 %v258
    %290 = vmatpush1.bf16.msra.mxu0 %v257
    %291 = vmatprep.subr.bf16.mxu0 %v260
    %292 = vmatpush1.bf16.msra.mxu0 %v259
    %293 = vmatprep.subr.bf16.mxu0 %v262
    %294 = vmatpush1.bf16.msra.mxu0 %v261
    %295 = vmatprep.subr.bf16.mxu0 %v264
    %296 = vmatpush1.bf16.msra.mxu0 %v263
    %297 = vmatprep.subr.bf16.mxu0 %v266
    %298 = vmatpush1.bf16.msra.mxu0 %v265
    %299 = vmatprep.subr.bf16.mxu0 0
    %300 = vmatpush1.bf16.msra.mxu0 0
    %301 = vmatprep.subr.bf16.mxu0 0
    %302 = vmatpush1.bf16.msra.mxu0 0
    %303 = vmatprep.subr.bf16.mxu0 0
    %304 = vmatpush1.bf16.msra.mxu0 0
    %305 = vmatprep.subr.bf16.mxu0 0
    %306 = vmatpush1.bf16.msra.mxu0 0
    %307 = vmatprep.subr.bf16.mxu0 0
    %308 = vmatpush1.bf16.msra.mxu0 0
    %309 = vmatprep.subr.bf16.mxu0 0
    %310 = vmatpush1.bf16.msra.mxu0 0
    %311 = vmatprep.subr.bf16.mxu0 0
    %312 = vmatpush1.bf16.msra.mxu0 0
    %313 = vmatprep.subr.bf16.mxu0 0
    %314 = vmatpush1.bf16.msra.mxu0 0
    %315 = vmatprep.mubr.bf16.mxu0 0
    %316 = vmatmul.mubr.bf16.gmra.mrb[0].mxu0 %v187
    %v317 = vpop.f32.mrb[0].mxu0
    %v318 = vadd.f32 0.0, %v317
    %v319 = vpop.f32.mrb[0].mxu0
    %v320 = vadd.f32 0.0, %v319
    %v321 = vpop.f32.mrb[0].mxu0
    %v322 = vadd.f32 0.0, %v321
    %v323 = vpop.f32.mrb[0].mxu0
    %v324 = vadd.f32 0.0, %v323
    %325 = vmatprep.mubr.bf16.mxu0 0
    %326 = vmatmul.mubr.bf16.gmra.mrb[0].mxu0 %v188
    %v327 = vpop.f32.mrb[0].mxu0
    %v328 = vadd.f32 0.0, %v327
    %v329 = vpop.f32.mrb[0].mxu0
    %v330 = vadd.f32 0.0, %v329
    %v331 = vpop.f32.mrb[0].mxu0
    %v332 = vadd.f32 0.0, %v331
    %v333 = vpop.f32.mrb[0].mxu0
    %v334 = vadd.f32 0.0, %v333
    %335 = vmatprep.mubr.bf16.mxu0 0
    %336 = vmatmul.mubr.bf16.gmra.mrb[0].mxu0 %v189
    %v337 = vpop.f32.mrb[0].mxu0
    %v338 = vadd.f32 0.0, %v337
    %v339 = vpop.f32.mrb[0].mxu0
    %v340 = vadd.f32 0.0, %v339
    %v341 = vpop.f32.mrb[0].mxu0
    %v342 = vadd.f32 0.0, %v341
    %v343 = vpop.f32.mrb[0].mxu0
    %v344 = vadd.f32 0.0, %v343
    %345 = vmatprep.mubr.bf16.mxu0 0
    %346 = vmatmul.mubr.bf16.gmra.mrb[0].mxu0 %v190
    %v347 = vpop.f32.mrb[0].mxu0
    %v348 = vadd.f32 0.0, %v347
    %v349 = vpop.f32.mrb[0].mxu0
    %v350 = vadd.f32 0.0, %v349
    %v351 = vpop.f32.mrb[0].mxu0
    %v352 = vadd.f32 0.0, %v351
    %v353 = vpop.f32.mrb[0].mxu0
    %v354 = vadd.f32 0.0, %v353
    %355 = vmatprep.mubr.bf16.mxu0 0
    %356 = vmatmul.mubr.bf16.gmra.mrb[0].mxu0 %v191
    %v357 = vpop.f32.mrb[0].mxu0
    %v358 = vadd.f32 0.0, %v357
    %v359 = vpop.f32.mrb[0].mxu0
    %v360 = vadd.f32 0.0, %v359
    %v361 = vpop.f32.mrb[0].mxu0
    %v362 = vadd.f32 0.0, %v361
    %v363 = vpop.f32.mrb[0].mxu0
    %v364 = vadd.f32 0.0, %v363
    %365 = vmatprep.mubr.bf16.mxu0 0
    %366 = vmatmul.mubr.bf16.gmra.mrb[0].mxu0 %v192
    %v367 = vpop.f32.mrb[0].mxu0
    %v368 = vadd.f32 0.0, %v367
    %v369 = vpop.f32.mrb[0].mxu0
    %v370 = vadd.f32 0.0, %v369
    %v371 = vpop.f32.mrb[0].mxu0
    %v372 = vadd.f32 0.0, %v371
    %v373 = vpop.f32.mrb[0].mxu0
    %v374 = vadd.f32 0.0, %v373
    %375 = vmatprep.mubr.bf16.mxu0 0
    %376 = vmatmul.mubr.bf16.gmra.mrb[0].mxu0 %v193
    %v377 = vpop.f32.mrb[0].mxu0
    %v378 = vadd.f32 0.0, %v377
    %v379 = vpop.f32.mrb[0].mxu0
    %v380 = vadd.f32 0.0, %v379
    %v381 = vpop.f32.mrb[0].mxu0
    %v382 = vadd.f32 0.0, %v381
    %v383 = vpop.f32.mrb[0].mxu0
    %v384 = vadd.f32 0.0, %v383
    %385 = vmatprep.mubr.bf16.mxu0 0
    %386 = vmatmul.mubr.bf16.gmra.mrb[0].mxu0 %v194
    %v387 = vpop.f32.mrb[0].mxu0
    %v388 = vadd.f32 0.0, %v387
    %v389 = vpop.f32.mrb[0].mxu0
    %v390 = vadd.f32 0.0, %v389
    %v391 = vpop.f32.mrb[0].mxu0
    %v392 = vadd.f32 0.0, %v391
    %v393 = vpop.f32.mrb[0].mxu0
    %v394 = vadd.f32 0.0, %v393
    %395 = vdwg.mxu0
    %v396 = vadd.f32 %v91, %v318
    %v397 = vadd.f32 %v92, %v320
    %v398 = vadd.f32 %v93, %v322
    %v399 = vadd.f32 %v94, %v324
    %v400 = vadd.f32 %v95, %v328
    %v401 = vadd.f32 %v96, %v330
    %v402 = vadd.f32 %v97, %v332
    %v403 = vadd.f32 %v98, %v334
    %v404 = vadd.f32 %v99, %v338
    %v405 = vadd.f32 %v100, %v340
    %v406 = vadd.f32 %v101, %v342
    %v407 = vadd.f32 %v102, %v344
    %v408 = vadd.f32 %v103, %v348
    %v409 = vadd.f32 %v104, %v350
    %v410 = vadd.f32 %v105, %v352
    %v411 = vadd.f32 %v106, %v354
    %v412 = vadd.f32 %v107, %v358
    %v413 = vadd.f32 %v108, %v360
    %v414 = vadd.f32 %v109, %v362
    %v415 = vadd.f32 %v110, %v364
    %v416 = vadd.f32 %v111, %v368
    %v417 = vadd.f32 %v112, %v370
    %v418 = vadd.f32 %v113, %v372
    %v419 = vadd.f32 %v114, %v374
    %v420 = vadd.f32 %v115, %v378
    %v421 = vadd.f32 %v116, %v380
    %v422 = vadd.f32 %v117, %v382
    %v423 = vadd.f32 %v118, %v384
    %v424 = vadd.f32 %v119, %v388
    %v425 = vadd.f32 %v120, %v390
    %v426 = vadd.f32 %v121, %v392
    %v427 = vadd.f32 %v122, %v394
    %428 = vst [vmem:[#allocation2] sm:$0xff] %v396
    %429 = vst [vmem:[#allocation2 + $0x8] sm:$0xff] %v397
    %430 = vst [vmem:[#allocation2 + $0x10] sm:$0xff] %v398
    %431 = vst [vmem:[#allocation2 + $0x18] sm:$0xff] %v399
    %432 = vst [vmem:[#allocation2 + $0x20] sm:$0xff] %v400
    %433 = vst [vmem:[#allocation2 + $0x28] sm:$0xff] %v401
    %434 = vst [vmem:[#allocation2 + $0x30] sm:$0xff] %v402
    %435 = vst [vmem:[#allocation2 + $0x38] sm:$0xff] %v403
    %436 = vst [vmem:[#allocation2 + $0x40] sm:$0xff] %v404
    %437 = vst [vmem:[#allocation2 + $0x48] sm:$0xff] %v405
    %438 = vst [vmem:[#allocation2 + $0x50] sm:$0xff] %v406
    %439 = vst [vmem:[#allocation2 + $0x58] sm:$0xff] %v407
    %440 = vst [vmem:[#allocation2 + $0x60] sm:$0xff] %v408
    %441 = vst [vmem:[#allocation2 + $0x68] sm:$0xff] %v409
    %442 = vst [vmem:[#allocation2 + $0x70] sm:$0xff] %v410
    %443 = vst [vmem:[#allocation2 + $0x78] sm:$0xff] %v411
    %444 = vst [vmem:[#allocation2 + $0x80] sm:$0xff] %v412
    %445 = vst [vmem:[#allocation2 + $0x88] sm:$0xff] %v413
    %446 = vst [vmem:[#allocation2 + $0x90] sm:$0xff] %v414
    %447 = vst [vmem:[#allocation2 + $0x98] sm:$0xff] %v415
    %448 = vst [vmem:[#allocation2 + $0xa0] sm:$0xff] %v416
    %449 = vst [vmem:[#allocation2 + $0xa8] sm:$0xff] %v417
    %450 = vst [vmem:[#allocation2 + $0xb0] sm:$0xff] %v418
    %451 = vst [vmem:[#allocation2 + $0xb8] sm:$0xff] %v419
    %452 = vst [vmem:[#allocation2 + $0xc0] sm:$0xff] %v420
    %453 = vst [vmem:[#allocation2 + $0xc8] sm:$0xff] %v421
    %454 = vst [vmem:[#allocation2 + $0xd0] sm:$0xff] %v422
    %455 = vst [vmem:[#allocation2 + $0xd8] sm:$0xff] %v423
    %456 = vst [vmem:[#allocation2 + $0xe0] sm:$0xff] %v424
    %457 = vst [vmem:[#allocation2 + $0xe8] sm:$0xff] %v425
    %458 = vst [vmem:[#allocation2 + $0xf0] sm:$0xff] %v426
    %459 = vst [vmem:[#allocation2 + $0xf8] sm:$0xff] %v427
    // Predicated region
    $region30: #{rnnlm_forward.9} parent=1 // pred_check
      %p460 = pneg %p55
    $region31: #{rnnlm_forward.9} parent=1 // pred_check_branch
      %462 = sbr.rel (%p460) target = $region33
    $region32: #{rnnlm_forward.9} parent=1 // pred_region
      %v463 = vld [vmem:[#allocation2] sm:$0xff]
      %v464 = vld [vmem:[#allocation2 + $0x8] sm:$0xff]
      %v465 = vld [vmem:[#allocation2 + $0x10] sm:$0xff]
      %v466 = vld [vmem:[#allocation2 + $0x18] sm:$0xff]
      %v467 = vld [vmem:[#allocation2 + $0x20] sm:$0xff]
      %v468 = vld [vmem:[#allocation2 + $0x28] sm:$0xff]
      %v469 = vld [vmem:[#allocation2 + $0x30] sm:$0xff]
      %v470 = vld [vmem:[#allocation2 + $0x38] sm:$0xff]
      %v471 = vld [vmem:[#allocation2 + $0x40] sm:$0xff]
      %v472 = vld [vmem:[#allocation2 + $0x48] sm:$0xff]
      %v473 = vld [vmem:[#allocation2 + $0x50] sm:$0xff]
      %v474 = vld [vmem:[#allocation2 + $0x58] sm:$0xff]
      %v475 = vld [vmem:[#allocation2 + $0x60] sm:$0xff]
      %v476 = vld [vmem:[#allocation2 + $0x68] sm:$0xff]
      %v477 = vld [vmem:[#allocation2 + $0x70] sm:$0xff]
      %v478 = vld [vmem:[#allocation2 + $0x78] sm:$0xff]
      %v479 = vld [vmem:[#allocation2 + $0x80] sm:$0xff]
      %v480 = vld [vmem:[#allocation2 + $0x88] sm:$0xff]
      %v481 = vld [vmem:[#allocation2 + $0x90] sm:$0xff]
      %v482 = vld [vmem:[#allocation2 + $0x98] sm:$0xff]
      %v483 = vld [vmem:[#allocation2 + $0xa0] sm:$0xff]
      %v484 = vld [vmem:[#allocation2 + $0xa8] sm:$0xff]
      %v485 = vld [vmem:[#allocation2 + $0xb0] sm:$0xff]
      %v486 = vld [vmem:[#allocation2 + $0xb8] sm:$0xff]
      %v487 = vld [vmem:[#allocation2 + $0xc0] sm:$0xff]
      %v488 = vld [vmem:[#allocation2 + $0xc8] sm:$0xff]
      %v489 = vld [vmem:[#allocation2 + $0xd0] sm:$0xff]
      %v490 = vld [vmem:[#allocation2 + $0xd8] sm:$0xff]
      %v491 = vld [vmem:[#allocation2 + $0xe0] sm:$0xff]
      %v492 = vld [vmem:[#allocation2 + $0xe8] sm:$0xff]
      %v493 = vld [vmem:[#allocation2 + $0xf0] sm:$0xff]
      %v494 = vld [vmem:[#allocation2 + $0xf8] sm:$0xff]
      %v495 = vld [vmem:[#allocation8] sm:$0x3]
      %v497 = vlaneseq
      %v498 = vshrl.u32 %v497, 7
      %v499 = vsub.s32 0, %v498
      %v500 = vrot.slane %v495, %v499
      %v501 = vlaneseq
      %v502 = vshrl.u32 %v501, 7
      %v503 = vsub.s32 1, %v502
      %v504 = vrot.slane %v495, %v503
      %v507 = vadd.f32 %v463, %v500
      %v508 = vadd.f32 %v464, %v504
      %v509 = vadd.f32 %v465, %v500
      %v510 = vadd.f32 %v466, %v504
      %v511 = vadd.f32 %v467, %v500
      %v512 = vadd.f32 %v468, %v504
      %v513 = vadd.f32 %v469, %v500
      %v514 = vadd.f32 %v470, %v504
      %v515 = vadd.f32 %v471, %v500
      %v516 = vadd.f32 %v472, %v504
      %v517 = vadd.f32 %v473, %v500
      %v518 = vadd.f32 %v474, %v504
      %v519 = vadd.f32 %v475, %v500
      %v520 = vadd.f32 %v476, %v504
      %v521 = vadd.f32 %v477, %v500
      %v522 = vadd.f32 %v478, %v504
      %v523 = vadd.f32 %v479, %v500
      %v524 = vadd.f32 %v480, %v504
      %v525 = vadd.f32 %v481, %v500
      %v526 = vadd.f32 %v482, %v504
      %v527 = vadd.f32 %v483, %v500
      %v528 = vadd.f32 %v484, %v504
      %v529 = vadd.f32 %v485, %v500
      %v530 = vadd.f32 %v486, %v504
      %v531 = vadd.f32 %v487, %v500
      %v532 = vadd.f32 %v488, %v504
      %v533 = vadd.f32 %v489, %v500
      %v534 = vadd.f32 %v490, %v504
      %v535 = vadd.f32 %v491, %v500
      %v536 = vadd.f32 %v492, %v504
      %v537 = vadd.f32 %v493, %v500
      %v538 = vadd.f32 %v494, %v504
      %539 = vst [vmem:[#allocation9] sm:$0xff] %v507
      %540 = vst [vmem:[#allocation9 + $0x8] sm:$0xff] %v508
      %541 = vst [vmem:[#allocation9 + $0x10] sm:$0xff] %v509
      %542 = vst [vmem:[#allocation9 + $0x18] sm:$0xff] %v510
      %543 = vst [vmem:[#allocation9 + $0x20] sm:$0xff] %v511
      %544 = vst [vmem:[#allocation9 + $0x28] sm:$0xff] %v512
      %545 = vst [vmem:[#allocation9 + $0x30] sm:$0xff] %v513
      %546 = vst [vmem:[#allocation9 + $0x38] sm:$0xff] %v514
      %547 = vst [vmem:[#allocation9 + $0x40] sm:$0xff] %v515
      %548 = vst [vmem:[#allocation9 + $0x48] sm:$0xff] %v516
      %549 = vst [vmem:[#allocation9 + $0x50] sm:$0xff] %v517
      %550 = vst [vmem:[#allocation9 + $0x58] sm:$0xff] %v518
      %551 = vst [vmem:[#allocation9 + $0x60] sm:$0xff] %v519
      %552 = vst [vmem:[#allocation9 + $0x68] sm:$0xff] %v520
      %553 = vst [vmem:[#allocation9 + $0x70] sm:$0xff] %v521
      %554 = vst [vmem:[#allocation9 + $0x78] sm:$0xff] %v522
      %555 = vst [vmem:[#allocation9 + $0x80] sm:$0xff] %v523
      %556 = vst [vmem:[#allocation9 + $0x88] sm:$0xff] %v524
      %557 = vst [vmem:[#allocation9 + $0x90] sm:$0xff] %v525
      %558 = vst [vmem:[#allocation9 + $0x98] sm:$0xff] %v526
      %559 = vst [vmem:[#allocation9 + $0xa0] sm:$0xff] %v527
      %560 = vst [vmem:[#allocation9 + $0xa8] sm:$0xff] %v528
      %561 = vst [vmem:[#allocation9 + $0xb0] sm:$0xff] %v529
      %562 = vst [vmem:[#allocation9 + $0xb8] sm:$0xff] %v530
      %563 = vst [vmem:[#allocation9 + $0xc0] sm:$0xff] %v531
      %564 = vst [vmem:[#allocation9 + $0xc8] sm:$0xff] %v532
      %565 = vst [vmem:[#allocation9 + $0xd0] sm:$0xff] %v533
      %566 = vst [vmem:[#allocation9 + $0xd8] sm:$0xff] %v534
      %567 = vst [vmem:[#allocation9 + $0xe0] sm:$0xff] %v535
      %568 = vst [vmem:[#allocation9 + $0xe8] sm:$0xff] %v536
      %569 = vst [vmem:[#allocation9 + $0xf0] sm:$0xff] %v537
      %570 = vst [vmem:[#allocation9 + $0xf8] sm:$0xff] %v538
    $region33: #{rnnlm_forward.9} parent=1 // pred_fallthru
      _
    // Predicated region
    $region34: #{rnnlm_forward.9} parent=1 // pred_check
      _
    $region35: #{rnnlm_forward.9} parent=1 // pred_check_branch
      %572 = sbr.rel (0) target = $region37
    $region36: #{rnnlm_forward.9} parent=1 // pred_region
      %s574 = ssub.s32 4096, 4096
      %575 = vsyncadd [#allocation5], %s574
      %s576 = sshll.u32 [#allocation9], 4
      %s577 = int_to_ptr.vmem [resolvable:$true] %s576
      %582 = dma.vmem_to_hbm [thread:$0]  %s577, 4096, %s3, [#allocation5], 256, 256, 16
    $region37: #{rnnlm_forward.9} parent=1 // pred_fallthru
      _
    // Predicated region
    $region38: #{rnnlm_forward.9} parent=1 // pred_check
      _
    $region39: #{rnnlm_forward.9} parent=1 // pred_check_branch
      %584 = sbr.rel (0) target = $region41
    $region40: #{rnnlm_forward.9} parent=1 // pred_region
      %585 = dma.done [#allocation5], 4096
    $region41: #{rnnlm_forward.9} parent=1 // pred_fallthru
      _
    %586 = vsyncpa [#allocation4], 1
    %587 = vsyncpa [#allocation7], 1
    %588 = vsyncpa [#allocation5], 1

// kernel: rnnlm_forward.5
$region0: #{rnnlm_forward.5}
  #allocation0 [shape = 'u32[]', space=smem, size = 0x4, offset = 0x4, fixed_abs, tag = 'smem constant byte address 0x4 - core index']
  #allocation1 [shape = 'u32[144,128]{1,0:T(1,128)}', space=vmem, size = 0x12000, scoped, tag = 'internal scratch']
  #allocation2 [shape = 'f32[128,512]{1,0:T(8,128)}', space=vmem, size = 0x40000, scoped, tag = 'scratch operand']
  %s0 = inlined_call_operand.hbm [shape: bf16[128,128], index: 0, kind: input, shape index: {}]
  %s1 = inlined_call_operand.hbm [shape: bf16[128,512], index: 1, kind: input, shape index: {}]
  %s2 = inlined_call_operand.hbm [shape: f32[1,512], index: 2, kind: input, shape index: {}]
  %s3 = inlined_call_operand.hbm [shape: f32[128,512], index: 3, kind: output, shape index: {}]
  %s4 = sld [smem:[#allocation0]]
  $region42: #{rnnlm_forward.5} parent=0
    _
  %s6 = ssub.s32 1, %s4
  %s7 = scalar_select 0, %s6, %s4
  $region1: #{rnnlm_forward.5} parent=0
    #allocation3 [shape = 'u8[32768]{0}', space=vmem, size = 0x8000, scoped, tag = 'input window, operand 0, single buffered']
    #allocation4 [shape = 's32[1]{0}', space=sflag, size = 0x4, scoped, tag = 'scoped memory for rnnlm_forward.5']
    #allocation5 [shape = 's32[1]{0}', space=sflag, size = 0x4, scoped, tag = 'scoped memory for rnnlm_forward.5']
    #allocation6 [shape = 'u8[131072]{0}', space=vmem, size = 0x20000, scoped, tag = 'input window, operand 1, single buffered']
    #allocation7 [shape = 's32[1]{0}', space=sflag, size = 0x4, scoped, tag = 'scoped memory for rnnlm_forward.5']
    #allocation8 [shape = 'u8[2048]{0}', space=vmem, size = 0x800, scoped, tag = 'input window, operand 2, single buffered']
    #allocation9 [shape = 'u8[262144]{0}', space=vmem, size = 0x40000, scoped, tag = 'output window, operand 0, single buffered']
    %8 = vsyncpa [#allocation4], 0
    %9 = vsyncpa [#allocation7], 0
    %10 = vsyncpa [#allocation5], 0
    // Predicated region
    $region2: #{rnnlm_forward.5} parent=1 // pred_check
      _
    $region3: #{rnnlm_forward.5} parent=1 // pred_check_branch
      %12 = sbr.rel (0) target = $region5
    $region4: #{rnnlm_forward.5} parent=1 // pred_region
      %s14 = ssub.s32 1024, 1024
      %15 = vsyncadd [#allocation4], %s14
      %s16 = sshll.u32 [#allocation3], 4
      %s17 = int_to_ptr.vmem [resolvable:$true] %s16
      %22 = dma.hbm_to_vmem [thread:$0]  %s0, 1024, %s17, [#allocation4], 64, 64, 4
    $region5: #{rnnlm_forward.5} parent=1 // pred_fallthru
      _
    // Predicated region
    $region6: #{rnnlm_forward.5} parent=1 // pred_check
      _
    $region7: #{rnnlm_forward.5} parent=1 // pred_check_branch
      %24 = sbr.rel (0) target = $region9
    $region8: #{rnnlm_forward.5} parent=1 // pred_region
      %s26 = ssub.s32 4096, 4096
      %27 = vsyncadd [#allocation7], %s26
      %s28 = sshll.u32 [#allocation6], 4
      %s29 = int_to_ptr.vmem [resolvable:$true] %s28
      %34 = dma.hbm_to_vmem [thread:$0]  %s1, 4096, %s29, [#allocation7], 256, 256, 16
    $region9: #{rnnlm_forward.5} parent=1 // pred_fallthru
      _
    // Predicated region
    $region10: #{rnnlm_forward.5} parent=1 // pred_check
      _
    $region11: #{rnnlm_forward.5} parent=1 // pred_check_branch
      %36 = sbr.rel (0) target = $region13
    $region12: #{rnnlm_forward.5} parent=1 // pred_region
      %s38 = ssub.s32 64, 64
      %39 = vsyncadd [#allocation7], %s38
      %s41 = sshll.u32 [#allocation8], 4
      %s42 = int_to_ptr.vmem [resolvable:$true] %s41
      %44 = dma.hbm_to_vmem [thread:$0]  %s2, 64, %s42, [#allocation7]
    $region13: #{rnnlm_forward.5} parent=1 // pred_fallthru
      _
    // Predicated region
    $region14: #{rnnlm_forward.5} parent=1 // pred_check
      _
    $region15: #{rnnlm_forward.5} parent=1 // pred_check_branch
      %46 = sbr.rel (0) target = $region17
    $region16: #{rnnlm_forward.5} parent=1 // pred_region
      %47 = dma.done [#allocation4], 1024
    $region17: #{rnnlm_forward.5} parent=1 // pred_fallthru
      _
    // Predicated region
    $region18: #{rnnlm_forward.5} parent=1 // pred_check
      _
    $region19: #{rnnlm_forward.5} parent=1 // pred_check_branch
      %49 = sbr.rel (0) target = $region21
    $region20: #{rnnlm_forward.5} parent=1 // pred_region
      %50 = dma.done [#allocation7], 4096
    $region21: #{rnnlm_forward.5} parent=1 // pred_fallthru
      _
    // Predicated region
    $region22: #{rnnlm_forward.5} parent=1 // pred_check
      _
    $region23: #{rnnlm_forward.5} parent=1 // pred_check_branch
      %52 = sbr.rel (0) target = $region25
    $region24: #{rnnlm_forward.5} parent=1 // pred_region
      %53 = dma.done [#allocation7], 64
    $region25: #{rnnlm_forward.5} parent=1 // pred_fallthru
      _
    %p55 = scmp.eq.s32.totalorder 0, 0
    // Predicated region
    $region26: #{rnnlm_forward.5} parent=1 // pred_check
      %p56 = pneg %p55
    $region27: #{rnnlm_forward.5} parent=1 // pred_check_branch
      %58 = sbr.rel (%p56) target = $region29
    $region28: #{rnnlm_forward.5} parent=1 // pred_region
      %59 = vst [vmem:[#allocation2] sm:$0xff] 0.0
      %60 = vst [vmem:[#allocation2 + $0x8] sm:$0xff] 0.0
      %61 = vst [vmem:[#allocation2 + $0x10] sm:$0xff] 0.0
      %62 = vst [vmem:[#allocation2 + $0x18] sm:$0xff] 0.0
      %63 = vst [vmem:[#allocation2 + $0x20] sm:$0xff] 0.0
      %64 = vst [vmem:[#allocation2 + $0x28] sm:$0xff] 0.0
      %65 = vst [vmem:[#allocation2 + $0x30] sm:$0xff] 0.0
      %66 = vst [vmem:[#allocation2 + $0x38] sm:$0xff] 0.0
      %67 = vst [vmem:[#allocation2 + $0x40] sm:$0xff] 0.0
      %68 = vst [vmem:[#allocation2 + $0x48] sm:$0xff] 0.0
      %69 = vst [vmem:[#allocation2 + $0x50] sm:$0xff] 0.0
      %70 = vst [vmem:[#allocation2 + $0x58] sm:$0xff] 0.0
      %71 = vst [vmem:[#allocation2 + $0x60] sm:$0xff] 0.0
      %72 = vst [vmem:[#allocation2 + $0x68] sm:$0xff] 0.0
      %73 = vst [vmem:[#allocation2 + $0x70] sm:$0xff] 0.0
      %74 = vst [vmem:[#allocation2 + $0x78] sm:$0xff] 0.0
      %75 = vst [vmem:[#allocation2 + $0x80] sm:$0xff] 0.0
      %76 = vst [vmem:[#allocation2 + $0x88] sm:$0xff] 0.0
      %77 = vst [vmem:[#allocation2 + $0x90] sm:$0xff] 0.0
      %78 = vst [vmem:[#allocation2 + $0x98] sm:$0xff] 0.0
      %79 = vst [vmem:[#allocation2 + $0xa0] sm:$0xff] 0.0
      %80 = vst [vmem:[#allocation2 + $0xa8] sm:$0xff] 0.0
      %81 = vst [vmem:[#allocation2 + $0xb0] sm:$0xff] 0.0
      %82 = vst [vmem:[#allocation2 + $0xb8] sm:$0xff] 0.0
      %83 = vst [vmem:[#allocation2 + $0xc0] sm:$0xff] 0.0
      %84 = vst [vmem:[#allocation2 + $0xc8] sm:$0xff] 0.0
      %85 = vst [vmem:[#allocation2 + $0xd0] sm:$0xff] 0.0
      %86 = vst [vmem:[#allocation2 + $0xd8] sm:$0xff] 0.0
      %87 = vst [vmem:[#allocation2 + $0xe0] sm:$0xff] 0.0
      %88 = vst [vmem:[#allocation2 + $0xe8] sm:$0xff] 0.0
      %89 = vst [vmem:[#allocation2 + $0xf0] sm:$0xff] 0.0
      %90 = vst [vmem:[#allocation2 + $0xf8] sm:$0xff] 0.0
      %91 = vst [vmem:[#allocation2 + $0x100] sm:$0xff] 0.0
      %92 = vst [vmem:[#allocation2 + $0x108] sm:$0xff] 0.0
      %93 = vst [vmem:[#allocation2 + $0x110] sm:$0xff] 0.0
      %94 = vst [vmem:[#allocation2 + $0x118] sm:$0xff] 0.0
      %95 = vst [vmem:[#allocation2 + $0x120] sm:$0xff] 0.0
      %96 = vst [vmem:[#allocation2 + $0x128] sm:$0xff] 0.0
      %97 = vst [vmem:[#allocation2 + $0x130] sm:$0xff] 0.0
      %98 = vst [vmem:[#allocation2 + $0x138] sm:$0xff] 0.0
      %99 = vst [vmem:[#allocation2 + $0x140] sm:$0xff] 0.0
      %100 = vst [vmem:[#allocation2 + $0x148] sm:$0xff] 0.0
      %101 = vst [vmem:[#allocation2 + $0x150] sm:$0xff] 0.0
      %102 = vst [vmem:[#allocation2 + $0x158] sm:$0xff] 0.0
      %103 = vst [vmem:[#allocation2 + $0x160] sm:$0xff] 0.0
      %104 = vst [vmem:[#allocation2 + $0x168] sm:$0xff] 0.0
      %105 = vst [vmem:[#allocation2 + $0x170] sm:$0xff] 0.0
      %106 = vst [vmem:[#allocation2 + $0x178] sm:$0xff] 0.0
      %107 = vst [vmem:[#allocation2 + $0x180] sm:$0xff] 0.0
      %108 = vst [vmem:[#allocation2 + $0x188] sm:$0xff] 0.0
      %109 = vst [vmem:[#allocation2 + $0x190] sm:$0xff] 0.0
      %110 = vst [vmem:[#allocation2 + $0x198] sm:$0xff] 0.0
      %111 = vst [vmem:[#allocation2 + $0x1a0] sm:$0xff] 0.0
      %112 = vst [vmem:[#allocation2 + $0x1a8] sm:$0xff] 0.0
      %113 = vst [vmem:[#allocation2 + $0x1b0] sm:$0xff] 0.0
      %114 = vst [vmem:[#allocation2 + $0x1b8] sm:$0xff] 0.0
      %115 = vst [vmem:[#allocation2 + $0x1c0] sm:$0xff] 0.0
      %116 = vst [vmem:[#allocation2 + $0x1c8] sm:$0xff] 0.0
      %117 = vst [vmem:[#allocation2 + $0x1d0] sm:$0xff] 0.0
      %118 = vst [vmem:[#allocation2 + $0x1d8] sm:$0xff] 0.0
      %119 = vst [vmem:[#allocation2 + $0x1e0] sm:$0xff] 0.0
      %120 = vst [vmem:[#allocation2 + $0x1e8] sm:$0xff] 0.0
      %121 = vst [vmem:[#allocation2 + $0x1f0] sm:$0xff] 0.0
      %122 = vst [vmem:[#allocation2 + $0x1f8] sm:$0xff] 0.0
    $region29: #{rnnlm_forward.5} parent=1 // pred_fallthru
      _
    %v123 = vld [vmem:[#allocation2] sm:$0xff]
    %v124 = vld [vmem:[#allocation2 + $0x8] sm:$0xff]
    %v125 = vld [vmem:[#allocation2 + $0x10] sm:$0xff]
    %v126 = vld [vmem:[#allocation2 + $0x18] sm:$0xff]
    %v127 = vld [vmem:[#allocation2 + $0x20] sm:$0xff]
    %v128 = vld [vmem:[#allocation2 + $0x28] sm:$0xff]
    %v129 = vld [vmem:[#allocation2 + $0x30] sm:$0xff]
    %v130 = vld [vmem:[#allocation2 + $0x38] sm:$0xff]
    %v131 = vld [vmem:[#allocation2 + $0x40] sm:$0xff]
    %v132 = vld [vmem:[#allocation2 + $0x48] sm:$0xff]
    %v133 = vld [vmem:[#allocation2 + $0x50] sm:$0xff]
    %v134 = vld [vmem:[#allocation2 + $0x58] sm:$0xff]
    %v135 = vld [vmem:[#allocation2 + $0x60] sm:$0xff]
    %v136 = vld [vmem:[#allocation2 + $0x68] sm:$0xff]
    %v137 = vld [vmem:[#allocation2 + $0x70] sm:$0xff]
    %v138 = vld [vmem:[#allocation2 + $0x78] sm:$0xff]
    %v139 = vld [vmem:[#allocation2 + $0x80] sm:$0xff]
    %v140 = vld [vmem:[#allocation2 + $0x88] sm:$0xff]
    %v141 = vld [vmem:[#allocation2 + $0x90] sm:$0xff]
    %v142 = vld [vmem:[#allocation2 + $0x98] sm:$0xff]
    %v143 = vld [vmem:[#allocation2 + $0xa0] sm:$0xff]
    %v144 = vld [vmem:[#allocation2 + $0xa8] sm:$0xff]
    %v145 = vld [vmem:[#allocation2 + $0xb0] sm:$0xff]
    %v146 = vld [vmem:[#allocation2 + $0xb8] sm:$0xff]
    %v147 = vld [vmem:[#allocation2 + $0xc0] sm:$0xff]
    %v148 = vld [vmem:[#allocation2 + $0xc8] sm:$0xff]
    %v149 = vld [vmem:[#allocation2 + $0xd0] sm:$0xff]
    %v150 = vld [vmem:[#allocation2 + $0xd8] sm:$0xff]
    %v151 = vld [vmem:[#allocation2 + $0xe0] sm:$0xff]
    %v152 = vld [vmem:[#allocation2 + $0xe8] sm:$0xff]
    %v153 = vld [vmem:[#allocation2 + $0xf0] sm:$0xff]
    %v154 = vld [vmem:[#allocation2 + $0xf8] sm:$0xff]
    %v155 = vld [vmem:[#allocation2 + $0x100] sm:$0xff]
    %v156 = vld [vmem:[#allocation2 + $0x108] sm:$0xff]
    %v157 = vld [vmem:[#allocation2 + $0x110] sm:$0xff]
    %v158 = vld [vmem:[#allocation2 + $0x118] sm:$0xff]
    %v159 = vld [vmem:[#allocation2 + $0x120] sm:$0xff]
    %v160 = vld [vmem:[#allocation2 + $0x128] sm:$0xff]
    %v161 = vld [vmem:[#allocation2 + $0x130] sm:$0xff]
    %v162 = vld [vmem:[#allocation2 + $0x138] sm:$0xff]
    %v163 = vld [vmem:[#allocation2 + $0x140] sm:$0xff]
    %v164 = vld [vmem:[#allocation2 + $0x148] sm:$0xff]
    %v165 = vld [vmem:[#allocation2 + $0x150] sm:$0xff]
    %v166 = vld [vmem:[#allocation2 + $0x158] sm:$0xff]
    %v167 = vld [vmem:[#allocation2 + $0x160] sm:$0xff]
    %v168 = vld [vmem:[#allocation2 + $0x168] sm:$0xff]
    %v169 = vld [vmem:[#allocation2 + $0x170] sm:$0xff]
    %v170 = vld [vmem:[#allocation2 + $0x178] sm:$0xff]
    %v171 = vld [vmem:[#allocation2 + $0x180] sm:$0xff]
    %v172 = vld [vmem:[#allocation2 + $0x188] sm:$0xff]
    %v173 = vld [vmem:[#allocation2 + $0x190] sm:$0xff]
    %v174 = vld [vmem:[#allocation2 + $0x198] sm:$0xff]
    %v175 = vld [vmem:[#allocation2 + $0x1a0] sm:$0xff]
    %v176 = vld [vmem:[#allocation2 + $0x1a8] sm:$0xff]
    %v177 = vld [vmem:[#allocation2 + $0x1b0] sm:$0xff]
    %v178 = vld [vmem:[#allocation2 + $0x1b8] sm:$0xff]
    %v179 = vld [vmem:[#allocation2 + $0x1c0] sm:$0xff]
    %v180 = vld [vmem:[#allocation2 + $0x1c8] sm:$0xff]
    %v181 = vld [vmem:[#allocation2 + $0x1d0] sm:$0xff]
    %v182 = vld [vmem:[#allocation2 + $0x1d8] sm:$0xff]
    %v183 = vld [vmem:[#allocation2 + $0x1e0] sm:$0xff]
    %v184 = vld [vmem:[#allocation2 + $0x1e8] sm:$0xff]
    %v185 = vld [vmem:[#allocation2 + $0x1f0] sm:$0xff]
    %v186 = vld [vmem:[#allocation2 + $0x1f8] sm:$0xff]
    %v187 = vld [vmem:[#allocation3] sm:$0xf]
    %v188 = vld [vmem:[#allocation3 + $0x4] sm:$0xf]
    %v189 = vld [vmem:[#allocation3 + $0x8] sm:$0xf]
    %v190 = vld [vmem:[#allocation3 + $0xc] sm:$0xf]
    %v191 = vld [vmem:[#allocation3 + $0x10] sm:$0xf]
    %v192 = vld [vmem:[#allocation3 + $0x14] sm:$0xf]
    %v193 = vld [vmem:[#allocation3 + $0x18] sm:$0xf]
    %v194 = vld [vmem:[#allocation3 + $0x1c] sm:$0xf]
    %v195 = vld [vmem:[#allocation3 + $0x20] sm:$0xf]
    %v196 = vld [vmem:[#allocation3 + $0x24] sm:$0xf]
    %v197 = vld [vmem:[#allocation3 + $0x28] sm:$0xf]
    %v198 = vld [vmem:[#allocation3 + $0x2c] sm:$0xf]
    %v199 = vld [vmem:[#allocation3 + $0x30] sm:$0xf]
    %v200 = vld [vmem:[#allocation3 + $0x34] sm:$0xf]
    %v201 = vld [vmem:[#allocation3 + $0x38] sm:$0xf]
    %v202 = vld [vmem:[#allocation3 + $0x3c] sm:$0xf]
    %v203 = vld [vmem:[#allocation6] sm:$0xff]
    %v204 = vld [vmem:[#allocation6 + $0x8] sm:$0xff]
    %v205 = vld [vmem:[#allocation6 + $0x10] sm:$0xff]
    %v206 = vld [vmem:[#allocation6 + $0x18] sm:$0xff]
    %v207 = vld [vmem:[#allocation6 + $0x20] sm:$0xff]
    %v208 = vld [vmem:[#allocation6 + $0x28] sm:$0xff]
    %v209 = vld [vmem:[#allocation6 + $0x30] sm:$0xff]
    %v210 = vld [vmem:[#allocation6 + $0x38] sm:$0xff]
    %v211 = vld [vmem:[#allocation6 + $0x40] sm:$0xff]
    %v212 = vld [vmem:[#allocation6 + $0x48] sm:$0xff]
    %v213 = vld [vmem:[#allocation6 + $0x50] sm:$0xff]
    %v214 = vld [vmem:[#allocation6 + $0x58] sm:$0xff]
    %v215 = vld [vmem:[#allocation6 + $0x60] sm:$0xff]
    %v216 = vld [vmem:[#allocation6 + $0x68] sm:$0xff]
    %v217 = vld [vmem:[#allocation6 + $0x70] sm:$0xff]
    %v218 = vld [vmem:[#allocation6 + $0x78] sm:$0xff]
    %v219 = vld [vmem:[#allocation6 + $0x80] sm:$0xff]
    %v220 = vld [vmem:[#allocation6 + $0x88] sm:$0xff]
    %v221 = vld [vmem:[#allocation6 + $0x90] sm:$0xff]
    %v222 = vld [vmem:[#allocation6 + $0x98] sm:$0xff]
    %v223 = vld [vmem:[#allocation6 + $0xa0] sm:$0xff]
    %v224 = vld [vmem:[#allocation6 + $0xa8] sm:$0xff]
    %v225 = vld [vmem:[#allocation6 + $0xb0] sm:$0xff]
    %v226 = vld [vmem:[#allocation6 + $0xb8] sm:$0xff]
    %v227 = vld [vmem:[#allocation6 + $0xc0] sm:$0xff]
    %v228 = vld [vmem:[#allocation6 + $0xc8] sm:$0xff]
    %v229 = vld [vmem:[#allocation6 + $0xd0] sm:$0xff]
    %v230 = vld [vmem:[#allocation6 + $0xd8] sm:$0xff]
    %v231 = vld [vmem:[#allocation6 + $0xe0] sm:$0xff]
    %v232 = vld [vmem:[#allocation6 + $0xe8] sm:$0xff]
    %v233 = vld [vmem:[#allocation6 + $0xf0] sm:$0xff]
    %v234 = vld [vmem:[#allocation6 + $0xf8] sm:$0xff]
    %v251 = vunpack.c.l.b16 %v187
    %v252 = vunpack.c.l.b16 %v188
    %v253 = vunpack.c.l.b16 %v189
    %v254 = vunpack.c.l.b16 %v190
    %v255 = vunpack.c.l.b16 %v191
    %v256 = vunpack.c.l.b16 %v192
    %v257 = vunpack.c.l.b16 %v193
    %v258 = vunpack.c.l.b16 %v194
    %v259 = vunpack.c.l.b16 %v195
    %v260 = vunpack.c.l.b16 %v196
    %v261 = vunpack.c.l.b16 %v197
    %v262 = vunpack.c.l.b16 %v198
    %v263 = vunpack.c.l.b16 %v199
    %v264 = vunpack.c.l.b16 %v200
    %v265 = vunpack.c.l.b16 %v201
    %v266 = vunpack.c.l.b16 %v202
    %v267 = vpack.c.b16 %v252, %v251
    %v268 = vpack.c.b16 %v254, %v253
    %v269 = vpack.c.b16 %v256, %v255
    %v270 = vpack.c.b16 %v258, %v257
    %v271 = vpack.c.b16 %v260, %v259
    %v272 = vpack.c.b16 %v262, %v261
    %v273 = vpack.c.b16 %v264, %v263
    %v274 = vpack.c.b16 %v266, %v265
    %v315 = vunpack.c.l.b16 %v203
    %v316 = vunpack.c.h.b16 %v203
    %v317 = vunpack.c.l.b16 %v204
    %v318 = vunpack.c.h.b16 %v204
    %v319 = vunpack.c.l.b16 %v205
    %v320 = vunpack.c.h.b16 %v205
    %v321 = vunpack.c.l.b16 %v206
    %v322 = vunpack.c.h.b16 %v206
    %v323 = vunpack.c.l.b16 %v207
    %v324 = vunpack.c.h.b16 %v207
    %v325 = vunpack.c.l.b16 %v208
    %v326 = vunpack.c.h.b16 %v208
    %v327 = vunpack.c.l.b16 %v209
    %v328 = vunpack.c.h.b16 %v209
    %v329 = vunpack.c.l.b16 %v210
    %v330 = vunpack.c.h.b16 %v210
    %v331 = vunpack.c.l.b16 %v211
    %v332 = vunpack.c.h.b16 %v211
    %v333 = vunpack.c.l.b16 %v212
    %v334 = vunpack.c.h.b16 %v212
    %v335 = vunpack.c.l.b16 %v213
    %v336 = vunpack.c.h.b16 %v213
    %v337 = vunpack.c.l.b16 %v214
    %v338 = vunpack.c.h.b16 %v214
    %v339 = vunpack.c.l.b16 %v215
    %v340 = vunpack.c.h.b16 %v215
    %v341 = vunpack.c.l.b16 %v216
    %v342 = vunpack.c.h.b16 %v216
    %v343 = vunpack.c.l.b16 %v217
    %v344 = vunpack.c.h.b16 %v217
    %v345 = vunpack.c.l.b16 %v218
    %v346 = vunpack.c.h.b16 %v218
    %v347 = vunpack.c.l.b16 %v219
    %v348 = vunpack.c.h.b16 %v219
    %v349 = vunpack.c.l.b16 %v220
    %v350 = vunpack.c.h.b16 %v220
    %v351 = vunpack.c.l.b16 %v221
    %v352 = vunpack.c.h.b16 %v221
    %v353 = vunpack.c.l.b16 %v222
    %v354 = vunpack.c.h.b16 %v222
    %v355 = vunpack.c.l.b16 %v223
    %v356 = vunpack.c.h.b16 %v223
    %v357 = vunpack.c.l.b16 %v224
    %v358 = vunpack.c.h.b16 %v224
    %v359 = vunpack.c.l.b16 %v225
    %v360 = vunpack.c.h.b16 %v225
    %v361 = vunpack.c.l.b16 %v226
    %v362 = vunpack.c.h.b16 %v226
    %v363 = vunpack.c.l.b16 %v227
    %v364 = vunpack.c.h.b16 %v227
    %v365 = vunpack.c.l.b16 %v228
    %v366 = vunpack.c.h.b16 %v228
    %v367 = vunpack.c.l.b16 %v229
    %v368 = vunpack.c.h.b16 %v229
    %v369 = vunpack.c.l.b16 %v230
    %v370 = vunpack.c.h.b16 %v230
    %v371 = vunpack.c.l.b16 %v231
    %v372 = vunpack.c.h.b16 %v231
    %v373 = vunpack.c.l.b16 %v232
    %v374 = vunpack.c.h.b16 %v232
    %v375 = vunpack.c.l.b16 %v233
    %v376 = vunpack.c.h.b16 %v233
    %v377 = vunpack.c.l.b16 %v234
    %v378 = vunpack.c.h.b16 %v234
    %v379 = vpack.c.b16 %v319, %v315
    %v380 = vpack.c.b16 %v320, %v316
    %v381 = vpack.c.b16 %v321, %v317
    %v382 = vpack.c.b16 %v322, %v318
    %v383 = vpack.c.b16 %v327, %v323
    %v384 = vpack.c.b16 %v328, %v324
    %v385 = vpack.c.b16 %v329, %v325
    %v386 = vpack.c.b16 %v330, %v326
    %v387 = vpack.c.b16 %v335, %v331
    %v388 = vpack.c.b16 %v336, %v332
    %v389 = vpack.c.b16 %v337, %v333
    %v390 = vpack.c.b16 %v338, %v334
    %v391 = vpack.c.b16 %v343, %v339
    %v392 = vpack.c.b16 %v344, %v340
    %v393 = vpack.c.b16 %v345, %v341
    %v394 = vpack.c.b16 %v346, %v342
    %v395 = vpack.c.b16 %v351, %v347
    %v396 = vpack.c.b16 %v352, %v348
    %v397 = vpack.c.b16 %v353, %v349
    %v398 = vpack.c.b16 %v354, %v350
    %v399 = vpack.c.b16 %v359, %v355
    %v400 = vpack.c.b16 %v360, %v356
    %v401 = vpack.c.b16 %v361, %v357
    %v402 = vpack.c.b16 %v362, %v358
    %v403 = vpack.c.b16 %v367, %v363
    %v404 = vpack.c.b16 %v368, %v364
    %v405 = vpack.c.b16 %v369, %v365
    %v406 = vpack.c.b16 %v370, %v366
    %v407 = vpack.c.b16 %v375, %v371
    %v408 = vpack.c.b16 %v376, %v372
    %v409 = vpack.c.b16 %v377, %v373
    %v410 = vpack.c.b16 %v378, %v374
    %443 = vmatprep.subr.bf16.mxu0 %v380
    %444 = vmatpush1.bf16.msra.mxu0 %v379
    %445 = vmatprep.subr.bf16.mxu0 %v384
    %446 = vmatpush1.bf16.msra.mxu0 %v383
    %447 = vmatprep.subr.bf16.mxu0 %v388
    %448 = vmatpush1.bf16.msra.mxu0 %v387
    %449 = vmatprep.subr.bf16.mxu0 %v392
    %450 = vmatpush1.bf16.msra.mxu0 %v391
    %451 = vmatprep.subr.bf16.mxu0 %v396
    %452 = vmatpush1.bf16.msra.mxu0 %v395
    %453 = vmatprep.subr.bf16.mxu0 %v400
    %454 = vmatpush1.bf16.msra.mxu0 %v399
    %455 = vmatprep.subr.bf16.mxu0 %v404
    %456 = vmatpush1.bf16.msra.mxu0 %v403
    %457 = vmatprep.subr.bf16.mxu0 %v408
    %458 = vmatpush1.bf16.msra.mxu0 %v407
    %459 = vmatprep.subr.bf16.mxu0 0
    %460 = vmatpush1.bf16.msra.mxu0 0
    %461 = vmatprep.subr.bf16.mxu0 0
    %462 = vmatpush1.bf16.msra.mxu0 0
    %463 = vmatprep.subr.bf16.mxu0 0
    %464 = vmatpush1.bf16.msra.mxu0 0
    %465 = vmatprep.subr.bf16.mxu0 0
    %466 = vmatpush1.bf16.msra.mxu0 0
    %467 = vmatprep.subr.bf16.mxu0 0
    %468 = vmatpush1.bf16.msra.mxu0 0
    %469 = vmatprep.subr.bf16.mxu0 0
    %470 = vmatpush1.bf16.msra.mxu0 0
    %471 = vmatprep.subr.bf16.mxu0 0
    %472 = vmatpush1.bf16.msra.mxu0 0
    %473 = vmatprep.subr.bf16.mxu0 0
    %474 = vmatpush1.bf16.msra.mxu0 0
    %475 = vmatprep.mubr.bf16.mxu0 0
    %476 = vmatmul.mubr.bf16.gmra.mrb[0].mxu0 %v267
    %v477 = vpop.f32.mrb[0].mxu0
    %v478 = vadd.f32 0.0, %v477
    %v479 = vpop.f32.mrb[0].mxu0
    %v480 = vadd.f32 0.0, %v479
    %v481 = vpop.f32.mrb[0].mxu0
    %v482 = vadd.f32 0.0, %v481
    %v483 = vpop.f32.mrb[0].mxu0
    %v484 = vadd.f32 0.0, %v483
    %485 = vmatprep.mubr.bf16.mxu0 0
    %486 = vmatmul.mubr.bf16.gmra.mrb[0].mxu0 %v268
    %v487 = vpop.f32.mrb[0].mxu0
    %v488 = vadd.f32 0.0, %v487
    %v489 = vpop.f32.mrb[0].mxu0
    %v490 = vadd.f32 0.0, %v489
    %v491 = vpop.f32.mrb[0].mxu0
    %v492 = vadd.f32 0.0, %v491
    %v493 = vpop.f32.mrb[0].mxu0
    %v494 = vadd.f32 0.0, %v493
    %495 = vmatprep.mubr.bf16.mxu0 0
    %496 = vmatmul.mubr.bf16.gmra.mrb[0].mxu0 %v269
    %v497 = vpop.f32.mrb[0].mxu0
    %v498 = vadd.f32 0.0, %v497
    %v499 = vpop.f32.mrb[0].mxu0
    %v500 = vadd.f32 0.0, %v499
    %v501 = vpop.f32.mrb[0].mxu0
    %v502 = vadd.f32 0.0, %v501
    %v503 = vpop.f32.mrb[0].mxu0
    %v504 = vadd.f32 0.0, %v503
    %505 = vmatprep.mubr.bf16.mxu0 0
    %506 = vmatmul.mubr.bf16.gmra.mrb[0].mxu0 %v270
    %v507 = vpop.f32.mrb[0].mxu0
    %v508 = vadd.f32 0.0, %v507
    %v509 = vpop.f32.mrb[0].mxu0
    %v510 = vadd.f32 0.0, %v509
    %v511 = vpop.f32.mrb[0].mxu0
    %v512 = vadd.f32 0.0, %v511
    %v513 = vpop.f32.mrb[0].mxu0
    %v514 = vadd.f32 0.0, %v513
    %515 = vmatprep.mubr.bf16.mxu0 0
    %516 = vmatmul.mubr.bf16.gmra.mrb[0].mxu0 %v271
    %v517 = vpop.f32.mrb[0].mxu0
    %v518 = vadd.f32 0.0, %v517
    %v519 = vpop.f32.mrb[0].mxu0
    %v520 = vadd.f32 0.0, %v519
    %v521 = vpop.f32.mrb[0].mxu0
    %v522 = vadd.f32 0.0, %v521
    %v523 = vpop.f32.mrb[0].mxu0
    %v524 = vadd.f32 0.0, %v523
    %525 = vmatprep.mubr.bf16.mxu0 0
    %526 = vmatmul.mubr.bf16.gmra.mrb[0].mxu0 %v272
    %v527 = vpop.f32.mrb[0].mxu0
    %v528 = vadd.f32 0.0, %v527
    %v529 = vpop.f32.mrb[0].mxu0
    %v530 = vadd.f32 0.0, %v529
    %v531 = vpop.f32.mrb[0].mxu0
    %v532 = vadd.f32 0.0, %v531
    %v533 = vpop.f32.mrb[0].mxu0
    %v534 = vadd.f32 0.0, %v533
    %535 = vmatprep.mubr.bf16.mxu0 0
    %536 = vmatmul.mubr.bf16.gmra.mrb[0].mxu0 %v273
    %v537 = vpop.f32.mrb[0].mxu0
    %v538 = vadd.f32 0.0, %v537
    %v539 = vpop.f32.mrb[0].mxu0
    %v540 = vadd.f32 0.0, %v539
    %v541 = vpop.f32.mrb[0].mxu0
    %v542 = vadd.f32 0.0, %v541
    %v543 = vpop.f32.mrb[0].mxu0
    %v544 = vadd.f32 0.0, %v543
    %545 = vmatprep.mubr.bf16.mxu0 0
    %546 = vmatmul.mubr.bf16.gmra.mrb[0].mxu0 %v274
    %v547 = vpop.f32.mrb[0].mxu0
    %v548 = vadd.f32 0.0, %v547
    %v549 = vpop.f32.mrb[0].mxu0
    %v550 = vadd.f32 0.0, %v549
    %v551 = vpop.f32.mrb[0].mxu0
    %v552 = vadd.f32 0.0, %v551
    %v553 = vpop.f32.mrb[0].mxu0
    %v554 = vadd.f32 0.0, %v553
    %555 = vdwg.mxu0
    %556 = vmatprep.subr.bf16.mxu0 %v382
    %557 = vmatpush1.bf16.msra.mxu0 %v381
    %558 = vmatprep.subr.bf16.mxu0 %v386
    %559 = vmatpush1.bf16.msra.mxu0 %v385
    %560 = vmatprep.subr.bf16.mxu0 %v390
    %561 = vmatpush1.bf16.msra.mxu0 %v389
    %562 = vmatprep.subr.bf16.mxu0 %v394
    %563 = vmatpush1.bf16.msra.mxu0 %v393
    %564 = vmatprep.subr.bf16.mxu0 %v398
    %565 = vmatpush1.bf16.msra.mxu0 %v397
    %566 = vmatprep.subr.bf16.mxu0 %v402
    %567 = vmatpush1.bf16.msra.mxu0 %v401
    %568 = vmatprep.subr.bf16.mxu0 %v406
    %569 = vmatpush1.bf16.msra.mxu0 %v405
    %570 = vmatprep.subr.bf16.mxu0 %v410
    %571 = vmatpush1.bf16.msra.mxu0 %v409
    %572 = vmatprep.subr.bf16.mxu0 0
    %573 = vmatpush1.bf16.msra.mxu0 0
    %574 = vmatprep.subr.bf16.mxu0 0
    %575 = vmatpush1.bf16.msra.mxu0 0
    %576 = vmatprep.subr.bf16.mxu0 0
    %577 = vmatpush1.bf16.msra.mxu0 0
    %578 = vmatprep.subr.bf16.mxu0 0
    %579 = vmatpush1.bf16.msra.mxu0 0
    %580 = vmatprep.subr.bf16.mxu0 0
    %581 = vmatpush1.bf16.msra.mxu0 0
    %582 = vmatprep.subr.bf16.mxu0 0
    %583 = vmatpush1.bf16.msra.mxu0 0
    %584 = vmatprep.subr.bf16.mxu0 0
    %585 = vmatpush1.bf16.msra.mxu0 0
    %586 = vmatprep.subr.bf16.mxu0 0
    %587 = vmatpush1.bf16.msra.mxu0 0
    %588 = vmatprep.mubr.bf16.mxu0 0
    %589 = vmatmul.mubr.bf16.gmra.mrb[0].mxu0 %v267
    %v590 = vpop.f32.mrb[0].mxu0
    %v591 = vadd.f32 0.0, %v590
    %v592 = vpop.f32.mrb[0].mxu0
    %v593 = vadd.f32 0.0, %v592
    %v594 = vpop.f32.mrb[0].mxu0
    %v595 = vadd.f32 0.0, %v594
    %v596 = vpop.f32.mrb[0].mxu0
    %v597 = vadd.f32 0.0, %v596
    %598 = vmatprep.mubr.bf16.mxu0 0
    %599 = vmatmul.mubr.bf16.gmra.mrb[0].mxu0 %v268
    %v600 = vpop.f32.mrb[0].mxu0
    %v601 = vadd.f32 0.0, %v600
    %v602 = vpop.f32.mrb[0].mxu0
    %v603 = vadd.f32 0.0, %v602
    %v604 = vpop.f32.mrb[0].mxu0
    %v605 = vadd.f32 0.0, %v604
    %v606 = vpop.f32.mrb[0].mxu0
    %v607 = vadd.f32 0.0, %v606
    %608 = vmatprep.mubr.bf16.mxu0 0
    %609 = vmatmul.mubr.bf16.gmra.mrb[0].mxu0 %v269
    %v610 = vpop.f32.mrb[0].mxu0
    %v611 = vadd.f32 0.0, %v610
    %v612 = vpop.f32.mrb[0].mxu0
    %v613 = vadd.f32 0.0, %v612
    %v614 = vpop.f32.mrb[0].mxu0
    %v615 = vadd.f32 0.0, %v614
    %v616 = vpop.f32.mrb[0].mxu0
    %v617 = vadd.f32 0.0, %v616
    %618 = vmatprep.mubr.bf16.mxu0 0
    %619 = vmatmul.mubr.bf16.gmra.mrb[0].mxu0 %v270
    %v620 = vpop.f32.mrb[0].mxu0
    %v621 = vadd.f32 0.0, %v620
    %v622 = vpop.f32.mrb[0].mxu0
    %v623 = vadd.f32 0.0, %v622
    %v624 = vpop.f32.mrb[0].mxu0
    %v625 = vadd.f32 0.0, %v624
    %v626 = vpop.f32.mrb[0].mxu0
    %v627 = vadd.f32 0.0, %v626
    %628 = vmatprep.mubr.bf16.mxu0 0
    %629 = vmatmul.mubr.bf16.gmra.mrb[0].mxu0 %v271
    %v630 = vpop.f32.mrb[0].mxu0
    %v631 = vadd.f32 0.0, %v630
    %v632 = vpop.f32.mrb[0].mxu0
    %v633 = vadd.f32 0.0, %v632
    %v634 = vpop.f32.mrb[0].mxu0
    %v635 = vadd.f32 0.0, %v634
    %v636 = vpop.f32.mrb[0].mxu0
    %v637 = vadd.f32 0.0, %v636
    %638 = vmatprep.mubr.bf16.mxu0 0
    %639 = vmatmul.mubr.bf16.gmra.mrb[0].mxu0 %v272
    %v640 = vpop.f32.mrb[0].mxu0
    %v641 = vadd.f32 0.0, %v640
    %v642 = vpop.f32.mrb[0].mxu0
    %v643 = vadd.f32 0.0, %v642
    %v644 = vpop.f32.mrb[0].mxu0
    %v645 = vadd.f32 0.0, %v644
    %v646 = vpop.f32.mrb[0].mxu0
    %v647 = vadd.f32 0.0, %v646
    %648 = vmatprep.mubr.bf16.mxu0 0
    %649 = vmatmul.mubr.bf16.gmra.mrb[0].mxu0 %v273
    %v650 = vpop.f32.mrb[0].mxu0
    %v651 = vadd.f32 0.0, %v650
    %v652 = vpop.f32.mrb[0].mxu0
    %v653 = vadd.f32 0.0, %v652
    %v654 = vpop.f32.mrb[0].mxu0
    %v655 = vadd.f32 0.0, %v654
    %v656 = vpop.f32.mrb[0].mxu0
    %v657 = vadd.f32 0.0, %v656
    %658 = vmatprep.mubr.bf16.mxu0 0
    %659 = vmatmul.mubr.bf16.gmra.mrb[0].mxu0 %v274
    %v660 = vpop.f32.mrb[0].mxu0
    %v661 = vadd.f32 0.0, %v660
    %v662 = vpop.f32.mrb[0].mxu0
    %v663 = vadd.f32 0.0, %v662
    %v664 = vpop.f32.mrb[0].mxu0
    %v665 = vadd.f32 0.0, %v664
    %v666 = vpop.f32.mrb[0].mxu0
    %v667 = vadd.f32 0.0, %v666
    %668 = vdwg.mxu0
    %v669 = vadd.f32 %v123, %v478
    %v670 = vadd.f32 %v124, %v480
    %v671 = vadd.f32 %v125, %v591
    %v672 = vadd.f32 %v126, %v593
    %v673 = vadd.f32 %v127, %v482
    %v674 = vadd.f32 %v128, %v484
    %v675 = vadd.f32 %v129, %v595
    %v676 = vadd.f32 %v130, %v597
    %v677 = vadd.f32 %v131, %v488
    %v678 = vadd.f32 %v132, %v490
    %v679 = vadd.f32 %v133, %v601
    %v680 = vadd.f32 %v134, %v603
    %v681 = vadd.f32 %v135, %v492
    %v682 = vadd.f32 %v136, %v494
    %v683 = vadd.f32 %v137, %v605
    %v684 = vadd.f32 %v138, %v607
    %v685 = vadd.f32 %v139, %v498
    %v686 = vadd.f32 %v140, %v500
    %v687 = vadd.f32 %v141, %v611
    %v688 = vadd.f32 %v142, %v613
    %v689 = vadd.f32 %v143, %v502
    %v690 = vadd.f32 %v144, %v504
    %v691 = vadd.f32 %v145, %v615
    %v692 = vadd.f32 %v146, %v617
    %v693 = vadd.f32 %v147, %v508
    %v694 = vadd.f32 %v148, %v510
    %v695 = vadd.f32 %v149, %v621
    %v696 = vadd.f32 %v150, %v623
    %v697 = vadd.f32 %v151, %v512
    %v698 = vadd.f32 %v152, %v514
    %v699 = vadd.f32 %v153, %v625
    %v700 = vadd.f32 %v154, %v627
    %v701 = vadd.f32 %v155, %v518
    %v702 = vadd.f32 %v156, %v520
    %v703 = vadd.f32 %v157, %v631
    %v704 = vadd.f32 %v158, %v633
    %v705 = vadd.f32 %v159, %v522
    %v706 = vadd.f32 %v160, %v524
    %v707 = vadd.f32 %v161, %v635
    %v708 = vadd.f32 %v162, %v637
    %v709 = vadd.f32 %v163, %v528
    %v710 = vadd.f32 %v164, %v530
    %v711 = vadd.f32 %v165, %v641
    %v712 = vadd.f32 %v166, %v643
    %v713 = vadd.f32 %v167, %v532
    %v714 = vadd.f32 %v168, %v534
    %v715 = vadd.f32 %v169, %v645
    %v716 = vadd.f32 %v170, %v647
    %v717 = vadd.f32 %v171, %v538
    %v718 = vadd.f32 %v172, %v540
    %v719 = vadd.f32 %v173, %v651
    %v720 = vadd.f32 %v174, %v653
    %v721 = vadd.f32 %v175, %v542
    %v722 = vadd.f32 %v176, %v544
    %v723 = vadd.f32 %v177, %v655
    %v724 = vadd.f32 %v178, %v657
    %v725 = vadd.f32 %v179, %v548
    %v726 = vadd.f32 %v180, %v550
    %v727 = vadd.f32 %v181, %v661
    %v728 = vadd.f32 %v182, %v663
    %v729 = vadd.f32 %v183, %v552
    %v730 = vadd.f32 %v184, %v554
    %v731 = vadd.f32 %v185, %v665
    %v732 = vadd.f32 %v186, %v667
    %733 = vst [vmem:[#allocation2] sm:$0xff] %v669
    %734 = vst [vmem:[#allocation2 + $0x8] sm:$0xff] %v670
    %735 = vst [vmem:[#allocation2 + $0x10] sm:$0xff] %v671
    %736 = vst [vmem:[#allocation2 + $0x18] sm:$0xff] %v672
    %737 = vst [vmem:[#allocation2 + $0x20] sm:$0xff] %v673
    %738 = vst [vmem:[#allocation2 + $0x28] sm:$0xff] %v674
    %739 = vst [vmem:[#allocation2 + $0x30] sm:$0xff] %v675
    %740 = vst [vmem:[#allocation2 + $0x38] sm:$0xff] %v676
    %741 = vst [vmem:[#allocation2 + $0x40] sm:$0xff] %v677
    %742 = vst [vmem:[#allocation2 + $0x48] sm:$0xff] %v678
    %743 = vst [vmem:[#allocation2 + $0x50] sm:$0xff] %v679
    %744 = vst [vmem:[#allocation2 + $0x58] sm:$0xff] %v680
    %745 = vst [vmem:[#allocation2 + $0x60] sm:$0xff] %v681
    %746 = vst [vmem:[#allocation2 + $0x68] sm:$0xff] %v682
    %747 = vst [vmem:[#allocation2 + $0x70] sm:$0xff] %v683
    %748 = vst [vmem:[#allocation2 + $0x78] sm:$0xff] %v684
    %749 = vst [vmem:[#allocation2 + $0x80] sm:$0xff] %v685
    %750 = vst [vmem:[#allocation2 + $0x88] sm:$0xff] %v686
    %751 = vst [vmem:[#allocation2 + $0x90] sm:$0xff] %v687
    %752 = vst [vmem:[#allocation2 + $0x98] sm:$0xff] %v688
    %753 = vst [vmem:[#allocation2 + $0xa0] sm:$0xff] %v689
    %754 = vst [vmem:[#allocation2 + $0xa8] sm:$0xff] %v690
    %755 = vst [vmem:[#allocation2 + $0xb0] sm:$0xff] %v691
    %756 = vst [vmem:[#allocation2 + $0xb8] sm:$0xff] %v692
    %757 = vst [vmem:[#allocation2 + $0xc0] sm:$0xff] %v693
    %758 = vst [vmem:[#allocation2 + $0xc8] sm:$0xff] %v694
    %759 = vst [vmem:[#allocation2 + $0xd0] sm:$0xff] %v695
    %760 = vst [vmem:[#allocation2 + $0xd8] sm:$0xff] %v696
    %761 = vst [vmem:[#allocation2 + $0xe0] sm:$0xff] %v697
    %762 = vst [vmem:[#allocation2 + $0xe8] sm:$0xff] %v698
    %763 = vst [vmem:[#allocation2 + $0xf0] sm:$0xff] %v699
    %764 = vst [vmem:[#allocation2 + $0xf8] sm:$0xff] %v700
    %765 = vst [vmem:[#allocation2 + $0x100] sm:$0xff] %v701
    %766 = vst [vmem:[#allocation2 + $0x108] sm:$0xff] %v702
    %767 = vst [vmem:[#allocation2 + $0x110] sm:$0xff] %v703
    %768 = vst [vmem:[#allocation2 + $0x118] sm:$0xff] %v704
    %769 = vst [vmem:[#allocation2 + $0x120] sm:$0xff] %v705
    %770 = vst [vmem:[#allocation2 + $0x128] sm:$0xff] %v706
    %771 = vst [vmem:[#allocation2 + $0x130] sm:$0xff] %v707
    %772 = vst [vmem:[#allocation2 + $0x138] sm:$0xff] %v708
    %773 = vst [vmem:[#allocation2 + $0x140] sm:$0xff] %v709
    %774 = vst [vmem:[#allocation2 + $0x148] sm:$0xff] %v710
    %775 = vst [vmem:[#allocation2 + $0x150] sm:$0xff] %v711
    %776 = vst [vmem:[#allocation2 + $0x158] sm:$0xff] %v712
    %777 = vst [vmem:[#allocation2 + $0x160] sm:$0xff] %v713
    %778 = vst [vmem:[#allocation2 + $0x168] sm:$0xff] %v714
    %779 = vst [vmem:[#allocation2 + $0x170] sm:$0xff] %v715
    %780 = vst [vmem:[#allocation2 + $0x178] sm:$0xff] %v716
    %781 = vst [vmem:[#allocation2 + $0x180] sm:$0xff] %v717
    %782 = vst [vmem:[#allocation2 + $0x188] sm:$0xff] %v718
    %783 = vst [vmem:[#allocation2 + $0x190] sm:$0xff] %v719
    %784 = vst [vmem:[#allocation2 + $0x198] sm:$0xff] %v720
    %785 = vst [vmem:[#allocation2 + $0x1a0] sm:$0xff] %v721
    %786 = vst [vmem:[#allocation2 + $0x1a8] sm:$0xff] %v722
    %787 = vst [vmem:[#allocation2 + $0x1b0] sm:$0xff] %v723
    %788 = vst [vmem:[#allocation2 + $0x1b8] sm:$0xff] %v724
    %789 = vst [vmem:[#allocation2 + $0x1c0] sm:$0xff] %v725
    %790 = vst [vmem:[#allocation2 + $0x1c8] sm:$0xff] %v726
    %791 = vst [vmem:[#allocation2 + $0x1d0] sm:$0xff] %v727
    %792 = vst [vmem:[#allocation2 + $0x1d8] sm:$0xff] %v728
    %793 = vst [vmem:[#allocation2 + $0x1e0] sm:$0xff] %v729
    %794 = vst [vmem:[#allocation2 + $0x1e8] sm:$0xff] %v730
    %795 = vst [vmem:[#allocation2 + $0x1f0] sm:$0xff] %v731
    %796 = vst [vmem:[#allocation2 + $0x1f8] sm:$0xff] %v732
    // Predicated region
    $region30: #{rnnlm_forward.5} parent=1 // pred_check
      %p797 = pneg %p55
    $region31: #{rnnlm_forward.5} parent=1 // pred_check_branch
      %799 = sbr.rel (%p797) target = $region33
    $region32: #{rnnlm_forward.5} parent=1 // pred_region
      %v800 = vld [vmem:[#allocation2] sm:$0xff]
      %v801 = vld [vmem:[#allocation2 + $0x8] sm:$0xff]
      %v802 = vld [vmem:[#allocation2 + $0x10] sm:$0xff]
      %v803 = vld [vmem:[#allocation2 + $0x18] sm:$0xff]
      %v804 = vld [vmem:[#allocation2 + $0x20] sm:$0xff]
      %v805 = vld [vmem:[#allocation2 + $0x28] sm:$0xff]
      %v806 = vld [vmem:[#allocation2 + $0x30] sm:$0xff]
      %v807 = vld [vmem:[#allocation2 + $0x38] sm:$0xff]
      %v808 = vld [vmem:[#allocation2 + $0x40] sm:$0xff]
      %v809 = vld [vmem:[#allocation2 + $0x48] sm:$0xff]
      %v810 = vld [vmem:[#allocation2 + $0x50] sm:$0xff]
      %v811 = vld [vmem:[#allocation2 + $0x58] sm:$0xff]
      %v812 = vld [vmem:[#allocation2 + $0x60] sm:$0xff]
      %v813 = vld [vmem:[#allocation2 + $0x68] sm:$0xff]
      %v814 = vld [vmem:[#allocation2 + $0x70] sm:$0xff]
      %v815 = vld [vmem:[#allocation2 + $0x78] sm:$0xff]
      %v816 = vld [vmem:[#allocation2 + $0x80] sm:$0xff]
      %v817 = vld [vmem:[#allocation2 + $0x88] sm:$0xff]
      %v818 = vld [vmem:[#allocation2 + $0x90] sm:$0xff]
      %v819 = vld [vmem:[#allocation2 + $0x98] sm:$0xff]
      %v820 = vld [vmem:[#allocation2 + $0xa0] sm:$0xff]
      %v821 = vld [vmem:[#allocation2 + $0xa8] sm:$0xff]
      %v822 = vld [vmem:[#allocation2 + $0xb0] sm:$0xff]
      %v823 = vld [vmem:[#allocation2 + $0xb8] sm:$0xff]
      %v824 = vld [vmem:[#allocation2 + $0xc0] sm:$0xff]
      %v825 = vld [vmem:[#allocation2 + $0xc8] sm:$0xff]
      %v826 = vld [vmem:[#allocation2 + $0xd0] sm:$0xff]
      %v827 = vld [vmem:[#allocation2 + $0xd8] sm:$0xff]
      %v828 = vld [vmem:[#allocation2 + $0xe0] sm:$0xff]
      %v829 = vld [vmem:[#allocation2 + $0xe8] sm:$0xff]
      %v830 = vld [vmem:[#allocation2 + $0xf0] sm:$0xff]
      %v831 = vld [vmem:[#allocation2 + $0xf8] sm:$0xff]
      %v832 = vld [vmem:[#allocation2 + $0x100] sm:$0xff]
      %v833 = vld [vmem:[#allocation2 + $0x108] sm:$0xff]
      %v834 = vld [vmem:[#allocation2 + $0x110] sm:$0xff]
      %v835 = vld [vmem:[#allocation2 + $0x118] sm:$0xff]
      %v836 = vld [vmem:[#allocation2 + $0x120] sm:$0xff]
      %v837 = vld [vmem:[#allocation2 + $0x128] sm:$0xff]
      %v838 = vld [vmem:[#allocation2 + $0x130] sm:$0xff]
      %v839 = vld [vmem:[#allocation2 + $0x138] sm:$0xff]
      %v840 = vld [vmem:[#allocation2 + $0x140] sm:$0xff]
      %v841 = vld [vmem:[#allocation2 + $0x148] sm:$0xff]
      %v842 = vld [vmem:[#allocation2 + $0x150] sm:$0xff]
      %v843 = vld [vmem:[#allocation2 + $0x158] sm:$0xff]
      %v844 = vld [vmem:[#allocation2 + $0x160] sm:$0xff]
      %v845 = vld [vmem:[#allocation2 + $0x168] sm:$0xff]
      %v846 = vld [vmem:[#allocation2 + $0x170] sm:$0xff]
      %v847 = vld [vmem:[#allocation2 + $0x178] sm:$0xff]
      %v848 = vld [vmem:[#allocation2 + $0x180] sm:$0xff]
      %v849 = vld [vmem:[#allocation2 + $0x188] sm:$0xff]
      %v850 = vld [vmem:[#allocation2 + $0x190] sm:$0xff]
      %v851 = vld [vmem:[#allocation2 + $0x198] sm:$0xff]
      %v852 = vld [vmem:[#allocation2 + $0x1a0] sm:$0xff]
      %v853 = vld [vmem:[#allocation2 + $0x1a8] sm:$0xff]
      %v854 = vld [vmem:[#allocation2 + $0x1b0] sm:$0xff]
      %v855 = vld [vmem:[#allocation2 + $0x1b8] sm:$0xff]
      %v856 = vld [vmem:[#allocation2 + $0x1c0] sm:$0xff]
      %v857 = vld [vmem:[#allocation2 + $0x1c8] sm:$0xff]
      %v858 = vld [vmem:[#allocation2 + $0x1d0] sm:$0xff]
      %v859 = vld [vmem:[#allocation2 + $0x1d8] sm:$0xff]
      %v860 = vld [vmem:[#allocation2 + $0x1e0] sm:$0xff]
      %v861 = vld [vmem:[#allocation2 + $0x1e8] sm:$0xff]
      %v862 = vld [vmem:[#allocation2 + $0x1f0] sm:$0xff]
      %v863 = vld [vmem:[#allocation2 + $0x1f8] sm:$0xff]
      %v864 = vld [vmem:[#allocation8] sm:$0xf]
      %v866 = vlaneseq
      %v867 = vshrl.u32 %v866, 7
      %v868 = vsub.s32 0, %v867
      %v869 = vrot.slane %v864, %v868
      %v870 = vlaneseq
      %v871 = vshrl.u32 %v870, 7
      %v872 = vsub.s32 1, %v871
      %v873 = vrot.slane %v864, %v872
      %v874 = vlaneseq
      %v875 = vshrl.u32 %v874, 7
      %v876 = vsub.s32 2, %v875
      %v877 = vrot.slane %v864, %v876
      %v878 = vlaneseq
      %v879 = vshrl.u32 %v878, 7
      %v880 = vsub.s32 3, %v879
      %v881 = vrot.slane %v864, %v880
      %v886 = vadd.f32 %v800, %v869
      %v887 = vadd.f32 %v801, %v873
      %v888 = vadd.f32 %v802, %v877
      %v889 = vadd.f32 %v803, %v881
      %v890 = vadd.f32 %v804, %v869
      %v891 = vadd.f32 %v805, %v873
      %v892 = vadd.f32 %v806, %v877
      %v893 = vadd.f32 %v807, %v881
      %v894 = vadd.f32 %v808, %v869
      %v895 = vadd.f32 %v809, %v873
      %v896 = vadd.f32 %v810, %v877
      %v897 = vadd.f32 %v811, %v881
      %v898 = vadd.f32 %v812, %v869
      %v899 = vadd.f32 %v813, %v873
      %v900 = vadd.f32 %v814, %v877
      %v901 = vadd.f32 %v815, %v881
      %v902 = vadd.f32 %v816, %v869
      %v903 = vadd.f32 %v817, %v873
      %v904 = vadd.f32 %v818, %v877
      %v905 = vadd.f32 %v819, %v881
      %v906 = vadd.f32 %v820, %v869
      %v907 = vadd.f32 %v821, %v873
      %v908 = vadd.f32 %v822, %v877
      %v909 = vadd.f32 %v823, %v881
      %v910 = vadd.f32 %v824, %v869
      %v911 = vadd.f32 %v825, %v873
      %v912 = vadd.f32 %v826, %v877
      %v913 = vadd.f32 %v827, %v881
      %v914 = vadd.f32 %v828, %v869
      %v915 = vadd.f32 %v829, %v873
      %v916 = vadd.f32 %v830, %v877
      %v917 = vadd.f32 %v831, %v881
      %v918 = vadd.f32 %v832, %v869
      %v919 = vadd.f32 %v833, %v873
      %v920 = vadd.f32 %v834, %v877
      %v921 = vadd.f32 %v835, %v881
      %v922 = vadd.f32 %v836, %v869
      %v923 = vadd.f32 %v837, %v873
      %v924 = vadd.f32 %v838, %v877
      %v925 = vadd.f32 %v839, %v881
      %v926 = vadd.f32 %v840, %v869
      %v927 = vadd.f32 %v841, %v873
      %v928 = vadd.f32 %v842, %v877
      %v929 = vadd.f32 %v843, %v881
      %v930 = vadd.f32 %v844, %v869
      %v931 = vadd.f32 %v845, %v873
      %v932 = vadd.f32 %v846, %v877
      %v933 = vadd.f32 %v847, %v881
      %v934 = vadd.f32 %v848, %v869
      %v935 = vadd.f32 %v849, %v873
      %v936 = vadd.f32 %v850, %v877
      %v937 = vadd.f32 %v851, %v881
      %v938 = vadd.f32 %v852, %v869
      %v939 = vadd.f32 %v853, %v873
      %v940 = vadd.f32 %v854, %v877
      %v941 = vadd.f32 %v855, %v881
      %v942 = vadd.f32 %v856, %v869
      %v943 = vadd.f32 %v857, %v873
      %v944 = vadd.f32 %v858, %v877
      %v945 = vadd.f32 %v859, %v881
      %v946 = vadd.f32 %v860, %v869
      %v947 = vadd.f32 %v861, %v873
      %v948 = vadd.f32 %v862, %v877
      %v949 = vadd.f32 %v863, %v881
      %950 = vst [vmem:[#allocation9] sm:$0xff] %v886
      %951 = vst [vmem:[#allocation9 + $0x8] sm:$0xff] %v887
      %952 = vst [vmem:[#allocation9 + $0x10] sm:$0xff] %v888
      %953 = vst [vmem:[#allocation9 + $0x18] sm:$0xff] %v889
      %954 = vst [vmem:[#allocation9 + $0x20] sm:$0xff] %v890
      %955 = vst [vmem:[#allocation9 + $0x28] sm:$0xff] %v891
      %956 = vst [vmem:[#allocation9 + $0x30] sm:$0xff] %v892
      %957 = vst [vmem:[#allocation9 + $0x38] sm:$0xff] %v893
      %958 = vst [vmem:[#allocation9 + $0x40] sm:$0xff] %v894
      %959 = vst [vmem:[#allocation9 + $0x48] sm:$0xff] %v895
      %960 = vst [vmem:[#allocation9 + $0x50] sm:$0xff] %v896
      %961 = vst [vmem:[#allocation9 + $0x58] sm:$0xff] %v897
      %962 = vst [vmem:[#allocation9 + $0x60] sm:$0xff] %v898
      %963 = vst [vmem:[#allocation9 + $0x68] sm:$0xff] %v899
      %964 = vst [vmem:[#allocation9 + $0x70] sm:$0xff] %v900
      %965 = vst [vmem:[#allocation9 + $0x78] sm:$0xff] %v901
      %966 = vst [vmem:[#allocation9 + $0x80] sm:$0xff] %v902
      %967 = vst [vmem:[#allocation9 + $0x88] sm:$0xff] %v903
      %968 = vst [vmem:[#allocation9 + $0x90] sm:$0xff] %v904
      %969 = vst [vmem:[#allocation9 + $0x98] sm:$0xff] %v905
      %970 = vst [vmem:[#allocation9 + $0xa0] sm:$0xff] %v906
      %971 = vst [vmem:[#allocation9 + $0xa8] sm:$0xff] %v907
      %972 = vst [vmem:[#allocation9 + $0xb0] sm:$0xff] %v908
      %973 = vst [vmem:[#allocation9 + $0xb8] sm:$0xff] %v909
      %974 = vst [vmem:[#allocation9 + $0xc0] sm:$0xff] %v910
      %975 = vst [vmem:[#allocation9 + $0xc8] sm:$0xff] %v911
      %976 = vst [vmem:[#allocation9 + $0xd0] sm:$0xff] %v912
      %977 = vst [vmem:[#allocation9 + $0xd8] sm:$0xff] %v913
      %978 = vst [vmem:[#allocation9 + $0xe0] sm:$0xff] %v914
      %979 = vst [vmem:[#allocation9 + $0xe8] sm:$0xff] %v915
      %980 = vst [vmem:[#allocation9 + $0xf0] sm:$0xff] %v916
      %981 = vst [vmem:[#allocation9 + $0xf8] sm:$0xff] %v917
      %982 = vst [vmem:[#allocation9 + $0x100] sm:$0xff] %v918
      %983 = vst [vmem:[#allocation9 + $0x108] sm:$0xff] %v919
      %984 = vst [vmem:[#allocation9 + $0x110] sm:$0xff] %v920
      %985 = vst [vmem:[#allocation9 + $0x118] sm:$0xff] %v921
      %986 = vst [vmem:[#allocation9 + $0x120] sm:$0xff] %v922
      %987 = vst [vmem:[#allocation9 + $0x128] sm:$0xff] %v923
      %988 = vst [vmem:[#allocation9 + $0x130] sm:$0xff] %v924
      %989 = vst [vmem:[#allocation9 + $0x138] sm:$0xff] %v925
      %990 = vst [vmem:[#allocation9 + $0x140] sm:$0xff] %v926
      %991 = vst [vmem:[#allocation9 + $0x148] sm:$0xff] %v927
      %992 = vst [vmem:[#allocation9 + $0x150] sm:$0xff] %v928
      %993 = vst [vmem:[#allocation9 + $0x158] sm:$0xff] %v929
      %994 = vst [vmem:[#allocation9 + $0x160] sm:$0xff] %v930
      %995 = vst [vmem:[#allocation9 + $0x168] sm:$0xff] %v931
      %996 = vst [vmem:[#allocation9 + $0x170] sm:$0xff] %v932
      %997 = vst [vmem:[#allocation9 + $0x178] sm:$0xff] %v933
      %998 = vst [vmem:[#allocation9 + $0x180] sm:$0xff] %v934
      %999 = vst [vmem:[#allocation9 + $0x188] sm:$0xff] %v935
      %1000 = vst [vmem:[#allocation9 + $0x190] sm:$0xff] %v936
      %1001 = vst [vmem:[#allocation9 + $0x198] sm:$0xff] %v937
      %1002 = vst [vmem:[#allocation9 + $0x1a0] sm:$0xff] %v938
      %1003 = vst [vmem:[#allocation9 + $0x1a8] sm:$0xff] %v939
      %1004 = vst [vmem:[#allocation9 + $0x1b0] sm:$0xff] %v940
      %1005 = vst [vmem:[#allocation9 + $0x1b8] sm:$0xff] %v941
      %1006 = vst [vmem:[#allocation9 + $0x1c0] sm:$0xff] %v942
      %1007 = vst [vmem:[#allocation9 + $0x1c8] sm:$0xff] %v943
      %1008 = vst [vmem:[#allocation9 + $0x1d0] sm:$0xff] %v944
      %1009 = vst [vmem:[#allocation9 + $0x1d8] sm:$0xff] %v945
      %1010 = vst [vmem:[#allocation9 + $0x1e0] sm:$0xff] %v946
      %1011 = vst [vmem:[#allocation9 + $0x1e8] sm:$0xff] %v947
      %1012 = vst [vmem:[#allocation9 + $0x1f0] sm:$0xff] %v948
      %1013 = vst [vmem:[#allocation9 + $0x1f8] sm:$0xff] %v949
    $region33: #{rnnlm_forward.5} parent=1 // pred_fallthru
      _
    // Predicated region
    $region34: #{rnnlm_forward.5} parent=1 // pred_check
      _
    $region35: #{rnnlm_forward.5} parent=1 // pred_check_branch
      %1015 = sbr.rel (0) target = $region37
    $region36: #{rnnlm_forward.5} parent=1 // pred_region
      %s1017 = ssub.s32 8192, 8192
      %1018 = vsyncadd [#allocation5], %s1017
      %s1019 = sshll.u32 [#allocation9], 4
      %s1020 = int_to_ptr.vmem [resolvable:$true] %s1019
      %1025 = dma.vmem_to_hbm [thread:$0]  %s1020, 8192, %s3, [#allocation5], 512, 512, 32
    $region37: #{rnnlm_forward.5} parent=1 // pred_fallthru
      _
    // Predicated region
    $region38: #{rnnlm_forward.5} parent=1 // pred_check
      _
    $region39: #{rnnlm_forward.5} parent=1 // pred_check_branch
      %1027 = sbr.rel (0) target = $region41
    $region40: #{rnnlm_forward.5} parent=1 // pred_region
      %1028 = dma.done [#allocation5], 8192
    $region41: #{rnnlm_forward.5} parent=1 // pred_fallthru
      _
    %1029 = vsyncpa [#allocation4], 1
    %1030 = vsyncpa [#allocation7], 1
    %1031 = vsyncpa [#allocation5], 1

// kernel: rnnlm_forward.6
$region0: #{rnnlm_forward.6}
  #allocation0 [shape = 'u32[]', space=smem, size = 0x4, offset = 0x4, fixed_abs, tag = 'smem constant byte address 0x4 - core index']
  #allocation1 [shape = 'u32[144,128]{1,0:T(1,128)}', space=vmem, size = 0x12000, scoped, tag = 'internal scratch']
  #allocation2 [shape = 'f32[8,128]{1,0:T(8,128)}', space=vmem, size = 0x1000, scoped, tag = 'scratch operand']
  #allocation3 [shape = 'f32[8,128]{1,0:T(8,128)}', space=vmem, size = 0x1000, scoped, tag = 'scratch operand']
  %s0 = inlined_call_operand.hbm [shape: f32[8,16,512], index: 0, kind: input, shape index: {}]
  %s1 = inlined_call_operand.hbm [shape: bf16[128,512], index: 1, kind: input, shape index: {}]
  %s2 = inlined_call_operand.hbm [shape: f32[8,128], index: 2, kind: input, shape index: {}]
  %s3 = inlined_call_operand.hbm [shape: f32[8,128], index: 3, kind: input, shape index: {}]
  %s4 = inlined_call_operand.hbm [shape: f32[8,16,128], index: 4, kind: output, shape index: {0}]
  %s5 = inlined_call_operand.hbm [shape: f32[8,128], index: 5, kind: output, shape index: {1}]
  %s6 = inlined_call_operand.hbm [shape: f32[8,128], index: 6, kind: output, shape index: {2}]
  %7 = xla_tuple %s4, %s5, %s6
  %s8 = sld [smem:[#allocation0]]
  $region89: #{rnnlm_forward.6} parent=0
    _
  %s10 = ssub.s32 1, %s8
  %s11 = scalar_select 0, %s10, %s8
  $region1: #{rnnlm_forward.6} parent=0
    #allocation4 [shape = 'u8[262144]{0}', space=vmem, size = 0x40000, scoped, tag = 'input window, operand 0']
    #allocation5 [shape = 's32[2]{0}', space=sflag, size = 0x8, scoped, tag = 'scoped memory for rnnlm_forward.6']
    #allocation6 [shape = 's32[2]{0}', space=sflag, size = 0x8, scoped, tag = 'scoped memory for rnnlm_forward.6']
    #allocation7 [shape = 'u8[131072]{0}', space=vmem, size = 0x20000, scoped, tag = 'input window, operand 1, single buffered']
    #allocation8 [shape = 's32[1]{0}', space=sflag, size = 0x4, scoped, tag = 'scoped memory for rnnlm_forward.6']
    #allocation9 [shape = 'u8[4096]{0}', space=vmem, size = 0x1000, scoped, tag = 'input window, operand 2, single buffered']
    #allocation10 [shape = 'u8[4096]{0}', space=vmem, size = 0x1000, scoped, tag = 'input window, operand 3, single buffered']
    #allocation11 [shape = 's32[1]{0}', space=sflag, size = 0x4, scoped, tag = 'scoped memory for rnnlm_forward.6']
    #allocation12 [shape = 'u8[65536]{0}', space=vmem, size = 0x10000, scoped, tag = 'output window, operand 0']
    #allocation13 [shape = 'u8[4096]{0}', space=vmem, size = 0x1000, scoped, tag = 'output window, operand 1, single buffered']
    #allocation14 [shape = 's32[1]{0}', space=sflag, size = 0x4, scoped, tag = 'scoped memory for rnnlm_forward.6']
    #allocation15 [shape = 'u8[4096]{0}', space=vmem, size = 0x1000, scoped, tag = 'output window, operand 2, single buffered']
    %12 = vsyncpa [#allocation5], 0
    %s13 = scalar_lea.sflag [#allocation5], 1
    %14 = vsyncpa %s13, 0
    %15 = vsyncpa [#allocation8], 0
    %16 = vsyncpa [#allocation11], 0
    %17 = vsyncpa [#allocation6], 0
    %s18 = scalar_lea.sflag [#allocation6], 1
    %19 = vsyncpa %s18, 0
    %20 = vsyncpa [#allocation14], 0
    loop: start=0, step=1, limit=4
    $region2: #{rnnlm_forward.6} parent=1 // loop_pre_header
      _
    $region3: #{rnnlm_forward.6} parent=1 // loop_header
      %s22 = sphi 0, %s26
      %p23 = scmp.ge.s32.totalorder %s22, 4
      %s29 = sphi 0, %s41
      %s30 = sphi 0, %s37
      %s31 = sphi 0, %s29
      %s32 = sphi 0, %s30
      %s33 = sphi 0, %s31
      %s34 = sphi 0, %s32
      %s46 = sphi 0, %s48
      %s49 = sphi 0, %s46
      %s50 = sphi 0, %s49
      %s66 = sphi 0, %s50
      %s70 = sphi 0, %s70
      %s72 = sphi 0, %s70
      %s73 = sphi 0, %s72
      %s87 = sphi 0, %s73
      %s93 = sphi 0, %s95
      %s96 = sphi 0, %s93
      %s97 = sphi 0, %s96
      %s113 = sphi 0, %s97
      %s119 = sphi 0, %s121
      %s122 = sphi 0, %s119
      %s123 = sphi 0, %s122
      %s139 = sphi 0, %s123
      %s147 = sphi 0, %s149
      %s150 = sphi 0, %s147
      %s151 = sphi 0, %s150
      %s167 = sphi 0, %s151
      %s173 = sphi 0, %s175
      %s176 = sphi 0, %s173
      %s177 = sphi 0, %s176
      %s193 = sphi 0, %s177
      %s199 = sphi 0, %s201
      %s202 = sphi 0, %s199
      %s203 = sphi 0, %s202
      %s219 = sphi 0, %s203
    $region4: #{rnnlm_forward.6} parent=1 // loop_header_branch
      %25 = sbr.rel (%p23) target = $region8
    $region5: #{rnnlm_forward.6} parent=1 // loop_body
      %s27 = ssub.s32 %s22, 1
      %s28 = ssub.s32 %s22, 2
      %s35 = sadd.s32 1, %s30
      %p36 = scmp.ge.s32.totalorder %s35, 2
      %s37 = scalar_select %p36, 0, %s35
      %s38 = sadd.s32 1, %s29
      %s39 = scalar_select %p36, %s38, %s29
      %p40 = scmp.ge.s32.totalorder %s39, 1
      %s41 = scalar_select %p40, 0, %s39
      %s42 = ssub.s32 %s29, %s41
      %s43 = ssub.s32 %s30, %s37
      %s44 = sor.u32 %s42, %s43
      %p45 = scmp.eq.s32.totalorder %s44, 0
      %s47 = sadd.s32 %s46, 1
      %s48 = scalar_select %p45, %s46, %s47
      %p51 = pneg %p45
      %p52 = scmp.eq.s32.totalorder %s22, 1
      %p53 = por %p51, %p52
      %p54 = scmp.ne.s32.totalorder %s46, %s49
      %p55 = scmp.eq.s32.totalorder %s22, 0
      %p56 = por %p54, %p55
      %p57 = scmp.ne.s32.totalorder %s46, %s49
      %p58 = scmp.eq.s32.totalorder %s27, 1
      %p59 = por %p57, %p58
      %p60 = scmp.ne.s32.totalorder %s49, %s50
      %p61 = scmp.eq.s32.totalorder %s27, 0
      %p62 = por %p60, %p61
      %p63 = scmp.ne.s32.totalorder %s49, %s50
      %p64 = scmp.eq.s32.totalorder %s28, 1
      %p65 = por %p63, %p64
      %p67 = scmp.ne.s32.totalorder %s50, %s66
      %p68 = scmp.eq.s32.totalorder %s28, 0
      %p69 = por %p67, %p68
      %s71 = sadd.s32 %s70, 1
      %p74 = scmp.eq.s32.totalorder %s22, 1
      %p75 = scmp.ne.s32.totalorder %s70, %s72
      %p76 = scmp.eq.s32.totalorder %s22, 0
      %p77 = por %p75, %p76
      %p78 = scmp.ne.s32.totalorder %s70, %s72
      %p79 = scmp.eq.s32.totalorder %s27, 1
      %p80 = por %p78, %p79
      %p81 = scmp.ne.s32.totalorder %s72, %s73
      %p82 = scmp.eq.s32.totalorder %s27, 0
      %p83 = por %p81, %p82
      %p84 = scmp.ne.s32.totalorder %s72, %s73
      %p85 = scmp.eq.s32.totalorder %s28, 1
      %p86 = por %p84, %p85
      %p88 = scmp.ne.s32.totalorder %s73, %s87
      %p89 = scmp.eq.s32.totalorder %s28, 0
      %p90 = por %p88, %p89
      %s91 = ssub.s32 %s29, %s41
      %p92 = scmp.eq.s32.totalorder %s91, 0
      %s94 = sadd.s32 %s93, 1
      %s95 = scalar_select %p92, %s93, %s94
      %p98 = pneg %p92
      %p99 = scmp.eq.s32.totalorder %s22, 1
      %p100 = por %p98, %p99
      %p101 = scmp.ne.s32.totalorder %s93, %s96
      %p102 = scmp.eq.s32.totalorder %s22, 0
      %p103 = por %p101, %p102
      %p104 = scmp.ne.s32.totalorder %s93, %s96
      %p105 = scmp.eq.s32.totalorder %s27, 1
      %p106 = por %p104, %p105
      %p107 = scmp.ne.s32.totalorder %s96, %s97
      %p108 = scmp.eq.s32.totalorder %s27, 0
      %p109 = por %p107, %p108
      %p110 = scmp.ne.s32.totalorder %s96, %s97
      %p111 = scmp.eq.s32.totalorder %s28, 1
      %p112 = por %p110, %p111
      %p114 = scmp.ne.s32.totalorder %s97, %s113
      %p115 = scmp.eq.s32.totalorder %s28, 0
      %p116 = por %p114, %p115
      %s117 = ssub.s32 %s29, %s41
      %p118 = scmp.eq.s32.totalorder %s117, 0
      %s120 = sadd.s32 %s119, 1
      %s121 = scalar_select %p118, %s119, %s120
      %p124 = pneg %p118
      %p125 = scmp.eq.s32.totalorder %s22, 1
      %p126 = por %p124, %p125
      %p127 = scmp.ne.s32.totalorder %s119, %s122
      %p128 = scmp.eq.s32.totalorder %s22, 0
      %p129 = por %p127, %p128
      %p130 = scmp.ne.s32.totalorder %s119, %s122
      %p131 = scmp.eq.s32.totalorder %s27, 1
      %p132 = por %p130, %p131
      %p133 = scmp.ne.s32.totalorder %s122, %s123
      %p134 = scmp.eq.s32.totalorder %s27, 0
      %p135 = por %p133, %p134
      %p136 = scmp.ne.s32.totalorder %s122, %s123
      %p137 = scmp.eq.s32.totalorder %s28, 1
      %p138 = por %p136, %p137
      %p140 = scmp.ne.s32.totalorder %s123, %s139
      %p141 = scmp.eq.s32.totalorder %s28, 0
      %p142 = por %p140, %p141
      %s143 = ssub.s32 %s29, %s41
      %s144 = ssub.s32 %s30, %s37
      %s145 = sor.u32 %s143, %s144
      %p146 = scmp.eq.s32.totalorder %s145, 0
      %s148 = sadd.s32 %s147, 1
      %s149 = scalar_select %p146, %s147, %s148
      %p152 = pneg %p146
      %p153 = scmp.eq.s32.totalorder %s22, 1
      %p154 = por %p152, %p153
      %p155 = scmp.ne.s32.totalorder %s147, %s150
      %p156 = scmp.eq.s32.totalorder %s22, 0
      %p157 = por %p155, %p156
      %p158 = scmp.ne.s32.totalorder %s147, %s150
      %p159 = scmp.eq.s32.totalorder %s27, 1
      %p160 = por %p158, %p159
      %p161 = scmp.ne.s32.totalorder %s150, %s151
      %p162 = scmp.eq.s32.totalorder %s27, 0
      %p163 = por %p161, %p162
      %p164 = scmp.ne.s32.totalorder %s150, %s151
      %p165 = scmp.eq.s32.totalorder %s28, 1
      %p166 = por %p164, %p165
      %p168 = scmp.ne.s32.totalorder %s151, %s167
      %p169 = scmp.eq.s32.totalorder %s28, 0
      %p170 = por %p168, %p169
      %s171 = ssub.s32 %s29, %s41
      %p172 = scmp.eq.s32.totalorder %s171, 0
      %s174 = sadd.s32 %s173, 1
      %s175 = scalar_select %p172, %s173, %s174
      %p178 = pneg %p172
      %p179 = scmp.eq.s32.totalorder %s22, 1
      %p180 = por %p178, %p179
      %p181 = scmp.ne.s32.totalorder %s173, %s176
      %p182 = scmp.eq.s32.totalorder %s22, 0
      %p183 = por %p181, %p182
      %p184 = scmp.ne.s32.totalorder %s173, %s176
      %p185 = scmp.eq.s32.totalorder %s27, 1
      %p186 = por %p184, %p185
      %p187 = scmp.ne.s32.totalorder %s176, %s177
      %p188 = scmp.eq.s32.totalorder %s27, 0
      %p189 = por %p187, %p188
      %p190 = scmp.ne.s32.totalorder %s176, %s177
      %p191 = scmp.eq.s32.totalorder %s28, 1
      %p192 = por %p190, %p191
      %p194 = scmp.ne.s32.totalorder %s177, %s193
      %p195 = scmp.eq.s32.totalorder %s28, 0
      %p196 = por %p194, %p195
      %s197 = ssub.s32 %s29, %s41
      %p198 = scmp.eq.s32.totalorder %s197, 0
      %s200 = sadd.s32 %s199, 1
      %s201 = scalar_select %p198, %s199, %s200
      %p204 = pneg %p198
      %p205 = scmp.eq.s32.totalorder %s22, 1
      %p206 = por %p204, %p205
      %p207 = scmp.ne.s32.totalorder %s199, %s202
      %p208 = scmp.eq.s32.totalorder %s22, 0
      %p209 = por %p207, %p208
      %p210 = scmp.ne.s32.totalorder %s199, %s202
      %p211 = scmp.eq.s32.totalorder %s27, 1
      %p212 = por %p210, %p211
      %p213 = scmp.ne.s32.totalorder %s202, %s203
      %p214 = scmp.eq.s32.totalorder %s27, 0
      %p215 = por %p213, %p214
      %p216 = scmp.ne.s32.totalorder %s202, %s203
      %p217 = scmp.eq.s32.totalorder %s28, 1
      %p218 = por %p216, %p217
      %p220 = scmp.ne.s32.totalorder %s203, %s219
      %p221 = scmp.eq.s32.totalorder %s28, 0
      %p222 = por %p220, %p221
      %p223 = scmp.le.s32.totalorder 1, %s22
      %p224 = scmp.lt.s32.totalorder %s22, 3
      %p225 = pnand %p223, %p224
      %p226 = pneg %p225
      // Predicated region
      $region9: #{rnnlm_forward.6} parent=5 // pred_check
        _
      $region10: #{rnnlm_forward.6} parent=5 // pred_check_branch
        %228 = sbr.rel (%p225) target = $region12
      $region11: #{rnnlm_forward.6} parent=5 // pred_region
        %s229 = ssub.s32 %s22, 1
        // Predicated region
        $region13: #{rnnlm_forward.6} parent=11 // pred_check
          %p230 = pneg %p83
        $region14: #{rnnlm_forward.6} parent=11 // pred_check_branch
          %232 = sbr.rel (%p230) target = $region16
        $region15: #{rnnlm_forward.6} parent=11 // pred_region
          %s234 = ssub.s32 4096, 4096
          %235 = vsyncadd [#allocation8], %s234
          %s236 = sshll.u32 [#allocation7], 4
          %s237 = int_to_ptr.vmem [resolvable:$true] %s236
          %242 = dma.hbm_to_vmem [thread:$0]  %s1, 4096, %s237, [#allocation8], 256, 256, 16
        $region16: #{rnnlm_forward.6} parent=11 // pred_fallthru
          _
        // Predicated region
        $region17: #{rnnlm_forward.6} parent=11 // pred_check
          %p243 = pneg %p109
        $region18: #{rnnlm_forward.6} parent=11 // pred_check_branch
          %245 = sbr.rel (%p243) target = $region20
        $region19: #{rnnlm_forward.6} parent=11 // pred_region
          %s247 = ssub.s32 128, 128
          %248 = vsyncadd [#allocation8], %s247
          %s249 = smul.addr %s31, 128
          %s250 = scalar_lea.hbm %s2, %s249
          %s252 = sshll.u32 [#allocation9], 4
          %s253 = int_to_ptr.vmem [resolvable:$true] %s252
          %255 = dma.hbm_to_vmem [thread:$0]  %s250, 128, %s253, [#allocation8]
        $region20: #{rnnlm_forward.6} parent=11 // pred_fallthru
          _
        // Predicated region
        $region21: #{rnnlm_forward.6} parent=11 // pred_check
          %p256 = pneg %p135
        $region22: #{rnnlm_forward.6} parent=11 // pred_check_branch
          %258 = sbr.rel (%p256) target = $region24
        $region23: #{rnnlm_forward.6} parent=11 // pred_region
          %s260 = ssub.s32 128, 128
          %261 = vsyncadd [#allocation11], %s260
          %s262 = smul.addr %s31, 128
          %s263 = scalar_lea.hbm %s3, %s262
          %s265 = sshll.u32 [#allocation10], 4
          %s266 = int_to_ptr.vmem [resolvable:$true] %s265
          %268 = dma.hbm_to_vmem [thread:$0]  %s263, 128, %s266, [#allocation11]
        $region24: #{rnnlm_forward.6} parent=11 // pred_fallthru
          _
      $region12: #{rnnlm_forward.6} parent=5 // pred_fallthru
        _
      %p269 = scmp.lt.s32.totalorder %s22, 2
      // Predicated region
      $region25: #{rnnlm_forward.6} parent=5 // pred_check
        %p270 = pneg %p269
      $region26: #{rnnlm_forward.6} parent=5 // pred_check_branch
        %272 = sbr.rel (%p270) target = $region28
      $region27: #{rnnlm_forward.6} parent=5 // pred_region
        // Predicated region
        $region29: #{rnnlm_forward.6} parent=27 // pred_check
          %p273 = pneg %p56
        $region30: #{rnnlm_forward.6} parent=27 // pred_check_branch
          %275 = sbr.rel (%p273) target = $region32
        $region31: #{rnnlm_forward.6} parent=27 // pred_region
          %s276 = sand.u32 %s46, 1
          %s277 = scalar_lea.sflag [#allocation5], %s276
          %s278 = sand.u32 %s46, 1
          %s279 = smul.addr %s278, 256
          %s280 = scalar_lea.vmem [#allocation4], %s279
          %s281 = smul.u32 8, %s29
          %s283 = ssub.s32 4096, 4096
          %284 = vsyncadd %s277, %s283
          %s285 = smul.addr %s30, 4
          %s286 = smul.addr %s281, 8
          %s287 = sadd.s32 %s285, %s286
          %s288 = smul.addr %s287, 128
          %s289 = scalar_lea.hbm %s0, %s288
          %s290 = sshll.u32 %s280, 4
          %s291 = int_to_ptr.vmem [resolvable:$true] %s290
          %296 = dma.hbm_to_vmem [thread:$0]  %s289, 4096, %s291, %s277, 1024, 512, 32
        $region32: #{rnnlm_forward.6} parent=27 // pred_fallthru
          _
      $region28: #{rnnlm_forward.6} parent=5 // pred_fallthru
        _
      %p297 = scmp.le.s32.totalorder 1, %s22
      %p298 = scmp.lt.s32.totalorder %s22, 3
      %p299 = pnand %p297, %p298
      %p300 = pneg %p299
      // Predicated region
      $region33: #{rnnlm_forward.6} parent=5 // pred_check
        _
      $region34: #{rnnlm_forward.6} parent=5 // pred_check_branch
        %302 = sbr.rel (%p299) target = $region36
      $region35: #{rnnlm_forward.6} parent=5 // pred_region
        %s303 = ssub.s32 %s22, 1
        %s304 = sand.u32 %s49, 1
        %s305 = scalar_lea.sflag [#allocation5], %s304
        %s306 = sand.u32 %s49, 1
        %s307 = smul.addr %s306, 256
        %s308 = scalar_lea.vmem [#allocation4], %s307
        // Predicated region
        $region37: #{rnnlm_forward.6} parent=35 // pred_check
          %p309 = pneg %p62
        $region38: #{rnnlm_forward.6} parent=35 // pred_check_branch
          %311 = sbr.rel (%p309) target = $region40
        $region39: #{rnnlm_forward.6} parent=35 // pred_region
          %312 = dma.done %s305, 4096
        $region40: #{rnnlm_forward.6} parent=35 // pred_fallthru
          _
        // Predicated region
        $region41: #{rnnlm_forward.6} parent=35 // pred_check
          %p313 = pneg %p83
        $region42: #{rnnlm_forward.6} parent=35 // pred_check_branch
          %315 = sbr.rel (%p313) target = $region44
        $region43: #{rnnlm_forward.6} parent=35 // pred_region
          %316 = dma.done [#allocation8], 4096
        $region44: #{rnnlm_forward.6} parent=35 // pred_fallthru
          _
        // Predicated region
        $region45: #{rnnlm_forward.6} parent=35 // pred_check
          %p317 = pneg %p109
        $region46: #{rnnlm_forward.6} parent=35 // pred_check_branch
          %319 = sbr.rel (%p317) target = $region48
        $region47: #{rnnlm_forward.6} parent=35 // pred_region
          %320 = dma.done [#allocation8], 128
        $region48: #{rnnlm_forward.6} parent=35 // pred_fallthru
          _
        // Predicated region
        $region49: #{rnnlm_forward.6} parent=35 // pred_check
          %p321 = pneg %p135
        $region50: #{rnnlm_forward.6} parent=35 // pred_check_branch
          %323 = sbr.rel (%p321) target = $region52
        $region51: #{rnnlm_forward.6} parent=35 // pred_region
          %324 = dma.done [#allocation11], 128
        $region52: #{rnnlm_forward.6} parent=35 // pred_fallthru
          _
        %s325 = sand.u32 %s49, 1
        %s326 = scalar_lea.sflag [#allocation5], %s325
        %s327 = sand.u32 %s49, 1
        %s328 = smul.addr %s327, 256
        %s329 = scalar_lea.vmem [#allocation4], %s328
        %p330 = pneg %p62
        %p331 = pneg %p59
        %p332 = pneg %p83
        %p333 = pneg %p80
        %p334 = pneg %p109
        %p335 = pneg %p106
        %p336 = pneg %p135
        %p337 = pneg %p132
        %p338 = pneg %p163
        %p339 = pneg %p160
        %s340 = sand.u32 %s150, 1
        %s341 = scalar_lea.sflag [#allocation6], %s340
        %s342 = sand.u32 %s150, 1
        %s343 = smul.addr %s342, 64
        %s344 = scalar_lea.vmem [#allocation12], %s343
        %p345 = pneg %p189
        %p346 = pneg %p186
        %p347 = pneg %p215
        %p348 = pneg %p212
        %s349 = smul.u32 8, %s31
        %s350 = smul.u32 8, %s31
        %p352 = scmp.eq.s32.totalorder %s32, 0
        // Predicated region
        $region53: #{rnnlm_forward.6} parent=35 // pred_check
          %p353 = pneg %p352
        $region54: #{rnnlm_forward.6} parent=35 // pred_check_branch
          %355 = sbr.rel (%p353) target = $region56
        $region55: #{rnnlm_forward.6} parent=35 // pred_region
          %v356 = vld [vmem:[#allocation9] sm:$0xff]
          %357 = vst [vmem:[#allocation2] sm:$0xff] %v356
          %v358 = vld [vmem:[#allocation10] sm:$0xff]
          %359 = vst [vmem:[#allocation3] sm:$0xff] %v358
        $region56: #{rnnlm_forward.6} parent=35 // pred_fallthru
          _
        %v360 = vld [vmem:[#allocation7] sm:$0xff]
        %v361 = vld [vmem:[#allocation7 + $0x8] sm:$0xff]
        %v362 = vld [vmem:[#allocation7 + $0x10] sm:$0xff]
        %v363 = vld [vmem:[#allocation7 + $0x18] sm:$0xff]
        %v364 = vld [vmem:[#allocation7 + $0x20] sm:$0xff]
        %v365 = vld [vmem:[#allocation7 + $0x28] sm:$0xff]
        %v366 = vld [vmem:[#allocation7 + $0x30] sm:$0xff]
        %v367 = vld [vmem:[#allocation7 + $0x38] sm:$0xff]
        %v368 = vld [vmem:[#allocation7 + $0x40] sm:$0xff]
        %v369 = vld [vmem:[#allocation7 + $0x48] sm:$0xff]
        %v370 = vld [vmem:[#allocation7 + $0x50] sm:$0xff]
        %v371 = vld [vmem:[#allocation7 + $0x58] sm:$0xff]
        %v372 = vld [vmem:[#allocation7 + $0x60] sm:$0xff]
        %v373 = vld [vmem:[#allocation7 + $0x68] sm:$0xff]
        %v374 = vld [vmem:[#allocation7 + $0x70] sm:$0xff]
        %v375 = vld [vmem:[#allocation7 + $0x78] sm:$0xff]
        %v376 = vld [vmem:[#allocation7 + $0x80] sm:$0xff]
        %v377 = vld [vmem:[#allocation7 + $0x88] sm:$0xff]
        %v378 = vld [vmem:[#allocation7 + $0x90] sm:$0xff]
        %v379 = vld [vmem:[#allocation7 + $0x98] sm:$0xff]
        %v380 = vld [vmem:[#allocation7 + $0xa0] sm:$0xff]
        %v381 = vld [vmem:[#allocation7 + $0xa8] sm:$0xff]
        %v382 = vld [vmem:[#allocation7 + $0xb0] sm:$0xff]
        %v383 = vld [vmem:[#allocation7 + $0xb8] sm:$0xff]
        %v384 = vld [vmem:[#allocation7 + $0xc0] sm:$0xff]
        %v385 = vld [vmem:[#allocation7 + $0xc8] sm:$0xff]
        %v386 = vld [vmem:[#allocation7 + $0xd0] sm:$0xff]
        %v387 = vld [vmem:[#allocation7 + $0xd8] sm:$0xff]
        %v388 = vld [vmem:[#allocation7 + $0xe0] sm:$0xff]
        %v389 = vld [vmem:[#allocation7 + $0xe8] sm:$0xff]
        %v390 = vld [vmem:[#allocation7 + $0xf0] sm:$0xff]
        %v391 = vld [vmem:[#allocation7 + $0xf8] sm:$0xff]
        %v392 = vld [vmem:[#allocation2] sm:$0xff]
        %v393 = vld [vmem:[#allocation3] sm:$0xff]
        %v394 = vld [vmem:[%s308] ss:$8 sm:$0xf]
        %s395 = scalar_lea.vmem %s308, 32 [#allocation4]
        %v396 = vld [vmem:[%s395] ss:$8 sm:$0xf]
        %s397 = scalar_lea.vmem %s308, 64 [#allocation4]
        %v398 = vld [vmem:[%s397] ss:$8 sm:$0xf]
        %s399 = scalar_lea.vmem %s308, 96 [#allocation4]
        %v400 = vld [vmem:[%s399] ss:$8 sm:$0xf]
        %s401 = scalar_lea.vmem %s308, 128 [#allocation4]
        %v402 = vld [vmem:[%s401] ss:$8 sm:$0xf]
        %s403 = scalar_lea.vmem %s308, 160 [#allocation4]
        %v404 = vld [vmem:[%s403] ss:$8 sm:$0xf]
        %s405 = scalar_lea.vmem %s308, 192 [#allocation4]
        %v406 = vld [vmem:[%s405] ss:$8 sm:$0xf]
        %s407 = scalar_lea.vmem %s308, 224 [#allocation4]
        %v408 = vld [vmem:[%s407] ss:$8 sm:$0xf]
        %v409 = vpack.c.bf16 %v392, %v392
        %v442 = vunpack.c.l.b16 %v360
        %v443 = vunpack.c.h.b16 %v360
        %v444 = vunpack.c.l.b16 %v361
        %v445 = vunpack.c.h.b16 %v361
        %v446 = vunpack.c.l.b16 %v362
        %v447 = vunpack.c.h.b16 %v362
        %v448 = vunpack.c.l.b16 %v363
        %v449 = vunpack.c.h.b16 %v363
        %v450 = vunpack.c.l.b16 %v364
        %v451 = vunpack.c.h.b16 %v364
        %v452 = vunpack.c.l.b16 %v365
        %v453 = vunpack.c.h.b16 %v365
        %v454 = vunpack.c.l.b16 %v366
        %v455 = vunpack.c.h.b16 %v366
        %v456 = vunpack.c.l.b16 %v367
        %v457 = vunpack.c.h.b16 %v367
        %v458 = vunpack.c.l.b16 %v368
        %v459 = vunpack.c.h.b16 %v368
        %v460 = vunpack.c.l.b16 %v369
        %v461 = vunpack.c.h.b16 %v369
        %v462 = vunpack.c.l.b16 %v370
        %v463 = vunpack.c.h.b16 %v370
        %v464 = vunpack.c.l.b16 %v371
        %v465 = vunpack.c.h.b16 %v371
        %v466 = vunpack.c.l.b16 %v372
        %v467 = vunpack.c.h.b16 %v372
        %v468 = vunpack.c.l.b16 %v373
        %v469 = vunpack.c.h.b16 %v373
        %v470 = vunpack.c.l.b16 %v374
        %v471 = vunpack.c.h.b16 %v374
        %v472 = vunpack.c.l.b16 %v375
        %v473 = vunpack.c.h.b16 %v375
        %v474 = vunpack.c.l.b16 %v376
        %v475 = vunpack.c.h.b16 %v376
        %v476 = vunpack.c.l.b16 %v377
        %v477 = vunpack.c.h.b16 %v377
        %v478 = vunpack.c.l.b16 %v378
        %v479 = vunpack.c.h.b16 %v378
        %v480 = vunpack.c.l.b16 %v379
        %v481 = vunpack.c.h.b16 %v379
        %v482 = vunpack.c.l.b16 %v380
        %v483 = vunpack.c.h.b16 %v380
        %v484 = vunpack.c.l.b16 %v381
        %v485 = vunpack.c.h.b16 %v381
        %v486 = vunpack.c.l.b16 %v382
        %v487 = vunpack.c.h.b16 %v382
        %v488 = vunpack.c.l.b16 %v383
        %v489 = vunpack.c.h.b16 %v383
        %v490 = vunpack.c.l.b16 %v384
        %v491 = vunpack.c.h.b16 %v384
        %v492 = vunpack.c.l.b16 %v385
        %v493 = vunpack.c.h.b16 %v385
        %v494 = vunpack.c.l.b16 %v386
        %v495 = vunpack.c.h.b16 %v386
        %v496 = vunpack.c.l.b16 %v387
        %v497 = vunpack.c.h.b16 %v387
        %v498 = vunpack.c.l.b16 %v388
        %v499 = vunpack.c.h.b16 %v388
        %v500 = vunpack.c.l.b16 %v389
        %v501 = vunpack.c.h.b16 %v389
        %v502 = vunpack.c.l.b16 %v390
        %v503 = vunpack.c.h.b16 %v390
        %v504 = vunpack.c.l.b16 %v391
        %v505 = vunpack.c.h.b16 %v391
        %v506 = vpack.c.b16 %v446, %v442
        %v507 = vpack.c.b16 %v447, %v443
        %v508 = vpack.c.b16 %v448, %v444
        %v509 = vpack.c.b16 %v449, %v445
        %v510 = vpack.c.b16 %v454, %v450
        %v511 = vpack.c.b16 %v455, %v451
        %v512 = vpack.c.b16 %v456, %v452
        %v513 = vpack.c.b16 %v457, %v453
        %v514 = vpack.c.b16 %v462, %v458
        %v515 = vpack.c.b16 %v463, %v459
        %v516 = vpack.c.b16 %v464, %v460
        %v517 = vpack.c.b16 %v465, %v461
        %v518 = vpack.c.b16 %v470, %v466
        %v519 = vpack.c.b16 %v471, %v467
        %v520 = vpack.c.b16 %v472, %v468
        %v521 = vpack.c.b16 %v473, %v469
        %v522 = vpack.c.b16 %v478, %v474
        %v523 = vpack.c.b16 %v479, %v475
        %v524 = vpack.c.b16 %v480, %v476
        %v525 = vpack.c.b16 %v481, %v477
        %v526 = vpack.c.b16 %v486, %v482
        %v527 = vpack.c.b16 %v487, %v483
        %v528 = vpack.c.b16 %v488, %v484
        %v529 = vpack.c.b16 %v489, %v485
        %v530 = vpack.c.b16 %v494, %v490
        %v531 = vpack.c.b16 %v495, %v491
        %v532 = vpack.c.b16 %v496, %v492
        %v533 = vpack.c.b16 %v497, %v493
        %v534 = vpack.c.b16 %v502, %v498
        %v535 = vpack.c.b16 %v503, %v499
        %v536 = vpack.c.b16 %v504, %v500
        %v537 = vpack.c.b16 %v505, %v501
        %570 = vmatprep.subr.bf16.mxu0 %v507
        %571 = vmatpush1.bf16.msra.mxu0 %v506
        %572 = vmatprep.subr.bf16.mxu0 %v511
        %573 = vmatpush1.bf16.msra.mxu0 %v510
        %574 = vmatprep.subr.bf16.mxu0 %v515
        %575 = vmatpush1.bf16.msra.mxu0 %v514
        %576 = vmatprep.subr.bf16.mxu0 %v519
        %577 = vmatpush1.bf16.msra.mxu0 %v518
        %578 = vmatprep.subr.bf16.mxu0 %v523
        %579 = vmatpush1.bf16.msra.mxu0 %v522
        %580 = vmatprep.subr.bf16.mxu0 %v527
        %581 = vmatpush1.bf16.msra.mxu0 %v526
        %582 = vmatprep.subr.bf16.mxu0 %v531
        %583 = vmatpush1.bf16.msra.mxu0 %v530
        %584 = vmatprep.subr.bf16.mxu0 %v535
        %585 = vmatpush1.bf16.msra.mxu0 %v534
        %586 = vmatprep.subr.bf16.mxu0 0
        %587 = vmatpush1.bf16.msra.mxu0 0
        %588 = vmatprep.subr.bf16.mxu0 0
        %589 = vmatpush1.bf16.msra.mxu0 0
        %590 = vmatprep.subr.bf16.mxu0 0
        %591 = vmatpush1.bf16.msra.mxu0 0
        %592 = vmatprep.subr.bf16.mxu0 0
        %593 = vmatpush1.bf16.msra.mxu0 0
        %594 = vmatprep.subr.bf16.mxu0 0
        %595 = vmatpush1.bf16.msra.mxu0 0
        %596 = vmatprep.subr.bf16.mxu0 0
        %597 = vmatpush1.bf16.msra.mxu0 0
        %598 = vmatprep.subr.bf16.mxu0 0
        %599 = vmatpush1.bf16.msra.mxu0 0
        %600 = vmatprep.subr.bf16.mxu0 0
        %601 = vmatpush1.bf16.msra.mxu0 0
        %602 = vmatprep.mubr.bf16.mxu0 0
        %603 = vmatmul.mubr.bf16.gmra.mrb[0].mxu0 %v409
        %v604 = vpop.f32.mrb[0].mxu0
        %v605 = vadd.f32 0.0, %v604
        %v606 = vpop.f32.mrb[0].mxu0
        %v607 = vadd.f32 0.0, %v606
        %v608 = vpop.f32.mrb[0].mxu0
        %v609 = vpop.f32.mrb[0].mxu0
        %610 = vdwg.mxu0
        %611 = vmatprep.subr.bf16.mxu0 %v509
        %612 = vmatpush1.bf16.msra.mxu0 %v508
        %613 = vmatprep.subr.bf16.mxu0 %v513
        %614 = vmatpush1.bf16.msra.mxu0 %v512
        %615 = vmatprep.subr.bf16.mxu0 %v517
        %616 = vmatpush1.bf16.msra.mxu0 %v516
        %617 = vmatprep.subr.bf16.mxu0 %v521
        %618 = vmatpush1.bf16.msra.mxu0 %v520
        %619 = vmatprep.subr.bf16.mxu0 %v525
        %620 = vmatpush1.bf16.msra.mxu0 %v524
        %621 = vmatprep.subr.bf16.mxu0 %v529
        %622 = vmatpush1.bf16.msra.mxu0 %v528
        %623 = vmatprep.subr.bf16.mxu0 %v533
        %624 = vmatpush1.bf16.msra.mxu0 %v532
        %625 = vmatprep.subr.bf16.mxu0 %v537
        %626 = vmatpush1.bf16.msra.mxu0 %v536
        %627 = vmatprep.subr.bf16.mxu0 0
        %628 = vmatpush1.bf16.msra.mxu0 0
        %629 = vmatprep.subr.bf16.mxu0 0
        %630 = vmatpush1.bf16.msra.mxu0 0
        %631 = vmatprep.subr.bf16.mxu0 0
        %632 = vmatpush1.bf16.msra.mxu0 0
        %633 = vmatprep.subr.bf16.mxu0 0
        %634 = vmatpush1.bf16.msra.mxu0 0
        %635 = vmatprep.subr.bf16.mxu0 0
        %636 = vmatpush1.bf16.msra.mxu0 0
        %637 = vmatprep.subr.bf16.mxu0 0
        %638 = vmatpush1.bf16.msra.mxu0 0
        %639 = vmatprep.subr.bf16.mxu0 0
        %640 = vmatpush1.bf16.msra.mxu0 0
        %641 = vmatprep.subr.bf16.mxu0 0
        %642 = vmatpush1.bf16.msra.mxu0 0
        %643 = vmatprep.mubr.bf16.mxu0 0
        %644 = vmatmul.mubr.bf16.gmra.mrb[0].mxu0 %v409
        %v645 = vpop.f32.mrb[0].mxu0
        %v646 = vadd.f32 0.0, %v645
        %v647 = vpop.f32.mrb[0].mxu0
        %v648 = vadd.f32 0.0, %v647
        %v649 = vpop.f32.mrb[0].mxu0
        %v650 = vpop.f32.mrb[0].mxu0
        %651 = vdwg.mxu0
        %v656 = vcombine.low %v605, %v607
        %v657 = vcombine.high %v605, %v607
        %v658 = vcombine.low %v646, %v648
        %v659 = vcombine.high %v646, %v648
        %v661 = vunpack.c.l.s4 1966171168
        %v662 = vunpack.c.0.s8 %v661
        %v663 = vlaneseq
        %v664 = vshrl.u32 %v663, 7
        %v665 = vsub.s32 %v662, %v664
        %v666 = vrot.slane %v656, %v665
        %v668 = vunpack.c.l.s4 1966171168
        %v669 = vunpack.c.0.s8 %v668
        %v670 = vlaneseq
        %v671 = vshrl.u32 %v670, 7
        %v672 = vsub.s32 %v669, %v671
        %v673 = vrot.slane %v657, %v672
        %v675 = vunpack.c.l.s4 1966171168
        %v676 = vunpack.c.0.s8 %v675
        %v677 = vlaneseq
        %v678 = vshrl.u32 %v677, 7
        %v679 = vsub.s32 %v676, %v678
        %v680 = vrot.slane %v658, %v679
        %v682 = vunpack.c.l.s4 1966171168
        %v683 = vunpack.c.0.s8 %v682
        %v684 = vlaneseq
        %v685 = vshrl.u32 %v684, 7
        %v686 = vsub.s32 %v683, %v685
        %v687 = vrot.slane %v659, %v686
        %v688 = vcombine.low %v666, %v680
        %v689 = vcombine.high %v666, %v680
        %v690 = vcombine.low %v673, %v687
        %v691 = vcombine.high %v673, %v687
        %v693 = vunpack.c.l.s4 1966171168
        %v694 = vunpack.c.0.s8 %v693
        %v695 = vlaneseq
        %v696 = vshrl.u32 %v695, 7
        %v697 = vsub.s32 %v694, %v696
        %v698 = vrot.slane %v688, %v697
        %v700 = vunpack.c.l.s4 1966171168
        %v701 = vunpack.c.0.s8 %v700
        %v702 = vlaneseq
        %v703 = vshrl.u32 %v702, 7
        %v704 = vsub.s32 %v701, %v703
        %v705 = vrot.slane %v690, %v704
        %v707 = vunpack.c.l.s4 1966171168
        %v708 = vunpack.c.0.s8 %v707
        %v709 = vlaneseq
        %v710 = vshrl.u32 %v709, 7
        %v711 = vsub.s32 %v708, %v710
        %v712 = vrot.slane %v689, %v711
        %v714 = vunpack.c.l.s4 1966171168
        %v715 = vunpack.c.0.s8 %v714
        %v716 = vlaneseq
        %v717 = vshrl.u32 %v716, 7
        %v718 = vsub.s32 %v715, %v717
        %v719 = vrot.slane %v691, %v718
        %v720 = vcombine.high %v698, %v698
        %v721 = vcombine.high %v705, %v705
        %v722 = vcombine.high %v712, %v712
        %v723 = vcombine.high %v719, %v719
        %v732 = vadd.f32 %v394, %v698
        %v733 = vadd.f32 %v396, %v712
        %v734 = vadd.f32 %v398, %v720
        %v735 = vadd.f32 %v400, %v722
        %v736 = vadd.f32 %v402, %v705
        %v737 = vadd.f32 %v404, %v719
        %v738 = vadd.f32 %v406, %v721
        %v739 = vadd.f32 %v408, %v723
        %v740 = vxor.u32 %v732, 2147483648
        %v741 = vxor.u32 %v733, 2147483648
        %v742 = vxor.u32 %v734, 2147483648
        %v743 = vxor.u32 %v735, 2147483648
        %v744 = vxor.u32 %v736, 2147483648
        %v745 = vxor.u32 %v737, 2147483648
        %v746 = vxor.u32 %v738, 2147483648
        %v747 = vxor.u32 %v739, 2147483648
        %v748 = vmul.f32 %v740, 1.442695
        %v749 = vpow.pop %v748
        %v750 = vmul.f32 %v741, 1.442695
        %v751 = vpow.pop %v750
        %v752 = vmul.f32 %v742, 1.442695
        %v753 = vpow.pop %v752
        %v754 = vmul.f32 %v743, 1.442695
        %v755 = vpow.pop %v754
        %v756 = vmul.f32 %v744, 1.442695
        %v757 = vpow.pop %v756
        %v758 = vmul.f32 %v745, 1.442695
        %v759 = vpow.pop %v758
        %v760 = vmul.f32 %v746, 1.442695
        %v761 = vpow.pop %v760
        %v762 = vmul.f32 %v747, 1.442695
        %v763 = vpow.pop %v762
        %v764 = vadd.f32 %v749, 1.0
        %v765 = vadd.f32 %v751, 1.0
        %v766 = vadd.f32 %v753, 1.0
        %v767 = vadd.f32 %v755, 1.0
        %v768 = vadd.f32 %v757, 1.0
        %v769 = vadd.f32 %v759, 1.0
        %v770 = vadd.f32 %v761, 1.0
        %v771 = vadd.f32 %v763, 1.0
        %v772 = vrcp.pop %v764
        %v773 = vmul.f32 1.0, %v772
        %v774 = vrcp.pop %v765
        %v775 = vmul.f32 1.0, %v774
        %v776 = vrcp.pop %v766
        %v777 = vmul.f32 1.0, %v776
        %v778 = vrcp.pop %v767
        %v779 = vmul.f32 1.0, %v778
        %v780 = vrcp.pop %v768
        %v781 = vmul.f32 1.0, %v780
        %v782 = vrcp.pop %v769
        %v783 = vmul.f32 1.0, %v782
        %v784 = vrcp.pop %v770
        %v785 = vmul.f32 1.0, %v784
        %v786 = vrcp.pop %v771
        %v787 = vmul.f32 1.0, %v786
        %v796 = vrot.slane %v732, 1
        %v797 = vrot.slane %v733, 1
        %v798 = vrot.slane %v734, 1
        %v799 = vrot.slane %v735, 1
        %v800 = vrot.slane %v736, 1
        %v801 = vrot.slane %v737, 1
        %v802 = vrot.slane %v738, 1
        %v803 = vrot.slane %v739, 1
        %v812 = vxor.u32 %v796, 2147483648
        %v813 = vxor.u32 %v797, 2147483648
        %v814 = vxor.u32 %v798, 2147483648
        %v815 = vxor.u32 %v799, 2147483648
        %v816 = vxor.u32 %v800, 2147483648
        %v817 = vxor.u32 %v801, 2147483648
        %v818 = vxor.u32 %v802, 2147483648
        %v819 = vxor.u32 %v803, 2147483648
        %v820 = vmul.f32 %v812, 1.442695
        %v821 = vpow.pop %v820
        %v822 = vmul.f32 %v813, 1.442695
        %v823 = vpow.pop %v822
        %v824 = vmul.f32 %v814, 1.442695
        %v825 = vpow.pop %v824
        %v826 = vmul.f32 %v815, 1.442695
        %v827 = vpow.pop %v826
        %v828 = vmul.f32 %v816, 1.442695
        %v829 = vpow.pop %v828
        %v830 = vmul.f32 %v817, 1.442695
        %v831 = vpow.pop %v830
        %v832 = vmul.f32 %v818, 1.442695
        %v833 = vpow.pop %v832
        %v834 = vmul.f32 %v819, 1.442695
        %v835 = vpow.pop %v834
        %v836 = vadd.f32 %v821, 1.0
        %v837 = vadd.f32 %v823, 1.0
        %v838 = vadd.f32 %v825, 1.0
        %v839 = vadd.f32 %v827, 1.0
        %v840 = vadd.f32 %v829, 1.0
        %v841 = vadd.f32 %v831, 1.0
        %v842 = vadd.f32 %v833, 1.0
        %v843 = vadd.f32 %v835, 1.0
        %v844 = vrcp.pop %v836
        %v845 = vmul.f32 1.0, %v844
        %v846 = vrcp.pop %v837
        %v847 = vmul.f32 1.0, %v846
        %v848 = vrcp.pop %v838
        %v849 = vmul.f32 1.0, %v848
        %v850 = vrcp.pop %v839
        %v851 = vmul.f32 1.0, %v850
        %v852 = vrcp.pop %v840
        %v853 = vmul.f32 1.0, %v852
        %v854 = vrcp.pop %v841
        %v855 = vmul.f32 1.0, %v854
        %v856 = vrcp.pop %v842
        %v857 = vmul.f32 1.0, %v856
        %v858 = vrcp.pop %v843
        %v859 = vmul.f32 1.0, %v858
        %v860 = vrot.slane %v732, 2
        %v861 = vrot.slane %v733, 2
        %v862 = vrot.slane %v734, 2
        %v863 = vrot.slane %v735, 2
        %v864 = vrot.slane %v736, 2
        %v865 = vrot.slane %v737, 2
        %v866 = vrot.slane %v738, 2
        %v867 = vrot.slane %v739, 2
        %v876 = vtanh.pop %v860
        %v877 = vtanh.pop %v861
        %v878 = vtanh.pop %v862
        %v879 = vtanh.pop %v863
        %v880 = vtanh.pop %v864
        %v881 = vtanh.pop %v865
        %v882 = vtanh.pop %v866
        %v883 = vtanh.pop %v867
        %v884 = vrot.slane %v732, 3
        %v885 = vrot.slane %v733, 3
        %v886 = vrot.slane %v734, 3
        %v887 = vrot.slane %v735, 3
        %v888 = vrot.slane %v736, 3
        %v889 = vrot.slane %v737, 3
        %v890 = vrot.slane %v738, 3
        %v891 = vrot.slane %v739, 3
        %v900 = vxor.u32 %v884, 2147483648
        %v901 = vxor.u32 %v885, 2147483648
        %v902 = vxor.u32 %v886, 2147483648
        %v903 = vxor.u32 %v887, 2147483648
        %v904 = vxor.u32 %v888, 2147483648
        %v905 = vxor.u32 %v889, 2147483648
        %v906 = vxor.u32 %v890, 2147483648
        %v907 = vxor.u32 %v891, 2147483648
        %v908 = vmul.f32 %v900, 1.442695
        %v909 = vpow.pop %v908
        %v910 = vmul.f32 %v901, 1.442695
        %v911 = vpow.pop %v910
        %v912 = vmul.f32 %v902, 1.442695
        %v913 = vpow.pop %v912
        %v914 = vmul.f32 %v903, 1.442695
        %v915 = vpow.pop %v914
        %v916 = vmul.f32 %v904, 1.442695
        %v917 = vpow.pop %v916
        %v918 = vmul.f32 %v905, 1.442695
        %v919 = vpow.pop %v918
        %v920 = vmul.f32 %v906, 1.442695
        %v921 = vpow.pop %v920
        %v922 = vmul.f32 %v907, 1.442695
        %v923 = vpow.pop %v922
        %v924 = vadd.f32 %v909, 1.0
        %v925 = vadd.f32 %v911, 1.0
        %v926 = vadd.f32 %v913, 1.0
        %v927 = vadd.f32 %v915, 1.0
        %v928 = vadd.f32 %v917, 1.0
        %v929 = vadd.f32 %v919, 1.0
        %v930 = vadd.f32 %v921, 1.0
        %v931 = vadd.f32 %v923, 1.0
        %v932 = vrcp.pop %v924
        %v933 = vmul.f32 1.0, %v932
        %v934 = vrcp.pop %v925
        %v935 = vmul.f32 1.0, %v934
        %v936 = vrcp.pop %v926
        %v937 = vmul.f32 1.0, %v936
        %v938 = vrcp.pop %v927
        %v939 = vmul.f32 1.0, %v938
        %v940 = vrcp.pop %v928
        %v941 = vmul.f32 1.0, %v940
        %v942 = vrcp.pop %v929
        %v943 = vmul.f32 1.0, %v942
        %v944 = vrcp.pop %v930
        %v945 = vmul.f32 1.0, %v944
        %v946 = vrcp.pop %v931
        %v947 = vmul.f32 1.0, %v946
        %v949 = vcombine.high %v393, %v393
        %v951 = vunpack.c.l.s4 1966171168
        %v952 = vunpack.c.0.s8 %v951
        %v953 = vlaneseq
        %v954 = vshrl.u32 %v953, 7
        %v955 = vsub.s32 %v952, %v954
        %v956 = vrot.slane %v393, %v955
        %v958 = vunpack.c.l.s4 1966171168
        %v959 = vunpack.c.0.s8 %v958
        %v960 = vlaneseq
        %v961 = vshrl.u32 %v960, 7
        %v962 = vsub.s32 %v959, %v961
        %v963 = vrot.slane %v949, %v962
        %v964 = vcombine.high %v956, %v956
        %v965 = vcombine.high %v963, %v963
        %v967 = vunpack.c.l.s4 1966171168
        %v968 = vunpack.c.0.s8 %v967
        %v969 = vlaneseq
        %v970 = vshrl.u32 %v969, 7
        %v971 = vsub.s32 %v968, %v970
        %v972 = vrot.slane %v956, %v971
        %v974 = vunpack.c.l.s4 1966171168
        %v975 = vunpack.c.0.s8 %v974
        %v976 = vlaneseq
        %v977 = vshrl.u32 %v976, 7
        %v978 = vsub.s32 %v975, %v977
        %v979 = vrot.slane %v963, %v978
        %v981 = vunpack.c.l.s4 1966171168
        %v982 = vunpack.c.0.s8 %v981
        %v983 = vlaneseq
        %v984 = vshrl.u32 %v983, 7
        %v985 = vsub.s32 %v982, %v984
        %v986 = vrot.slane %v964, %v985
        %v988 = vunpack.c.l.s4 1966171168
        %v989 = vunpack.c.0.s8 %v988
        %v990 = vlaneseq
        %v991 = vshrl.u32 %v990, 7
        %v992 = vsub.s32 %v989, %v991
        %v993 = vrot.slane %v965, %v992
        %v994 = vcombine.high %v972, %v972
        %v995 = vcombine.high %v979, %v979
        %v996 = vcombine.high %v986, %v986
        %v997 = vcombine.high %v993, %v993
        %v1006 = vmul.f32 %v845, %v972
        %v1007 = vmul.f32 %v847, %v986
        %v1008 = vmul.f32 %v849, %v994
        %v1009 = vmul.f32 %v851, %v996
        %v1010 = vmul.f32 %v853, %v979
        %v1011 = vmul.f32 %v855, %v993
        %v1012 = vmul.f32 %v857, %v995
        %v1013 = vmul.f32 %v859, %v997
        %v1014 = vmul.f32 %v773, %v876
        %v1015 = vmul.f32 %v775, %v877
        %v1016 = vmul.f32 %v777, %v878
        %v1017 = vmul.f32 %v779, %v879
        %v1018 = vmul.f32 %v781, %v880
        %v1019 = vmul.f32 %v783, %v881
        %v1020 = vmul.f32 %v785, %v882
        %v1021 = vmul.f32 %v787, %v883
        %v1022 = vadd.f32 %v1006, %v1014
        %v1023 = vadd.f32 %v1007, %v1015
        %v1024 = vadd.f32 %v1008, %v1016
        %v1025 = vadd.f32 %v1009, %v1017
        %v1026 = vadd.f32 %v1010, %v1018
        %v1027 = vadd.f32 %v1011, %v1019
        %v1028 = vadd.f32 %v1012, %v1020
        %v1029 = vadd.f32 %v1013, %v1021
        %v1030 = vtanh.pop %v1022
        %v1031 = vtanh.pop %v1023
        %v1032 = vtanh.pop %v1024
        %v1033 = vtanh.pop %v1025
        %v1034 = vtanh.pop %v1026
        %v1035 = vtanh.pop %v1027
        %v1036 = vtanh.pop %v1028
        %v1037 = vtanh.pop %v1029
        %v1038 = vmul.f32 %v933, %v1030
        %v1039 = vmul.f32 %v935, %v1031
        %v1040 = vmul.f32 %v937, %v1032
        %v1041 = vmul.f32 %v939, %v1033
        %v1042 = vmul.f32 %v941, %v1034
        %v1043 = vmul.f32 %v943, %v1035
        %v1044 = vmul.f32 %v945, %v1036
        %v1045 = vmul.f32 %v947, %v1037
        %1046 = vst [vmem:[%s344] sm:$0x1] %v1038
        %1047 = vst [vmem:[%s344 + $0x8] sm:$0x1] %v1039
        %1048 = vst [vmem:[%s344 + $0x10] sm:$0x1] %v1040
        %1049 = vst [vmem:[%s344 + $0x18] sm:$0x1] %v1041
        %1050 = vst [vmem:[%s344 + $0x20] sm:$0x1] %v1042
        %1051 = vst [vmem:[%s344 + $0x28] sm:$0x1] %v1043
        %1052 = vst [vmem:[%s344 + $0x30] sm:$0x1] %v1044
        %1053 = vst [vmem:[%s344 + $0x38] sm:$0x1] %v1045
        %s1054 = scalar_lea.vmem %s308, 1 [#allocation4]
        %v1055 = vld [vmem:[%s1054] ss:$8 sm:$0xf]
        %s1056 = scalar_lea.vmem %s308, 33 [#allocation4]
        %v1057 = vld [vmem:[%s1056] ss:$8 sm:$0xf]
        %s1058 = scalar_lea.vmem %s308, 65 [#allocation4]
        %v1059 = vld [vmem:[%s1058] ss:$8 sm:$0xf]
        %s1060 = scalar_lea.vmem %s308, 97 [#allocation4]
        %v1061 = vld [vmem:[%s1060] ss:$8 sm:$0xf]
        %s1062 = scalar_lea.vmem %s308, 129 [#allocation4]
        %v1063 = vld [vmem:[%s1062] ss:$8 sm:$0xf]
        %s1064 = scalar_lea.vmem %s308, 161 [#allocation4]
        %v1065 = vld [vmem:[%s1064] ss:$8 sm:$0xf]
        %s1066 = scalar_lea.vmem %s308, 193 [#allocation4]
        %v1067 = vld [vmem:[%s1066] ss:$8 sm:$0xf]
        %s1068 = scalar_lea.vmem %s308, 225 [#allocation4]
        %v1069 = vld [vmem:[%s1068] ss:$8 sm:$0xf]
        %v1070 = vpack.c.bf16 %v1038, %v1038
        %v1071 = vpack.c.bf16 %v1039, %v1039
        %v1072 = vpack.c.bf16 %v1040, %v1040
        %v1073 = vpack.c.bf16 %v1041, %v1041
        %v1074 = vpack.c.bf16 %v1042, %v1042
        %v1075 = vpack.c.bf16 %v1043, %v1043
        %v1076 = vpack.c.bf16 %v1044, %v1044
        %v1077 = vpack.c.bf16 %v1045, %v1045
        %v1086 = vunpack.c.l.b16 %v1070
        %v1087 = vunpack.c.l.b16 %v1071
        %v1088 = vunpack.c.l.b16 %v1072
        %v1089 = vunpack.c.l.b16 %v1073
        %v1090 = vunpack.c.l.b16 %v1074
        %v1091 = vunpack.c.l.b16 %v1075
        %v1092 = vunpack.c.l.b16 %v1076
        %v1093 = vunpack.c.l.b16 %v1077
        %v1094 = vrot.slane %v1087, 7
        %vm1095 = vcmask 1041409
        %v1096 = vsel %vm1095, %v1094, %v1086
        %v1097 = vrot.slane %v1088, 6
        %vm1098 = vcmask 1042434
        %v1099 = vsel %vm1098, %v1097, %v1096
        %v1100 = vrot.slane %v1089, 5
        %vm1101 = vcmask 1043459
        %v1102 = vsel %vm1101, %v1100, %v1099
        %v1103 = vrot.slane %v1090, 4
        %vm1104 = vcmask 1044484
        %v1105 = vsel %vm1104, %v1103, %v1102
        %v1106 = vrot.slane %v1091, 3
        %vm1107 = vcmask 1045509
        %v1108 = vsel %vm1107, %v1106, %v1105
        %v1109 = vrot.slane %v1092, 2
        %vm1110 = vcmask 1046534
        %v1111 = vsel %vm1110, %v1109, %v1108
        %v1112 = vrot.slane %v1093, 1
        %vm1113 = vcmask 1047559
        %v1114 = vsel %vm1113, %v1112, %v1111
        %v1115 = vpack.c.b16 %v1114, %v1114
        %1117 = vmatprep.subr.bf16.mxu0 %v507
        %1118 = vmatpush1.bf16.msra.mxu0 %v506
        %1119 = vmatprep.subr.bf16.mxu0 %v511
        %1120 = vmatpush1.bf16.msra.mxu0 %v510
        %1121 = vmatprep.subr.bf16.mxu0 %v515
        %1122 = vmatpush1.bf16.msra.mxu0 %v514
        %1123 = vmatprep.subr.bf16.mxu0 %v519
        %1124 = vmatpush1.bf16.msra.mxu0 %v518
        %1125 = vmatprep.subr.bf16.mxu0 %v523
        %1126 = vmatpush1.bf16.msra.mxu0 %v522
        %1127 = vmatprep.subr.bf16.mxu0 %v527
        %1128 = vmatpush1.bf16.msra.mxu0 %v526
        %1129 = vmatprep.subr.bf16.mxu0 %v531
        %1130 = vmatpush1.bf16.msra.mxu0 %v530
        %1131 = vmatprep.subr.bf16.mxu0 %v535
        %1132 = vmatpush1.bf16.msra.mxu0 %v534
        %1133 = vmatprep.subr.bf16.mxu0 0
        %1134 = vmatpush1.bf16.msra.mxu0 0
        %1135 = vmatprep.subr.bf16.mxu0 0
        %1136 = vmatpush1.bf16.msra.mxu0 0
        %1137 = vmatprep.subr.bf16.mxu0 0
        %1138 = vmatpush1.bf16.msra.mxu0 0
        %1139 = vmatprep.subr.bf16.mxu0 0
        %1140 = vmatpush1.bf16.msra.mxu0 0
        %1141 = vmatprep.subr.bf16.mxu0 0
        %1142 = vmatpush1.bf16.msra.mxu0 0
        %1143 = vmatprep.subr.bf16.mxu0 0
        %1144 = vmatpush1.bf16.msra.mxu0 0
        %1145 = vmatprep.subr.bf16.mxu0 0
        %1146 = vmatpush1.bf16.msra.mxu0 0
        %1147 = vmatprep.subr.bf16.mxu0 0
        %1148 = vmatpush1.bf16.msra.mxu0 0
        %1149 = vmatprep.mubr.bf16.mxu0 0
        %1150 = vmatmul.mubr.bf16.gmra.mrb[0].mxu0 %v1115
        %v1151 = vpop.f32.mrb[0].mxu0
        %v1152 = vadd.f32 0.0, %v1151
        %v1153 = vpop.f32.mrb[0].mxu0
        %v1154 = vadd.f32 0.0, %v1153
        %v1155 = vpop.f32.mrb[0].mxu0
        %v1156 = vpop.f32.mrb[0].mxu0
        %1157 = vdwg.mxu0
        %1158 = vmatprep.subr.bf16.mxu0 %v509
        %1159 = vmatpush1.bf16.msra.mxu0 %v508
        %1160 = vmatprep.subr.bf16.mxu0 %v513
        %1161 = vmatpush1.bf16.msra.mxu0 %v512
        %1162 = vmatprep.subr.bf16.mxu0 %v517
        %1163 = vmatpush1.bf16.msra.mxu0 %v516
        %1164 = vmatprep.subr.bf16.mxu0 %v521
        %1165 = vmatpush1.bf16.msra.mxu0 %v520
        %1166 = vmatprep.subr.bf16.mxu0 %v525
        %1167 = vmatpush1.bf16.msra.mxu0 %v524
        %1168 = vmatprep.subr.bf16.mxu0 %v529
        %1169 = vmatpush1.bf16.msra.mxu0 %v528
        %1170 = vmatprep.subr.bf16.mxu0 %v533
        %1171 = vmatpush1.bf16.msra.mxu0 %v532
        %1172 = vmatprep.subr.bf16.mxu0 %v537
        %1173 = vmatpush1.bf16.msra.mxu0 %v536
        %1174 = vmatprep.subr.bf16.mxu0 0
        %1175 = vmatpush1.bf16.msra.mxu0 0
        %1176 = vmatprep.subr.bf16.mxu0 0
        %1177 = vmatpush1.bf16.msra.mxu0 0
        %1178 = vmatprep.subr.bf16.mxu0 0
        %1179 = vmatpush1.bf16.msra.mxu0 0
        %1180 = vmatprep.subr.bf16.mxu0 0
        %1181 = vmatpush1.bf16.msra.mxu0 0
        %1182 = vmatprep.subr.bf16.mxu0 0
        %1183 = vmatpush1.bf16.msra.mxu0 0
        %1184 = vmatprep.subr.bf16.mxu0 0
        %1185 = vmatpush1.bf16.msra.mxu0 0
        %1186 = vmatprep.subr.bf16.mxu0 0
        %1187 = vmatpush1.bf16.msra.mxu0 0
        %1188 = vmatprep.subr.bf16.mxu0 0
        %1189 = vmatpush1.bf16.msra.mxu0 0
        %1190 = vmatprep.mubr.bf16.mxu0 0
        %1191 = vmatmul.mubr.bf16.gmra.mrb[0].mxu0 %v1115
        %v1192 = vpop.f32.mrb[0].mxu0
        %v1193 = vadd.f32 0.0, %v1192
        %v1194 = vpop.f32.mrb[0].mxu0
        %v1195 = vadd.f32 0.0, %v1194
        %v1196 = vpop.f32.mrb[0].mxu0
        %v1197 = vpop.f32.mrb[0].mxu0
        %1198 = vdwg.mxu0
        %v1203 = vcombine.low %v1152, %v1154
        %v1204 = vcombine.high %v1152, %v1154
        %v1205 = vcombine.low %v1193, %v1195
        %v1206 = vcombine.high %v1193, %v1195
        %v1208 = vunpack.c.l.s4 1966171168
        %v1209 = vunpack.c.0.s8 %v1208
        %v1210 = vlaneseq
        %v1211 = vshrl.u32 %v1210, 7
        %v1212 = vsub.s32 %v1209, %v1211
        %v1213 = vrot.slane %v1203, %v1212
        %v1215 = vunpack.c.l.s4 1966171168
        %v1216 = vunpack.c.0.s8 %v1215
        %v1217 = vlaneseq
        %v1218 = vshrl.u32 %v1217, 7
        %v1219 = vsub.s32 %v1216, %v1218
        %v1220 = vrot.slane %v1204, %v1219
        %v1222 = vunpack.c.l.s4 1966171168
        %v1223 = vunpack.c.0.s8 %v1222
        %v1224 = vlaneseq
        %v1225 = vshrl.u32 %v1224, 7
        %v1226 = vsub.s32 %v1223, %v1225
        %v1227 = vrot.slane %v1205, %v1226
        %v1229 = vunpack.c.l.s4 1966171168
        %v1230 = vunpack.c.0.s8 %v1229
        %v1231 = vlaneseq
        %v1232 = vshrl.u32 %v1231, 7
        %v1233 = vsub.s32 %v1230, %v1232
        %v1234 = vrot.slane %v1206, %v1233
        %v1235 = vcombine.low %v1213, %v1227
        %v1236 = vcombine.high %v1213, %v1227
        %v1237 = vcombine.low %v1220, %v1234
        %v1238 = vcombine.high %v1220, %v1234
        %v1240 = vunpack.c.l.s4 1966171168
        %v1241 = vunpack.c.0.s8 %v1240
        %v1242 = vlaneseq
        %v1243 = vshrl.u32 %v1242, 7
        %v1244 = vsub.s32 %v1241, %v1243
        %v1245 = vrot.slane %v1235, %v1244
        %v1247 = vunpack.c.l.s4 1966171168
        %v1248 = vunpack.c.0.s8 %v1247
        %v1249 = vlaneseq
        %v1250 = vshrl.u32 %v1249, 7
        %v1251 = vsub.s32 %v1248, %v1250
        %v1252 = vrot.slane %v1237, %v1251
        %v1254 = vunpack.c.l.s4 1966171168
        %v1255 = vunpack.c.0.s8 %v1254
        %v1256 = vlaneseq
        %v1257 = vshrl.u32 %v1256, 7
        %v1258 = vsub.s32 %v1255, %v1257
        %v1259 = vrot.slane %v1236, %v1258
        %v1261 = vunpack.c.l.s4 1966171168
        %v1262 = vunpack.c.0.s8 %v1261
        %v1263 = vlaneseq
        %v1264 = vshrl.u32 %v1263, 7
        %v1265 = vsub.s32 %v1262, %v1264
        %v1266 = vrot.slane %v1238, %v1265
        %v1267 = vcombine.high %v1245, %v1245
        %v1268 = vcombine.high %v1252, %v1252
        %v1269 = vcombine.high %v1259, %v1259
        %v1270 = vcombine.high %v1266, %v1266
        %v1279 = vadd.f32 %v1055, %v1245
        %v1280 = vadd.f32 %v1057, %v1259
        %v1281 = vadd.f32 %v1059, %v1267
        %v1282 = vadd.f32 %v1061, %v1269
        %v1283 = vadd.f32 %v1063, %v1252
        %v1284 = vadd.f32 %v1065, %v1266
        %v1285 = vadd.f32 %v1067, %v1268
        %v1286 = vadd.f32 %v1069, %v1270
        %v1287 = vxor.u32 %v1279, 2147483648
        %v1288 = vxor.u32 %v1280, 2147483648
        %v1289 = vxor.u32 %v1281, 2147483648
        %v1290 = vxor.u32 %v1282, 2147483648
        %v1291 = vxor.u32 %v1283, 2147483648
        %v1292 = vxor.u32 %v1284, 2147483648
        %v1293 = vxor.u32 %v1285, 2147483648
        %v1294 = vxor.u32 %v1286, 2147483648
        %v1295 = vmul.f32 %v1287, 1.442695
        %v1296 = vpow.pop %v1295
        %v1297 = vmul.f32 %v1288, 1.442695
        %v1298 = vpow.pop %v1297
        %v1299 = vmul.f32 %v1289, 1.442695
        %v1300 = vpow.pop %v1299
        %v1301 = vmul.f32 %v1290, 1.442695
        %v1302 = vpow.pop %v1301
        %v1303 = vmul.f32 %v1291, 1.442695
        %v1304 = vpow.pop %v1303
        %v1305 = vmul.f32 %v1292, 1.442695
        %v1306 = vpow.pop %v1305
        %v1307 = vmul.f32 %v1293, 1.442695
        %v1308 = vpow.pop %v1307
        %v1309 = vmul.f32 %v1294, 1.442695
        %v1310 = vpow.pop %v1309
        %v1311 = vadd.f32 %v1296, 1.0
        %v1312 = vadd.f32 %v1298, 1.0
        %v1313 = vadd.f32 %v1300, 1.0
        %v1314 = vadd.f32 %v1302, 1.0
        %v1315 = vadd.f32 %v1304, 1.0
        %v1316 = vadd.f32 %v1306, 1.0
        %v1317 = vadd.f32 %v1308, 1.0
        %v1318 = vadd.f32 %v1310, 1.0
        %v1319 = vrcp.pop %v1311
        %v1320 = vmul.f32 1.0, %v1319
        %v1321 = vrcp.pop %v1312
        %v1322 = vmul.f32 1.0, %v1321
        %v1323 = vrcp.pop %v1313
        %v1324 = vmul.f32 1.0, %v1323
        %v1325 = vrcp.pop %v1314
        %v1326 = vmul.f32 1.0, %v1325
        %v1327 = vrcp.pop %v1315
        %v1328 = vmul.f32 1.0, %v1327
        %v1329 = vrcp.pop %v1316
        %v1330 = vmul.f32 1.0, %v1329
        %v1331 = vrcp.pop %v1317
        %v1332 = vmul.f32 1.0, %v1331
        %v1333 = vrcp.pop %v1318
        %v1334 = vmul.f32 1.0, %v1333
        %v1343 = vrot.slane %v1279, 1
        %v1344 = vrot.slane %v1280, 1
        %v1345 = vrot.slane %v1281, 1
        %v1346 = vrot.slane %v1282, 1
        %v1347 = vrot.slane %v1283, 1
        %v1348 = vrot.slane %v1284, 1
        %v1349 = vrot.slane %v1285, 1
        %v1350 = vrot.slane %v1286, 1
        %v1359 = vxor.u32 %v1343, 2147483648
        %v1360 = vxor.u32 %v1344, 2147483648
        %v1361 = vxor.u32 %v1345, 2147483648
        %v1362 = vxor.u32 %v1346, 2147483648
        %v1363 = vxor.u32 %v1347, 2147483648
        %v1364 = vxor.u32 %v1348, 2147483648
        %v1365 = vxor.u32 %v1349, 2147483648
        %v1366 = vxor.u32 %v1350, 2147483648
        %v1367 = vmul.f32 %v1359, 1.442695
        %v1368 = vpow.pop %v1367
        %v1369 = vmul.f32 %v1360, 1.442695
        %v1370 = vpow.pop %v1369
        %v1371 = vmul.f32 %v1361, 1.442695
        %v1372 = vpow.pop %v1371
        %v1373 = vmul.f32 %v1362, 1.442695
        %v1374 = vpow.pop %v1373
        %v1375 = vmul.f32 %v1363, 1.442695
        %v1376 = vpow.pop %v1375
        %v1377 = vmul.f32 %v1364, 1.442695
        %v1378 = vpow.pop %v1377
        %v1379 = vmul.f32 %v1365, 1.442695
        %v1380 = vpow.pop %v1379
        %v1381 = vmul.f32 %v1366, 1.442695
        %v1382 = vpow.pop %v1381
        %v1383 = vadd.f32 %v1368, 1.0
        %v1384 = vadd.f32 %v1370, 1.0
        %v1385 = vadd.f32 %v1372, 1.0
        %v1386 = vadd.f32 %v1374, 1.0
        %v1387 = vadd.f32 %v1376, 1.0
        %v1388 = vadd.f32 %v1378, 1.0
        %v1389 = vadd.f32 %v1380, 1.0
        %v1390 = vadd.f32 %v1382, 1.0
        %v1391 = vrcp.pop %v1383
        %v1392 = vmul.f32 1.0, %v1391
        %v1393 = vrcp.pop %v1384
        %v1394 = vmul.f32 1.0, %v1393
        %v1395 = vrcp.pop %v1385
        %v1396 = vmul.f32 1.0, %v1395
        %v1397 = vrcp.pop %v1386
        %v1398 = vmul.f32 1.0, %v1397
        %v1399 = vrcp.pop %v1387
        %v1400 = vmul.f32 1.0, %v1399
        %v1401 = vrcp.pop %v1388
        %v1402 = vmul.f32 1.0, %v1401
        %v1403 = vrcp.pop %v1389
        %v1404 = vmul.f32 1.0, %v1403
        %v1405 = vrcp.pop %v1390
        %v1406 = vmul.f32 1.0, %v1405
        %v1407 = vrot.slane %v1279, 2
        %v1408 = vrot.slane %v1280, 2
        %v1409 = vrot.slane %v1281, 2
        %v1410 = vrot.slane %v1282, 2
        %v1411 = vrot.slane %v1283, 2
        %v1412 = vrot.slane %v1284, 2
        %v1413 = vrot.slane %v1285, 2
        %v1414 = vrot.slane %v1286, 2
        %v1423 = vtanh.pop %v1407
        %v1424 = vtanh.pop %v1408
        %v1425 = vtanh.pop %v1409
        %v1426 = vtanh.pop %v1410
        %v1427 = vtanh.pop %v1411
        %v1428 = vtanh.pop %v1412
        %v1429 = vtanh.pop %v1413
        %v1430 = vtanh.pop %v1414
        %v1431 = vrot.slane %v1279, 3
        %v1432 = vrot.slane %v1280, 3
        %v1433 = vrot.slane %v1281, 3
        %v1434 = vrot.slane %v1282, 3
        %v1435 = vrot.slane %v1283, 3
        %v1436 = vrot.slane %v1284, 3
        %v1437 = vrot.slane %v1285, 3
        %v1438 = vrot.slane %v1286, 3
        %v1447 = vxor.u32 %v1431, 2147483648
        %v1448 = vxor.u32 %v1432, 2147483648
        %v1449 = vxor.u32 %v1433, 2147483648
        %v1450 = vxor.u32 %v1434, 2147483648
        %v1451 = vxor.u32 %v1435, 2147483648
        %v1452 = vxor.u32 %v1436, 2147483648
        %v1453 = vxor.u32 %v1437, 2147483648
        %v1454 = vxor.u32 %v1438, 2147483648
        %v1455 = vmul.f32 %v1447, 1.442695
        %v1456 = vpow.pop %v1455
        %v1457 = vmul.f32 %v1448, 1.442695
        %v1458 = vpow.pop %v1457
        %v1459 = vmul.f32 %v1449, 1.442695
        %v1460 = vpow.pop %v1459
        %v1461 = vmul.f32 %v1450, 1.442695
        %v1462 = vpow.pop %v1461
        %v1463 = vmul.f32 %v1451, 1.442695
        %v1464 = vpow.pop %v1463
        %v1465 = vmul.f32 %v1452, 1.442695
        %v1466 = vpow.pop %v1465
        %v1467 = vmul.f32 %v1453, 1.442695
        %v1468 = vpow.pop %v1467
        %v1469 = vmul.f32 %v1454, 1.442695
        %v1470 = vpow.pop %v1469
        %v1471 = vadd.f32 %v1456, 1.0
        %v1472 = vadd.f32 %v1458, 1.0
        %v1473 = vadd.f32 %v1460, 1.0
        %v1474 = vadd.f32 %v1462, 1.0
        %v1475 = vadd.f32 %v1464, 1.0
        %v1476 = vadd.f32 %v1466, 1.0
        %v1477 = vadd.f32 %v1468, 1.0
        %v1478 = vadd.f32 %v1470, 1.0
        %v1479 = vrcp.pop %v1471
        %v1480 = vmul.f32 1.0, %v1479
        %v1481 = vrcp.pop %v1472
        %v1482 = vmul.f32 1.0, %v1481
        %v1483 = vrcp.pop %v1473
        %v1484 = vmul.f32 1.0, %v1483
        %v1485 = vrcp.pop %v1474
        %v1486 = vmul.f32 1.0, %v1485
        %v1487 = vrcp.pop %v1475
        %v1488 = vmul.f32 1.0, %v1487
        %v1489 = vrcp.pop %v1476
        %v1490 = vmul.f32 1.0, %v1489
        %v1491 = vrcp.pop %v1477
        %v1492 = vmul.f32 1.0, %v1491
        %v1493 = vrcp.pop %v1478
        %v1494 = vmul.f32 1.0, %v1493
        %v1495 = vmul.f32 %v1392, %v1022
        %v1496 = vmul.f32 %v1394, %v1023
        %v1497 = vmul.f32 %v1396, %v1024
        %v1498 = vmul.f32 %v1398, %v1025
        %v1499 = vmul.f32 %v1400, %v1026
        %v1500 = vmul.f32 %v1402, %v1027
        %v1501 = vmul.f32 %v1404, %v1028
        %v1502 = vmul.f32 %v1406, %v1029
        %v1503 = vmul.f32 %v1320, %v1423
        %v1504 = vmul.f32 %v1322, %v1424
        %v1505 = vmul.f32 %v1324, %v1425
        %v1506 = vmul.f32 %v1326, %v1426
        %v1507 = vmul.f32 %v1328, %v1427
        %v1508 = vmul.f32 %v1330, %v1428
        %v1509 = vmul.f32 %v1332, %v1429
        %v1510 = vmul.f32 %v1334, %v1430
        %v1511 = vadd.f32 %v1495, %v1503
        %v1512 = vadd.f32 %v1496, %v1504
        %v1513 = vadd.f32 %v1497, %v1505
        %v1514 = vadd.f32 %v1498, %v1506
        %v1515 = vadd.f32 %v1499, %v1507
        %v1516 = vadd.f32 %v1500, %v1508
        %v1517 = vadd.f32 %v1501, %v1509
        %v1518 = vadd.f32 %v1502, %v1510
        %v1519 = vtanh.pop %v1511
        %v1520 = vtanh.pop %v1512
        %v1521 = vtanh.pop %v1513
        %v1522 = vtanh.pop %v1514
        %v1523 = vtanh.pop %v1515
        %v1524 = vtanh.pop %v1516
        %v1525 = vtanh.pop %v1517
        %v1526 = vtanh.pop %v1518
        %v1527 = vmul.f32 %v1480, %v1519
        %v1528 = vmul.f32 %v1482, %v1520
        %v1529 = vmul.f32 %v1484, %v1521
        %v1530 = vmul.f32 %v1486, %v1522
        %v1531 = vmul.f32 %v1488, %v1523
        %v1532 = vmul.f32 %v1490, %v1524
        %v1533 = vmul.f32 %v1492, %v1525
        %v1534 = vmul.f32 %v1494, %v1526
        %1535 = vst [vmem:[%s344 + $0x1] sm:$0x1] %v1527
        %1536 = vst [vmem:[%s344 + $0x9] sm:$0x1] %v1528
        %1537 = vst [vmem:[%s344 + $0x11] sm:$0x1] %v1529
        %1538 = vst [vmem:[%s344 + $0x19] sm:$0x1] %v1530
        %1539 = vst [vmem:[%s344 + $0x21] sm:$0x1] %v1531
        %1540 = vst [vmem:[%s344 + $0x29] sm:$0x1] %v1532
        %1541 = vst [vmem:[%s344 + $0x31] sm:$0x1] %v1533
        %1542 = vst [vmem:[%s344 + $0x39] sm:$0x1] %v1534
        %s1543 = scalar_lea.vmem %s308, 2 [#allocation4]
        %v1544 = vld [vmem:[%s1543] ss:$8 sm:$0xf]
        %s1545 = scalar_lea.vmem %s308, 34 [#allocation4]
        %v1546 = vld [vmem:[%s1545] ss:$8 sm:$0xf]
        %s1547 = scalar_lea.vmem %s308, 66 [#allocation4]
        %v1548 = vld [vmem:[%s1547] ss:$8 sm:$0xf]
        %s1549 = scalar_lea.vmem %s308, 98 [#allocation4]
        %v1550 = vld [vmem:[%s1549] ss:$8 sm:$0xf]
        %s1551 = scalar_lea.vmem %s308, 130 [#allocation4]
        %v1552 = vld [vmem:[%s1551] ss:$8 sm:$0xf]
        %s1553 = scalar_lea.vmem %s308, 162 [#allocation4]
        %v1554 = vld [vmem:[%s1553] ss:$8 sm:$0xf]
        %s1555 = scalar_lea.vmem %s308, 194 [#allocation4]
        %v1556 = vld [vmem:[%s1555] ss:$8 sm:$0xf]
        %s1557 = scalar_lea.vmem %s308, 226 [#allocation4]
        %v1558 = vld [vmem:[%s1557] ss:$8 sm:$0xf]
        %v1559 = vpack.c.bf16 %v1527, %v1527
        %v1560 = vpack.c.bf16 %v1528, %v1528
        %v1561 = vpack.c.bf16 %v1529, %v1529
        %v1562 = vpack.c.bf16 %v1530, %v1530
        %v1563 = vpack.c.bf16 %v1531, %v1531
        %v1564 = vpack.c.bf16 %v1532, %v1532
        %v1565 = vpack.c.bf16 %v1533, %v1533
        %v1566 = vpack.c.bf16 %v1534, %v1534
        %v1575 = vunpack.c.l.b16 %v1559
        %v1576 = vunpack.c.l.b16 %v1560
        %v1577 = vunpack.c.l.b16 %v1561
        %v1578 = vunpack.c.l.b16 %v1562
        %v1579 = vunpack.c.l.b16 %v1563
        %v1580 = vunpack.c.l.b16 %v1564
        %v1581 = vunpack.c.l.b16 %v1565
        %v1582 = vunpack.c.l.b16 %v1566
        %v1583 = vrot.slane %v1576, 7
        %v1584 = vsel %vm1095, %v1583, %v1575
        %v1585 = vrot.slane %v1577, 6
        %v1586 = vsel %vm1098, %v1585, %v1584
        %v1587 = vrot.slane %v1578, 5
        %v1588 = vsel %vm1101, %v1587, %v1586
        %v1589 = vrot.slane %v1579, 4
        %v1590 = vsel %vm1104, %v1589, %v1588
        %v1591 = vrot.slane %v1580, 3
        %v1592 = vsel %vm1107, %v1591, %v1590
        %v1593 = vrot.slane %v1581, 2
        %v1594 = vsel %vm1110, %v1593, %v1592
        %v1595 = vrot.slane %v1582, 1
        %v1596 = vsel %vm1113, %v1595, %v1594
        %v1597 = vpack.c.b16 %v1596, %v1596
        %1599 = vmatprep.subr.bf16.mxu0 %v507
        %1600 = vmatpush1.bf16.msra.mxu0 %v506
        %1601 = vmatprep.subr.bf16.mxu0 %v511
        %1602 = vmatpush1.bf16.msra.mxu0 %v510
        %1603 = vmatprep.subr.bf16.mxu0 %v515
        %1604 = vmatpush1.bf16.msra.mxu0 %v514
        %1605 = vmatprep.subr.bf16.mxu0 %v519
        %1606 = vmatpush1.bf16.msra.mxu0 %v518
        %1607 = vmatprep.subr.bf16.mxu0 %v523
        %1608 = vmatpush1.bf16.msra.mxu0 %v522
        %1609 = vmatprep.subr.bf16.mxu0 %v527
        %1610 = vmatpush1.bf16.msra.mxu0 %v526
        %1611 = vmatprep.subr.bf16.mxu0 %v531
        %1612 = vmatpush1.bf16.msra.mxu0 %v530
        %1613 = vmatprep.subr.bf16.mxu0 %v535
        %1614 = vmatpush1.bf16.msra.mxu0 %v534
        %1615 = vmatprep.subr.bf16.mxu0 0
        %1616 = vmatpush1.bf16.msra.mxu0 0
        %1617 = vmatprep.subr.bf16.mxu0 0
        %1618 = vmatpush1.bf16.msra.mxu0 0
        %1619 = vmatprep.subr.bf16.mxu0 0
        %1620 = vmatpush1.bf16.msra.mxu0 0
        %1621 = vmatprep.subr.bf16.mxu0 0
        %1622 = vmatpush1.bf16.msra.mxu0 0
        %1623 = vmatprep.subr.bf16.mxu0 0
        %1624 = vmatpush1.bf16.msra.mxu0 0
        %1625 = vmatprep.subr.bf16.mxu0 0
        %1626 = vmatpush1.bf16.msra.mxu0 0
        %1627 = vmatprep.subr.bf16.mxu0 0
        %1628 = vmatpush1.bf16.msra.mxu0 0
        %1629 = vmatprep.subr.bf16.mxu0 0
        %1630 = vmatpush1.bf16.msra.mxu0 0
        %1631 = vmatprep.mubr.bf16.mxu0 0
        %1632 = vmatmul.mubr.bf16.gmra.mrb[0].mxu0 %v1597
        %v1633 = vpop.f32.mrb[0].mxu0
        %v1634 = vadd.f32 0.0, %v1633
        %v1635 = vpop.f32.mrb[0].mxu0
        %v1636 = vadd.f32 0.0, %v1635
        %v1637 = vpop.f32.mrb[0].mxu0
        %v1638 = vpop.f32.mrb[0].mxu0
        %1639 = vdwg.mxu0
        %1640 = vmatprep.subr.bf16.mxu0 %v509
        %1641 = vmatpush1.bf16.msra.mxu0 %v508
        %1642 = vmatprep.subr.bf16.mxu0 %v513
        %1643 = vmatpush1.bf16.msra.mxu0 %v512
        %1644 = vmatprep.subr.bf16.mxu0 %v517
        %1645 = vmatpush1.bf16.msra.mxu0 %v516
        %1646 = vmatprep.subr.bf16.mxu0 %v521
        %1647 = vmatpush1.bf16.msra.mxu0 %v520
        %1648 = vmatprep.subr.bf16.mxu0 %v525
        %1649 = vmatpush1.bf16.msra.mxu0 %v524
        %1650 = vmatprep.subr.bf16.mxu0 %v529
        %1651 = vmatpush1.bf16.msra.mxu0 %v528
        %1652 = vmatprep.subr.bf16.mxu0 %v533
        %1653 = vmatpush1.bf16.msra.mxu0 %v532
        %1654 = vmatprep.subr.bf16.mxu0 %v537
        %1655 = vmatpush1.bf16.msra.mxu0 %v536
        %1656 = vmatprep.subr.bf16.mxu0 0
        %1657 = vmatpush1.bf16.msra.mxu0 0
        %1658 = vmatprep.subr.bf16.mxu0 0
        %1659 = vmatpush1.bf16.msra.mxu0 0
        %1660 = vmatprep.subr.bf16.mxu0 0
        %1661 = vmatpush1.bf16.msra.mxu0 0
        %1662 = vmatprep.subr.bf16.mxu0 0
        %1663 = vmatpush1.bf16.msra.mxu0 0
        %1664 = vmatprep.subr.bf16.mxu0 0
        %1665 = vmatpush1.bf16.msra.mxu0 0
        %1666 = vmatprep.subr.bf16.mxu0 0
        %1667 = vmatpush1.bf16.msra.mxu0 0
        %1668 = vmatprep.subr.bf16.mxu0 0
        %1669 = vmatpush1.bf16.msra.mxu0 0
        %1670 = vmatprep.subr.bf16.mxu0 0
        %1671 = vmatpush1.bf16.msra.mxu0 0
        %1672 = vmatprep.mubr.bf16.mxu0 0
        %1673 = vmatmul.mubr.bf16.gmra.mrb[0].mxu0 %v1597
        %v1674 = vpop.f32.mrb[0].mxu0
        %v1675 = vadd.f32 0.0, %v1674
        %v1676 = vpop.f32.mrb[0].mxu0
        %v1677 = vadd.f32 0.0, %v1676
        %v1678 = vpop.f32.mrb[0].mxu0
        %v1679 = vpop.f32.mrb[0].mxu0
        %1680 = vdwg.mxu0
        %v1685 = vcombine.low %v1634, %v1636
        %v1686 = vcombine.high %v1634, %v1636
        %v1687 = vcombine.low %v1675, %v1677
        %v1688 = vcombine.high %v1675, %v1677
        %v1690 = vunpack.c.l.s4 1966171168
        %v1691 = vunpack.c.0.s8 %v1690
        %v1692 = vlaneseq
        %v1693 = vshrl.u32 %v1692, 7
        %v1694 = vsub.s32 %v1691, %v1693
        %v1695 = vrot.slane %v1685, %v1694
        %v1697 = vunpack.c.l.s4 1966171168
        %v1698 = vunpack.c.0.s8 %v1697
        %v1699 = vlaneseq
        %v1700 = vshrl.u32 %v1699, 7
        %v1701 = vsub.s32 %v1698, %v1700
        %v1702 = vrot.slane %v1686, %v1701
        %v1704 = vunpack.c.l.s4 1966171168
        %v1705 = vunpack.c.0.s8 %v1704
        %v1706 = vlaneseq
        %v1707 = vshrl.u32 %v1706, 7
        %v1708 = vsub.s32 %v1705, %v1707
        %v1709 = vrot.slane %v1687, %v1708
        %v1711 = vunpack.c.l.s4 1966171168
        %v1712 = vunpack.c.0.s8 %v1711
        %v1713 = vlaneseq
        %v1714 = vshrl.u32 %v1713, 7
        %v1715 = vsub.s32 %v1712, %v1714
        %v1716 = vrot.slane %v1688, %v1715
        %v1717 = vcombine.low %v1695, %v1709
        %v1718 = vcombine.high %v1695, %v1709
        %v1719 = vcombine.low %v1702, %v1716
        %v1720 = vcombine.high %v1702, %v1716
        %v1722 = vunpack.c.l.s4 1966171168
        %v1723 = vunpack.c.0.s8 %v1722
        %v1724 = vlaneseq
        %v1725 = vshrl.u32 %v1724, 7
        %v1726 = vsub.s32 %v1723, %v1725
        %v1727 = vrot.slane %v1717, %v1726
        %v1729 = vunpack.c.l.s4 1966171168
        %v1730 = vunpack.c.0.s8 %v1729
        %v1731 = vlaneseq
        %v1732 = vshrl.u32 %v1731, 7
        %v1733 = vsub.s32 %v1730, %v1732
        %v1734 = vrot.slane %v1719, %v1733
        %v1736 = vunpack.c.l.s4 1966171168
        %v1737 = vunpack.c.0.s8 %v1736
        %v1738 = vlaneseq
        %v1739 = vshrl.u32 %v1738, 7
        %v1740 = vsub.s32 %v1737, %v1739
        %v1741 = vrot.slane %v1718, %v1740
        %v1743 = vunpack.c.l.s4 1966171168
        %v1744 = vunpack.c.0.s8 %v1743
        %v1745 = vlaneseq
        %v1746 = vshrl.u32 %v1745, 7
        %v1747 = vsub.s32 %v1744, %v1746
        %v1748 = vrot.slane %v1720, %v1747
        %v1749 = vcombine.high %v1727, %v1727
        %v1750 = vcombine.high %v1734, %v1734
        %v1751 = vcombine.high %v1741, %v1741
        %v1752 = vcombine.high %v1748, %v1748
        %v1761 = vadd.f32 %v1544, %v1727
        %v1762 = vadd.f32 %v1546, %v1741
        %v1763 = vadd.f32 %v1548, %v1749
        %v1764 = vadd.f32 %v1550, %v1751
        %v1765 = vadd.f32 %v1552, %v1734
        %v1766 = vadd.f32 %v1554, %v1748
        %v1767 = vadd.f32 %v1556, %v1750
        %v1768 = vadd.f32 %v1558, %v1752
        %v1769 = vxor.u32 %v1761, 2147483648
        %v1770 = vxor.u32 %v1762, 2147483648
        %v1771 = vxor.u32 %v1763, 2147483648
        %v1772 = vxor.u32 %v1764, 2147483648
        %v1773 = vxor.u32 %v1765, 2147483648
        %v1774 = vxor.u32 %v1766, 2147483648
        %v1775 = vxor.u32 %v1767, 2147483648
        %v1776 = vxor.u32 %v1768, 2147483648
        %v1777 = vmul.f32 %v1769, 1.442695
        %v1778 = vpow.pop %v1777
        %v1779 = vmul.f32 %v1770, 1.442695
        %v1780 = vpow.pop %v1779
        %v1781 = vmul.f32 %v1771, 1.442695
        %v1782 = vpow.pop %v1781
        %v1783 = vmul.f32 %v1772, 1.442695
        %v1784 = vpow.pop %v1783
        %v1785 = vmul.f32 %v1773, 1.442695
        %v1786 = vpow.pop %v1785
        %v1787 = vmul.f32 %v1774, 1.442695
        %v1788 = vpow.pop %v1787
        %v1789 = vmul.f32 %v1775, 1.442695
        %v1790 = vpow.pop %v1789
        %v1791 = vmul.f32 %v1776, 1.442695
        %v1792 = vpow.pop %v1791
        %v1793 = vadd.f32 %v1778, 1.0
        %v1794 = vadd.f32 %v1780, 1.0
        %v1795 = vadd.f32 %v1782, 1.0
        %v1796 = vadd.f32 %v1784, 1.0
        %v1797 = vadd.f32 %v1786, 1.0
        %v1798 = vadd.f32 %v1788, 1.0
        %v1799 = vadd.f32 %v1790, 1.0
        %v1800 = vadd.f32 %v1792, 1.0
        %v1801 = vrcp.pop %v1793
        %v1802 = vmul.f32 1.0, %v1801
        %v1803 = vrcp.pop %v1794
        %v1804 = vmul.f32 1.0, %v1803
        %v1805 = vrcp.pop %v1795
        %v1806 = vmul.f32 1.0, %v1805
        %v1807 = vrcp.pop %v1796
        %v1808 = vmul.f32 1.0, %v1807
        %v1809 = vrcp.pop %v1797
        %v1810 = vmul.f32 1.0, %v1809
        %v1811 = vrcp.pop %v1798
        %v1812 = vmul.f32 1.0, %v1811
        %v1813 = vrcp.pop %v1799
        %v1814 = vmul.f32 1.0, %v1813
        %v1815 = vrcp.pop %v1800
        %v1816 = vmul.f32 1.0, %v1815
        %v1825 = vrot.slane %v1761, 1
        %v1826 = vrot.slane %v1762, 1
        %v1827 = vrot.slane %v1763, 1
        %v1828 = vrot.slane %v1764, 1
        %v1829 = vrot.slane %v1765, 1
        %v1830 = vrot.slane %v1766, 1
        %v1831 = vrot.slane %v1767, 1
        %v1832 = vrot.slane %v1768, 1
        %v1841 = vxor.u32 %v1825, 2147483648
        %v1842 = vxor.u32 %v1826, 2147483648
        %v1843 = vxor.u32 %v1827, 2147483648
        %v1844 = vxor.u32 %v1828, 2147483648
        %v1845 = vxor.u32 %v1829, 2147483648
        %v1846 = vxor.u32 %v1830, 2147483648
        %v1847 = vxor.u32 %v1831, 2147483648
        %v1848 = vxor.u32 %v1832, 2147483648
        %v1849 = vmul.f32 %v1841, 1.442695
        %v1850 = vpow.pop %v1849
        %v1851 = vmul.f32 %v1842, 1.442695
        %v1852 = vpow.pop %v1851
        %v1853 = vmul.f32 %v1843, 1.442695
        %v1854 = vpow.pop %v1853
        %v1855 = vmul.f32 %v1844, 1.442695
        %v1856 = vpow.pop %v1855
        %v1857 = vmul.f32 %v1845, 1.442695
        %v1858 = vpow.pop %v1857
        %v1859 = vmul.f32 %v1846, 1.442695
        %v1860 = vpow.pop %v1859
        %v1861 = vmul.f32 %v1847, 1.442695
        %v1862 = vpow.pop %v1861
        %v1863 = vmul.f32 %v1848, 1.442695
        %v1864 = vpow.pop %v1863
        %v1865 = vadd.f32 %v1850, 1.0
        %v1866 = vadd.f32 %v1852, 1.0
        %v1867 = vadd.f32 %v1854, 1.0
        %v1868 = vadd.f32 %v1856, 1.0
        %v1869 = vadd.f32 %v1858, 1.0
        %v1870 = vadd.f32 %v1860, 1.0
        %v1871 = vadd.f32 %v1862, 1.0
        %v1872 = vadd.f32 %v1864, 1.0
        %v1873 = vrcp.pop %v1865
        %v1874 = vmul.f32 1.0, %v1873
        %v1875 = vrcp.pop %v1866
        %v1876 = vmul.f32 1.0, %v1875
        %v1877 = vrcp.pop %v1867
        %v1878 = vmul.f32 1.0, %v1877
        %v1879 = vrcp.pop %v1868
        %v1880 = vmul.f32 1.0, %v1879
        %v1881 = vrcp.pop %v1869
        %v1882 = vmul.f32 1.0, %v1881
        %v1883 = vrcp.pop %v1870
        %v1884 = vmul.f32 1.0, %v1883
        %v1885 = vrcp.pop %v1871
        %v1886 = vmul.f32 1.0, %v1885
        %v1887 = vrcp.pop %v1872
        %v1888 = vmul.f32 1.0, %v1887
        %v1889 = vrot.slane %v1761, 2
        %v1890 = vrot.slane %v1762, 2
        %v1891 = vrot.slane %v1763, 2
        %v1892 = vrot.slane %v1764, 2
        %v1893 = vrot.slane %v1765, 2
        %v1894 = vrot.slane %v1766, 2
        %v1895 = vrot.slane %v1767, 2
        %v1896 = vrot.slane %v1768, 2
        %v1905 = vtanh.pop %v1889
        %v1906 = vtanh.pop %v1890
        %v1907 = vtanh.pop %v1891
        %v1908 = vtanh.pop %v1892
        %v1909 = vtanh.pop %v1893
        %v1910 = vtanh.pop %v1894
        %v1911 = vtanh.pop %v1895
        %v1912 = vtanh.pop %v1896
        %v1913 = vrot.slane %v1761, 3
        %v1914 = vrot.slane %v1762, 3
        %v1915 = vrot.slane %v1763, 3
        %v1916 = vrot.slane %v1764, 3
        %v1917 = vrot.slane %v1765, 3
        %v1918 = vrot.slane %v1766, 3
        %v1919 = vrot.slane %v1767, 3
        %v1920 = vrot.slane %v1768, 3
        %v1929 = vxor.u32 %v1913, 2147483648
        %v1930 = vxor.u32 %v1914, 2147483648
        %v1931 = vxor.u32 %v1915, 2147483648
        %v1932 = vxor.u32 %v1916, 2147483648
        %v1933 = vxor.u32 %v1917, 2147483648
        %v1934 = vxor.u32 %v1918, 2147483648
        %v1935 = vxor.u32 %v1919, 2147483648
        %v1936 = vxor.u32 %v1920, 2147483648
        %v1937 = vmul.f32 %v1929, 1.442695
        %v1938 = vpow.pop %v1937
        %v1939 = vmul.f32 %v1930, 1.442695
        %v1940 = vpow.pop %v1939
        %v1941 = vmul.f32 %v1931, 1.442695
        %v1942 = vpow.pop %v1941
        %v1943 = vmul.f32 %v1932, 1.442695
        %v1944 = vpow.pop %v1943
        %v1945 = vmul.f32 %v1933, 1.442695
        %v1946 = vpow.pop %v1945
        %v1947 = vmul.f32 %v1934, 1.442695
        %v1948 = vpow.pop %v1947
        %v1949 = vmul.f32 %v1935, 1.442695
        %v1950 = vpow.pop %v1949
        %v1951 = vmul.f32 %v1936, 1.442695
        %v1952 = vpow.pop %v1951
        %v1953 = vadd.f32 %v1938, 1.0
        %v1954 = vadd.f32 %v1940, 1.0
        %v1955 = vadd.f32 %v1942, 1.0
        %v1956 = vadd.f32 %v1944, 1.0
        %v1957 = vadd.f32 %v1946, 1.0
        %v1958 = vadd.f32 %v1948, 1.0
        %v1959 = vadd.f32 %v1950, 1.0
        %v1960 = vadd.f32 %v1952, 1.0
        %v1961 = vrcp.pop %v1953
        %v1962 = vmul.f32 1.0, %v1961
        %v1963 = vrcp.pop %v1954
        %v1964 = vmul.f32 1.0, %v1963
        %v1965 = vrcp.pop %v1955
        %v1966 = vmul.f32 1.0, %v1965
        %v1967 = vrcp.pop %v1956
        %v1968 = vmul.f32 1.0, %v1967
        %v1969 = vrcp.pop %v1957
        %v1970 = vmul.f32 1.0, %v1969
        %v1971 = vrcp.pop %v1958
        %v1972 = vmul.f32 1.0, %v1971
        %v1973 = vrcp.pop %v1959
        %v1974 = vmul.f32 1.0, %v1973
        %v1975 = vrcp.pop %v1960
        %v1976 = vmul.f32 1.0, %v1975
        %v1977 = vmul.f32 %v1874, %v1511
        %v1978 = vmul.f32 %v1876, %v1512
        %v1979 = vmul.f32 %v1878, %v1513
        %v1980 = vmul.f32 %v1880, %v1514
        %v1981 = vmul.f32 %v1882, %v1515
        %v1982 = vmul.f32 %v1884, %v1516
        %v1983 = vmul.f32 %v1886, %v1517
        %v1984 = vmul.f32 %v1888, %v1518
        %v1985 = vmul.f32 %v1802, %v1905
        %v1986 = vmul.f32 %v1804, %v1906
        %v1987 = vmul.f32 %v1806, %v1907
        %v1988 = vmul.f32 %v1808, %v1908
        %v1989 = vmul.f32 %v1810, %v1909
        %v1990 = vmul.f32 %v1812, %v1910
        %v1991 = vmul.f32 %v1814, %v1911
        %v1992 = vmul.f32 %v1816, %v1912
        %v1993 = vadd.f32 %v1977, %v1985
        %v1994 = vadd.f32 %v1978, %v1986
        %v1995 = vadd.f32 %v1979, %v1987
        %v1996 = vadd.f32 %v1980, %v1988
        %v1997 = vadd.f32 %v1981, %v1989
        %v1998 = vadd.f32 %v1982, %v1990
        %v1999 = vadd.f32 %v1983, %v1991
        %v2000 = vadd.f32 %v1984, %v1992
        %v2001 = vtanh.pop %v1993
        %v2002 = vtanh.pop %v1994
        %v2003 = vtanh.pop %v1995
        %v2004 = vtanh.pop %v1996
        %v2005 = vtanh.pop %v1997
        %v2006 = vtanh.pop %v1998
        %v2007 = vtanh.pop %v1999
        %v2008 = vtanh.pop %v2000
        %v2009 = vmul.f32 %v1962, %v2001
        %v2010 = vmul.f32 %v1964, %v2002
        %v2011 = vmul.f32 %v1966, %v2003
        %v2012 = vmul.f32 %v1968, %v2004
        %v2013 = vmul.f32 %v1970, %v2005
        %v2014 = vmul.f32 %v1972, %v2006
        %v2015 = vmul.f32 %v1974, %v2007
        %v2016 = vmul.f32 %v1976, %v2008
        %2017 = vst [vmem:[%s344 + $0x2] sm:$0x1] %v2009
        %2018 = vst [vmem:[%s344 + $0xa] sm:$0x1] %v2010
        %2019 = vst [vmem:[%s344 + $0x12] sm:$0x1] %v2011
        %2020 = vst [vmem:[%s344 + $0x1a] sm:$0x1] %v2012
        %2021 = vst [vmem:[%s344 + $0x22] sm:$0x1] %v2013
        %2022 = vst [vmem:[%s344 + $0x2a] sm:$0x1] %v2014
        %2023 = vst [vmem:[%s344 + $0x32] sm:$0x1] %v2015
        %2024 = vst [vmem:[%s344 + $0x3a] sm:$0x1] %v2016
        %s2025 = scalar_lea.vmem %s308, 3 [#allocation4]
        %v2026 = vld [vmem:[%s2025] ss:$8 sm:$0xf]
        %s2027 = scalar_lea.vmem %s308, 35 [#allocation4]
        %v2028 = vld [vmem:[%s2027] ss:$8 sm:$0xf]
        %s2029 = scalar_lea.vmem %s308, 67 [#allocation4]
        %v2030 = vld [vmem:[%s2029] ss:$8 sm:$0xf]
        %s2031 = scalar_lea.vmem %s308, 99 [#allocation4]
        %v2032 = vld [vmem:[%s2031] ss:$8 sm:$0xf]
        %s2033 = scalar_lea.vmem %s308, 131 [#allocation4]
        %v2034 = vld [vmem:[%s2033] ss:$8 sm:$0xf]
        %s2035 = scalar_lea.vmem %s308, 163 [#allocation4]
        %v2036 = vld [vmem:[%s2035] ss:$8 sm:$0xf]
        %s2037 = scalar_lea.vmem %s308, 195 [#allocation4]
        %v2038 = vld [vmem:[%s2037] ss:$8 sm:$0xf]
        %s2039 = scalar_lea.vmem %s308, 227 [#allocation4]
        %v2040 = vld [vmem:[%s2039] ss:$8 sm:$0xf]
        %v2041 = vpack.c.bf16 %v2009, %v2009
        %v2042 = vpack.c.bf16 %v2010, %v2010
        %v2043 = vpack.c.bf16 %v2011, %v2011
        %v2044 = vpack.c.bf16 %v2012, %v2012
        %v2045 = vpack.c.bf16 %v2013, %v2013
        %v2046 = vpack.c.bf16 %v2014, %v2014
        %v2047 = vpack.c.bf16 %v2015, %v2015
        %v2048 = vpack.c.bf16 %v2016, %v2016
        %v2057 = vunpack.c.l.b16 %v2041
        %v2058 = vunpack.c.l.b16 %v2042
        %v2059 = vunpack.c.l.b16 %v2043
        %v2060 = vunpack.c.l.b16 %v2044
        %v2061 = vunpack.c.l.b16 %v2045
        %v2062 = vunpack.c.l.b16 %v2046
        %v2063 = vunpack.c.l.b16 %v2047
        %v2064 = vunpack.c.l.b16 %v2048
        %v2065 = vrot.slane %v2058, 7
        %v2066 = vsel %vm1095, %v2065, %v2057
        %v2067 = vrot.slane %v2059, 6
        %v2068 = vsel %vm1098, %v2067, %v2066
        %v2069 = vrot.slane %v2060, 5
        %v2070 = vsel %vm1101, %v2069, %v2068
        %v2071 = vrot.slane %v2061, 4
        %v2072 = vsel %vm1104, %v2071, %v2070
        %v2073 = vrot.slane %v2062, 3
        %v2074 = vsel %vm1107, %v2073, %v2072
        %v2075 = vrot.slane %v2063, 2
        %v2076 = vsel %vm1110, %v2075, %v2074
        %v2077 = vrot.slane %v2064, 1
        %v2078 = vsel %vm1113, %v2077, %v2076
        %v2079 = vpack.c.b16 %v2078, %v2078
        %2081 = vmatprep.subr.bf16.mxu0 %v507
        %2082 = vmatpush1.bf16.msra.mxu0 %v506
        %2083 = vmatprep.subr.bf16.mxu0 %v511
        %2084 = vmatpush1.bf16.msra.mxu0 %v510
        %2085 = vmatprep.subr.bf16.mxu0 %v515
        %2086 = vmatpush1.bf16.msra.mxu0 %v514
        %2087 = vmatprep.subr.bf16.mxu0 %v519
        %2088 = vmatpush1.bf16.msra.mxu0 %v518
        %2089 = vmatprep.subr.bf16.mxu0 %v523
        %2090 = vmatpush1.bf16.msra.mxu0 %v522
        %2091 = vmatprep.subr.bf16.mxu0 %v527
        %2092 = vmatpush1.bf16.msra.mxu0 %v526
        %2093 = vmatprep.subr.bf16.mxu0 %v531
        %2094 = vmatpush1.bf16.msra.mxu0 %v530
        %2095 = vmatprep.subr.bf16.mxu0 %v535
        %2096 = vmatpush1.bf16.msra.mxu0 %v534
        %2097 = vmatprep.subr.bf16.mxu0 0
        %2098 = vmatpush1.bf16.msra.mxu0 0
        %2099 = vmatprep.subr.bf16.mxu0 0
        %2100 = vmatpush1.bf16.msra.mxu0 0
        %2101 = vmatprep.subr.bf16.mxu0 0
        %2102 = vmatpush1.bf16.msra.mxu0 0
        %2103 = vmatprep.subr.bf16.mxu0 0
        %2104 = vmatpush1.bf16.msra.mxu0 0
        %2105 = vmatprep.subr.bf16.mxu0 0
        %2106 = vmatpush1.bf16.msra.mxu0 0
        %2107 = vmatprep.subr.bf16.mxu0 0
        %2108 = vmatpush1.bf16.msra.mxu0 0
        %2109 = vmatprep.subr.bf16.mxu0 0
        %2110 = vmatpush1.bf16.msra.mxu0 0
        %2111 = vmatprep.subr.bf16.mxu0 0
        %2112 = vmatpush1.bf16.msra.mxu0 0
        %2113 = vmatprep.mubr.bf16.mxu0 0
        %2114 = vmatmul.mubr.bf16.gmra.mrb[0].mxu0 %v2079
        %v2115 = vpop.f32.mrb[0].mxu0
        %v2116 = vadd.f32 0.0, %v2115
        %v2117 = vpop.f32.mrb[0].mxu0
        %v2118 = vadd.f32 0.0, %v2117
        %v2119 = vpop.f32.mrb[0].mxu0
        %v2120 = vpop.f32.mrb[0].mxu0
        %2121 = vdwg.mxu0
        %2122 = vmatprep.subr.bf16.mxu0 %v509
        %2123 = vmatpush1.bf16.msra.mxu0 %v508
        %2124 = vmatprep.subr.bf16.mxu0 %v513
        %2125 = vmatpush1.bf16.msra.mxu0 %v512
        %2126 = vmatprep.subr.bf16.mxu0 %v517
        %2127 = vmatpush1.bf16.msra.mxu0 %v516
        %2128 = vmatprep.subr.bf16.mxu0 %v521
        %2129 = vmatpush1.bf16.msra.mxu0 %v520
        %2130 = vmatprep.subr.bf16.mxu0 %v525
        %2131 = vmatpush1.bf16.msra.mxu0 %v524
        %2132 = vmatprep.subr.bf16.mxu0 %v529
        %2133 = vmatpush1.bf16.msra.mxu0 %v528
        %2134 = vmatprep.subr.bf16.mxu0 %v533
        %2135 = vmatpush1.bf16.msra.mxu0 %v532
        %2136 = vmatprep.subr.bf16.mxu0 %v537
        %2137 = vmatpush1.bf16.msra.mxu0 %v536
        %2138 = vmatprep.subr.bf16.mxu0 0
        %2139 = vmatpush1.bf16.msra.mxu0 0
        %2140 = vmatprep.subr.bf16.mxu0 0
        %2141 = vmatpush1.bf16.msra.mxu0 0
        %2142 = vmatprep.subr.bf16.mxu0 0
        %2143 = vmatpush1.bf16.msra.mxu0 0
        %2144 = vmatprep.subr.bf16.mxu0 0
        %2145 = vmatpush1.bf16.msra.mxu0 0
        %2146 = vmatprep.subr.bf16.mxu0 0
        %2147 = vmatpush1.bf16.msra.mxu0 0
        %2148 = vmatprep.subr.bf16.mxu0 0
        %2149 = vmatpush1.bf16.msra.mxu0 0
        %2150 = vmatprep.subr.bf16.mxu0 0
        %2151 = vmatpush1.bf16.msra.mxu0 0
        %2152 = vmatprep.subr.bf16.mxu0 0
        %2153 = vmatpush1.bf16.msra.mxu0 0
        %2154 = vmatprep.mubr.bf16.mxu0 0
        %2155 = vmatmul.mubr.bf16.gmra.mrb[0].mxu0 %v2079
        %v2156 = vpop.f32.mrb[0].mxu0
        %v2157 = vadd.f32 0.0, %v2156
        %v2158 = vpop.f32.mrb[0].mxu0
        %v2159 = vadd.f32 0.0, %v2158
        %v2160 = vpop.f32.mrb[0].mxu0
        %v2161 = vpop.f32.mrb[0].mxu0
        %2162 = vdwg.mxu0
        %v2167 = vcombine.low %v2116, %v2118
        %v2168 = vcombine.high %v2116, %v2118
        %v2169 = vcombine.low %v2157, %v2159
        %v2170 = vcombine.high %v2157, %v2159
        %v2172 = vunpack.c.l.s4 1966171168
        %v2173 = vunpack.c.0.s8 %v2172
        %v2174 = vlaneseq
        %v2175 = vshrl.u32 %v2174, 7
        %v2176 = vsub.s32 %v2173, %v2175
        %v2177 = vrot.slane %v2167, %v2176
        %v2179 = vunpack.c.l.s4 1966171168
        %v2180 = vunpack.c.0.s8 %v2179
        %v2181 = vlaneseq
        %v2182 = vshrl.u32 %v2181, 7
        %v2183 = vsub.s32 %v2180, %v2182
        %v2184 = vrot.slane %v2168, %v2183
        %v2186 = vunpack.c.l.s4 1966171168
        %v2187 = vunpack.c.0.s8 %v2186
        %v2188 = vlaneseq
        %v2189 = vshrl.u32 %v2188, 7
        %v2190 = vsub.s32 %v2187, %v2189
        %v2191 = vrot.slane %v2169, %v2190
        %v2193 = vunpack.c.l.s4 1966171168
        %v2194 = vunpack.c.0.s8 %v2193
        %v2195 = vlaneseq
        %v2196 = vshrl.u32 %v2195, 7
        %v2197 = vsub.s32 %v2194, %v2196
        %v2198 = vrot.slane %v2170, %v2197
        %v2199 = vcombine.low %v2177, %v2191
        %v2200 = vcombine.high %v2177, %v2191
        %v2201 = vcombine.low %v2184, %v2198
        %v2202 = vcombine.high %v2184, %v2198
        %v2204 = vunpack.c.l.s4 1966171168
        %v2205 = vunpack.c.0.s8 %v2204
        %v2206 = vlaneseq
        %v2207 = vshrl.u32 %v2206, 7
        %v2208 = vsub.s32 %v2205, %v2207
        %v2209 = vrot.slane %v2199, %v2208
        %v2211 = vunpack.c.l.s4 1966171168
        %v2212 = vunpack.c.0.s8 %v2211
        %v2213 = vlaneseq
        %v2214 = vshrl.u32 %v2213, 7
        %v2215 = vsub.s32 %v2212, %v2214
        %v2216 = vrot.slane %v2201, %v2215
        %v2218 = vunpack.c.l.s4 1966171168
        %v2219 = vunpack.c.0.s8 %v2218
        %v2220 = vlaneseq
        %v2221 = vshrl.u32 %v2220, 7
        %v2222 = vsub.s32 %v2219, %v2221
        %v2223 = vrot.slane %v2200, %v2222
        %v2225 = vunpack.c.l.s4 1966171168
        %v2226 = vunpack.c.0.s8 %v2225
        %v2227 = vlaneseq
        %v2228 = vshrl.u32 %v2227, 7
        %v2229 = vsub.s32 %v2226, %v2228
        %v2230 = vrot.slane %v2202, %v2229
        %v2231 = vcombine.high %v2209, %v2209
        %v2232 = vcombine.high %v2216, %v2216
        %v2233 = vcombine.high %v2223, %v2223
        %v2234 = vcombine.high %v2230, %v2230
        %v2243 = vadd.f32 %v2026, %v2209
        %v2244 = vadd.f32 %v2028, %v2223
        %v2245 = vadd.f32 %v2030, %v2231
        %v2246 = vadd.f32 %v2032, %v2233
        %v2247 = vadd.f32 %v2034, %v2216
        %v2248 = vadd.f32 %v2036, %v2230
        %v2249 = vadd.f32 %v2038, %v2232
        %v2250 = vadd.f32 %v2040, %v2234
        %v2251 = vxor.u32 %v2243, 2147483648
        %v2252 = vxor.u32 %v2244, 2147483648
        %v2253 = vxor.u32 %v2245, 2147483648
        %v2254 = vxor.u32 %v2246, 2147483648
        %v2255 = vxor.u32 %v2247, 2147483648
        %v2256 = vxor.u32 %v2248, 2147483648
        %v2257 = vxor.u32 %v2249, 2147483648
        %v2258 = vxor.u32 %v2250, 2147483648
        %v2259 = vmul.f32 %v2251, 1.442695
        %v2260 = vpow.pop %v2259
        %v2261 = vmul.f32 %v2252, 1.442695
        %v2262 = vpow.pop %v2261
        %v2263 = vmul.f32 %v2253, 1.442695
        %v2264 = vpow.pop %v2263
        %v2265 = vmul.f32 %v2254, 1.442695
        %v2266 = vpow.pop %v2265
        %v2267 = vmul.f32 %v2255, 1.442695
        %v2268 = vpow.pop %v2267
        %v2269 = vmul.f32 %v2256, 1.442695
        %v2270 = vpow.pop %v2269
        %v2271 = vmul.f32 %v2257, 1.442695
        %v2272 = vpow.pop %v2271
        %v2273 = vmul.f32 %v2258, 1.442695
        %v2274 = vpow.pop %v2273
        %v2275 = vadd.f32 %v2260, 1.0
        %v2276 = vadd.f32 %v2262, 1.0
        %v2277 = vadd.f32 %v2264, 1.0
        %v2278 = vadd.f32 %v2266, 1.0
        %v2279 = vadd.f32 %v2268, 1.0
        %v2280 = vadd.f32 %v2270, 1.0
        %v2281 = vadd.f32 %v2272, 1.0
        %v2282 = vadd.f32 %v2274, 1.0
        %v2283 = vrcp.pop %v2275
        %v2284 = vmul.f32 1.0, %v2283
        %v2285 = vrcp.pop %v2276
        %v2286 = vmul.f32 1.0, %v2285
        %v2287 = vrcp.pop %v2277
        %v2288 = vmul.f32 1.0, %v2287
        %v2289 = vrcp.pop %v2278
        %v2290 = vmul.f32 1.0, %v2289
        %v2291 = vrcp.pop %v2279
        %v2292 = vmul.f32 1.0, %v2291
        %v2293 = vrcp.pop %v2280
        %v2294 = vmul.f32 1.0, %v2293
        %v2295 = vrcp.pop %v2281
        %v2296 = vmul.f32 1.0, %v2295
        %v2297 = vrcp.pop %v2282
        %v2298 = vmul.f32 1.0, %v2297
        %v2307 = vrot.slane %v2243, 1
        %v2308 = vrot.slane %v2244, 1
        %v2309 = vrot.slane %v2245, 1
        %v2310 = vrot.slane %v2246, 1
        %v2311 = vrot.slane %v2247, 1
        %v2312 = vrot.slane %v2248, 1
        %v2313 = vrot.slane %v2249, 1
        %v2314 = vrot.slane %v2250, 1
        %v2323 = vxor.u32 %v2307, 2147483648
        %v2324 = vxor.u32 %v2308, 2147483648
        %v2325 = vxor.u32 %v2309, 2147483648
        %v2326 = vxor.u32 %v2310, 2147483648
        %v2327 = vxor.u32 %v2311, 2147483648
        %v2328 = vxor.u32 %v2312, 2147483648
        %v2329 = vxor.u32 %v2313, 2147483648
        %v2330 = vxor.u32 %v2314, 2147483648
        %v2331 = vmul.f32 %v2323, 1.442695
        %v2332 = vpow.pop %v2331
        %v2333 = vmul.f32 %v2324, 1.442695
        %v2334 = vpow.pop %v2333
        %v2335 = vmul.f32 %v2325, 1.442695
        %v2336 = vpow.pop %v2335
        %v2337 = vmul.f32 %v2326, 1.442695
        %v2338 = vpow.pop %v2337
        %v2339 = vmul.f32 %v2327, 1.442695
        %v2340 = vpow.pop %v2339
        %v2341 = vmul.f32 %v2328, 1.442695
        %v2342 = vpow.pop %v2341
        %v2343 = vmul.f32 %v2329, 1.442695
        %v2344 = vpow.pop %v2343
        %v2345 = vmul.f32 %v2330, 1.442695
        %v2346 = vpow.pop %v2345
        %v2347 = vadd.f32 %v2332, 1.0
        %v2348 = vadd.f32 %v2334, 1.0
        %v2349 = vadd.f32 %v2336, 1.0
        %v2350 = vadd.f32 %v2338, 1.0
        %v2351 = vadd.f32 %v2340, 1.0
        %v2352 = vadd.f32 %v2342, 1.0
        %v2353 = vadd.f32 %v2344, 1.0
        %v2354 = vadd.f32 %v2346, 1.0
        %v2355 = vrcp.pop %v2347
        %v2356 = vmul.f32 1.0, %v2355
        %v2357 = vrcp.pop %v2348
        %v2358 = vmul.f32 1.0, %v2357
        %v2359 = vrcp.pop %v2349
        %v2360 = vmul.f32 1.0, %v2359
        %v2361 = vrcp.pop %v2350
        %v2362 = vmul.f32 1.0, %v2361
        %v2363 = vrcp.pop %v2351
        %v2364 = vmul.f32 1.0, %v2363
        %v2365 = vrcp.pop %v2352
        %v2366 = vmul.f32 1.0, %v2365
        %v2367 = vrcp.pop %v2353
        %v2368 = vmul.f32 1.0, %v2367
        %v2369 = vrcp.pop %v2354
        %v2370 = vmul.f32 1.0, %v2369
        %v2371 = vrot.slane %v2243, 2
        %v2372 = vrot.slane %v2244, 2
        %v2373 = vrot.slane %v2245, 2
        %v2374 = vrot.slane %v2246, 2
        %v2375 = vrot.slane %v2247, 2
        %v2376 = vrot.slane %v2248, 2
        %v2377 = vrot.slane %v2249, 2
        %v2378 = vrot.slane %v2250, 2
        %v2387 = vtanh.pop %v2371
        %v2388 = vtanh.pop %v2372
        %v2389 = vtanh.pop %v2373
        %v2390 = vtanh.pop %v2374
        %v2391 = vtanh.pop %v2375
        %v2392 = vtanh.pop %v2376
        %v2393 = vtanh.pop %v2377
        %v2394 = vtanh.pop %v2378
        %v2395 = vrot.slane %v2243, 3
        %v2396 = vrot.slane %v2244, 3
        %v2397 = vrot.slane %v2245, 3
        %v2398 = vrot.slane %v2246, 3
        %v2399 = vrot.slane %v2247, 3
        %v2400 = vrot.slane %v2248, 3
        %v2401 = vrot.slane %v2249, 3
        %v2402 = vrot.slane %v2250, 3
        %v2411 = vxor.u32 %v2395, 2147483648
        %v2412 = vxor.u32 %v2396, 2147483648
        %v2413 = vxor.u32 %v2397, 2147483648
        %v2414 = vxor.u32 %v2398, 2147483648
        %v2415 = vxor.u32 %v2399, 2147483648
        %v2416 = vxor.u32 %v2400, 2147483648
        %v2417 = vxor.u32 %v2401, 2147483648
        %v2418 = vxor.u32 %v2402, 2147483648
        %v2419 = vmul.f32 %v2411, 1.442695
        %v2420 = vpow.pop %v2419
        %v2421 = vmul.f32 %v2412, 1.442695
        %v2422 = vpow.pop %v2421
        %v2423 = vmul.f32 %v2413, 1.442695
        %v2424 = vpow.pop %v2423
        %v2425 = vmul.f32 %v2414, 1.442695
        %v2426 = vpow.pop %v2425
        %v2427 = vmul.f32 %v2415, 1.442695
        %v2428 = vpow.pop %v2427
        %v2429 = vmul.f32 %v2416, 1.442695
        %v2430 = vpow.pop %v2429
        %v2431 = vmul.f32 %v2417, 1.442695
        %v2432 = vpow.pop %v2431
        %v2433 = vmul.f32 %v2418, 1.442695
        %v2434 = vpow.pop %v2433
        %v2435 = vadd.f32 %v2420, 1.0
        %v2436 = vadd.f32 %v2422, 1.0
        %v2437 = vadd.f32 %v2424, 1.0
        %v2438 = vadd.f32 %v2426, 1.0
        %v2439 = vadd.f32 %v2428, 1.0
        %v2440 = vadd.f32 %v2430, 1.0
        %v2441 = vadd.f32 %v2432, 1.0
        %v2442 = vadd.f32 %v2434, 1.0
        %v2443 = vrcp.pop %v2435
        %v2444 = vmul.f32 1.0, %v2443
        %v2445 = vrcp.pop %v2436
        %v2446 = vmul.f32 1.0, %v2445
        %v2447 = vrcp.pop %v2437
        %v2448 = vmul.f32 1.0, %v2447
        %v2449 = vrcp.pop %v2438
        %v2450 = vmul.f32 1.0, %v2449
        %v2451 = vrcp.pop %v2439
        %v2452 = vmul.f32 1.0, %v2451
        %v2453 = vrcp.pop %v2440
        %v2454 = vmul.f32 1.0, %v2453
        %v2455 = vrcp.pop %v2441
        %v2456 = vmul.f32 1.0, %v2455
        %v2457 = vrcp.pop %v2442
        %v2458 = vmul.f32 1.0, %v2457
        %v2459 = vmul.f32 %v2356, %v1993
        %v2460 = vmul.f32 %v2358, %v1994
        %v2461 = vmul.f32 %v2360, %v1995
        %v2462 = vmul.f32 %v2362, %v1996
        %v2463 = vmul.f32 %v2364, %v1997
        %v2464 = vmul.f32 %v2366, %v1998
        %v2465 = vmul.f32 %v2368, %v1999
        %v2466 = vmul.f32 %v2370, %v2000
        %v2467 = vmul.f32 %v2284, %v2387
        %v2468 = vmul.f32 %v2286, %v2388
        %v2469 = vmul.f32 %v2288, %v2389
        %v2470 = vmul.f32 %v2290, %v2390
        %v2471 = vmul.f32 %v2292, %v2391
        %v2472 = vmul.f32 %v2294, %v2392
        %v2473 = vmul.f32 %v2296, %v2393
        %v2474 = vmul.f32 %v2298, %v2394
        %v2475 = vadd.f32 %v2459, %v2467
        %v2476 = vadd.f32 %v2460, %v2468
        %v2477 = vadd.f32 %v2461, %v2469
        %v2478 = vadd.f32 %v2462, %v2470
        %v2479 = vadd.f32 %v2463, %v2471
        %v2480 = vadd.f32 %v2464, %v2472
        %v2481 = vadd.f32 %v2465, %v2473
        %v2482 = vadd.f32 %v2466, %v2474
        %v2483 = vtanh.pop %v2475
        %v2484 = vtanh.pop %v2476
        %v2485 = vtanh.pop %v2477
        %v2486 = vtanh.pop %v2478
        %v2487 = vtanh.pop %v2479
        %v2488 = vtanh.pop %v2480
        %v2489 = vtanh.pop %v2481
        %v2490 = vtanh.pop %v2482
        %v2491 = vmul.f32 %v2444, %v2483
        %v2492 = vmul.f32 %v2446, %v2484
        %v2493 = vmul.f32 %v2448, %v2485
        %v2494 = vmul.f32 %v2450, %v2486
        %v2495 = vmul.f32 %v2452, %v2487
        %v2496 = vmul.f32 %v2454, %v2488
        %v2497 = vmul.f32 %v2456, %v2489
        %v2498 = vmul.f32 %v2458, %v2490
        %2499 = vst [vmem:[%s344 + $0x3] sm:$0x1] %v2491
        %2500 = vst [vmem:[%s344 + $0xb] sm:$0x1] %v2492
        %2501 = vst [vmem:[%s344 + $0x13] sm:$0x1] %v2493
        %2502 = vst [vmem:[%s344 + $0x1b] sm:$0x1] %v2494
        %2503 = vst [vmem:[%s344 + $0x23] sm:$0x1] %v2495
        %2504 = vst [vmem:[%s344 + $0x2b] sm:$0x1] %v2496
        %2505 = vst [vmem:[%s344 + $0x33] sm:$0x1] %v2497
        %2506 = vst [vmem:[%s344 + $0x3b] sm:$0x1] %v2498
        %s2507 = scalar_lea.vmem %s308, 4 [#allocation4]
        %v2508 = vld [vmem:[%s2507] ss:$8 sm:$0xf]
        %s2509 = scalar_lea.vmem %s308, 36 [#allocation4]
        %v2510 = vld [vmem:[%s2509] ss:$8 sm:$0xf]
        %s2511 = scalar_lea.vmem %s308, 68 [#allocation4]
        %v2512 = vld [vmem:[%s2511] ss:$8 sm:$0xf]
        %s2513 = scalar_lea.vmem %s308, 100 [#allocation4]
        %v2514 = vld [vmem:[%s2513] ss:$8 sm:$0xf]
        %s2515 = scalar_lea.vmem %s308, 132 [#allocation4]
        %v2516 = vld [vmem:[%s2515] ss:$8 sm:$0xf]
        %s2517 = scalar_lea.vmem %s308, 164 [#allocation4]
        %v2518 = vld [vmem:[%s2517] ss:$8 sm:$0xf]
        %s2519 = scalar_lea.vmem %s308, 196 [#allocation4]
        %v2520 = vld [vmem:[%s2519] ss:$8 sm:$0xf]
        %s2521 = scalar_lea.vmem %s308, 228 [#allocation4]
        %v2522 = vld [vmem:[%s2521] ss:$8 sm:$0xf]
        %v2523 = vpack.c.bf16 %v2491, %v2491
        %v2524 = vpack.c.bf16 %v2492, %v2492
        %v2525 = vpack.c.bf16 %v2493, %v2493
        %v2526 = vpack.c.bf16 %v2494, %v2494
        %v2527 = vpack.c.bf16 %v2495, %v2495
        %v2528 = vpack.c.bf16 %v2496, %v2496
        %v2529 = vpack.c.bf16 %v2497, %v2497
        %v2530 = vpack.c.bf16 %v2498, %v2498
        %v2539 = vunpack.c.l.b16 %v2523
        %v2540 = vunpack.c.l.b16 %v2524
        %v2541 = vunpack.c.l.b16 %v2525
        %v2542 = vunpack.c.l.b16 %v2526
        %v2543 = vunpack.c.l.b16 %v2527
        %v2544 = vunpack.c.l.b16 %v2528
        %v2545 = vunpack.c.l.b16 %v2529
        %v2546 = vunpack.c.l.b16 %v2530
        %v2547 = vrot.slane %v2540, 7
        %v2548 = vsel %vm1095, %v2547, %v2539
        %v2549 = vrot.slane %v2541, 6
        %v2550 = vsel %vm1098, %v2549, %v2548
        %v2551 = vrot.slane %v2542, 5
        %v2552 = vsel %vm1101, %v2551, %v2550
        %v2553 = vrot.slane %v2543, 4
        %v2554 = vsel %vm1104, %v2553, %v2552
        %v2555 = vrot.slane %v2544, 3
        %v2556 = vsel %vm1107, %v2555, %v2554
        %v2557 = vrot.slane %v2545, 2
        %v2558 = vsel %vm1110, %v2557, %v2556
        %v2559 = vrot.slane %v2546, 1
        %v2560 = vsel %vm1113, %v2559, %v2558
        %v2561 = vpack.c.b16 %v2560, %v2560
        %2563 = vmatprep.subr.bf16.mxu0 %v507
        %2564 = vmatpush1.bf16.msra.mxu0 %v506
        %2565 = vmatprep.subr.bf16.mxu0 %v511
        %2566 = vmatpush1.bf16.msra.mxu0 %v510
        %2567 = vmatprep.subr.bf16.mxu0 %v515
        %2568 = vmatpush1.bf16.msra.mxu0 %v514
        %2569 = vmatprep.subr.bf16.mxu0 %v519
        %2570 = vmatpush1.bf16.msra.mxu0 %v518
        %2571 = vmatprep.subr.bf16.mxu0 %v523
        %2572 = vmatpush1.bf16.msra.mxu0 %v522
        %2573 = vmatprep.subr.bf16.mxu0 %v527
        %2574 = vmatpush1.bf16.msra.mxu0 %v526
        %2575 = vmatprep.subr.bf16.mxu0 %v531
        %2576 = vmatpush1.bf16.msra.mxu0 %v530
        %2577 = vmatprep.subr.bf16.mxu0 %v535
        %2578 = vmatpush1.bf16.msra.mxu0 %v534
        %2579 = vmatprep.subr.bf16.mxu0 0
        %2580 = vmatpush1.bf16.msra.mxu0 0
        %2581 = vmatprep.subr.bf16.mxu0 0
        %2582 = vmatpush1.bf16.msra.mxu0 0
        %2583 = vmatprep.subr.bf16.mxu0 0
        %2584 = vmatpush1.bf16.msra.mxu0 0
        %2585 = vmatprep.subr.bf16.mxu0 0
        %2586 = vmatpush1.bf16.msra.mxu0 0
        %2587 = vmatprep.subr.bf16.mxu0 0
        %2588 = vmatpush1.bf16.msra.mxu0 0
        %2589 = vmatprep.subr.bf16.mxu0 0
        %2590 = vmatpush1.bf16.msra.mxu0 0
        %2591 = vmatprep.subr.bf16.mxu0 0
        %2592 = vmatpush1.bf16.msra.mxu0 0
        %2593 = vmatprep.subr.bf16.mxu0 0
        %2594 = vmatpush1.bf16.msra.mxu0 0
        %2595 = vmatprep.mubr.bf16.mxu0 0
        %2596 = vmatmul.mubr.bf16.gmra.mrb[0].mxu0 %v2561
        %v2597 = vpop.f32.mrb[0].mxu0
        %v2598 = vadd.f32 0.0, %v2597
        %v2599 = vpop.f32.mrb[0].mxu0
        %v2600 = vadd.f32 0.0, %v2599
        %v2601 = vpop.f32.mrb[0].mxu0
        %v2602 = vpop.f32.mrb[0].mxu0
        %2603 = vdwg.mxu0
        %2604 = vmatprep.subr.bf16.mxu0 %v509
        %2605 = vmatpush1.bf16.msra.mxu0 %v508
        %2606 = vmatprep.subr.bf16.mxu0 %v513
        %2607 = vmatpush1.bf16.msra.mxu0 %v512
        %2608 = vmatprep.subr.bf16.mxu0 %v517
        %2609 = vmatpush1.bf16.msra.mxu0 %v516
        %2610 = vmatprep.subr.bf16.mxu0 %v521
        %2611 = vmatpush1.bf16.msra.mxu0 %v520
        %2612 = vmatprep.subr.bf16.mxu0 %v525
        %2613 = vmatpush1.bf16.msra.mxu0 %v524
        %2614 = vmatprep.subr.bf16.mxu0 %v529
        %2615 = vmatpush1.bf16.msra.mxu0 %v528
        %2616 = vmatprep.subr.bf16.mxu0 %v533
        %2617 = vmatpush1.bf16.msra.mxu0 %v532
        %2618 = vmatprep.subr.bf16.mxu0 %v537
        %2619 = vmatpush1.bf16.msra.mxu0 %v536
        %2620 = vmatprep.subr.bf16.mxu0 0
        %2621 = vmatpush1.bf16.msra.mxu0 0
        %2622 = vmatprep.subr.bf16.mxu0 0
        %2623 = vmatpush1.bf16.msra.mxu0 0
        %2624 = vmatprep.subr.bf16.mxu0 0
        %2625 = vmatpush1.bf16.msra.mxu0 0
        %2626 = vmatprep.subr.bf16.mxu0 0
        %2627 = vmatpush1.bf16.msra.mxu0 0
        %2628 = vmatprep.subr.bf16.mxu0 0
        %2629 = vmatpush1.bf16.msra.mxu0 0
        %2630 = vmatprep.subr.bf16.mxu0 0
        %2631 = vmatpush1.bf16.msra.mxu0 0
        %2632 = vmatprep.subr.bf16.mxu0 0
        %2633 = vmatpush1.bf16.msra.mxu0 0
        %2634 = vmatprep.subr.bf16.mxu0 0
        %2635 = vmatpush1.bf16.msra.mxu0 0
        %2636 = vmatprep.mubr.bf16.mxu0 0
        %2637 = vmatmul.mubr.bf16.gmra.mrb[0].mxu0 %v2561
        %v2638 = vpop.f32.mrb[0].mxu0
        %v2639 = vadd.f32 0.0, %v2638
        %v2640 = vpop.f32.mrb[0].mxu0
        %v2641 = vadd.f32 0.0, %v2640
        %v2642 = vpop.f32.mrb[0].mxu0
        %v2643 = vpop.f32.mrb[0].mxu0
        %2644 = vdwg.mxu0
        %v2649 = vcombine.low %v2598, %v2600
        %v2650 = vcombine.high %v2598, %v2600
        %v2651 = vcombine.low %v2639, %v2641
        %v2652 = vcombine.high %v2639, %v2641
        %v2654 = vunpack.c.l.s4 1966171168
        %v2655 = vunpack.c.0.s8 %v2654
        %v2656 = vlaneseq
        %v2657 = vshrl.u32 %v2656, 7
        %v2658 = vsub.s32 %v2655, %v2657
        %v2659 = vrot.slane %v2649, %v2658
        %v2661 = vunpack.c.l.s4 1966171168
        %v2662 = vunpack.c.0.s8 %v2661
        %v2663 = vlaneseq
        %v2664 = vshrl.u32 %v2663, 7
        %v2665 = vsub.s32 %v2662, %v2664
        %v2666 = vrot.slane %v2650, %v2665
        %v2668 = vunpack.c.l.s4 1966171168
        %v2669 = vunpack.c.0.s8 %v2668
        %v2670 = vlaneseq
        %v2671 = vshrl.u32 %v2670, 7
        %v2672 = vsub.s32 %v2669, %v2671
        %v2673 = vrot.slane %v2651, %v2672
        %v2675 = vunpack.c.l.s4 1966171168
        %v2676 = vunpack.c.0.s8 %v2675
        %v2677 = vlaneseq
        %v2678 = vshrl.u32 %v2677, 7
        %v2679 = vsub.s32 %v2676, %v2678
        %v2680 = vrot.slane %v2652, %v2679
        %v2681 = vcombine.low %v2659, %v2673
        %v2682 = vcombine.high %v2659, %v2673
        %v2683 = vcombine.low %v2666, %v2680
        %v2684 = vcombine.high %v2666, %v2680
        %v2686 = vunpack.c.l.s4 1966171168
        %v2687 = vunpack.c.0.s8 %v2686
        %v2688 = vlaneseq
        %v2689 = vshrl.u32 %v2688, 7
        %v2690 = vsub.s32 %v2687, %v2689
        %v2691 = vrot.slane %v2681, %v2690
        %v2693 = vunpack.c.l.s4 1966171168
        %v2694 = vunpack.c.0.s8 %v2693
        %v2695 = vlaneseq
        %v2696 = vshrl.u32 %v2695, 7
        %v2697 = vsub.s32 %v2694, %v2696
        %v2698 = vrot.slane %v2683, %v2697
        %v2700 = vunpack.c.l.s4 1966171168
        %v2701 = vunpack.c.0.s8 %v2700
        %v2702 = vlaneseq
        %v2703 = vshrl.u32 %v2702, 7
        %v2704 = vsub.s32 %v2701, %v2703
        %v2705 = vrot.slane %v2682, %v2704
        %v2707 = vunpack.c.l.s4 1966171168
        %v2708 = vunpack.c.0.s8 %v2707
        %v2709 = vlaneseq
        %v2710 = vshrl.u32 %v2709, 7
        %v2711 = vsub.s32 %v2708, %v2710
        %v2712 = vrot.slane %v2684, %v2711
        %v2713 = vcombine.high %v2691, %v2691
        %v2714 = vcombine.high %v2698, %v2698
        %v2715 = vcombine.high %v2705, %v2705
        %v2716 = vcombine.high %v2712, %v2712
        %v2725 = vadd.f32 %v2508, %v2691
        %v2726 = vadd.f32 %v2510, %v2705
        %v2727 = vadd.f32 %v2512, %v2713
        %v2728 = vadd.f32 %v2514, %v2715
        %v2729 = vadd.f32 %v2516, %v2698
        %v2730 = vadd.f32 %v2518, %v2712
        %v2731 = vadd.f32 %v2520, %v2714
        %v2732 = vadd.f32 %v2522, %v2716
        %v2733 = vxor.u32 %v2725, 2147483648
        %v2734 = vxor.u32 %v2726, 2147483648
        %v2735 = vxor.u32 %v2727, 2147483648
        %v2736 = vxor.u32 %v2728, 2147483648
        %v2737 = vxor.u32 %v2729, 2147483648
        %v2738 = vxor.u32 %v2730, 2147483648
        %v2739 = vxor.u32 %v2731, 2147483648
        %v2740 = vxor.u32 %v2732, 2147483648
        %v2741 = vmul.f32 %v2733, 1.442695
        %v2742 = vpow.pop %v2741
        %v2743 = vmul.f32 %v2734, 1.442695
        %v2744 = vpow.pop %v2743
        %v2745 = vmul.f32 %v2735, 1.442695
        %v2746 = vpow.pop %v2745
        %v2747 = vmul.f32 %v2736, 1.442695
        %v2748 = vpow.pop %v2747
        %v2749 = vmul.f32 %v2737, 1.442695
        %v2750 = vpow.pop %v2749
        %v2751 = vmul.f32 %v2738, 1.442695
        %v2752 = vpow.pop %v2751
        %v2753 = vmul.f32 %v2739, 1.442695
        %v2754 = vpow.pop %v2753
        %v2755 = vmul.f32 %v2740, 1.442695
        %v2756 = vpow.pop %v2755
        %v2757 = vadd.f32 %v2742, 1.0
        %v2758 = vadd.f32 %v2744, 1.0
        %v2759 = vadd.f32 %v2746, 1.0
        %v2760 = vadd.f32 %v2748, 1.0
        %v2761 = vadd.f32 %v2750, 1.0
        %v2762 = vadd.f32 %v2752, 1.0
        %v2763 = vadd.f32 %v2754, 1.0
        %v2764 = vadd.f32 %v2756, 1.0
        %v2765 = vrcp.pop %v2757
        %v2766 = vmul.f32 1.0, %v2765
        %v2767 = vrcp.pop %v2758
        %v2768 = vmul.f32 1.0, %v2767
        %v2769 = vrcp.pop %v2759
        %v2770 = vmul.f32 1.0, %v2769
        %v2771 = vrcp.pop %v2760
        %v2772 = vmul.f32 1.0, %v2771
        %v2773 = vrcp.pop %v2761
        %v2774 = vmul.f32 1.0, %v2773
        %v2775 = vrcp.pop %v2762
        %v2776 = vmul.f32 1.0, %v2775
        %v2777 = vrcp.pop %v2763
        %v2778 = vmul.f32 1.0, %v2777
        %v2779 = vrcp.pop %v2764
        %v2780 = vmul.f32 1.0, %v2779
        %v2789 = vrot.slane %v2725, 1
        %v2790 = vrot.slane %v2726, 1
        %v2791 = vrot.slane %v2727, 1
        %v2792 = vrot.slane %v2728, 1
        %v2793 = vrot.slane %v2729, 1
        %v2794 = vrot.slane %v2730, 1
        %v2795 = vrot.slane %v2731, 1
        %v2796 = vrot.slane %v2732, 1
        %v2805 = vxor.u32 %v2789, 2147483648
        %v2806 = vxor.u32 %v2790, 2147483648
        %v2807 = vxor.u32 %v2791, 2147483648
        %v2808 = vxor.u32 %v2792, 2147483648
        %v2809 = vxor.u32 %v2793, 2147483648
        %v2810 = vxor.u32 %v2794, 2147483648
        %v2811 = vxor.u32 %v2795, 2147483648
        %v2812 = vxor.u32 %v2796, 2147483648
        %v2813 = vmul.f32 %v2805, 1.442695
        %v2814 = vpow.pop %v2813
        %v2815 = vmul.f32 %v2806, 1.442695
        %v2816 = vpow.pop %v2815
        %v2817 = vmul.f32 %v2807, 1.442695
        %v2818 = vpow.pop %v2817
        %v2819 = vmul.f32 %v2808, 1.442695
        %v2820 = vpow.pop %v2819
        %v2821 = vmul.f32 %v2809, 1.442695
        %v2822 = vpow.pop %v2821
        %v2823 = vmul.f32 %v2810, 1.442695
        %v2824 = vpow.pop %v2823
        %v2825 = vmul.f32 %v2811, 1.442695
        %v2826 = vpow.pop %v2825
        %v2827 = vmul.f32 %v2812, 1.442695
        %v2828 = vpow.pop %v2827
        %v2829 = vadd.f32 %v2814, 1.0
        %v2830 = vadd.f32 %v2816, 1.0
        %v2831 = vadd.f32 %v2818, 1.0
        %v2832 = vadd.f32 %v2820, 1.0
        %v2833 = vadd.f32 %v2822, 1.0
        %v2834 = vadd.f32 %v2824, 1.0
        %v2835 = vadd.f32 %v2826, 1.0
        %v2836 = vadd.f32 %v2828, 1.0
        %v2837 = vrcp.pop %v2829
        %v2838 = vmul.f32 1.0, %v2837
        %v2839 = vrcp.pop %v2830
        %v2840 = vmul.f32 1.0, %v2839
        %v2841 = vrcp.pop %v2831
        %v2842 = vmul.f32 1.0, %v2841
        %v2843 = vrcp.pop %v2832
        %v2844 = vmul.f32 1.0, %v2843
        %v2845 = vrcp.pop %v2833
        %v2846 = vmul.f32 1.0, %v2845
        %v2847 = vrcp.pop %v2834
        %v2848 = vmul.f32 1.0, %v2847
        %v2849 = vrcp.pop %v2835
        %v2850 = vmul.f32 1.0, %v2849
        %v2851 = vrcp.pop %v2836
        %v2852 = vmul.f32 1.0, %v2851
        %v2853 = vrot.slane %v2725, 2
        %v2854 = vrot.slane %v2726, 2
        %v2855 = vrot.slane %v2727, 2
        %v2856 = vrot.slane %v2728, 2
        %v2857 = vrot.slane %v2729, 2
        %v2858 = vrot.slane %v2730, 2
        %v2859 = vrot.slane %v2731, 2
        %v2860 = vrot.slane %v2732, 2
        %v2869 = vtanh.pop %v2853
        %v2870 = vtanh.pop %v2854
        %v2871 = vtanh.pop %v2855
        %v2872 = vtanh.pop %v2856
        %v2873 = vtanh.pop %v2857
        %v2874 = vtanh.pop %v2858
        %v2875 = vtanh.pop %v2859
        %v2876 = vtanh.pop %v2860
        %v2877 = vrot.slane %v2725, 3
        %v2878 = vrot.slane %v2726, 3
        %v2879 = vrot.slane %v2727, 3
        %v2880 = vrot.slane %v2728, 3
        %v2881 = vrot.slane %v2729, 3
        %v2882 = vrot.slane %v2730, 3
        %v2883 = vrot.slane %v2731, 3
        %v2884 = vrot.slane %v2732, 3
        %v2893 = vxor.u32 %v2877, 2147483648
        %v2894 = vxor.u32 %v2878, 2147483648
        %v2895 = vxor.u32 %v2879, 2147483648
        %v2896 = vxor.u32 %v2880, 2147483648
        %v2897 = vxor.u32 %v2881, 2147483648
        %v2898 = vxor.u32 %v2882, 2147483648
        %v2899 = vxor.u32 %v2883, 2147483648
        %v2900 = vxor.u32 %v2884, 2147483648
        %v2901 = vmul.f32 %v2893, 1.442695
        %v2902 = vpow.pop %v2901
        %v2903 = vmul.f32 %v2894, 1.442695
        %v2904 = vpow.pop %v2903
        %v2905 = vmul.f32 %v2895, 1.442695
        %v2906 = vpow.pop %v2905
        %v2907 = vmul.f32 %v2896, 1.442695
        %v2908 = vpow.pop %v2907
        %v2909 = vmul.f32 %v2897, 1.442695
        %v2910 = vpow.pop %v2909
        %v2911 = vmul.f32 %v2898, 1.442695
        %v2912 = vpow.pop %v2911
        %v2913 = vmul.f32 %v2899, 1.442695
        %v2914 = vpow.pop %v2913
        %v2915 = vmul.f32 %v2900, 1.442695
        %v2916 = vpow.pop %v2915
        %v2917 = vadd.f32 %v2902, 1.0
        %v2918 = vadd.f32 %v2904, 1.0
        %v2919 = vadd.f32 %v2906, 1.0
        %v2920 = vadd.f32 %v2908, 1.0
        %v2921 = vadd.f32 %v2910, 1.0
        %v2922 = vadd.f32 %v2912, 1.0
        %v2923 = vadd.f32 %v2914, 1.0
        %v2924 = vadd.f32 %v2916, 1.0
        %v2925 = vrcp.pop %v2917
        %v2926 = vmul.f32 1.0, %v2925
        %v2927 = vrcp.pop %v2918
        %v2928 = vmul.f32 1.0, %v2927
        %v2929 = vrcp.pop %v2919
        %v2930 = vmul.f32 1.0, %v2929
        %v2931 = vrcp.pop %v2920
        %v2932 = vmul.f32 1.0, %v2931
        %v2933 = vrcp.pop %v2921
        %v2934 = vmul.f32 1.0, %v2933
        %v2935 = vrcp.pop %v2922
        %v2936 = vmul.f32 1.0, %v2935
        %v2937 = vrcp.pop %v2923
        %v2938 = vmul.f32 1.0, %v2937
        %v2939 = vrcp.pop %v2924
        %v2940 = vmul.f32 1.0, %v2939
        %v2941 = vmul.f32 %v2838, %v2475
        %v2942 = vmul.f32 %v2840, %v2476
        %v2943 = vmul.f32 %v2842, %v2477
        %v2944 = vmul.f32 %v2844, %v2478
        %v2945 = vmul.f32 %v2846, %v2479
        %v2946 = vmul.f32 %v2848, %v2480
        %v2947 = vmul.f32 %v2850, %v2481
        %v2948 = vmul.f32 %v2852, %v2482
        %v2949 = vmul.f32 %v2766, %v2869
        %v2950 = vmul.f32 %v2768, %v2870
        %v2951 = vmul.f32 %v2770, %v2871
        %v2952 = vmul.f32 %v2772, %v2872
        %v2953 = vmul.f32 %v2774, %v2873
        %v2954 = vmul.f32 %v2776, %v2874
        %v2955 = vmul.f32 %v2778, %v2875
        %v2956 = vmul.f32 %v2780, %v2876
        %v2957 = vadd.f32 %v2941, %v2949
        %v2958 = vadd.f32 %v2942, %v2950
        %v2959 = vadd.f32 %v2943, %v2951
        %v2960 = vadd.f32 %v2944, %v2952
        %v2961 = vadd.f32 %v2945, %v2953
        %v2962 = vadd.f32 %v2946, %v2954
        %v2963 = vadd.f32 %v2947, %v2955
        %v2964 = vadd.f32 %v2948, %v2956
        %v2965 = vtanh.pop %v2957
        %v2966 = vtanh.pop %v2958
        %v2967 = vtanh.pop %v2959
        %v2968 = vtanh.pop %v2960
        %v2969 = vtanh.pop %v2961
        %v2970 = vtanh.pop %v2962
        %v2971 = vtanh.pop %v2963
        %v2972 = vtanh.pop %v2964
        %v2973 = vmul.f32 %v2926, %v2965
        %v2974 = vmul.f32 %v2928, %v2966
        %v2975 = vmul.f32 %v2930, %v2967
        %v2976 = vmul.f32 %v2932, %v2968
        %v2977 = vmul.f32 %v2934, %v2969
        %v2978 = vmul.f32 %v2936, %v2970
        %v2979 = vmul.f32 %v2938, %v2971
        %v2980 = vmul.f32 %v2940, %v2972
        %2981 = vst [vmem:[%s344 + $0x4] sm:$0x1] %v2973
        %2982 = vst [vmem:[%s344 + $0xc] sm:$0x1] %v2974
        %2983 = vst [vmem:[%s344 + $0x14] sm:$0x1] %v2975
        %2984 = vst [vmem:[%s344 + $0x1c] sm:$0x1] %v2976
        %2985 = vst [vmem:[%s344 + $0x24] sm:$0x1] %v2977
        %2986 = vst [vmem:[%s344 + $0x2c] sm:$0x1] %v2978
        %2987 = vst [vmem:[%s344 + $0x34] sm:$0x1] %v2979
        %2988 = vst [vmem:[%s344 + $0x3c] sm:$0x1] %v2980
        %s2989 = scalar_lea.vmem %s308, 5 [#allocation4]
        %v2990 = vld [vmem:[%s2989] ss:$8 sm:$0xf]
        %s2991 = scalar_lea.vmem %s308, 37 [#allocation4]
        %v2992 = vld [vmem:[%s2991] ss:$8 sm:$0xf]
        %s2993 = scalar_lea.vmem %s308, 69 [#allocation4]
        %v2994 = vld [vmem:[%s2993] ss:$8 sm:$0xf]
        %s2995 = scalar_lea.vmem %s308, 101 [#allocation4]
        %v2996 = vld [vmem:[%s2995] ss:$8 sm:$0xf]
        %s2997 = scalar_lea.vmem %s308, 133 [#allocation4]
        %v2998 = vld [vmem:[%s2997] ss:$8 sm:$0xf]
        %s2999 = scalar_lea.vmem %s308, 165 [#allocation4]
        %v3000 = vld [vmem:[%s2999] ss:$8 sm:$0xf]
        %s3001 = scalar_lea.vmem %s308, 197 [#allocation4]
        %v3002 = vld [vmem:[%s3001] ss:$8 sm:$0xf]
        %s3003 = scalar_lea.vmem %s308, 229 [#allocation4]
        %v3004 = vld [vmem:[%s3003] ss:$8 sm:$0xf]
        %v3005 = vpack.c.bf16 %v2973, %v2973
        %v3006 = vpack.c.bf16 %v2974, %v2974
        %v3007 = vpack.c.bf16 %v2975, %v2975
        %v3008 = vpack.c.bf16 %v2976, %v2976
        %v3009 = vpack.c.bf16 %v2977, %v2977
        %v3010 = vpack.c.bf16 %v2978, %v2978
        %v3011 = vpack.c.bf16 %v2979, %v2979
        %v3012 = vpack.c.bf16 %v2980, %v2980
        %v3021 = vunpack.c.l.b16 %v3005
        %v3022 = vunpack.c.l.b16 %v3006
        %v3023 = vunpack.c.l.b16 %v3007
        %v3024 = vunpack.c.l.b16 %v3008
        %v3025 = vunpack.c.l.b16 %v3009
        %v3026 = vunpack.c.l.b16 %v3010
        %v3027 = vunpack.c.l.b16 %v3011
        %v3028 = vunpack.c.l.b16 %v3012
        %v3029 = vrot.slane %v3022, 7
        %v3030 = vsel %vm1095, %v3029, %v3021
        %v3031 = vrot.slane %v3023, 6
        %v3032 = vsel %vm1098, %v3031, %v3030
        %v3033 = vrot.slane %v3024, 5
        %v3034 = vsel %vm1101, %v3033, %v3032
        %v3035 = vrot.slane %v3025, 4
        %v3036 = vsel %vm1104, %v3035, %v3034
        %v3037 = vrot.slane %v3026, 3
        %v3038 = vsel %vm1107, %v3037, %v3036
        %v3039 = vrot.slane %v3027, 2
        %v3040 = vsel %vm1110, %v3039, %v3038
        %v3041 = vrot.slane %v3028, 1
        %v3042 = vsel %vm1113, %v3041, %v3040
        %v3043 = vpack.c.b16 %v3042, %v3042
        %3045 = vmatprep.subr.bf16.mxu0 %v507
        %3046 = vmatpush1.bf16.msra.mxu0 %v506
        %3047 = vmatprep.subr.bf16.mxu0 %v511
        %3048 = vmatpush1.bf16.msra.mxu0 %v510
        %3049 = vmatprep.subr.bf16.mxu0 %v515
        %3050 = vmatpush1.bf16.msra.mxu0 %v514
        %3051 = vmatprep.subr.bf16.mxu0 %v519
        %3052 = vmatpush1.bf16.msra.mxu0 %v518
        %3053 = vmatprep.subr.bf16.mxu0 %v523
        %3054 = vmatpush1.bf16.msra.mxu0 %v522
        %3055 = vmatprep.subr.bf16.mxu0 %v527
        %3056 = vmatpush1.bf16.msra.mxu0 %v526
        %3057 = vmatprep.subr.bf16.mxu0 %v531
        %3058 = vmatpush1.bf16.msra.mxu0 %v530
        %3059 = vmatprep.subr.bf16.mxu0 %v535
        %3060 = vmatpush1.bf16.msra.mxu0 %v534
        %3061 = vmatprep.subr.bf16.mxu0 0
        %3062 = vmatpush1.bf16.msra.mxu0 0
        %3063 = vmatprep.subr.bf16.mxu0 0
        %3064 = vmatpush1.bf16.msra.mxu0 0
        %3065 = vmatprep.subr.bf16.mxu0 0
        %3066 = vmatpush1.bf16.msra.mxu0 0
        %3067 = vmatprep.subr.bf16.mxu0 0
        %3068 = vmatpush1.bf16.msra.mxu0 0
        %3069 = vmatprep.subr.bf16.mxu0 0
        %3070 = vmatpush1.bf16.msra.mxu0 0
        %3071 = vmatprep.subr.bf16.mxu0 0
        %3072 = vmatpush1.bf16.msra.mxu0 0
        %3073 = vmatprep.subr.bf16.mxu0 0
        %3074 = vmatpush1.bf16.msra.mxu0 0
        %3075 = vmatprep.subr.bf16.mxu0 0
        %3076 = vmatpush1.bf16.msra.mxu0 0
        %3077 = vmatprep.mubr.bf16.mxu0 0
        %3078 = vmatmul.mubr.bf16.gmra.mrb[0].mxu0 %v3043
        %v3079 = vpop.f32.mrb[0].mxu0
        %v3080 = vadd.f32 0.0, %v3079
        %v3081 = vpop.f32.mrb[0].mxu0
        %v3082 = vadd.f32 0.0, %v3081
        %v3083 = vpop.f32.mrb[0].mxu0
        %v3084 = vpop.f32.mrb[0].mxu0
        %3085 = vdwg.mxu0
        %3086 = vmatprep.subr.bf16.mxu0 %v509
        %3087 = vmatpush1.bf16.msra.mxu0 %v508
        %3088 = vmatprep.subr.bf16.mxu0 %v513
        %3089 = vmatpush1.bf16.msra.mxu0 %v512
        %3090 = vmatprep.subr.bf16.mxu0 %v517
        %3091 = vmatpush1.bf16.msra.mxu0 %v516
        %3092 = vmatprep.subr.bf16.mxu0 %v521
        %3093 = vmatpush1.bf16.msra.mxu0 %v520
        %3094 = vmatprep.subr.bf16.mxu0 %v525
        %3095 = vmatpush1.bf16.msra.mxu0 %v524
        %3096 = vmatprep.subr.bf16.mxu0 %v529
        %3097 = vmatpush1.bf16.msra.mxu0 %v528
        %3098 = vmatprep.subr.bf16.mxu0 %v533
        %3099 = vmatpush1.bf16.msra.mxu0 %v532
        %3100 = vmatprep.subr.bf16.mxu0 %v537
        %3101 = vmatpush1.bf16.msra.mxu0 %v536
        %3102 = vmatprep.subr.bf16.mxu0 0
        %3103 = vmatpush1.bf16.msra.mxu0 0
        %3104 = vmatprep.subr.bf16.mxu0 0
        %3105 = vmatpush1.bf16.msra.mxu0 0
        %3106 = vmatprep.subr.bf16.mxu0 0
        %3107 = vmatpush1.bf16.msra.mxu0 0
        %3108 = vmatprep.subr.bf16.mxu0 0
        %3109 = vmatpush1.bf16.msra.mxu0 0
        %3110 = vmatprep.subr.bf16.mxu0 0
        %3111 = vmatpush1.bf16.msra.mxu0 0
        %3112 = vmatprep.subr.bf16.mxu0 0
        %3113 = vmatpush1.bf16.msra.mxu0 0
        %3114 = vmatprep.subr.bf16.mxu0 0
        %3115 = vmatpush1.bf16.msra.mxu0 0
        %3116 = vmatprep.subr.bf16.mxu0 0
        %3117 = vmatpush1.bf16.msra.mxu0 0
        %3118 = vmatprep.mubr.bf16.mxu0 0
        %3119 = vmatmul.mubr.bf16.gmra.mrb[0].mxu0 %v3043
        %v3120 = vpop.f32.mrb[0].mxu0
        %v3121 = vadd.f32 0.0, %v3120
        %v3122 = vpop.f32.mrb[0].mxu0
        %v3123 = vadd.f32 0.0, %v3122
        %v3124 = vpop.f32.mrb[0].mxu0
        %v3125 = vpop.f32.mrb[0].mxu0
        %3126 = vdwg.mxu0
        %v3131 = vcombine.low %v3080, %v3082
        %v3132 = vcombine.high %v3080, %v3082
        %v3133 = vcombine.low %v3121, %v3123
        %v3134 = vcombine.high %v3121, %v3123
        %v3136 = vunpack.c.l.s4 1966171168
        %v3137 = vunpack.c.0.s8 %v3136
        %v3138 = vlaneseq
        %v3139 = vshrl.u32 %v3138, 7
        %v3140 = vsub.s32 %v3137, %v3139
        %v3141 = vrot.slane %v3131, %v3140
        %v3143 = vunpack.c.l.s4 1966171168
        %v3144 = vunpack.c.0.s8 %v3143
        %v3145 = vlaneseq
        %v3146 = vshrl.u32 %v3145, 7
        %v3147 = vsub.s32 %v3144, %v3146
        %v3148 = vrot.slane %v3132, %v3147
        %v3150 = vunpack.c.l.s4 1966171168
        %v3151 = vunpack.c.0.s8 %v3150
        %v3152 = vlaneseq
        %v3153 = vshrl.u32 %v3152, 7
        %v3154 = vsub.s32 %v3151, %v3153
        %v3155 = vrot.slane %v3133, %v3154
        %v3157 = vunpack.c.l.s4 1966171168
        %v3158 = vunpack.c.0.s8 %v3157
        %v3159 = vlaneseq
        %v3160 = vshrl.u32 %v3159, 7
        %v3161 = vsub.s32 %v3158, %v3160
        %v3162 = vrot.slane %v3134, %v3161
        %v3163 = vcombine.low %v3141, %v3155
        %v3164 = vcombine.high %v3141, %v3155
        %v3165 = vcombine.low %v3148, %v3162
        %v3166 = vcombine.high %v3148, %v3162
        %v3168 = vunpack.c.l.s4 1966171168
        %v3169 = vunpack.c.0.s8 %v3168
        %v3170 = vlaneseq
        %v3171 = vshrl.u32 %v3170, 7
        %v3172 = vsub.s32 %v3169, %v3171
        %v3173 = vrot.slane %v3163, %v3172
        %v3175 = vunpack.c.l.s4 1966171168
        %v3176 = vunpack.c.0.s8 %v3175
        %v3177 = vlaneseq
        %v3178 = vshrl.u32 %v3177, 7
        %v3179 = vsub.s32 %v3176, %v3178
        %v3180 = vrot.slane %v3165, %v3179
        %v3182 = vunpack.c.l.s4 1966171168
        %v3183 = vunpack.c.0.s8 %v3182
        %v3184 = vlaneseq
        %v3185 = vshrl.u32 %v3184, 7
        %v3186 = vsub.s32 %v3183, %v3185
        %v3187 = vrot.slane %v3164, %v3186
        %v3189 = vunpack.c.l.s4 1966171168
        %v3190 = vunpack.c.0.s8 %v3189
        %v3191 = vlaneseq
        %v3192 = vshrl.u32 %v3191, 7
        %v3193 = vsub.s32 %v3190, %v3192
        %v3194 = vrot.slane %v3166, %v3193
        %v3195 = vcombine.high %v3173, %v3173
        %v3196 = vcombine.high %v3180, %v3180
        %v3197 = vcombine.high %v3187, %v3187
        %v3198 = vcombine.high %v3194, %v3194
        %v3207 = vadd.f32 %v2990, %v3173
        %v3208 = vadd.f32 %v2992, %v3187
        %v3209 = vadd.f32 %v2994, %v3195
        %v3210 = vadd.f32 %v2996, %v3197
        %v3211 = vadd.f32 %v2998, %v3180
        %v3212 = vadd.f32 %v3000, %v3194
        %v3213 = vadd.f32 %v3002, %v3196
        %v3214 = vadd.f32 %v3004, %v3198
        %v3215 = vxor.u32 %v3207, 2147483648
        %v3216 = vxor.u32 %v3208, 2147483648
        %v3217 = vxor.u32 %v3209, 2147483648
        %v3218 = vxor.u32 %v3210, 2147483648
        %v3219 = vxor.u32 %v3211, 2147483648
        %v3220 = vxor.u32 %v3212, 2147483648
        %v3221 = vxor.u32 %v3213, 2147483648
        %v3222 = vxor.u32 %v3214, 2147483648
        %v3223 = vmul.f32 %v3215, 1.442695
        %v3224 = vpow.pop %v3223
        %v3225 = vmul.f32 %v3216, 1.442695
        %v3226 = vpow.pop %v3225
        %v3227 = vmul.f32 %v3217, 1.442695
        %v3228 = vpow.pop %v3227
        %v3229 = vmul.f32 %v3218, 1.442695
        %v3230 = vpow.pop %v3229
        %v3231 = vmul.f32 %v3219, 1.442695
        %v3232 = vpow.pop %v3231
        %v3233 = vmul.f32 %v3220, 1.442695
        %v3234 = vpow.pop %v3233
        %v3235 = vmul.f32 %v3221, 1.442695
        %v3236 = vpow.pop %v3235
        %v3237 = vmul.f32 %v3222, 1.442695
        %v3238 = vpow.pop %v3237
        %v3239 = vadd.f32 %v3224, 1.0
        %v3240 = vadd.f32 %v3226, 1.0
        %v3241 = vadd.f32 %v3228, 1.0
        %v3242 = vadd.f32 %v3230, 1.0
        %v3243 = vadd.f32 %v3232, 1.0
        %v3244 = vadd.f32 %v3234, 1.0
        %v3245 = vadd.f32 %v3236, 1.0
        %v3246 = vadd.f32 %v3238, 1.0
        %v3247 = vrcp.pop %v3239
        %v3248 = vmul.f32 1.0, %v3247
        %v3249 = vrcp.pop %v3240
        %v3250 = vmul.f32 1.0, %v3249
        %v3251 = vrcp.pop %v3241
        %v3252 = vmul.f32 1.0, %v3251
        %v3253 = vrcp.pop %v3242
        %v3254 = vmul.f32 1.0, %v3253
        %v3255 = vrcp.pop %v3243
        %v3256 = vmul.f32 1.0, %v3255
        %v3257 = vrcp.pop %v3244
        %v3258 = vmul.f32 1.0, %v3257
        %v3259 = vrcp.pop %v3245
        %v3260 = vmul.f32 1.0, %v3259
        %v3261 = vrcp.pop %v3246
        %v3262 = vmul.f32 1.0, %v3261
        %v3271 = vrot.slane %v3207, 1
        %v3272 = vrot.slane %v3208, 1
        %v3273 = vrot.slane %v3209, 1
        %v3274 = vrot.slane %v3210, 1
        %v3275 = vrot.slane %v3211, 1
        %v3276 = vrot.slane %v3212, 1
        %v3277 = vrot.slane %v3213, 1
        %v3278 = vrot.slane %v3214, 1
        %v3287 = vxor.u32 %v3271, 2147483648
        %v3288 = vxor.u32 %v3272, 2147483648
        %v3289 = vxor.u32 %v3273, 2147483648
        %v3290 = vxor.u32 %v3274, 2147483648
        %v3291 = vxor.u32 %v3275, 2147483648
        %v3292 = vxor.u32 %v3276, 2147483648
        %v3293 = vxor.u32 %v3277, 2147483648
        %v3294 = vxor.u32 %v3278, 2147483648
        %v3295 = vmul.f32 %v3287, 1.442695
        %v3296 = vpow.pop %v3295
        %v3297 = vmul.f32 %v3288, 1.442695
        %v3298 = vpow.pop %v3297
        %v3299 = vmul.f32 %v3289, 1.442695
        %v3300 = vpow.pop %v3299
        %v3301 = vmul.f32 %v3290, 1.442695
        %v3302 = vpow.pop %v3301
        %v3303 = vmul.f32 %v3291, 1.442695
        %v3304 = vpow.pop %v3303
        %v3305 = vmul.f32 %v3292, 1.442695
        %v3306 = vpow.pop %v3305
        %v3307 = vmul.f32 %v3293, 1.442695
        %v3308 = vpow.pop %v3307
        %v3309 = vmul.f32 %v3294, 1.442695
        %v3310 = vpow.pop %v3309
        %v3311 = vadd.f32 %v3296, 1.0
        %v3312 = vadd.f32 %v3298, 1.0
        %v3313 = vadd.f32 %v3300, 1.0
        %v3314 = vadd.f32 %v3302, 1.0
        %v3315 = vadd.f32 %v3304, 1.0
        %v3316 = vadd.f32 %v3306, 1.0
        %v3317 = vadd.f32 %v3308, 1.0
        %v3318 = vadd.f32 %v3310, 1.0
        %v3319 = vrcp.pop %v3311
        %v3320 = vmul.f32 1.0, %v3319
        %v3321 = vrcp.pop %v3312
        %v3322 = vmul.f32 1.0, %v3321
        %v3323 = vrcp.pop %v3313
        %v3324 = vmul.f32 1.0, %v3323
        %v3325 = vrcp.pop %v3314
        %v3326 = vmul.f32 1.0, %v3325
        %v3327 = vrcp.pop %v3315
        %v3328 = vmul.f32 1.0, %v3327
        %v3329 = vrcp.pop %v3316
        %v3330 = vmul.f32 1.0, %v3329
        %v3331 = vrcp.pop %v3317
        %v3332 = vmul.f32 1.0, %v3331
        %v3333 = vrcp.pop %v3318
        %v3334 = vmul.f32 1.0, %v3333
        %v3335 = vrot.slane %v3207, 2
        %v3336 = vrot.slane %v3208, 2
        %v3337 = vrot.slane %v3209, 2
        %v3338 = vrot.slane %v3210, 2
        %v3339 = vrot.slane %v3211, 2
        %v3340 = vrot.slane %v3212, 2
        %v3341 = vrot.slane %v3213, 2
        %v3342 = vrot.slane %v3214, 2
        %v3351 = vtanh.pop %v3335
        %v3352 = vtanh.pop %v3336
        %v3353 = vtanh.pop %v3337
        %v3354 = vtanh.pop %v3338
        %v3355 = vtanh.pop %v3339
        %v3356 = vtanh.pop %v3340
        %v3357 = vtanh.pop %v3341
        %v3358 = vtanh.pop %v3342
        %v3359 = vrot.slane %v3207, 3
        %v3360 = vrot.slane %v3208, 3
        %v3361 = vrot.slane %v3209, 3
        %v3362 = vrot.slane %v3210, 3
        %v3363 = vrot.slane %v3211, 3
        %v3364 = vrot.slane %v3212, 3
        %v3365 = vrot.slane %v3213, 3
        %v3366 = vrot.slane %v3214, 3
        %v3375 = vxor.u32 %v3359, 2147483648
        %v3376 = vxor.u32 %v3360, 2147483648
        %v3377 = vxor.u32 %v3361, 2147483648
        %v3378 = vxor.u32 %v3362, 2147483648
        %v3379 = vxor.u32 %v3363, 2147483648
        %v3380 = vxor.u32 %v3364, 2147483648
        %v3381 = vxor.u32 %v3365, 2147483648
        %v3382 = vxor.u32 %v3366, 2147483648
        %v3383 = vmul.f32 %v3375, 1.442695
        %v3384 = vpow.pop %v3383
        %v3385 = vmul.f32 %v3376, 1.442695
        %v3386 = vpow.pop %v3385
        %v3387 = vmul.f32 %v3377, 1.442695
        %v3388 = vpow.pop %v3387
        %v3389 = vmul.f32 %v3378, 1.442695
        %v3390 = vpow.pop %v3389
        %v3391 = vmul.f32 %v3379, 1.442695
        %v3392 = vpow.pop %v3391
        %v3393 = vmul.f32 %v3380, 1.442695
        %v3394 = vpow.pop %v3393
        %v3395 = vmul.f32 %v3381, 1.442695
        %v3396 = vpow.pop %v3395
        %v3397 = vmul.f32 %v3382, 1.442695
        %v3398 = vpow.pop %v3397
        %v3399 = vadd.f32 %v3384, 1.0
        %v3400 = vadd.f32 %v3386, 1.0
        %v3401 = vadd.f32 %v3388, 1.0
        %v3402 = vadd.f32 %v3390, 1.0
        %v3403 = vadd.f32 %v3392, 1.0
        %v3404 = vadd.f32 %v3394, 1.0
        %v3405 = vadd.f32 %v3396, 1.0
        %v3406 = vadd.f32 %v3398, 1.0
        %v3407 = vrcp.pop %v3399
        %v3408 = vmul.f32 1.0, %v3407
        %v3409 = vrcp.pop %v3400
        %v3410 = vmul.f32 1.0, %v3409
        %v3411 = vrcp.pop %v3401
        %v3412 = vmul.f32 1.0, %v3411
        %v3413 = vrcp.pop %v3402
        %v3414 = vmul.f32 1.0, %v3413
        %v3415 = vrcp.pop %v3403
        %v3416 = vmul.f32 1.0, %v3415
        %v3417 = vrcp.pop %v3404
        %v3418 = vmul.f32 1.0, %v3417
        %v3419 = vrcp.pop %v3405
        %v3420 = vmul.f32 1.0, %v3419
        %v3421 = vrcp.pop %v3406
        %v3422 = vmul.f32 1.0, %v3421
        %v3423 = vmul.f32 %v3320, %v2957
        %v3424 = vmul.f32 %v3322, %v2958
        %v3425 = vmul.f32 %v3324, %v2959
        %v3426 = vmul.f32 %v3326, %v2960
        %v3427 = vmul.f32 %v3328, %v2961
        %v3428 = vmul.f32 %v3330, %v2962
        %v3429 = vmul.f32 %v3332, %v2963
        %v3430 = vmul.f32 %v3334, %v2964
        %v3431 = vmul.f32 %v3248, %v3351
        %v3432 = vmul.f32 %v3250, %v3352
        %v3433 = vmul.f32 %v3252, %v3353
        %v3434 = vmul.f32 %v3254, %v3354
        %v3435 = vmul.f32 %v3256, %v3355
        %v3436 = vmul.f32 %v3258, %v3356
        %v3437 = vmul.f32 %v3260, %v3357
        %v3438 = vmul.f32 %v3262, %v3358
        %v3439 = vadd.f32 %v3423, %v3431
        %v3440 = vadd.f32 %v3424, %v3432
        %v3441 = vadd.f32 %v3425, %v3433
        %v3442 = vadd.f32 %v3426, %v3434
        %v3443 = vadd.f32 %v3427, %v3435
        %v3444 = vadd.f32 %v3428, %v3436
        %v3445 = vadd.f32 %v3429, %v3437
        %v3446 = vadd.f32 %v3430, %v3438
        %v3447 = vtanh.pop %v3439
        %v3448 = vtanh.pop %v3440
        %v3449 = vtanh.pop %v3441
        %v3450 = vtanh.pop %v3442
        %v3451 = vtanh.pop %v3443
        %v3452 = vtanh.pop %v3444
        %v3453 = vtanh.pop %v3445
        %v3454 = vtanh.pop %v3446
        %v3455 = vmul.f32 %v3408, %v3447
        %v3456 = vmul.f32 %v3410, %v3448
        %v3457 = vmul.f32 %v3412, %v3449
        %v3458 = vmul.f32 %v3414, %v3450
        %v3459 = vmul.f32 %v3416, %v3451
        %v3460 = vmul.f32 %v3418, %v3452
        %v3461 = vmul.f32 %v3420, %v3453
        %v3462 = vmul.f32 %v3422, %v3454
        %3463 = vst [vmem:[%s344 + $0x5] sm:$0x1] %v3455
        %3464 = vst [vmem:[%s344 + $0xd] sm:$0x1] %v3456
        %3465 = vst [vmem:[%s344 + $0x15] sm:$0x1] %v3457
        %3466 = vst [vmem:[%s344 + $0x1d] sm:$0x1] %v3458
        %3467 = vst [vmem:[%s344 + $0x25] sm:$0x1] %v3459
        %3468 = vst [vmem:[%s344 + $0x2d] sm:$0x1] %v3460
        %3469 = vst [vmem:[%s344 + $0x35] sm:$0x1] %v3461
        %3470 = vst [vmem:[%s344 + $0x3d] sm:$0x1] %v3462
        %s3471 = scalar_lea.vmem %s308, 6 [#allocation4]
        %v3472 = vld [vmem:[%s3471] ss:$8 sm:$0xf]
        %s3473 = scalar_lea.vmem %s308, 38 [#allocation4]
        %v3474 = vld [vmem:[%s3473] ss:$8 sm:$0xf]
        %s3475 = scalar_lea.vmem %s308, 70 [#allocation4]
        %v3476 = vld [vmem:[%s3475] ss:$8 sm:$0xf]
        %s3477 = scalar_lea.vmem %s308, 102 [#allocation4]
        %v3478 = vld [vmem:[%s3477] ss:$8 sm:$0xf]
        %s3479 = scalar_lea.vmem %s308, 134 [#allocation4]
        %v3480 = vld [vmem:[%s3479] ss:$8 sm:$0xf]
        %s3481 = scalar_lea.vmem %s308, 166 [#allocation4]
        %v3482 = vld [vmem:[%s3481] ss:$8 sm:$0xf]
        %s3483 = scalar_lea.vmem %s308, 198 [#allocation4]
        %v3484 = vld [vmem:[%s3483] ss:$8 sm:$0xf]
        %s3485 = scalar_lea.vmem %s308, 230 [#allocation4]
        %v3486 = vld [vmem:[%s3485] ss:$8 sm:$0xf]
        %v3487 = vpack.c.bf16 %v3455, %v3455
        %v3488 = vpack.c.bf16 %v3456, %v3456
        %v3489 = vpack.c.bf16 %v3457, %v3457
        %v3490 = vpack.c.bf16 %v3458, %v3458
        %v3491 = vpack.c.bf16 %v3459, %v3459
        %v3492 = vpack.c.bf16 %v3460, %v3460
        %v3493 = vpack.c.bf16 %v3461, %v3461
        %v3494 = vpack.c.bf16 %v3462, %v3462
        %v3503 = vunpack.c.l.b16 %v3487
        %v3504 = vunpack.c.l.b16 %v3488
        %v3505 = vunpack.c.l.b16 %v3489
        %v3506 = vunpack.c.l.b16 %v3490
        %v3507 = vunpack.c.l.b16 %v3491
        %v3508 = vunpack.c.l.b16 %v3492
        %v3509 = vunpack.c.l.b16 %v3493
        %v3510 = vunpack.c.l.b16 %v3494
        %v3511 = vrot.slane %v3504, 7
        %v3512 = vsel %vm1095, %v3511, %v3503
        %v3513 = vrot.slane %v3505, 6
        %v3514 = vsel %vm1098, %v3513, %v3512
        %v3515 = vrot.slane %v3506, 5
        %v3516 = vsel %vm1101, %v3515, %v3514
        %v3517 = vrot.slane %v3507, 4
        %v3518 = vsel %vm1104, %v3517, %v3516
        %v3519 = vrot.slane %v3508, 3
        %v3520 = vsel %vm1107, %v3519, %v3518
        %v3521 = vrot.slane %v3509, 2
        %v3522 = vsel %vm1110, %v3521, %v3520
        %v3523 = vrot.slane %v3510, 1
        %v3524 = vsel %vm1113, %v3523, %v3522
        %v3525 = vpack.c.b16 %v3524, %v3524
        %3527 = vmatprep.subr.bf16.mxu0 %v507
        %3528 = vmatpush1.bf16.msra.mxu0 %v506
        %3529 = vmatprep.subr.bf16.mxu0 %v511
        %3530 = vmatpush1.bf16.msra.mxu0 %v510
        %3531 = vmatprep.subr.bf16.mxu0 %v515
        %3532 = vmatpush1.bf16.msra.mxu0 %v514
        %3533 = vmatprep.subr.bf16.mxu0 %v519
        %3534 = vmatpush1.bf16.msra.mxu0 %v518
        %3535 = vmatprep.subr.bf16.mxu0 %v523
        %3536 = vmatpush1.bf16.msra.mxu0 %v522
        %3537 = vmatprep.subr.bf16.mxu0 %v527
        %3538 = vmatpush1.bf16.msra.mxu0 %v526
        %3539 = vmatprep.subr.bf16.mxu0 %v531
        %3540 = vmatpush1.bf16.msra.mxu0 %v530
        %3541 = vmatprep.subr.bf16.mxu0 %v535
        %3542 = vmatpush1.bf16.msra.mxu0 %v534
        %3543 = vmatprep.subr.bf16.mxu0 0
        %3544 = vmatpush1.bf16.msra.mxu0 0
        %3545 = vmatprep.subr.bf16.mxu0 0
        %3546 = vmatpush1.bf16.msra.mxu0 0
        %3547 = vmatprep.subr.bf16.mxu0 0
        %3548 = vmatpush1.bf16.msra.mxu0 0
        %3549 = vmatprep.subr.bf16.mxu0 0
        %3550 = vmatpush1.bf16.msra.mxu0 0
        %3551 = vmatprep.subr.bf16.mxu0 0
        %3552 = vmatpush1.bf16.msra.mxu0 0
        %3553 = vmatprep.subr.bf16.mxu0 0
        %3554 = vmatpush1.bf16.msra.mxu0 0
        %3555 = vmatprep.subr.bf16.mxu0 0
        %3556 = vmatpush1.bf16.msra.mxu0 0
        %3557 = vmatprep.subr.bf16.mxu0 0
        %3558 = vmatpush1.bf16.msra.mxu0 0
        %3559 = vmatprep.mubr.bf16.mxu0 0
        %3560 = vmatmul.mubr.bf16.gmra.mrb[0].mxu0 %v3525
        %v3561 = vpop.f32.mrb[0].mxu0
        %v3562 = vadd.f32 0.0, %v3561
        %v3563 = vpop.f32.mrb[0].mxu0
        %v3564 = vadd.f32 0.0, %v3563
        %v3565 = vpop.f32.mrb[0].mxu0
        %v3566 = vpop.f32.mrb[0].mxu0
        %3567 = vdwg.mxu0
        %3568 = vmatprep.subr.bf16.mxu0 %v509
        %3569 = vmatpush1.bf16.msra.mxu0 %v508
        %3570 = vmatprep.subr.bf16.mxu0 %v513
        %3571 = vmatpush1.bf16.msra.mxu0 %v512
        %3572 = vmatprep.subr.bf16.mxu0 %v517
        %3573 = vmatpush1.bf16.msra.mxu0 %v516
        %3574 = vmatprep.subr.bf16.mxu0 %v521
        %3575 = vmatpush1.bf16.msra.mxu0 %v520
        %3576 = vmatprep.subr.bf16.mxu0 %v525
        %3577 = vmatpush1.bf16.msra.mxu0 %v524
        %3578 = vmatprep.subr.bf16.mxu0 %v529
        %3579 = vmatpush1.bf16.msra.mxu0 %v528
        %3580 = vmatprep.subr.bf16.mxu0 %v533
        %3581 = vmatpush1.bf16.msra.mxu0 %v532
        %3582 = vmatprep.subr.bf16.mxu0 %v537
        %3583 = vmatpush1.bf16.msra.mxu0 %v536
        %3584 = vmatprep.subr.bf16.mxu0 0
        %3585 = vmatpush1.bf16.msra.mxu0 0
        %3586 = vmatprep.subr.bf16.mxu0 0
        %3587 = vmatpush1.bf16.msra.mxu0 0
        %3588 = vmatprep.subr.bf16.mxu0 0
        %3589 = vmatpush1.bf16.msra.mxu0 0
        %3590 = vmatprep.subr.bf16.mxu0 0
        %3591 = vmatpush1.bf16.msra.mxu0 0
        %3592 = vmatprep.subr.bf16.mxu0 0
        %3593 = vmatpush1.bf16.msra.mxu0 0
        %3594 = vmatprep.subr.bf16.mxu0 0
        %3595 = vmatpush1.bf16.msra.mxu0 0
        %3596 = vmatprep.subr.bf16.mxu0 0
        %3597 = vmatpush1.bf16.msra.mxu0 0
        %3598 = vmatprep.subr.bf16.mxu0 0
        %3599 = vmatpush1.bf16.msra.mxu0 0
        %3600 = vmatprep.mubr.bf16.mxu0 0
        %3601 = vmatmul.mubr.bf16.gmra.mrb[0].mxu0 %v3525
        %v3602 = vpop.f32.mrb[0].mxu0
        %v3603 = vadd.f32 0.0, %v3602
        %v3604 = vpop.f32.mrb[0].mxu0
        %v3605 = vadd.f32 0.0, %v3604
        %v3606 = vpop.f32.mrb[0].mxu0
        %v3607 = vpop.f32.mrb[0].mxu0
        %3608 = vdwg.mxu0
        %v3613 = vcombine.low %v3562, %v3564
        %v3614 = vcombine.high %v3562, %v3564
        %v3615 = vcombine.low %v3603, %v3605
        %v3616 = vcombine.high %v3603, %v3605
        %v3618 = vunpack.c.l.s4 1966171168
        %v3619 = vunpack.c.0.s8 %v3618
        %v3620 = vlaneseq
        %v3621 = vshrl.u32 %v3620, 7
        %v3622 = vsub.s32 %v3619, %v3621
        %v3623 = vrot.slane %v3613, %v3622
        %v3625 = vunpack.c.l.s4 1966171168
        %v3626 = vunpack.c.0.s8 %v3625
        %v3627 = vlaneseq
        %v3628 = vshrl.u32 %v3627, 7
        %v3629 = vsub.s32 %v3626, %v3628
        %v3630 = vrot.slane %v3614, %v3629
        %v3632 = vunpack.c.l.s4 1966171168
        %v3633 = vunpack.c.0.s8 %v3632
        %v3634 = vlaneseq
        %v3635 = vshrl.u32 %v3634, 7
        %v3636 = vsub.s32 %v3633, %v3635
        %v3637 = vrot.slane %v3615, %v3636
        %v3639 = vunpack.c.l.s4 1966171168
        %v3640 = vunpack.c.0.s8 %v3639
        %v3641 = vlaneseq
        %v3642 = vshrl.u32 %v3641, 7
        %v3643 = vsub.s32 %v3640, %v3642
        %v3644 = vrot.slane %v3616, %v3643
        %v3645 = vcombine.low %v3623, %v3637
        %v3646 = vcombine.high %v3623, %v3637
        %v3647 = vcombine.low %v3630, %v3644
        %v3648 = vcombine.high %v3630, %v3644
        %v3650 = vunpack.c.l.s4 1966171168
        %v3651 = vunpack.c.0.s8 %v3650
        %v3652 = vlaneseq
        %v3653 = vshrl.u32 %v3652, 7
        %v3654 = vsub.s32 %v3651, %v3653
        %v3655 = vrot.slane %v3645, %v3654
        %v3657 = vunpack.c.l.s4 1966171168
        %v3658 = vunpack.c.0.s8 %v3657
        %v3659 = vlaneseq
        %v3660 = vshrl.u32 %v3659, 7
        %v3661 = vsub.s32 %v3658, %v3660
        %v3662 = vrot.slane %v3647, %v3661
        %v3664 = vunpack.c.l.s4 1966171168
        %v3665 = vunpack.c.0.s8 %v3664
        %v3666 = vlaneseq
        %v3667 = vshrl.u32 %v3666, 7
        %v3668 = vsub.s32 %v3665, %v3667
        %v3669 = vrot.slane %v3646, %v3668
        %v3671 = vunpack.c.l.s4 1966171168
        %v3672 = vunpack.c.0.s8 %v3671
        %v3673 = vlaneseq
        %v3674 = vshrl.u32 %v3673, 7
        %v3675 = vsub.s32 %v3672, %v3674
        %v3676 = vrot.slane %v3648, %v3675
        %v3677 = vcombine.high %v3655, %v3655
        %v3678 = vcombine.high %v3662, %v3662
        %v3679 = vcombine.high %v3669, %v3669
        %v3680 = vcombine.high %v3676, %v3676
        %v3689 = vadd.f32 %v3472, %v3655
        %v3690 = vadd.f32 %v3474, %v3669
        %v3691 = vadd.f32 %v3476, %v3677
        %v3692 = vadd.f32 %v3478, %v3679
        %v3693 = vadd.f32 %v3480, %v3662
        %v3694 = vadd.f32 %v3482, %v3676
        %v3695 = vadd.f32 %v3484, %v3678
        %v3696 = vadd.f32 %v3486, %v3680
        %v3697 = vxor.u32 %v3689, 2147483648
        %v3698 = vxor.u32 %v3690, 2147483648
        %v3699 = vxor.u32 %v3691, 2147483648
        %v3700 = vxor.u32 %v3692, 2147483648
        %v3701 = vxor.u32 %v3693, 2147483648
        %v3702 = vxor.u32 %v3694, 2147483648
        %v3703 = vxor.u32 %v3695, 2147483648
        %v3704 = vxor.u32 %v3696, 2147483648
        %v3705 = vmul.f32 %v3697, 1.442695
        %v3706 = vpow.pop %v3705
        %v3707 = vmul.f32 %v3698, 1.442695
        %v3708 = vpow.pop %v3707
        %v3709 = vmul.f32 %v3699, 1.442695
        %v3710 = vpow.pop %v3709
        %v3711 = vmul.f32 %v3700, 1.442695
        %v3712 = vpow.pop %v3711
        %v3713 = vmul.f32 %v3701, 1.442695
        %v3714 = vpow.pop %v3713
        %v3715 = vmul.f32 %v3702, 1.442695
        %v3716 = vpow.pop %v3715
        %v3717 = vmul.f32 %v3703, 1.442695
        %v3718 = vpow.pop %v3717
        %v3719 = vmul.f32 %v3704, 1.442695
        %v3720 = vpow.pop %v3719
        %v3721 = vadd.f32 %v3706, 1.0
        %v3722 = vadd.f32 %v3708, 1.0
        %v3723 = vadd.f32 %v3710, 1.0
        %v3724 = vadd.f32 %v3712, 1.0
        %v3725 = vadd.f32 %v3714, 1.0
        %v3726 = vadd.f32 %v3716, 1.0
        %v3727 = vadd.f32 %v3718, 1.0
        %v3728 = vadd.f32 %v3720, 1.0
        %v3729 = vrcp.pop %v3721
        %v3730 = vmul.f32 1.0, %v3729
        %v3731 = vrcp.pop %v3722
        %v3732 = vmul.f32 1.0, %v3731
        %v3733 = vrcp.pop %v3723
        %v3734 = vmul.f32 1.0, %v3733
        %v3735 = vrcp.pop %v3724
        %v3736 = vmul.f32 1.0, %v3735
        %v3737 = vrcp.pop %v3725
        %v3738 = vmul.f32 1.0, %v3737
        %v3739 = vrcp.pop %v3726
        %v3740 = vmul.f32 1.0, %v3739
        %v3741 = vrcp.pop %v3727
        %v3742 = vmul.f32 1.0, %v3741
        %v3743 = vrcp.pop %v3728
        %v3744 = vmul.f32 1.0, %v3743
        %v3753 = vrot.slane %v3689, 1
        %v3754 = vrot.slane %v3690, 1
        %v3755 = vrot.slane %v3691, 1
        %v3756 = vrot.slane %v3692, 1
        %v3757 = vrot.slane %v3693, 1
        %v3758 = vrot.slane %v3694, 1
        %v3759 = vrot.slane %v3695, 1
        %v3760 = vrot.slane %v3696, 1
        %v3769 = vxor.u32 %v3753, 2147483648
        %v3770 = vxor.u32 %v3754, 2147483648
        %v3771 = vxor.u32 %v3755, 2147483648
        %v3772 = vxor.u32 %v3756, 2147483648
        %v3773 = vxor.u32 %v3757, 2147483648
        %v3774 = vxor.u32 %v3758, 2147483648
        %v3775 = vxor.u32 %v3759, 2147483648
        %v3776 = vxor.u32 %v3760, 2147483648
        %v3777 = vmul.f32 %v3769, 1.442695
        %v3778 = vpow.pop %v3777
        %v3779 = vmul.f32 %v3770, 1.442695
        %v3780 = vpow.pop %v3779
        %v3781 = vmul.f32 %v3771, 1.442695
        %v3782 = vpow.pop %v3781
        %v3783 = vmul.f32 %v3772, 1.442695
        %v3784 = vpow.pop %v3783
        %v3785 = vmul.f32 %v3773, 1.442695
        %v3786 = vpow.pop %v3785
        %v3787 = vmul.f32 %v3774, 1.442695
        %v3788 = vpow.pop %v3787
        %v3789 = vmul.f32 %v3775, 1.442695
        %v3790 = vpow.pop %v3789
        %v3791 = vmul.f32 %v3776, 1.442695
        %v3792 = vpow.pop %v3791
        %v3793 = vadd.f32 %v3778, 1.0
        %v3794 = vadd.f32 %v3780, 1.0
        %v3795 = vadd.f32 %v3782, 1.0
        %v3796 = vadd.f32 %v3784, 1.0
        %v3797 = vadd.f32 %v3786, 1.0
        %v3798 = vadd.f32 %v3788, 1.0
        %v3799 = vadd.f32 %v3790, 1.0
        %v3800 = vadd.f32 %v3792, 1.0
        %v3801 = vrcp.pop %v3793
        %v3802 = vmul.f32 1.0, %v3801
        %v3803 = vrcp.pop %v3794
        %v3804 = vmul.f32 1.0, %v3803
        %v3805 = vrcp.pop %v3795
        %v3806 = vmul.f32 1.0, %v3805
        %v3807 = vrcp.pop %v3796
        %v3808 = vmul.f32 1.0, %v3807
        %v3809 = vrcp.pop %v3797
        %v3810 = vmul.f32 1.0, %v3809
        %v3811 = vrcp.pop %v3798
        %v3812 = vmul.f32 1.0, %v3811
        %v3813 = vrcp.pop %v3799
        %v3814 = vmul.f32 1.0, %v3813
        %v3815 = vrcp.pop %v3800
        %v3816 = vmul.f32 1.0, %v3815
        %v3817 = vrot.slane %v3689, 2
        %v3818 = vrot.slane %v3690, 2
        %v3819 = vrot.slane %v3691, 2
        %v3820 = vrot.slane %v3692, 2
        %v3821 = vrot.slane %v3693, 2
        %v3822 = vrot.slane %v3694, 2
        %v3823 = vrot.slane %v3695, 2
        %v3824 = vrot.slane %v3696, 2
        %v3833 = vtanh.pop %v3817
        %v3834 = vtanh.pop %v3818
        %v3835 = vtanh.pop %v3819
        %v3836 = vtanh.pop %v3820
        %v3837 = vtanh.pop %v3821
        %v3838 = vtanh.pop %v3822
        %v3839 = vtanh.pop %v3823
        %v3840 = vtanh.pop %v3824
        %v3841 = vrot.slane %v3689, 3
        %v3842 = vrot.slane %v3690, 3
        %v3843 = vrot.slane %v3691, 3
        %v3844 = vrot.slane %v3692, 3
        %v3845 = vrot.slane %v3693, 3
        %v3846 = vrot.slane %v3694, 3
        %v3847 = vrot.slane %v3695, 3
        %v3848 = vrot.slane %v3696, 3
        %v3857 = vxor.u32 %v3841, 2147483648
        %v3858 = vxor.u32 %v3842, 2147483648
        %v3859 = vxor.u32 %v3843, 2147483648
        %v3860 = vxor.u32 %v3844, 2147483648
        %v3861 = vxor.u32 %v3845, 2147483648
        %v3862 = vxor.u32 %v3846, 2147483648
        %v3863 = vxor.u32 %v3847, 2147483648
        %v3864 = vxor.u32 %v3848, 2147483648
        %v3865 = vmul.f32 %v3857, 1.442695
        %v3866 = vpow.pop %v3865
        %v3867 = vmul.f32 %v3858, 1.442695
        %v3868 = vpow.pop %v3867
        %v3869 = vmul.f32 %v3859, 1.442695
        %v3870 = vpow.pop %v3869
        %v3871 = vmul.f32 %v3860, 1.442695
        %v3872 = vpow.pop %v3871
        %v3873 = vmul.f32 %v3861, 1.442695
        %v3874 = vpow.pop %v3873
        %v3875 = vmul.f32 %v3862, 1.442695
        %v3876 = vpow.pop %v3875
        %v3877 = vmul.f32 %v3863, 1.442695
        %v3878 = vpow.pop %v3877
        %v3879 = vmul.f32 %v3864, 1.442695
        %v3880 = vpow.pop %v3879
        %v3881 = vadd.f32 %v3866, 1.0
        %v3882 = vadd.f32 %v3868, 1.0
        %v3883 = vadd.f32 %v3870, 1.0
        %v3884 = vadd.f32 %v3872, 1.0
        %v3885 = vadd.f32 %v3874, 1.0
        %v3886 = vadd.f32 %v3876, 1.0
        %v3887 = vadd.f32 %v3878, 1.0
        %v3888 = vadd.f32 %v3880, 1.0
        %v3889 = vrcp.pop %v3881
        %v3890 = vmul.f32 1.0, %v3889
        %v3891 = vrcp.pop %v3882
        %v3892 = vmul.f32 1.0, %v3891
        %v3893 = vrcp.pop %v3883
        %v3894 = vmul.f32 1.0, %v3893
        %v3895 = vrcp.pop %v3884
        %v3896 = vmul.f32 1.0, %v3895
        %v3897 = vrcp.pop %v3885
        %v3898 = vmul.f32 1.0, %v3897
        %v3899 = vrcp.pop %v3886
        %v3900 = vmul.f32 1.0, %v3899
        %v3901 = vrcp.pop %v3887
        %v3902 = vmul.f32 1.0, %v3901
        %v3903 = vrcp.pop %v3888
        %v3904 = vmul.f32 1.0, %v3903
        %v3905 = vmul.f32 %v3802, %v3439
        %v3906 = vmul.f32 %v3804, %v3440
        %v3907 = vmul.f32 %v3806, %v3441
        %v3908 = vmul.f32 %v3808, %v3442
        %v3909 = vmul.f32 %v3810, %v3443
        %v3910 = vmul.f32 %v3812, %v3444
        %v3911 = vmul.f32 %v3814, %v3445
        %v3912 = vmul.f32 %v3816, %v3446
        %v3913 = vmul.f32 %v3730, %v3833
        %v3914 = vmul.f32 %v3732, %v3834
        %v3915 = vmul.f32 %v3734, %v3835
        %v3916 = vmul.f32 %v3736, %v3836
        %v3917 = vmul.f32 %v3738, %v3837
        %v3918 = vmul.f32 %v3740, %v3838
        %v3919 = vmul.f32 %v3742, %v3839
        %v3920 = vmul.f32 %v3744, %v3840
        %v3921 = vadd.f32 %v3905, %v3913
        %v3922 = vadd.f32 %v3906, %v3914
        %v3923 = vadd.f32 %v3907, %v3915
        %v3924 = vadd.f32 %v3908, %v3916
        %v3925 = vadd.f32 %v3909, %v3917
        %v3926 = vadd.f32 %v3910, %v3918
        %v3927 = vadd.f32 %v3911, %v3919
        %v3928 = vadd.f32 %v3912, %v3920
        %v3929 = vtanh.pop %v3921
        %v3930 = vtanh.pop %v3922
        %v3931 = vtanh.pop %v3923
        %v3932 = vtanh.pop %v3924
        %v3933 = vtanh.pop %v3925
        %v3934 = vtanh.pop %v3926
        %v3935 = vtanh.pop %v3927
        %v3936 = vtanh.pop %v3928
        %v3937 = vmul.f32 %v3890, %v3929
        %v3938 = vmul.f32 %v3892, %v3930
        %v3939 = vmul.f32 %v3894, %v3931
        %v3940 = vmul.f32 %v3896, %v3932
        %v3941 = vmul.f32 %v3898, %v3933
        %v3942 = vmul.f32 %v3900, %v3934
        %v3943 = vmul.f32 %v3902, %v3935
        %v3944 = vmul.f32 %v3904, %v3936
        %3945 = vst [vmem:[%s344 + $0x6] sm:$0x1] %v3937
        %3946 = vst [vmem:[%s344 + $0xe] sm:$0x1] %v3938
        %3947 = vst [vmem:[%s344 + $0x16] sm:$0x1] %v3939
        %3948 = vst [vmem:[%s344 + $0x1e] sm:$0x1] %v3940
        %3949 = vst [vmem:[%s344 + $0x26] sm:$0x1] %v3941
        %3950 = vst [vmem:[%s344 + $0x2e] sm:$0x1] %v3942
        %3951 = vst [vmem:[%s344 + $0x36] sm:$0x1] %v3943
        %3952 = vst [vmem:[%s344 + $0x3e] sm:$0x1] %v3944
        %s3953 = scalar_lea.vmem %s308, 7 [#allocation4]
        %v3954 = vld [vmem:[%s3953] ss:$8 sm:$0xf]
        %s3955 = scalar_lea.vmem %s308, 39 [#allocation4]
        %v3956 = vld [vmem:[%s3955] ss:$8 sm:$0xf]
        %s3957 = scalar_lea.vmem %s308, 71 [#allocation4]
        %v3958 = vld [vmem:[%s3957] ss:$8 sm:$0xf]
        %s3959 = scalar_lea.vmem %s308, 103 [#allocation4]
        %v3960 = vld [vmem:[%s3959] ss:$8 sm:$0xf]
        %s3961 = scalar_lea.vmem %s308, 135 [#allocation4]
        %v3962 = vld [vmem:[%s3961] ss:$8 sm:$0xf]
        %s3963 = scalar_lea.vmem %s308, 167 [#allocation4]
        %v3964 = vld [vmem:[%s3963] ss:$8 sm:$0xf]
        %s3965 = scalar_lea.vmem %s308, 199 [#allocation4]
        %v3966 = vld [vmem:[%s3965] ss:$8 sm:$0xf]
        %s3967 = scalar_lea.vmem %s308, 231 [#allocation4]
        %v3968 = vld [vmem:[%s3967] ss:$8 sm:$0xf]
        %v3969 = vpack.c.bf16 %v3937, %v3937
        %v3970 = vpack.c.bf16 %v3938, %v3938
        %v3971 = vpack.c.bf16 %v3939, %v3939
        %v3972 = vpack.c.bf16 %v3940, %v3940
        %v3973 = vpack.c.bf16 %v3941, %v3941
        %v3974 = vpack.c.bf16 %v3942, %v3942
        %v3975 = vpack.c.bf16 %v3943, %v3943
        %v3976 = vpack.c.bf16 %v3944, %v3944
        %v3985 = vunpack.c.l.b16 %v3969
        %v3986 = vunpack.c.l.b16 %v3970
        %v3987 = vunpack.c.l.b16 %v3971
        %v3988 = vunpack.c.l.b16 %v3972
        %v3989 = vunpack.c.l.b16 %v3973
        %v3990 = vunpack.c.l.b16 %v3974
        %v3991 = vunpack.c.l.b16 %v3975
        %v3992 = vunpack.c.l.b16 %v3976
        %v3993 = vrot.slane %v3986, 7
        %v3994 = vsel %vm1095, %v3993, %v3985
        %v3995 = vrot.slane %v3987, 6
        %v3996 = vsel %vm1098, %v3995, %v3994
        %v3997 = vrot.slane %v3988, 5
        %v3998 = vsel %vm1101, %v3997, %v3996
        %v3999 = vrot.slane %v3989, 4
        %v4000 = vsel %vm1104, %v3999, %v3998
        %v4001 = vrot.slane %v3990, 3
        %v4002 = vsel %vm1107, %v4001, %v4000
        %v4003 = vrot.slane %v3991, 2
        %v4004 = vsel %vm1110, %v4003, %v4002
        %v4005 = vrot.slane %v3992, 1
        %v4006 = vsel %vm1113, %v4005, %v4004
        %v4007 = vpack.c.b16 %v4006, %v4006
        %4009 = vmatprep.subr.bf16.mxu0 %v507
        %4010 = vmatpush1.bf16.msra.mxu0 %v506
        %4011 = vmatprep.subr.bf16.mxu0 %v511
        %4012 = vmatpush1.bf16.msra.mxu0 %v510
        %4013 = vmatprep.subr.bf16.mxu0 %v515
        %4014 = vmatpush1.bf16.msra.mxu0 %v514
        %4015 = vmatprep.subr.bf16.mxu0 %v519
        %4016 = vmatpush1.bf16.msra.mxu0 %v518
        %4017 = vmatprep.subr.bf16.mxu0 %v523
        %4018 = vmatpush1.bf16.msra.mxu0 %v522
        %4019 = vmatprep.subr.bf16.mxu0 %v527
        %4020 = vmatpush1.bf16.msra.mxu0 %v526
        %4021 = vmatprep.subr.bf16.mxu0 %v531
        %4022 = vmatpush1.bf16.msra.mxu0 %v530
        %4023 = vmatprep.subr.bf16.mxu0 %v535
        %4024 = vmatpush1.bf16.msra.mxu0 %v534
        %4025 = vmatprep.subr.bf16.mxu0 0
        %4026 = vmatpush1.bf16.msra.mxu0 0
        %4027 = vmatprep.subr.bf16.mxu0 0
        %4028 = vmatpush1.bf16.msra.mxu0 0
        %4029 = vmatprep.subr.bf16.mxu0 0
        %4030 = vmatpush1.bf16.msra.mxu0 0
        %4031 = vmatprep.subr.bf16.mxu0 0
        %4032 = vmatpush1.bf16.msra.mxu0 0
        %4033 = vmatprep.subr.bf16.mxu0 0
        %4034 = vmatpush1.bf16.msra.mxu0 0
        %4035 = vmatprep.subr.bf16.mxu0 0
        %4036 = vmatpush1.bf16.msra.mxu0 0
        %4037 = vmatprep.subr.bf16.mxu0 0
        %4038 = vmatpush1.bf16.msra.mxu0 0
        %4039 = vmatprep.subr.bf16.mxu0 0
        %4040 = vmatpush1.bf16.msra.mxu0 0
        %4041 = vmatprep.mubr.bf16.mxu0 0
        %4042 = vmatmul.mubr.bf16.gmra.mrb[0].mxu0 %v4007
        %v4043 = vpop.f32.mrb[0].mxu0
        %v4044 = vadd.f32 0.0, %v4043
        %v4045 = vpop.f32.mrb[0].mxu0
        %v4046 = vadd.f32 0.0, %v4045
        %v4047 = vpop.f32.mrb[0].mxu0
        %v4048 = vpop.f32.mrb[0].mxu0
        %4049 = vdwg.mxu0
        %4050 = vmatprep.subr.bf16.mxu0 %v509
        %4051 = vmatpush1.bf16.msra.mxu0 %v508
        %4052 = vmatprep.subr.bf16.mxu0 %v513
        %4053 = vmatpush1.bf16.msra.mxu0 %v512
        %4054 = vmatprep.subr.bf16.mxu0 %v517
        %4055 = vmatpush1.bf16.msra.mxu0 %v516
        %4056 = vmatprep.subr.bf16.mxu0 %v521
        %4057 = vmatpush1.bf16.msra.mxu0 %v520
        %4058 = vmatprep.subr.bf16.mxu0 %v525
        %4059 = vmatpush1.bf16.msra.mxu0 %v524
        %4060 = vmatprep.subr.bf16.mxu0 %v529
        %4061 = vmatpush1.bf16.msra.mxu0 %v528
        %4062 = vmatprep.subr.bf16.mxu0 %v533
        %4063 = vmatpush1.bf16.msra.mxu0 %v532
        %4064 = vmatprep.subr.bf16.mxu0 %v537
        %4065 = vmatpush1.bf16.msra.mxu0 %v536
        %4066 = vmatprep.subr.bf16.mxu0 0
        %4067 = vmatpush1.bf16.msra.mxu0 0
        %4068 = vmatprep.subr.bf16.mxu0 0
        %4069 = vmatpush1.bf16.msra.mxu0 0
        %4070 = vmatprep.subr.bf16.mxu0 0
        %4071 = vmatpush1.bf16.msra.mxu0 0
        %4072 = vmatprep.subr.bf16.mxu0 0
        %4073 = vmatpush1.bf16.msra.mxu0 0
        %4074 = vmatprep.subr.bf16.mxu0 0
        %4075 = vmatpush1.bf16.msra.mxu0 0
        %4076 = vmatprep.subr.bf16.mxu0 0
        %4077 = vmatpush1.bf16.msra.mxu0 0
        %4078 = vmatprep.subr.bf16.mxu0 0
        %4079 = vmatpush1.bf16.msra.mxu0 0
        %4080 = vmatprep.subr.bf16.mxu0 0
        %4081 = vmatpush1.bf16.msra.mxu0 0
        %4082 = vmatprep.mubr.bf16.mxu0 0
        %4083 = vmatmul.mubr.bf16.gmra.mrb[0].mxu0 %v4007
        %v4084 = vpop.f32.mrb[0].mxu0
        %v4085 = vadd.f32 0.0, %v4084
        %v4086 = vpop.f32.mrb[0].mxu0
        %v4087 = vadd.f32 0.0, %v4086
        %v4088 = vpop.f32.mrb[0].mxu0
        %v4089 = vpop.f32.mrb[0].mxu0
        %4090 = vdwg.mxu0
        %v4095 = vcombine.low %v4044, %v4046
        %v4096 = vcombine.high %v4044, %v4046
        %v4097 = vcombine.low %v4085, %v4087
        %v4098 = vcombine.high %v4085, %v4087
        %v4100 = vunpack.c.l.s4 1966171168
        %v4101 = vunpack.c.0.s8 %v4100
        %v4102 = vlaneseq
        %v4103 = vshrl.u32 %v4102, 7
        %v4104 = vsub.s32 %v4101, %v4103
        %v4105 = vrot.slane %v4095, %v4104
        %v4107 = vunpack.c.l.s4 1966171168
        %v4108 = vunpack.c.0.s8 %v4107
        %v4109 = vlaneseq
        %v4110 = vshrl.u32 %v4109, 7
        %v4111 = vsub.s32 %v4108, %v4110
        %v4112 = vrot.slane %v4096, %v4111
        %v4114 = vunpack.c.l.s4 1966171168
        %v4115 = vunpack.c.0.s8 %v4114
        %v4116 = vlaneseq
        %v4117 = vshrl.u32 %v4116, 7
        %v4118 = vsub.s32 %v4115, %v4117
        %v4119 = vrot.slane %v4097, %v4118
        %v4121 = vunpack.c.l.s4 1966171168
        %v4122 = vunpack.c.0.s8 %v4121
        %v4123 = vlaneseq
        %v4124 = vshrl.u32 %v4123, 7
        %v4125 = vsub.s32 %v4122, %v4124
        %v4126 = vrot.slane %v4098, %v4125
        %v4127 = vcombine.low %v4105, %v4119
        %v4128 = vcombine.high %v4105, %v4119
        %v4129 = vcombine.low %v4112, %v4126
        %v4130 = vcombine.high %v4112, %v4126
        %v4132 = vunpack.c.l.s4 1966171168
        %v4133 = vunpack.c.0.s8 %v4132
        %v4134 = vlaneseq
        %v4135 = vshrl.u32 %v4134, 7
        %v4136 = vsub.s32 %v4133, %v4135
        %v4137 = vrot.slane %v4127, %v4136
        %v4139 = vunpack.c.l.s4 1966171168
        %v4140 = vunpack.c.0.s8 %v4139
        %v4141 = vlaneseq
        %v4142 = vshrl.u32 %v4141, 7
        %v4143 = vsub.s32 %v4140, %v4142
        %v4144 = vrot.slane %v4129, %v4143
        %v4146 = vunpack.c.l.s4 1966171168
        %v4147 = vunpack.c.0.s8 %v4146
        %v4148 = vlaneseq
        %v4149 = vshrl.u32 %v4148, 7
        %v4150 = vsub.s32 %v4147, %v4149
        %v4151 = vrot.slane %v4128, %v4150
        %v4153 = vunpack.c.l.s4 1966171168
        %v4154 = vunpack.c.0.s8 %v4153
        %v4155 = vlaneseq
        %v4156 = vshrl.u32 %v4155, 7
        %v4157 = vsub.s32 %v4154, %v4156
        %v4158 = vrot.slane %v4130, %v4157
        %v4159 = vcombine.high %v4137, %v4137
        %v4160 = vcombine.high %v4144, %v4144
        %v4161 = vcombine.high %v4151, %v4151
        %v4162 = vcombine.high %v4158, %v4158
        %v4171 = vadd.f32 %v3954, %v4137
        %v4172 = vadd.f32 %v3956, %v4151
        %v4173 = vadd.f32 %v3958, %v4159
        %v4174 = vadd.f32 %v3960, %v4161
        %v4175 = vadd.f32 %v3962, %v4144
        %v4176 = vadd.f32 %v3964, %v4158
        %v4177 = vadd.f32 %v3966, %v4160
        %v4178 = vadd.f32 %v3968, %v4162
        %v4179 = vxor.u32 %v4171, 2147483648
        %v4180 = vxor.u32 %v4172, 2147483648
        %v4181 = vxor.u32 %v4173, 2147483648
        %v4182 = vxor.u32 %v4174, 2147483648
        %v4183 = vxor.u32 %v4175, 2147483648
        %v4184 = vxor.u32 %v4176, 2147483648
        %v4185 = vxor.u32 %v4177, 2147483648
        %v4186 = vxor.u32 %v4178, 2147483648
        %v4187 = vmul.f32 %v4179, 1.442695
        %v4188 = vpow.pop %v4187
        %v4189 = vmul.f32 %v4180, 1.442695
        %v4190 = vpow.pop %v4189
        %v4191 = vmul.f32 %v4181, 1.442695
        %v4192 = vpow.pop %v4191
        %v4193 = vmul.f32 %v4182, 1.442695
        %v4194 = vpow.pop %v4193
        %v4195 = vmul.f32 %v4183, 1.442695
        %v4196 = vpow.pop %v4195
        %v4197 = vmul.f32 %v4184, 1.442695
        %v4198 = vpow.pop %v4197
        %v4199 = vmul.f32 %v4185, 1.442695
        %v4200 = vpow.pop %v4199
        %v4201 = vmul.f32 %v4186, 1.442695
        %v4202 = vpow.pop %v4201
        %v4203 = vadd.f32 %v4188, 1.0
        %v4204 = vadd.f32 %v4190, 1.0
        %v4205 = vadd.f32 %v4192, 1.0
        %v4206 = vadd.f32 %v4194, 1.0
        %v4207 = vadd.f32 %v4196, 1.0
        %v4208 = vadd.f32 %v4198, 1.0
        %v4209 = vadd.f32 %v4200, 1.0
        %v4210 = vadd.f32 %v4202, 1.0
        %v4211 = vrcp.pop %v4203
        %v4212 = vmul.f32 1.0, %v4211
        %v4213 = vrcp.pop %v4204
        %v4214 = vmul.f32 1.0, %v4213
        %v4215 = vrcp.pop %v4205
        %v4216 = vmul.f32 1.0, %v4215
        %v4217 = vrcp.pop %v4206
        %v4218 = vmul.f32 1.0, %v4217
        %v4219 = vrcp.pop %v4207
        %v4220 = vmul.f32 1.0, %v4219
        %v4221 = vrcp.pop %v4208
        %v4222 = vmul.f32 1.0, %v4221
        %v4223 = vrcp.pop %v4209
        %v4224 = vmul.f32 1.0, %v4223
        %v4225 = vrcp.pop %v4210
        %v4226 = vmul.f32 1.0, %v4225
        %v4235 = vrot.slane %v4171, 1
        %v4236 = vrot.slane %v4172, 1
        %v4237 = vrot.slane %v4173, 1
        %v4238 = vrot.slane %v4174, 1
        %v4239 = vrot.slane %v4175, 1
        %v4240 = vrot.slane %v4176, 1
        %v4241 = vrot.slane %v4177, 1
        %v4242 = vrot.slane %v4178, 1
        %v4251 = vxor.u32 %v4235, 2147483648
        %v4252 = vxor.u32 %v4236, 2147483648
        %v4253 = vxor.u32 %v4237, 2147483648
        %v4254 = vxor.u32 %v4238, 2147483648
        %v4255 = vxor.u32 %v4239, 2147483648
        %v4256 = vxor.u32 %v4240, 2147483648
        %v4257 = vxor.u32 %v4241, 2147483648
        %v4258 = vxor.u32 %v4242, 2147483648
        %v4259 = vmul.f32 %v4251, 1.442695
        %v4260 = vpow.pop %v4259
        %v4261 = vmul.f32 %v4252, 1.442695
        %v4262 = vpow.pop %v4261
        %v4263 = vmul.f32 %v4253, 1.442695
        %v4264 = vpow.pop %v4263
        %v4265 = vmul.f32 %v4254, 1.442695
        %v4266 = vpow.pop %v4265
        %v4267 = vmul.f32 %v4255, 1.442695
        %v4268 = vpow.pop %v4267
        %v4269 = vmul.f32 %v4256, 1.442695
        %v4270 = vpow.pop %v4269
        %v4271 = vmul.f32 %v4257, 1.442695
        %v4272 = vpow.pop %v4271
        %v4273 = vmul.f32 %v4258, 1.442695
        %v4274 = vpow.pop %v4273
        %v4275 = vadd.f32 %v4260, 1.0
        %v4276 = vadd.f32 %v4262, 1.0
        %v4277 = vadd.f32 %v4264, 1.0
        %v4278 = vadd.f32 %v4266, 1.0
        %v4279 = vadd.f32 %v4268, 1.0
        %v4280 = vadd.f32 %v4270, 1.0
        %v4281 = vadd.f32 %v4272, 1.0
        %v4282 = vadd.f32 %v4274, 1.0
        %v4283 = vrcp.pop %v4275
        %v4284 = vmul.f32 1.0, %v4283
        %v4285 = vrcp.pop %v4276
        %v4286 = vmul.f32 1.0, %v4285
        %v4287 = vrcp.pop %v4277
        %v4288 = vmul.f32 1.0, %v4287
        %v4289 = vrcp.pop %v4278
        %v4290 = vmul.f32 1.0, %v4289
        %v4291 = vrcp.pop %v4279
        %v4292 = vmul.f32 1.0, %v4291
        %v4293 = vrcp.pop %v4280
        %v4294 = vmul.f32 1.0, %v4293
        %v4295 = vrcp.pop %v4281
        %v4296 = vmul.f32 1.0, %v4295
        %v4297 = vrcp.pop %v4282
        %v4298 = vmul.f32 1.0, %v4297
        %v4299 = vrot.slane %v4171, 2
        %v4300 = vrot.slane %v4172, 2
        %v4301 = vrot.slane %v4173, 2
        %v4302 = vrot.slane %v4174, 2
        %v4303 = vrot.slane %v4175, 2
        %v4304 = vrot.slane %v4176, 2
        %v4305 = vrot.slane %v4177, 2
        %v4306 = vrot.slane %v4178, 2
        %v4315 = vtanh.pop %v4299
        %v4316 = vtanh.pop %v4300
        %v4317 = vtanh.pop %v4301
        %v4318 = vtanh.pop %v4302
        %v4319 = vtanh.pop %v4303
        %v4320 = vtanh.pop %v4304
        %v4321 = vtanh.pop %v4305
        %v4322 = vtanh.pop %v4306
        %v4323 = vrot.slane %v4171, 3
        %v4324 = vrot.slane %v4172, 3
        %v4325 = vrot.slane %v4173, 3
        %v4326 = vrot.slane %v4174, 3
        %v4327 = vrot.slane %v4175, 3
        %v4328 = vrot.slane %v4176, 3
        %v4329 = vrot.slane %v4177, 3
        %v4330 = vrot.slane %v4178, 3
        %v4339 = vxor.u32 %v4323, 2147483648
        %v4340 = vxor.u32 %v4324, 2147483648
        %v4341 = vxor.u32 %v4325, 2147483648
        %v4342 = vxor.u32 %v4326, 2147483648
        %v4343 = vxor.u32 %v4327, 2147483648
        %v4344 = vxor.u32 %v4328, 2147483648
        %v4345 = vxor.u32 %v4329, 2147483648
        %v4346 = vxor.u32 %v4330, 2147483648
        %v4347 = vmul.f32 %v4339, 1.442695
        %v4348 = vpow.pop %v4347
        %v4349 = vmul.f32 %v4340, 1.442695
        %v4350 = vpow.pop %v4349
        %v4351 = vmul.f32 %v4341, 1.442695
        %v4352 = vpow.pop %v4351
        %v4353 = vmul.f32 %v4342, 1.442695
        %v4354 = vpow.pop %v4353
        %v4355 = vmul.f32 %v4343, 1.442695
        %v4356 = vpow.pop %v4355
        %v4357 = vmul.f32 %v4344, 1.442695
        %v4358 = vpow.pop %v4357
        %v4359 = vmul.f32 %v4345, 1.442695
        %v4360 = vpow.pop %v4359
        %v4361 = vmul.f32 %v4346, 1.442695
        %v4362 = vpow.pop %v4361
        %v4363 = vadd.f32 %v4348, 1.0
        %v4364 = vadd.f32 %v4350, 1.0
        %v4365 = vadd.f32 %v4352, 1.0
        %v4366 = vadd.f32 %v4354, 1.0
        %v4367 = vadd.f32 %v4356, 1.0
        %v4368 = vadd.f32 %v4358, 1.0
        %v4369 = vadd.f32 %v4360, 1.0
        %v4370 = vadd.f32 %v4362, 1.0
        %v4371 = vrcp.pop %v4363
        %v4372 = vmul.f32 1.0, %v4371
        %v4373 = vrcp.pop %v4364
        %v4374 = vmul.f32 1.0, %v4373
        %v4375 = vrcp.pop %v4365
        %v4376 = vmul.f32 1.0, %v4375
        %v4377 = vrcp.pop %v4366
        %v4378 = vmul.f32 1.0, %v4377
        %v4379 = vrcp.pop %v4367
        %v4380 = vmul.f32 1.0, %v4379
        %v4381 = vrcp.pop %v4368
        %v4382 = vmul.f32 1.0, %v4381
        %v4383 = vrcp.pop %v4369
        %v4384 = vmul.f32 1.0, %v4383
        %v4385 = vrcp.pop %v4370
        %v4386 = vmul.f32 1.0, %v4385
        %v4387 = vmul.f32 %v4284, %v3921
        %v4388 = vmul.f32 %v4286, %v3922
        %v4389 = vmul.f32 %v4288, %v3923
        %v4390 = vmul.f32 %v4290, %v3924
        %v4391 = vmul.f32 %v4292, %v3925
        %v4392 = vmul.f32 %v4294, %v3926
        %v4393 = vmul.f32 %v4296, %v3927
        %v4394 = vmul.f32 %v4298, %v3928
        %v4395 = vmul.f32 %v4212, %v4315
        %v4396 = vmul.f32 %v4214, %v4316
        %v4397 = vmul.f32 %v4216, %v4317
        %v4398 = vmul.f32 %v4218, %v4318
        %v4399 = vmul.f32 %v4220, %v4319
        %v4400 = vmul.f32 %v4222, %v4320
        %v4401 = vmul.f32 %v4224, %v4321
        %v4402 = vmul.f32 %v4226, %v4322
        %v4403 = vadd.f32 %v4387, %v4395
        %v4404 = vadd.f32 %v4388, %v4396
        %v4405 = vadd.f32 %v4389, %v4397
        %v4406 = vadd.f32 %v4390, %v4398
        %v4407 = vadd.f32 %v4391, %v4399
        %v4408 = vadd.f32 %v4392, %v4400
        %v4409 = vadd.f32 %v4393, %v4401
        %v4410 = vadd.f32 %v4394, %v4402
        %v4411 = vtanh.pop %v4403
        %v4412 = vtanh.pop %v4404
        %v4413 = vtanh.pop %v4405
        %v4414 = vtanh.pop %v4406
        %v4415 = vtanh.pop %v4407
        %v4416 = vtanh.pop %v4408
        %v4417 = vtanh.pop %v4409
        %v4418 = vtanh.pop %v4410
        %v4419 = vmul.f32 %v4372, %v4411
        %v4420 = vmul.f32 %v4374, %v4412
        %v4421 = vmul.f32 %v4376, %v4413
        %v4422 = vmul.f32 %v4378, %v4414
        %v4423 = vmul.f32 %v4380, %v4415
        %v4424 = vmul.f32 %v4382, %v4416
        %v4425 = vmul.f32 %v4384, %v4417
        %v4426 = vmul.f32 %v4386, %v4418
        %4427 = vst [vmem:[%s344 + $0x7] sm:$0x1] %v4419
        %4428 = vst [vmem:[%s344 + $0xf] sm:$0x1] %v4420
        %4429 = vst [vmem:[%s344 + $0x17] sm:$0x1] %v4421
        %4430 = vst [vmem:[%s344 + $0x1f] sm:$0x1] %v4422
        %4431 = vst [vmem:[%s344 + $0x27] sm:$0x1] %v4423
        %4432 = vst [vmem:[%s344 + $0x2f] sm:$0x1] %v4424
        %4433 = vst [vmem:[%s344 + $0x37] sm:$0x1] %v4425
        %4434 = vst [vmem:[%s344 + $0x3f] sm:$0x1] %v4426
        %v4443 = vcombine.low %v4419, %v4420
        %v4444 = vcombine.low %v4421, %v4422
        %v4445 = vcombine.low %v4423, %v4424
        %v4446 = vcombine.low %v4425, %v4426
        %v4448 = vunpack.c.l.s4 1966171168
        %v4449 = vunpack.c.0.s8 %v4448
        %v4450 = vlaneseq
        %v4451 = vshrl.u32 %v4450, 7
        %v4452 = vsub.s32 %v4449, %v4451
        %v4453 = vrot.slane %v4443, %v4452
        %v4455 = vunpack.c.l.s4 1966171168
        %v4456 = vunpack.c.0.s8 %v4455
        %v4457 = vlaneseq
        %v4458 = vshrl.u32 %v4457, 7
        %v4459 = vsub.s32 %v4456, %v4458
        %v4460 = vrot.slane %v4444, %v4459
        %v4462 = vunpack.c.l.s4 1966171168
        %v4463 = vunpack.c.0.s8 %v4462
        %v4464 = vlaneseq
        %v4465 = vshrl.u32 %v4464, 7
        %v4466 = vsub.s32 %v4463, %v4465
        %v4467 = vrot.slane %v4445, %v4466
        %v4469 = vunpack.c.l.s4 1966171168
        %v4470 = vunpack.c.0.s8 %v4469
        %v4471 = vlaneseq
        %v4472 = vshrl.u32 %v4471, 7
        %v4473 = vsub.s32 %v4470, %v4472
        %v4474 = vrot.slane %v4446, %v4473
        %v4475 = vcombine.low %v4453, %v4460
        %v4476 = vcombine.low %v4467, %v4474
        %v4478 = vunpack.c.l.s4 1966171168
        %v4479 = vunpack.c.0.s8 %v4478
        %v4480 = vlaneseq
        %v4481 = vshrl.u32 %v4480, 7
        %v4482 = vsub.s32 %v4479, %v4481
        %v4483 = vrot.slane %v4475, %v4482
        %v4485 = vunpack.c.l.s4 1966171168
        %v4486 = vunpack.c.0.s8 %v4485
        %v4487 = vlaneseq
        %v4488 = vshrl.u32 %v4487, 7
        %v4489 = vsub.s32 %v4486, %v4488
        %v4490 = vrot.slane %v4476, %v4489
        %v4491 = vcombine.low %v4483, %v4490
        %4493 = vst [vmem:[#allocation2] sm:$0xff] %v4491
        %v4502 = vcombine.low %v4403, %v4404
        %v4503 = vcombine.low %v4405, %v4406
        %v4504 = vcombine.low %v4407, %v4408
        %v4505 = vcombine.low %v4409, %v4410
        %v4507 = vunpack.c.l.s4 1966171168
        %v4508 = vunpack.c.0.s8 %v4507
        %v4509 = vlaneseq
        %v4510 = vshrl.u32 %v4509, 7
        %v4511 = vsub.s32 %v4508, %v4510
        %v4512 = vrot.slane %v4502, %v4511
        %v4514 = vunpack.c.l.s4 1966171168
        %v4515 = vunpack.c.0.s8 %v4514
        %v4516 = vlaneseq
        %v4517 = vshrl.u32 %v4516, 7
        %v4518 = vsub.s32 %v4515, %v4517
        %v4519 = vrot.slane %v4503, %v4518
        %v4521 = vunpack.c.l.s4 1966171168
        %v4522 = vunpack.c.0.s8 %v4521
        %v4523 = vlaneseq
        %v4524 = vshrl.u32 %v4523, 7
        %v4525 = vsub.s32 %v4522, %v4524
        %v4526 = vrot.slane %v4504, %v4525
        %v4528 = vunpack.c.l.s4 1966171168
        %v4529 = vunpack.c.0.s8 %v4528
        %v4530 = vlaneseq
        %v4531 = vshrl.u32 %v4530, 7
        %v4532 = vsub.s32 %v4529, %v4531
        %v4533 = vrot.slane %v4505, %v4532
        %v4534 = vcombine.low %v4512, %v4519
        %v4535 = vcombine.low %v4526, %v4533
        %v4537 = vunpack.c.l.s4 1966171168
        %v4538 = vunpack.c.0.s8 %v4537
        %v4539 = vlaneseq
        %v4540 = vshrl.u32 %v4539, 7
        %v4541 = vsub.s32 %v4538, %v4540
        %v4542 = vrot.slane %v4534, %v4541
        %v4544 = vunpack.c.l.s4 1966171168
        %v4545 = vunpack.c.0.s8 %v4544
        %v4546 = vlaneseq
        %v4547 = vshrl.u32 %v4546, 7
        %v4548 = vsub.s32 %v4545, %v4547
        %v4549 = vrot.slane %v4535, %v4548
        %v4550 = vcombine.low %v4542, %v4549
        %4552 = vst [vmem:[#allocation3] sm:$0xff] %v4550
        %p4553 = scmp.eq.s32.totalorder %s32, 1
        // Predicated region
        $region57: #{rnnlm_forward.6} parent=35 // pred_check
          %p4554 = pneg %p4553
        $region58: #{rnnlm_forward.6} parent=35 // pred_check_branch
          %4556 = sbr.rel (%p4554) target = $region60
        $region59: #{rnnlm_forward.6} parent=35 // pred_region
          %4557 = vst [vmem:[#allocation13] sm:$0xff] %v4491
          %4558 = vst [vmem:[#allocation15] sm:$0xff] %v4550
        $region60: #{rnnlm_forward.6} parent=35 // pred_fallthru
          _
        %s4559 = sand.u32 %s150, 1
        %s4560 = scalar_lea.sflag [#allocation6], %s4559
        %s4561 = sand.u32 %s150, 1
        %s4562 = smul.addr %s4561, 64
        %s4563 = scalar_lea.vmem [#allocation12], %s4562
        // Predicated region
        $region61: #{rnnlm_forward.6} parent=35 // pred_check
          %p4564 = pneg %p160
        $region62: #{rnnlm_forward.6} parent=35 // pred_check_branch
          %4566 = sbr.rel (%p4564) target = $region64
        $region63: #{rnnlm_forward.6} parent=35 // pred_region
          %s4567 = smul.u32 8, %s31
          %s4569 = ssub.s32 1024, 1024
          %4570 = vsyncadd %s4560, %s4569
          %s4571 = smul.addr %s4567, 2
          %s4572 = sadd.s32 %s32, %s4571
          %s4573 = smul.addr %s4572, 128
          %s4574 = scalar_lea.hbm %s4, %s4573
          %s4575 = sshll.u32 %s4563, 4
          %s4576 = int_to_ptr.vmem [resolvable:$true] %s4575
          %4581 = dma.vmem_to_hbm [thread:$0]  %s4576, 1024, %s4574, %s4560, 128, 256, 8
        $region64: #{rnnlm_forward.6} parent=35 // pred_fallthru
          _
        // Predicated region
        $region65: #{rnnlm_forward.6} parent=35 // pred_check
          %p4582 = pneg %p186
        $region66: #{rnnlm_forward.6} parent=35 // pred_check_branch
          %4584 = sbr.rel (%p4582) target = $region68
        $region67: #{rnnlm_forward.6} parent=35 // pred_region
          %s4586 = ssub.s32 128, 128
          %4587 = vsyncadd [#allocation14], %s4586
          %s4588 = smul.addr %s31, 128
          %s4589 = scalar_lea.hbm %s5, %s4588
          %s4591 = sshll.u32 [#allocation13], 4
          %s4592 = int_to_ptr.vmem [resolvable:$true] %s4591
          %4594 = dma.vmem_to_hbm [thread:$0]  %s4592, 128, %s4589, [#allocation14]
        $region68: #{rnnlm_forward.6} parent=35 // pred_fallthru
          _
        // Predicated region
        $region69: #{rnnlm_forward.6} parent=35 // pred_check
          %p4595 = pneg %p212
        $region70: #{rnnlm_forward.6} parent=35 // pred_check_branch
          %4597 = sbr.rel (%p4595) target = $region72
        $region71: #{rnnlm_forward.6} parent=35 // pred_region
          %s4599 = ssub.s32 128, 128
          %4600 = vsyncadd [#allocation14], %s4599
          %s4601 = smul.addr %s31, 128
          %s4602 = scalar_lea.hbm %s6, %s4601
          %s4604 = sshll.u32 [#allocation15], 4
          %s4605 = int_to_ptr.vmem [resolvable:$true] %s4604
          %4607 = dma.vmem_to_hbm [thread:$0]  %s4605, 128, %s4602, [#allocation14]
        $region72: #{rnnlm_forward.6} parent=35 // pred_fallthru
          _
        // Predicated region
        $region73: #{rnnlm_forward.6} parent=35 // pred_check
          %p4608 = pneg %p186
        $region74: #{rnnlm_forward.6} parent=35 // pred_check_branch
          %4610 = sbr.rel (%p4608) target = $region76
        $region75: #{rnnlm_forward.6} parent=35 // pred_region
          %4611 = dma.done [#allocation14], 128
        $region76: #{rnnlm_forward.6} parent=35 // pred_fallthru
          _
        // Predicated region
        $region77: #{rnnlm_forward.6} parent=35 // pred_check
          %p4612 = pneg %p212
        $region78: #{rnnlm_forward.6} parent=35 // pred_check_branch
          %4614 = sbr.rel (%p4612) target = $region80
        $region79: #{rnnlm_forward.6} parent=35 // pred_region
          %4615 = dma.done [#allocation14], 128
        $region80: #{rnnlm_forward.6} parent=35 // pred_fallthru
          _
      $region36: #{rnnlm_forward.6} parent=5 // pred_fallthru
        _
      %p4616 = scmp.le.s32.totalorder 2, %s22
      // Predicated region
      $region81: #{rnnlm_forward.6} parent=5 // pred_check
        %p4617 = pneg %p4616
      $region82: #{rnnlm_forward.6} parent=5 // pred_check_branch
        %4619 = sbr.rel (%p4617) target = $region84
      $region83: #{rnnlm_forward.6} parent=5 // pred_region
        %s4620 = ssub.s32 %s22, 2
        // Predicated region
        $region85: #{rnnlm_forward.6} parent=83 // pred_check
          %p4621 = pneg %p166
        $region86: #{rnnlm_forward.6} parent=83 // pred_check_branch
          %4623 = sbr.rel (%p4621) target = $region88
        $region87: #{rnnlm_forward.6} parent=83 // pred_region
          %s4624 = sand.u32 %s151, 1
          %s4625 = scalar_lea.sflag [#allocation6], %s4624
          %s4626 = sand.u32 %s151, 1
          %s4627 = smul.addr %s4626, 64
          %s4628 = scalar_lea.vmem [#allocation12], %s4627
          %4629 = dma.done %s4625, 1024
        $region88: #{rnnlm_forward.6} parent=83 // pred_fallthru
          _
      $region84: #{rnnlm_forward.6} parent=5 // pred_fallthru
        _
    $region6: #{rnnlm_forward.6} parent=1 // loop_footer
      %s26 = sadd.s32 1, %s22
    $region7: #{rnnlm_forward.6} parent=1 // loop_footer_branch
      %21 = sbr.rel target = $region3
    $region8: #{rnnlm_forward.6} parent=1 // loop_exit
      _
    %4630 = vsyncpa [#allocation5], 1
    %s4631 = scalar_lea.sflag [#allocation5], 1
    %4632 = vsyncpa %s4631, 1
    %4633 = vsyncpa [#allocation8], 1
    %4634 = vsyncpa [#allocation11], 1
    %4635 = vsyncpa [#allocation6], 1
    %s4636 = scalar_lea.sflag [#allocation6], 1
    %4637 = vsyncpa %s4636, 1
    %4638 = vsyncpa [#allocation14], 1

</llo_original>
